<compile_context>
chip_gen: v7x
topology: tpu7x:2x2x1
jax: 0.10.0
libtpu: 0.0.40
codegen_flags: <defaults>
</compile_context>

<pallas_src>
import functools
import math

import jax
import jax.numpy as jnp
from jax import lax
from jax.experimental import pallas as pl
from jax.experimental.pallas import tpu as pltpu

_VMEM_LIMIT = 32 * 1024 * 1024  # valid on v5e / v6e / v7x


# ----------------------------------------------------------------------------
# helpers
# ----------------------------------------------------------------------------

def _largest_divisor_leq(n, cap):
    best = 1
    for c in range(1, n + 1):
        if n % c == 0 and c <= cap:
            best = c
    return best


def _tap_slab(xp_ref, row0, th, wd):
    """Assemble the (th*wd, 9*Cin) shifted-tap slab for a 3x3 conv tile.

    xp_ref: (1, H+2, W+2, Cin) padded NHWC image (bf16), resident per batch.
    Column order is (tap-major, then cin), matching the packed weights.
    """
    taps = []
    for ky in range(3):
        for kx in range(3):
            taps.append(xp_ref[0, pl.ds(row0 + ky, th), pl.ds(kx, wd), :])
    slab = jnp.concatenate(taps, axis=-1)          # (th, wd, 9*Cin), lane concat
    return slab.reshape(th * wd, slab.shape[-1])   # single cheap reshape


# ----------------------------------------------------------------------------
# Pallas kernels
# ----------------------------------------------------------------------------

def _conv1_stats_kernel(xp_ref, w_ref, b_ref, o_ref, st_ref, *, th, wd):
    """conv_1 (3x3 Conv2d_cd folded) + bias, single K=9*Cin matmul.
    Also accumulates per-batch HIN statistics (sum, sum-of-squares) into a
    resident f32 output across the 'arbitrary' row-tile axis."""
    i = pl.program_id(1)
    row0 = pl.multiple_of(i * th, th)
    slab = _tap_slab(xp_ref, row0, th, wd)                          # (th*wd, 9*Cin)
    y = jnp.dot(slab, w_ref[...], preferred_element_type=jnp.float32) + b_ref[...]
    yq = y.astype(o_ref.dtype)
    o_ref[0] = yq

    @pl.when(i == 0)
    def _():
        st_ref[...] = jnp.zeros_like(st_ref)

    # stats on the bf16-rounded activations (exactly what the HIN pass reads)
    yf = yq.astype(jnp.float32)
    s = jnp.sum(yf, axis=0, keepdims=True)                          # (1, C)
    ss = jnp.sum(yf * yf, axis=0, keepdims=True)                    # (1, C)
    st_ref[0] += jnp.concatenate([s, ss], axis=0)                   # (2, C)


def _hin_pad_kernel(x_ref, st_ref, g_ref, bt_ref, op_ref, *, th, wd, hw, slope):
    """Half-Instance-Norm (affine, eps=1e-5 on first C//2 channels) + LeakyReLU,
    written directly into a zero-bordered (1, H+2, W+2, C) padded image so the
    following conv needs no XLA pad round trip."""
    i = pl.program_id(1)
    C = x_ref.shape[2]

    @pl.when(i == 0)
    def _():
        op_ref[...] = jnp.zeros_like(op_ref)       # zero borders once per batch

    mu = st_ref[0, 0:1, :] * (1.0 / hw)                             # (1, C)
    ex2 = st_ref[0, 1:2, :] * (1.0 / hw)
    var = jnp.maximum(ex2 - mu * mu, 0.0)                           # clamp (review)
    inv = lax.rsqrt(var + 1e-5)

    first = lax.broadcasted_iota(jnp.int32, (1, C), 1) < (C // 2)
    g = g_ref[...]
    scale = jnp.where(first, inv * g, 1.0)
    shift = jnp.where(first, bt_ref[...] - mu * inv * g, 0.0)

    y = x_ref[0].astype(jnp.float32) * scale + shift
    y = jnp.where(y >= 0.0, y, slope * y)                           # fused LeakyReLU

    y3 = y.reshape(th, wd, C).astype(op_ref.dtype)
    zc = jnp.zeros((th, 1, C), op_ref.dtype)
    row0 = pl.multiple_of(i * th, th)
    # full-width (W+2) store at a row offset only -> lane/sublane aligned store
    op_ref[0, pl.ds(row0 + 1, th), :, :] = jnp.concatenate([zc, y3, zc], axis=1)


def _conv2_res_kernel(op_ref, res_ref, w_ref, b_ref, o_ref, *, th, wd, slope):
    """conv_2 (3x3 folded, single K=9*Cmid matmul) + bias + LeakyReLU +
    precomputed identity-conv residual add."""
    row0 = pl.multiple_of(pl.program_id(1) * th, th)
    slab = _tap_slab(op_ref, row0, th, wd)                          # (th*wd, 9*Cmid)
    y = jnp.dot(slab, w_ref[...], preferred_element_type=jnp.float32) + b_ref[...]
    y = jnp.where(y >= 0.0, y, slope * y)                           # fused LeakyReLU
    y = y + res_ref[0].astype(jnp.float32)                          # residual add
    o_ref[0] = y.astype(o_ref.dtype)


# ----------------------------------------------------------------------------
# pallas_call wrappers
# ----------------------------------------------------------------------------

def conv1_stats(xp, w, b, *, th):
    B, hp2, wp2, cin = xp.shape
    H, W = hp2 - 2, wp2 - 2
    cout = w.shape[1]
    nt = H // th
    kern = functools.partial(_conv1_stats_kernel, th=th, wd=W)
    return pl.pallas_call(
        kern,
        out_shape=(jax.ShapeDtypeStruct((B, H * W, cout), jnp.bfloat16),
                   jax.ShapeDtypeStruct((B, 2, cout), jnp.float32)),
        grid=(B, nt),
        in_specs=[
            pl.BlockSpec((1, hp2, wp2, cin), lambda b, i: (b, 0, 0, 0)),  # resident per batch
            pl.BlockSpec((9 * cin, cout), lambda b, i: (0, 0)),
            pl.BlockSpec((1, cout), lambda b, i: (0, 0)),
        ],
        out_specs=(pl.BlockSpec((1, th * W, cout), lambda b, i: (b, i, 0)),
                   pl.BlockSpec((1, 2, cout), lambda b, i: (b, 0, 0))),   # resident stats acc
        compiler_params=pltpu.CompilerParams(
            dimension_semantics=("parallel", "arbitrary"),
            vmem_limit_bytes=_VMEM_LIMIT),
    )(xp, w, b)


def hin_pad(out1, stats, gamma_full, beta_full, *, H, W, th, slope):
    B, hw, C = out1.shape
    nt = H // th
    kern = functools.partial(_hin_pad_kernel, th=th, wd=W, hw=hw, slope=slope)
    return pl.pallas_call(
        kern,
        out_shape=jax.ShapeDtypeStruct((B, H + 2, W + 2, C), jnp.bfloat16),
        grid=(B, nt),
        in_specs=[
            pl.BlockSpec((1, th * W, C), lambda b, i: (b, i, 0)),
            pl.BlockSpec((1, 2, C), lambda b, i: (b, 0, 0)),
            pl.BlockSpec((1, C), lambda b, i: (0, 0)),
            pl.BlockSpec((1, C), lambda b, i: (0, 0)),
        ],
        out_specs=pl.BlockSpec((1, H + 2, W + 2, C), lambda b, i: (b, 0, 0, 0)),
        compiler_params=pltpu.CompilerParams(
            dimension_semantics=("parallel", "arbitrary"),
            vmem_limit_bytes=_VMEM_LIMIT),
    )(out1, stats, gamma_full, beta_full)


def conv2_res(outp, res, w, b, *, th, slope):
    B, hp2, wp2, cmid = outp.shape
    H, W = hp2 - 2, wp2 - 2
    cout = w.shape[1]
    nt = H // th
    kern = functools.partial(_conv2_res_kernel, th=th, wd=W, slope=slope)
    return pl.pallas_call(
        kern,
        out_shape=jax.ShapeDtypeStruct((B, H * W, cout), jnp.float32),
        grid=(B, nt),
        in_specs=[
            pl.BlockSpec((1, hp2, wp2, cmid), lambda b, i: (b, 0, 0, 0)),  # padded HIN output
            pl.BlockSpec((1, th * W, cout), lambda b, i: (b, i, 0)),       # residual tile
            pl.BlockSpec((9 * cmid, cout), lambda b, i: (0, 0)),
            pl.BlockSpec((1, cout), lambda b, i: (0, 0)),
        ],
        out_specs=pl.BlockSpec((1, th * W, cout), lambda b, i: (b, i, 0)),
        compiler_params=pltpu.CompilerParams(
            dimension_semantics=("parallel", "parallel"),
            vmem_limit_bytes=_VMEM_LIMIT),
    )(outp, res, w, b)


# ----------------------------------------------------------------------------
# HINConvBlock forward
# ----------------------------------------------------------------------------

def hin_conv_block(params, x_nchw, relu_slope=0.2):
    """HINConvBlock.forward (use_HIN=True).  The `downsample` conv declared in
    __init__ is never applied in forward(), so it is not implemented here."""
    B, cin, H, W = x_nchw.shape
    cout = params["b1"].shape[-1]
    x = jnp.transpose(x_nchw, (0, 2, 3, 1)).astype(jnp.bfloat16)          # NHWC bf16
    th = _largest_divisor_leq(H, max(1, 2048 // max(W, 1)))               # ~2048-row tiles

    # cheap: only Cin channels go through the pad
    xp = jnp.pad(x, ((0, 0), (1, 1), (1, 1), (0, 0)))
    # identity 1x1 conv (theta-folded) as one dense XLA matmul -> bf16 residual
    res = jnp.einsum('bhwc,co->bhwo', x, params["wid"],
                     preferred_element_type=jnp.float32)
    res = res.reshape(B, H * W, cout).astype(jnp.bfloat16)

    out1, stats = conv1_stats(xp, params["w1"], params["b1"], th=th)
    outp = hin_pad(out1, stats, params["gamma"], params["beta"],
                   H=H, W=W, th=th, slope=relu_slope)                     # padded, bf16
    y = conv2_res(outp, res, params["w2"], params["b2"], th=th,
                  slope=relu_slope)                                        # (B, H*W, Cout) f32
    return jnp.transpose(y.reshape(B, H, W, cout), (0, 3, 1, 2))


# ----------------------------------------------------------------------------
# parameter init (PyTorch-like fan-in uniform) + Conv2d_cd theta folding
# ----------------------------------------------------------------------------

def init_params(key, in_size, out_size, theta=0.7):
    ks = jax.random.split(key, 5)

    def unif(rng, shape, fan_in):
        bound = 1.0 / math.sqrt(fan_in)
        return jax.random.uniform(rng, shape, jnp.float32, -bound, bound)

    w1 = unif(ks[0], (out_size, in_size, 3, 3), in_size * 9)
    b1 = unif(ks[1], (out_size,), in_size * 9)
    w2 = unif(ks[2], (out_size, out_size, 3, 3), out_size * 9)
    b2 = unif(ks[3], (out_size,), out_size * 9)
    wi = unif(ks[4], (out_size, in_size, 1, 1), in_size)
    gamma = jnp.ones((out_size // 2,), jnp.float32)
    beta = jnp.zeros((out_size // 2,), jnp.float32)

    rparams = {"w1": w1, "b1": b1, "w2": w2, "b2": b2, "wid": wi,
               "gamma": gamma, "beta": beta, "theta": theta}

    def fold3(w, b):
        # Conv2d_cd: conv(x,w)+b - theta*(conv1x1(x, w.sum(2,3)) + b)
        #          = conv(x, w_folded) + (1-theta)*b   (exact, incl. borders)
        kd = w.sum(axis=(2, 3))
        wf = w.at[:, :, 1, 1].add(-theta * kd)
        return wf, (1.0 - theta) * b

    def pack(w):   # (Cout, Cin, 3, 3) -> (9*Cin, Cout), rows ordered (ky, kx, cin)
        return jnp.transpose(w, (2, 3, 1, 0)).reshape(
            9 * w.shape[1], w.shape[0]).astype(jnp.bfloat16)

    w1f, b1f = fold3(w1, b1)
    w2f, b2f = fold3(w2, b2)
    widf = ((1.0 - theta) * wi[:, :, 0, 0]).T.astype(jnp.bfloat16)        # (Cin, Cout)

    half = out_size // 2
    g_full = jnp.concatenate([gamma, jnp.ones((out_size - half,), jnp.float32)]
                             ).reshape(1, out_size)
    b_full = jnp.concatenate([beta, jnp.zeros((out_size - half,), jnp.float32)]
                             ).reshape(1, out_size)

    kparams = {"w1": pack(w1f), "b1": b1f.reshape(1, -1),
               "w2": pack(w2f), "b2": b2f.reshape(1, -1),
               "wid": widf, "gamma": g_full, "beta": b_full}
    return kparams, rparams


# ----------------------------------------------------------------------------
# pure-JAX f32 reference (implements Conv2d_cd literally, no folding)
# ----------------------------------------------------------------------------

def _conv2d_cd_ref(x, w, b, theta, pad):
    dn = ("NCHW", "OIHW", "NCHW")
    y = lax.conv_general_dilated(x, w, (1, 1), ((pad, pad), (pad, pad)),
                                 dimension_numbers=dn,
                                 precision=lax.Precision.HIGHEST)
    kd = w.sum(axis=(2, 3))[:, :, None, None]
    yd = lax.conv_general_dilated(x, kd, (1, 1), ((0, 0), (0, 0)),
                                  dimension_numbers=dn,
                                  precision=lax.Precision.HIGHEST)
    if b is not None:
        y = y + b[None, :, None, None]
        yd = yd + b[None, :, None, None]
    return y - theta * yd


def reference_forward(rp, x, relu_slope=0.2):
    theta = rp["theta"]
    out = _conv2d_cd_ref(x, rp["w1"], rp["b1"], theta, 1)
    half = out.shape[1] // 2
    o1, o2 = out[:, :half], out[:, half:]
    mu = o1.mean(axis=(2, 3), keepdims=True)
    var = ((o1 - mu) ** 2).mean(axis=(2, 3), keepdims=True)
    o1 = (o1 - mu) * lax.rsqrt(var + 1e-5)
    o1 = o1 * rp["gamma"][None, :, None, None] + rp["beta"][None, :, None, None]
    out = jnp.concatenate([o1, o2], axis=1)
    out = jnp.where(out >= 0, out, relu_slope * out)
    out = _conv2d_cd_ref(out, rp["w2"], rp["b2"], theta, 1)
    out = jnp.where(out >= 0, out, relu_slope * out)
    return out + _conv2d_cd_ref(x, rp["wid"], None, theta, 0)


# ----------------------------------------------------------------------------
# main
# ----------------------------------------------------------------------------

if __name__ == "__main__":
    key = jax.random.PRNGKey(0)
    kx, kp = jax.random.split(key)
    B, Cin, H, W = 2, 4, 16, 16
    Cout = 128          # >=128 keeps every conv output store lane-dense

    x = jax.random.normal(kx, (B, Cin, H, W), jnp.float32)
    kparams, rparams = init_params(kp, Cin, Cout)

    fwd = jax.jit(hin_conv_block)
    y = jax.block_until_ready(fwd(kparams, x))
    assert y.shape == (B, Cout, H, W), y.shape
    assert bool(jnp.all(jnp.isfinite(y)))

    # Correctness vs. a pure-JAX f32 reference.  The Pallas path quantizes
    # activations/weights to bf16 (f32 accumulation), so compare against the
    # bf16-rounded input with a bf16-appropriate tolerance.
    x_q = x.astype(jnp.bfloat16).astype(jnp.float32)
    ref = reference_forward(rparams, x_q)
    err = float(jnp.max(jnp.abs(y - ref)))
    scale = float(jnp.max(jnp.abs(ref)))
    assert err <= 0.05 * scale + 0.05, (err, scale)

    print("KERNEL_OK")
</pallas_src>

<mosaic_0001>
module attributes {stable_mosaic.version = 11 : i64} {
  func.func @_hin_pad_kernel(%arg0: i32, %arg1: i32, %arg2: memref<1x256x128xbf16, #tpu.memory_space<vmem>>, %arg3: memref<1x2x128xf32, #tpu.memory_space<vmem>>, %arg4: memref<1x128xf32, #tpu.memory_space<vmem>>, %arg5: memref<1x128xf32, #tpu.memory_space<vmem>>, %arg6: memref<1x18x18x128xbf16, #tpu.memory_space<vmem>>) attributes {dimension_semantics = [#tpu.dimension_semantics<parallel>, #tpu.dimension_semantics<arbitrary>], iteration_bounds = array<i64: 2, 1>, scalar_prefetch = 0 : i64, scratch_operands = 0 : i64, tpu.core_type = #tpu.core_type<tc>, window_params = [{transform_indices = @transform_0, window_bounds = array<i64: 1, 256, 128>}, {transform_indices = @transform_1, window_bounds = array<i64: 1, 2, 128>}, {pipeline_mode = #tpu.pipeline_mode<synchronous>, transform_indices = @transform_2, window_bounds = array<i64: 1, 128>}, {pipeline_mode = #tpu.pipeline_mode<synchronous>, transform_indices = @transform_3, window_bounds = array<i64: 1, 128>}, {transform_indices = @transform_4, window_bounds = array<i64: 1, 18, 18, 128>}]} {
    %c0_i32 = arith.constant 0 : i32
    %0 = arith.cmpi eq, %arg1, %c0_i32 : i32
    %1 = arith.extui %0 : i1 to i32
    %c0_i32_0 = arith.constant 0 : i32
    %2 = arith.cmpi ne, %1, %c0_i32_0 : i32
    scf.if %2 {
      %cst_23 = arith.constant 0.000000e+00 : bf16
      %54 = vector.broadcast %cst_23 : bf16 to vector<1x18x18x128xbf16>
      %c0_24 = arith.constant 0 : index
      %c0_25 = arith.constant 0 : index
      %c0_26 = arith.constant 0 : index
      %c0_27 = arith.constant 0 : index
      %55 = vector.load %arg6[%c0_24, %c0_25, %c0_26, %c0_27] : memref<1x18x18x128xbf16, #tpu.memory_space<vmem>>, vector<1x18x18x128xbf16>
      tpu.vector_store %arg6[%c0_24, %c0_25, %c0_26, %c0_27], %54 {strides = array<i32>} : memref<1x18x18x128xbf16, #tpu.memory_space<vmem>>, vector<1x18x18x128xbf16>,
    } else {
    }
    %c0 = arith.constant 0 : index
    %c0_1 = arith.constant 0 : index
    %c0_2 = arith.constant 0 : index
    %3 = vector.load %arg3[%c0, %c0_1, %c0_2] : memref<1x2x128xf32, #tpu.memory_space<vmem>>, vector<1x1x128xf32>
    %4 = vector.shape_cast %3 : vector<1x1x128xf32> to vector<1x128xf32>
    %cst = arith.constant 3.906250e-03 : f32
    %5 = vector.broadcast %cst : f32 to vector<1x128xf32>
    %6 = arith.mulf %4, %5 : vector<1x128xf32>
    %c0_3 = arith.constant 0 : index
    %c1 = arith.constant 1 : index
    %c0_4 = arith.constant 0 : index
    %7 = vector.load %arg3[%c0_3, %c1, %c0_4] : memref<1x2x128xf32, #tpu.memory_space<vmem>>, vector<1x1x128xf32>
    %8 = vector.shape_cast %7 : vector<1x1x128xf32> to vector<1x128xf32>
    %cst_5 = arith.constant 3.906250e-03 : f32
    %9 = vector.broadcast %cst_5 : f32 to vector<1x128xf32>
    %10 = arith.mulf %8, %9 : vector<1x128xf32>
    %11 = arith.mulf %6, %6 : vector<1x128xf32>
    %12 = arith.subf %10, %11 : vector<1x128xf32>
    %cst_6 = arith.constant 0.000000e+00 : f32
    %13 = vector.broadcast %cst_6 : f32 to vector<1x128xf32>
    %14 = arith.maximumf %12, %13 : vector<1x128xf32>
    %cst_7 = arith.constant 9.99999974E-6 : f32
    %15 = vector.broadcast %cst_7 : f32 to vector<1x128xf32>
    %16 = arith.addf %14, %15 : vector<1x128xf32>
    %17 = math.rsqrt %16 : vector<1x128xf32>
    %18 = tpu.iota {dimensions = array<i32: 1>} : vector<1x128xi32>
    %c64_i32 = arith.constant 64 : i32
    %19 = vector.broadcast %c64_i32 : i32 to vector<1x128xi32>
    %20 = arith.cmpi slt, %18, %19 : vector<1x128xi32>
    %c0_8 = arith.constant 0 : index
    %c0_9 = arith.constant 0 : index
    %21 = vector.load %arg4[%c0_8, %c0_9] : memref<1x128xf32, #tpu.memory_space<vmem>>, vector<1x128xf32>
    %22 = arith.mulf %17, %21 : vector<1x128xf32>
    %cst_10 = arith.constant 1.000000e+00 : f32
    %23 = vector.broadcast %cst_10 : f32 to vector<1x128xf32>
    %24 = arith.select %20, %22, %23 : vector<1x128xi1>, vector<1x128xf32>
    %c0_11 = arith.constant 0 : index
    %c0_12 = arith.constant 0 : index
    %25 = vector.load %arg5[%c0_11, %c0_12] : memref<1x128xf32, #tpu.memory_space<vmem>>, vector<1x128xf32>
    %26 = arith.mulf %6, %17 : vector<1x128xf32>
    %27 = arith.mulf %26, %21 : vector<1x128xf32>
    %28 = arith.subf %25, %27 : vector<1x128xf32>
    %cst_13 = arith.constant 0.000000e+00 : f32
    %29 = vector.broadcast %cst_13 : f32 to vector<1x128xf32>
    %30 = arith.select %20, %28, %29 : vector<1x128xi1>, vector<1x128xf32>
    %c0_14 = arith.constant 0 : index
    %c0_15 = arith.constant 0 : index
    %c0_16 = arith.constant 0 : index
    %31 = vector.load %arg2[%c0_14, %c0_15, %c0_16] : memref<1x256x128xbf16, #tpu.memory_space<vmem>>, vector<1x256x128xbf16>
    %32 = vector.shape_cast %31 : vector<1x256x128xbf16> to vector<256x128xbf16>
    %33 = arith.extf %32 : vector<256x128xbf16> to vector<256x128xf32>
    %34 = vector.broadcast %24 : vector<1x128xf32> to vector<256x128xf32>
    %35 = arith.mulf %33, %34 : vector<256x128xf32>
    %36 = vector.broadcast %30 : vector<1x128xf32> to vector<256x128xf32>
    %37 = arith.addf %35, %36 : vector<256x128xf32>
    %cst_17 = arith.constant 0.000000e+00 : f32
    %38 = vector.broadcast %cst_17 : f32 to vector<256x128xf32>
    %39 = arith.cmpf oge, %37, %38 : vector<256x128xf32>
    %cst_18 = arith.constant 2.000000e-01 : f32
    %40 = vector.broadcast %cst_18 : f32 to vector<256x128xf32>
    %41 = arith.mulf %40, %37 : vector<256x128xf32>
    %42 = arith.select %39, %37, %41 : vector<256x128xi1>, vector<256x128xf32>
    %43 = vector.shape_cast %42 : vector<256x128xf32> to vector<16x16x128xf32>
    %44 = arith.truncf %43 : vector<16x16x128xf32> to vector<16x16x128xbf16>
    %cst_19 = arith.constant 0.000000e+00 : bf16
    %45 = vector.broadcast %cst_19 : bf16 to vector<16x1x128xbf16>
    %c16_i32 = arith.constant 16 : i32
    %46 = arith.muli %arg1, %c16_i32 : i32
    %47 = tpu.assume_multiple %46, 16 : i32
    %48 = tpu.concatenate %45, %44, %45 in 1 : vector<16x1x128xbf16>, vector<16x16x128xbf16>, vector<16x1x128xbf16> -> vector<16x18x128xbf16>
    %c1_i32 = arith.constant 1 : i32
    %49 = arith.addi %47, %c1_i32 : i32
    %c0_20 = arith.constant 0 : index
    %50 = arith.index_cast %49 : i32 to index
    %c0_21 = arith.constant 0 : index
    %c0_22 = arith.constant 0 : index
    %51 = vector.load %arg6[%c0_20, %50, %c0_21, %c0_22] : memref<1x18x18x128xbf16, #tpu.memory_space<vmem>>, vector<1x16x18x128xbf16>
    %52 = vector.shape_cast %51 : vector<1x16x18x128xbf16> to vector<16x18x128xbf16>
    %53 = vector.shape_cast %48 : vector<16x18x128xbf16> to vector<1x16x18x128xbf16>
    tpu.vector_store %arg6[%c0_20, %50, %c0_21, %c0_22], %53 {strides = array<i32>} : memref<1x18x18x128xbf16, #tpu.memory_space<vmem>>, vector<1x16x18x128xbf16>,
    return
  }
  func.func @transform_0(%arg0: i32, %arg1: i32) -> (i32, i32, i32) {
    %c0_i32 = arith.constant 0 : i32
    %c0_i32_0 = arith.constant 0 : i32
    return %arg0, %arg1, %c0_i32 : i32, i32, i32
  }
  func.func @transform_1(%arg0: i32, %arg1: i32) -> (i32, i32, i32) {
    %c0_i32 = arith.constant 0 : i32
    %c0_i32_0 = arith.constant 0 : i32
    %c0_i32_1 = arith.constant 0 : i32
    return %arg0, %c0_i32, %c0_i32_0 : i32, i32, i32
  }
  func.func @transform_2(%arg0: i32, %arg1: i32) -> (i32, i32) {
    %c0_i32 = arith.constant 0 : i32
    %c0_i32_0 = arith.constant 0 : i32
    %c0_i32_1 = arith.constant 0 : i32
    return %c0_i32, %c0_i32_0 : i32, i32
  }
  func.func @transform_3(%arg0: i32, %arg1: i32) -> (i32, i32) {
    %c0_i32 = arith.constant 0 : i32
    %c0_i32_0 = arith.constant 0 : i32
    %c0_i32_1 = arith.constant 0 : i32
    return %c0_i32, %c0_i32_0 : i32, i32
  }
  func.func @transform_4(%arg0: i32, %arg1: i32) -> (i32, i32, i32, i32) {
    %c0_i32 = arith.constant 0 : i32
    %c0_i32_0 = arith.constant 0 : i32
    %c0_i32_1 = arith.constant 0 : i32
    %c0_i32_2 = arith.constant 0 : i32
    return %arg0, %c0_i32, %c0_i32_0, %c0_i32_1 : i32, i32, i32, i32
  }
}

module attributes {stable_mosaic.version = 11 : i64} {
  func.func @_conv1_stats_kernel(%arg0: i32, %arg1: i32, %arg2: memref<1x18x18x4xbf16, #tpu.memory_space<vmem>>, %arg3: memref<36x128xbf16, #tpu.memory_space<vmem>>, %arg4: memref<1x128xf32, #tpu.memory_space<vmem>>, %arg5: memref<1x256x128xbf16, #tpu.memory_space<vmem>>, %arg6: memref<1x2x128xf32, #tpu.memory_space<vmem>>) attributes {dimension_semantics = [#tpu.dimension_semantics<parallel>, #tpu.dimension_semantics<arbitrary>], iteration_bounds = array<i64: 2, 1>, scalar_prefetch = 0 : i64, scratch_operands = 0 : i64, tpu.core_type = #tpu.core_type<tc>, window_params = [{transform_indices = @transform_0, window_bounds = array<i64: 1, 18, 18, 4>}, {pipeline_mode = #tpu.pipeline_mode<synchronous>, transform_indices = @transform_1, window_bounds = array<i64: 36, 128>}, {pipeline_mode = #tpu.pipeline_mode<synchronous>, transform_indices = @transform_2, window_bounds = array<i64: 1, 128>}, {transform_indices = @transform_3, window_bounds = array<i64: 1, 256, 128>}, {transform_indices = @transform_4, window_bounds = array<i64: 1, 2, 128>}]} {
    %c16_i32 = arith.constant 16 : i32
    %0 = arith.muli %arg1, %c16_i32 : i32
    %1 = tpu.assume_multiple %0, 16 : i32
    %c0_i32 = arith.constant 0 : i32
    %2 = arith.addi %1, %c0_i32 : i32
    %c0 = arith.constant 0 : index
    %3 = arith.index_cast %2 : i32 to index
    %c0_0 = arith.constant 0 : index
    %c0_1 = arith.constant 0 : index
    %4 = vector.load %arg2[%c0, %3, %c0_0, %c0_1] : memref<1x18x18x4xbf16, #tpu.memory_space<vmem>>, vector<1x16x16x4xbf16>
    %5 = vector.shape_cast %4 : vector<1x16x16x4xbf16> to vector<16x16x4xbf16>
    %c0_i32_2 = arith.constant 0 : i32
    %6 = arith.addi %1, %c0_i32_2 : i32
    %c0_3 = arith.constant 0 : index
    %7 = arith.index_cast %6 : i32 to index
    %c1 = arith.constant 1 : index
    %c0_4 = arith.constant 0 : index
    %8 = vector.load %arg2[%c0_3, %7, %c1, %c0_4] : memref<1x18x18x4xbf16, #tpu.memory_space<vmem>>, vector<1x16x16x4xbf16>
    %9 = vector.shape_cast %8 : vector<1x16x16x4xbf16> to vector<16x16x4xbf16>
    %c0_i32_5 = arith.constant 0 : i32
    %10 = arith.addi %1, %c0_i32_5 : i32
    %c0_6 = arith.constant 0 : index
    %11 = arith.index_cast %10 : i32 to index
    %c2 = arith.constant 2 : index
    %c0_7 = arith.constant 0 : index
    %12 = vector.load %arg2[%c0_6, %11, %c2, %c0_7] : memref<1x18x18x4xbf16, #tpu.memory_space<vmem>>, vector<1x16x16x4xbf16>
    %13 = vector.shape_cast %12 : vector<1x16x16x4xbf16> to vector<16x16x4xbf16>
    %c1_i32 = arith.constant 1 : i32
    %14 = arith.addi %1, %c1_i32 : i32
    %c0_8 = arith.constant 0 : index
    %15 = arith.index_cast %14 : i32 to index
    %c0_9 = arith.constant 0 : index
    %c0_10 = arith.constant 0 : index
    %16 = vector.load %arg2[%c0_8, %15, %c0_9, %c0_10] : memref<1x18x18x4xbf16, #tpu.memory_space<vmem>>, vector<1x16x16x4xbf16>
    %17 = vector.shape_cast %16 : vector<1x16x16x4xbf16> to vector<16x16x4xbf16>
    %c1_i32_11 = arith.constant 1 : i32
    %18 = arith.addi %1, %c1_i32_11 : i32
    %c0_12 = arith.constant 0 : index
    %19 = arith.index_cast %18 : i32 to index
    %c1_13 = arith.constant 1 : index
    %c0_14 = arith.constant 0 : index
    %20 = vector.load %arg2[%c0_12, %19, %c1_13, %c0_14] : memref<1x18x18x4xbf16, #tpu.memory_space<vmem>>, vector<1x16x16x4xbf16>
    %21 = vector.shape_cast %20 : vector<1x16x16x4xbf16> to vector<16x16x4xbf16>
    %c1_i32_15 = arith.constant 1 : i32
    %22 = arith.addi %1, %c1_i32_15 : i32
    %c0_16 = arith.constant 0 : index
    %23 = arith.index_cast %22 : i32 to index
    %c2_17 = arith.constant 2 : index
    %c0_18 = arith.constant 0 : index
    %24 = vector.load %arg2[%c0_16, %23, %c2_17, %c0_18] : memref<1x18x18x4xbf16, #tpu.memory_space<vmem>>, vector<1x16x16x4xbf16>
    %25 = vector.shape_cast %24 : vector<1x16x16x4xbf16> to vector<16x16x4xbf16>
    %c2_i32 = arith.constant 2 : i32
    %26 = arith.addi %1, %c2_i32 : i32
    %c0_19 = arith.constant 0 : index
    %27 = arith.index_cast %26 : i32 to index
    %c0_20 = arith.constant 0 : index
    %c0_21 = arith.constant 0 : index
    %28 = vector.load %arg2[%c0_19, %27, %c0_20, %c0_21] : memref<1x18x18x4xbf16, #tpu.memory_space<vmem>>, vector<1x16x16x4xbf16>
    %29 = vector.shape_cast %28 : vector<1x16x16x4xbf16> to vector<16x16x4xbf16>
    %c2_i32_22 = arith.constant 2 : i32
    %30 = arith.addi %1, %c2_i32_22 : i32
    %c0_23 = arith.constant 0 : index
    %31 = arith.index_cast %30 : i32 to index
    %c1_24 = arith.constant 1 : index
    %c0_25 = arith.constant 0 : index
    %32 = vector.load %arg2[%c0_23, %31, %c1_24, %c0_25] : memref<1x18x18x4xbf16, #tpu.memory_space<vmem>>, vector<1x16x16x4xbf16>
    %33 = vector.shape_cast %32 : vector<1x16x16x4xbf16> to vector<16x16x4xbf16>
    %c2_i32_26 = arith.constant 2 : i32
    %34 = arith.addi %1, %c2_i32_26 : i32
    %c0_27 = arith.constant 0 : index
    %35 = arith.index_cast %34 : i32 to index
    %c2_28 = arith.constant 2 : index
    %c0_29 = arith.constant 0 : index
    %36 = vector.load %arg2[%c0_27, %35, %c2_28, %c0_29] : memref<1x18x18x4xbf16, #tpu.memory_space<vmem>>, vector<1x16x16x4xbf16>
    %37 = vector.shape_cast %36 : vector<1x16x16x4xbf16> to vector<16x16x4xbf16>
    %38 = tpu.concatenate %5, %9, %13, %17, %21, %25, %29, %33, %37 in 2 : vector<16x16x4xbf16>, vector<16x16x4xbf16>, vector<16x16x4xbf16>, vector<16x16x4xbf16>, vector<16x16x4xbf16>, vector<16x16x4xbf16>, vector<16x16x4xbf16>, vector<16x16x4xbf16>, vector<16x16x4xbf16> -> vector<16x16x36xbf16>
    %39 = vector.shape_cast %38 : vector<16x16x36xbf16> to vector<256x36xbf16>
    %c0_30 = arith.constant 0 : index
    %c0_31 = arith.constant 0 : index
    %40 = vector.load %arg3[%c0_30, %c0_31] : memref<36x128xbf16, #tpu.memory_space<vmem>>, vector<36x128xbf16>
    %cst = arith.constant dense<0.000000e+00> : vector<256x128xf32>
    %41 = tpu.matmul %39, %40, %cst {dimension_numbers = #tpu.dot_dimension_numbers<[1], [0], [0], [1], [0, 0, 1, 1], [], []>} : vector<256x36xbf16>, vector<36x128xbf16>, vector<256x128xf32> -> vector<256x128xf32>
    %c0_32 = arith.constant 0 : index
    %c0_33 = arith.constant 0 : index
    %42 = vector.load %arg4[%c0_32, %c0_33] : memref<1x128xf32, #tpu.memory_space<vmem>>, vector<1x128xf32>
    %43 = vector.broadcast %42 : vector<1x128xf32> to vector<256x128xf32>
    %44 = arith.addf %41, %43 : vector<256x128xf32>
    %45 = arith.truncf %44 : vector<256x128xf32> to vector<256x128xbf16>
    %c0_34 = arith.constant 0 : index
    %c0_35 = arith.constant 0 : index
    %c0_36 = arith.constant 0 : index
    %46 = vector.load %arg5[%c0_34, %c0_35, %c0_36] : memref<1x256x128xbf16, #tpu.memory_space<vmem>>, vector<1x256x128xbf16>
    %47 = vector.shape_cast %46 : vector<1x256x128xbf16> to vector<256x128xbf16>
    %48 = vector.shape_cast %45 : vector<256x128xbf16> to vector<1x256x128xbf16>
    tpu.vector_store %arg5[%c0_34, %c0_35, %c0_36], %48 {strides = array<i32>} : memref<1x256x128xbf16, #tpu.memory_space<vmem>>, vector<1x256x128xbf16>,
    %c0_i32_37 = arith.constant 0 : i32
    %49 = arith.cmpi eq, %arg1, %c0_i32_37 : i32
    %50 = arith.extui %49 : i1 to i32
    %c0_i32_38 = arith.constant 0 : i32
    %51 = arith.cmpi ne, %50, %c0_i32_38 : i32
    scf.if %51 {
      %cst_47 = arith.constant 0.000000e+00 : f32
      %65 = vector.broadcast %cst_47 : f32 to vector<1x2x128xf32>
      %c0_48 = arith.constant 0 : index
      %c0_49 = arith.constant 0 : index
      %c0_50 = arith.constant 0 : index
      %66 = vector.load %arg6[%c0_48, %c0_49, %c0_50] : memref<1x2x128xf32, #tpu.memory_space<vmem>>, vector<1x2x128xf32>
      tpu.vector_store %arg6[%c0_48, %c0_49, %c0_50], %65 {strides = array<i32>} : memref<1x2x128xf32, #tpu.memory_space<vmem>>, vector<1x2x128xf32>,
    } else {
    }
    %52 = arith.extf %45 : vector<256x128xbf16> to vector<256x128xf32>
    %cst_39 = arith.constant dense<0.000000e+00> : vector<128xf32>
    %53 = vector.multi_reduction <add>, %52, %cst_39 [0] : vector<256x128xf32> to vector<128xf32>
    %54 = vector.shape_cast %53 : vector<128xf32> to vector<1x128xf32>
    %55 = arith.mulf %52, %52 : vector<256x128xf32>
    %cst_40 = arith.constant dense<0.000000e+00> : vector<128xf32>
    %56 = vector.multi_reduction <add>, %55, %cst_40 [0] : vector<256x128xf32> to vector<128xf32>
    %57 = vector.shape_cast %56 : vector<128xf32> to vector<1x128xf32>
    %c0_41 = arith.constant 0 : index
    %c0_42 = arith.constant 0 : index
    %c0_43 = arith.constant 0 : index
    %58 = vector.load %arg6[%c0_41, %c0_42, %c0_43] : memref<1x2x128xf32, #tpu.memory_space<vmem>>, vector<1x2x128xf32>
    %59 = vector.shape_cast %58 : vector<1x2x128xf32> to vector<2x128xf32>
    %60 = tpu.concatenate %54, %57 in 0 : vector<1x128xf32>, vector<1x128xf32> -> vector<2x128xf32>
    %61 = arith.addf %59, %60 : vector<2x128xf32>
    %c0_44 = arith.constant 0 : index
    %c0_45 = arith.constant 0 : index
    %c0_46 = arith.constant 0 : index
    %62 = vector.load %arg6[%c0_44, %c0_45, %c0_46] : memref<1x2x128xf32, #tpu.memory_space<vmem>>, vector<1x2x128xf32>
    %63 = vector.shape_cast %62 : vector<1x2x128xf32> to vector<2x128xf32>
    %64 = vector.shape_cast %61 : vector<2x128xf32> to vector<1x2x128xf32>
    tpu.vector_store %arg6[%c0_44, %c0_45, %c0_46], %64 {strides = array<i32>} : memref<1x2x128xf32, #tpu.memory_space<vmem>>, vector<1x2x128xf32>,
    return
  }
  func.func @transform_0(%arg0: i32, %arg1: i32) -> (i32, i32, i32, i32) {
    %c0_i32 = arith.constant 0 : i32
    %c0_i32_0 = arith.constant 0 : i32
    %c0_i32_1 = arith.constant 0 : i32
    %c0_i32_2 = arith.constant 0 : i32
    return %arg0, %c0_i32, %c0_i32_0, %c0_i32_1 : i32, i32, i32, i32
  }
  func.func @transform_1(%arg0: i32, %arg1: i32) -> (i32, i32) {
    %c0_i32 = arith.constant 0 : i32
    %c0_i32_0 = arith.constant 0 : i32
    %c0_i32_1 = arith.constant 0 : i32
    return %c0_i32, %c0_i32_0 : i32, i32
  }
  func.func @transform_2(%arg0: i32, %arg1: i32) -> (i32, i32) {
    %c0_i32 = arith.constant 0 : i32
    %c0_i32_0 = arith.constant 0 : i32
    %c0_i32_1 = arith.constant 0 : i32
    return %c0_i32, %c0_i32_0 : i32, i32
  }
  func.func @transform_3(%arg0: i32, %arg1: i32) -> (i32, i32, i32) {
    %c0_i32 = arith.constant 0 : i32
    %c0_i32_0 = arith.constant 0 : i32
    return %arg0, %arg1, %c0_i32 : i32, i32, i32
  }
  func.func @transform_4(%arg0: i32, %arg1: i32) -> (i32, i32, i32) {
    %c0_i32 = arith.constant 0 : i32
    %c0_i32_0 = arith.constant 0 : i32
    %c0_i32_1 = arith.constant 0 : i32
    return %arg0, %c0_i32, %c0_i32_0 : i32, i32, i32
  }
}

module attributes {stable_mosaic.version = 11 : i64} {
  func.func @_conv2_res_kernel(%arg0: i32, %arg1: i32, %arg2: memref<1x18x18x128xbf16, #tpu.memory_space<vmem>>, %arg3: memref<1x256x128xbf16, #tpu.memory_space<vmem>>, %arg4: memref<1152x128xbf16, #tpu.memory_space<vmem>>, %arg5: memref<1x128xf32, #tpu.memory_space<vmem>>, %arg6: memref<1x256x128xf32, #tpu.memory_space<vmem>>) attributes {dimension_semantics = [#tpu.dimension_semantics<parallel>, #tpu.dimension_semantics<parallel>], iteration_bounds = array<i64: 2, 1>, scalar_prefetch = 0 : i64, scratch_operands = 0 : i64, tpu.core_type = #tpu.core_type<tc>, window_params = [{transform_indices = @transform_0, window_bounds = array<i64: 1, 18, 18, 128>}, {transform_indices = @transform_1, window_bounds = array<i64: 1, 256, 128>}, {pipeline_mode = #tpu.pipeline_mode<synchronous>, transform_indices = @transform_2, window_bounds = array<i64: 1152, 128>}, {pipeline_mode = #tpu.pipeline_mode<synchronous>, transform_indices = @transform_3, window_bounds = array<i64: 1, 128>}, {transform_indices = @transform_4, window_bounds = array<i64: 1, 256, 128>}]} {
    %c16_i32 = arith.constant 16 : i32
    %0 = arith.muli %arg1, %c16_i32 : i32
    %1 = tpu.assume_multiple %0, 16 : i32
    %c0_i32 = arith.constant 0 : i32
    %2 = arith.addi %1, %c0_i32 : i32
    %c0 = arith.constant 0 : index
    %3 = arith.index_cast %2 : i32 to index
    %c0_0 = arith.constant 0 : index
    %c0_1 = arith.constant 0 : index
    %4 = vector.load %arg2[%c0, %3, %c0_0, %c0_1] : memref<1x18x18x128xbf16, #tpu.memory_space<vmem>>, vector<1x16x16x128xbf16>
    %5 = vector.shape_cast %4 : vector<1x16x16x128xbf16> to vector<16x16x128xbf16>
    %c0_i32_2 = arith.constant 0 : i32
    %6 = arith.addi %1, %c0_i32_2 : i32
    %c0_3 = arith.constant 0 : index
    %7 = arith.index_cast %6 : i32 to index
    %c1 = arith.constant 1 : index
    %c0_4 = arith.constant 0 : index
    %8 = vector.load %arg2[%c0_3, %7, %c1, %c0_4] : memref<1x18x18x128xbf16, #tpu.memory_space<vmem>>, vector<1x16x16x128xbf16>
    %9 = vector.shape_cast %8 : vector<1x16x16x128xbf16> to vector<16x16x128xbf16>
    %c0_i32_5 = arith.constant 0 : i32
    %10 = arith.addi %1, %c0_i32_5 : i32
    %c0_6 = arith.constant 0 : index
    %11 = arith.index_cast %10 : i32 to index
    %c2 = arith.constant 2 : index
    %c0_7 = arith.constant 0 : index
    %12 = vector.load %arg2[%c0_6, %11, %c2, %c0_7] : memref<1x18x18x128xbf16, #tpu.memory_space<vmem>>, vector<1x16x16x128xbf16>
    %13 = vector.shape_cast %12 : vector<1x16x16x128xbf16> to vector<16x16x128xbf16>
    %c1_i32 = arith.constant 1 : i32
    %14 = arith.addi %1, %c1_i32 : i32
    %c0_8 = arith.constant 0 : index
    %15 = arith.index_cast %14 : i32 to index
    %c0_9 = arith.constant 0 : index
    %c0_10 = arith.constant 0 : index
    %16 = vector.load %arg2[%c0_8, %15, %c0_9, %c0_10] : memref<1x18x18x128xbf16, #tpu.memory_space<vmem>>, vector<1x16x16x128xbf16>
    %17 = vector.shape_cast %16 : vector<1x16x16x128xbf16> to vector<16x16x128xbf16>
    %c1_i32_11 = arith.constant 1 : i32
    %18 = arith.addi %1, %c1_i32_11 : i32
    %c0_12 = arith.constant 0 : index
    %19 = arith.index_cast %18 : i32 to index
    %c1_13 = arith.constant 1 : index
    %c0_14 = arith.constant 0 : index
    %20 = vector.load %arg2[%c0_12, %19, %c1_13, %c0_14] : memref<1x18x18x128xbf16, #tpu.memory_space<vmem>>, vector<1x16x16x128xbf16>
    %21 = vector.shape_cast %20 : vector<1x16x16x128xbf16> to vector<16x16x128xbf16>
    %c1_i32_15 = arith.constant 1 : i32
    %22 = arith.addi %1, %c1_i32_15 : i32
    %c0_16 = arith.constant 0 : index
    %23 = arith.index_cast %22 : i32 to index
    %c2_17 = arith.constant 2 : index
    %c0_18 = arith.constant 0 : index
    %24 = vector.load %arg2[%c0_16, %23, %c2_17, %c0_18] : memref<1x18x18x128xbf16, #tpu.memory_space<vmem>>, vector<1x16x16x128xbf16>
    %25 = vector.shape_cast %24 : vector<1x16x16x128xbf16> to vector<16x16x128xbf16>
    %c2_i32 = arith.constant 2 : i32
    %26 = arith.addi %1, %c2_i32 : i32
    %c0_19 = arith.constant 0 : index
    %27 = arith.index_cast %26 : i32 to index
    %c0_20 = arith.constant 0 : index
    %c0_21 = arith.constant 0 : index
    %28 = vector.load %arg2[%c0_19, %27, %c0_20, %c0_21] : memref<1x18x18x128xbf16, #tpu.memory_space<vmem>>, vector<1x16x16x128xbf16>
    %29 = vector.shape_cast %28 : vector<1x16x16x128xbf16> to vector<16x16x128xbf16>
    %c2_i32_22 = arith.constant 2 : i32
    %30 = arith.addi %1, %c2_i32_22 : i32
    %c0_23 = arith.constant 0 : index
    %31 = arith.index_cast %30 : i32 to index
    %c1_24 = arith.constant 1 : index
    %c0_25 = arith.constant 0 : index
    %32 = vector.load %arg2[%c0_23, %31, %c1_24, %c0_25] : memref<1x18x18x128xbf16, #tpu.memory_space<vmem>>, vector<1x16x16x128xbf16>
    %33 = vector.shape_cast %32 : vector<1x16x16x128xbf16> to vector<16x16x128xbf16>
    %c2_i32_26 = arith.constant 2 : i32
    %34 = arith.addi %1, %c2_i32_26 : i32
    %c0_27 = arith.constant 0 : index
    %35 = arith.index_cast %34 : i32 to index
    %c2_28 = arith.constant 2 : index
    %c0_29 = arith.constant 0 : index
    %36 = vector.load %arg2[%c0_27, %35, %c2_28, %c0_29] : memref<1x18x18x128xbf16, #tpu.memory_space<vmem>>, vector<1x16x16x128xbf16>
    %37 = vector.shape_cast %36 : vector<1x16x16x128xbf16> to vector<16x16x128xbf16>
    %38 = tpu.concatenate %5, %9, %13, %17, %21, %25, %29, %33, %37 in 2 : vector<16x16x128xbf16>, vector<16x16x128xbf16>, vector<16x16x128xbf16>, vector<16x16x128xbf16>, vector<16x16x128xbf16>, vector<16x16x128xbf16>, vector<16x16x128xbf16>, vector<16x16x128xbf16>, vector<16x16x128xbf16> -> vector<16x16x1152xbf16>
    %39 = vector.shape_cast %38 : vector<16x16x1152xbf16> to vector<256x1152xbf16>
    %c0_30 = arith.constant 0 : index
    %c0_31 = arith.constant 0 : index
    %40 = vector.load %arg4[%c0_30, %c0_31] : memref<1152x128xbf16, #tpu.memory_space<vmem>>, vector<1152x128xbf16>
    %cst = arith.constant dense<0.000000e+00> : vector<256x128xf32>
    %41 = tpu.matmul %39, %40, %cst {dimension_numbers = #tpu.dot_dimension_numbers<[1], [0], [0], [1], [0, 0, 1, 1], [], []>} : vector<256x1152xbf16>, vector<1152x128xbf16>, vector<256x128xf32> -> vector<256x128xf32>
    %c0_32 = arith.constant 0 : index
    %c0_33 = arith.constant 0 : index
    %42 = vector.load %arg5[%c0_32, %c0_33] : memref<1x128xf32, #tpu.memory_space<vmem>>, vector<1x128xf32>
    %43 = vector.broadcast %42 : vector<1x128xf32> to vector<256x128xf32>
    %44 = arith.addf %41, %43 : vector<256x128xf32>
    %cst_34 = arith.constant 0.000000e+00 : f32
    %45 = vector.broadcast %cst_34 : f32 to vector<256x128xf32>
    %46 = arith.cmpf oge, %44, %45 : vector<256x128xf32>
    %cst_35 = arith.constant 2.000000e-01 : f32
    %47 = vector.broadcast %cst_35 : f32 to vector<256x128xf32>
    %48 = arith.mulf %47, %44 : vector<256x128xf32>
    %49 = arith.select %46, %44, %48 : vector<256x128xi1>, vector<256x128xf32>
    %c0_36 = arith.constant 0 : index
    %c0_37 = arith.constant 0 : index
    %c0_38 = arith.constant 0 : index
    %50 = vector.load %arg3[%c0_36, %c0_37, %c0_38] : memref<1x256x128xbf16, #tpu.memory_space<vmem>>, vector<1x256x128xbf16>
    %51 = vector.shape_cast %50 : vector<1x256x128xbf16> to vector<256x128xbf16>
    %52 = arith.extf %51 : vector<256x128xbf16> to vector<256x128xf32>
    %53 = arith.addf %49, %52 : vector<256x128xf32>
    %c0_39 = arith.constant 0 : index
    %c0_40 = arith.constant 0 : index
    %c0_41 = arith.constant 0 : index
    %54 = vector.load %arg6[%c0_39, %c0_40, %c0_41] : memref<1x256x128xf32, #tpu.memory_space<vmem>>, vector<1x256x128xf32>
    %55 = vector.shape_cast %54 : vector<1x256x128xf32> to vector<256x128xf32>
    %56 = vector.shape_cast %53 : vector<256x128xf32> to vector<1x256x128xf32>
    tpu.vector_store %arg6[%c0_39, %c0_40, %c0_41], %56 {strides = array<i32>} : memref<1x256x128xf32, #tpu.memory_space<vmem>>, vector<1x256x128xf32>,
    return
  }
  func.func @transform_0(%arg0: i32, %arg1: i32) -> (i32, i32, i32, i32) {
    %c0_i32 = arith.constant 0 : i32
    %c0_i32_0 = arith.constant 0 : i32
    %c0_i32_1 = arith.constant 0 : i32
    %c0_i32_2 = arith.constant 0 : i32
    return %arg0, %c0_i32, %c0_i32_0, %c0_i32_1 : i32, i32, i32, i32
  }
  func.func @transform_1(%arg0: i32, %arg1: i32) -> (i32, i32, i32) {
    %c0_i32 = arith.constant 0 : i32
    %c0_i32_0 = arith.constant 0 : i32
    return %arg0, %arg1, %c0_i32 : i32, i32, i32
  }
  func.func @transform_2(%arg0: i32, %arg1: i32) -> (i32, i32) {
    %c0_i32 = arith.constant 0 : i32
    %c0_i32_0 = arith.constant 0 : i32
    %c0_i32_1 = arith.constant 0 : i32
    return %c0_i32, %c0_i32_0 : i32, i32
  }
  func.func @transform_3(%arg0: i32, %arg1: i32) -> (i32, i32) {
    %c0_i32 = arith.constant 0 : i32
    %c0_i32_0 = arith.constant 0 : i32
    %c0_i32_1 = arith.constant 0 : i32
    return %c0_i32, %c0_i32_0 : i32, i32
  }
  func.func @transform_4(%arg0: i32, %arg1: i32) -> (i32, i32, i32) {
    %c0_i32 = arith.constant 0 : i32
    %c0_i32_0 = arith.constant 0 : i32
    return %arg0, %arg1, %c0_i32 : i32, i32, i32
  }
}

</mosaic_0001>

<llo_original>
// kernel: hin_conv_block.4
$region0: #{hin_conv_block.4}
  #allocation0 [shape = 'u32[]', space=smem, size = 0x4, offset = 0x4, fixed_abs, tag = 'smem constant byte address 0x4 - core index']
  #allocation1 [shape = 'u32[144,128]{1,0:T(1,128)}', space=vmem, size = 0x12000, scoped, tag = 'internal scratch']
  %s0 = inlined_call_operand.vmem [shape: bf16[2,256,128], index: 0, kind: input, shape index: {}]
  %s1 = inlined_call_operand.vmem [shape: f32[2,2,128], index: 1, kind: input, shape index: {}]
  %s2 = inlined_call_operand.vmem [shape: f32[1,128], index: 2, kind: input, shape index: {}]
  %s3 = inlined_call_operand.vmem [shape: f32[1,128], index: 3, kind: input, shape index: {}]
  %s4 = inlined_call_operand.vmem [shape: bf16[2,18,18,128], index: 4, kind: output, shape index: {}]
  %s5 = sld [smem:[#allocation0]]
  $region53: #{hin_conv_block.4} parent=0
    _
  %s7 = ssub.s32 1, %s5
  %s8 = scalar_select 0, %s7, %s5
  loop: start=0, step=1, limit=4
  $region2: #{hin_conv_block.4} parent=0 // loop_pre_header
    _
  $region3: #{hin_conv_block.4} parent=0 // loop_header
    %s10 = sphi 0, %s14
    %p11 = scmp.ge.s32.totalorder %s10, 4
    %s17 = sphi 0, %s29
    %s18 = sphi 0, %s25
    %s19 = sphi 0, %s17
    %s20 = sphi 0, %s18
    %s21 = sphi 0, %s19
    %s22 = sphi 0, %s20
    %s34 = sphi 0, %s36
    %s37 = sphi 0, %s34
    %s38 = sphi 0, %s37
    %s54 = sphi 0, %s38
    %s60 = sphi 0, %s62
    %s63 = sphi 0, %s60
    %s64 = sphi 0, %s63
    %s80 = sphi 0, %s64
    %s84 = sphi 0, %s84
    %s86 = sphi 0, %s84
    %s87 = sphi 0, %s86
    %s101 = sphi 0, %s87
    %s105 = sphi 0, %s105
    %s107 = sphi 0, %s105
    %s108 = sphi 0, %s107
    %s122 = sphi 0, %s108
    %s128 = sphi 0, %s130
    %s131 = sphi 0, %s128
    %s132 = sphi 0, %s131
    %s148 = sphi 0, %s132
  $region4: #{hin_conv_block.4} parent=0 // loop_header_branch
    %13 = sbr.rel (%p11) target = $region8
  $region5: #{hin_conv_block.4} parent=0 // loop_body
    %s15 = ssub.s32 %s10, 1
    %s16 = ssub.s32 %s10, 2
    %s23 = sadd.s32 1, %s18
    %p24 = scmp.ge.s32.totalorder %s23, 1
    %s25 = scalar_select %p24, 0, %s23
    %s26 = sadd.s32 1, %s17
    %s27 = scalar_select %p24, %s26, %s17
    %p28 = scmp.ge.s32.totalorder %s27, 2
    %s29 = scalar_select %p28, 0, %s27
    %s30 = ssub.s32 %s17, %s29
    %s31 = ssub.s32 %s18, %s25
    %s32 = sor.u32 %s30, %s31
    %p33 = scmp.eq.s32.totalorder %s32, 0
    %s35 = sadd.s32 %s34, 1
    %s36 = scalar_select %p33, %s34, %s35
    %p39 = pneg %p33
    %p40 = scmp.eq.s32.totalorder %s10, 1
    %p41 = por %p39, %p40
    %p42 = scmp.ne.s32.totalorder %s34, %s37
    %p43 = scmp.eq.s32.totalorder %s10, 0
    %p44 = por %p42, %p43
    %p45 = scmp.ne.s32.totalorder %s34, %s37
    %p46 = scmp.eq.s32.totalorder %s15, 1
    %p47 = por %p45, %p46
    %p48 = scmp.ne.s32.totalorder %s37, %s38
    %p49 = scmp.eq.s32.totalorder %s15, 0
    %p50 = por %p48, %p49
    %p51 = scmp.ne.s32.totalorder %s37, %s38
    %p52 = scmp.eq.s32.totalorder %s16, 1
    %p53 = por %p51, %p52
    %p55 = scmp.ne.s32.totalorder %s38, %s54
    %p56 = scmp.eq.s32.totalorder %s16, 0
    %p57 = por %p55, %p56
    %s58 = ssub.s32 %s17, %s29
    %p59 = scmp.eq.s32.totalorder %s58, 0
    %s61 = sadd.s32 %s60, 1
    %s62 = scalar_select %p59, %s60, %s61
    %p65 = pneg %p59
    %p66 = scmp.eq.s32.totalorder %s10, 1
    %p67 = por %p65, %p66
    %p68 = scmp.ne.s32.totalorder %s60, %s63
    %p69 = scmp.eq.s32.totalorder %s10, 0
    %p70 = por %p68, %p69
    %p71 = scmp.ne.s32.totalorder %s60, %s63
    %p72 = scmp.eq.s32.totalorder %s15, 1
    %p73 = por %p71, %p72
    %p74 = scmp.ne.s32.totalorder %s63, %s64
    %p75 = scmp.eq.s32.totalorder %s15, 0
    %p76 = por %p74, %p75
    %p77 = scmp.ne.s32.totalorder %s63, %s64
    %p78 = scmp.eq.s32.totalorder %s16, 1
    %p79 = por %p77, %p78
    %p81 = scmp.ne.s32.totalorder %s64, %s80
    %p82 = scmp.eq.s32.totalorder %s16, 0
    %p83 = por %p81, %p82
    %s85 = sadd.s32 %s84, 1
    %p88 = scmp.eq.s32.totalorder %s10, 1
    %p89 = scmp.ne.s32.totalorder %s84, %s86
    %p90 = scmp.eq.s32.totalorder %s10, 0
    %p91 = por %p89, %p90
    %p92 = scmp.ne.s32.totalorder %s84, %s86
    %p93 = scmp.eq.s32.totalorder %s15, 1
    %p94 = por %p92, %p93
    %p95 = scmp.ne.s32.totalorder %s86, %s87
    %p96 = scmp.eq.s32.totalorder %s15, 0
    %p97 = por %p95, %p96
    %p98 = scmp.ne.s32.totalorder %s86, %s87
    %p99 = scmp.eq.s32.totalorder %s16, 1
    %p100 = por %p98, %p99
    %p102 = scmp.ne.s32.totalorder %s87, %s101
    %p103 = scmp.eq.s32.totalorder %s16, 0
    %p104 = por %p102, %p103
    %s106 = sadd.s32 %s105, 1
    %p109 = scmp.eq.s32.totalorder %s10, 1
    %p110 = scmp.ne.s32.totalorder %s105, %s107
    %p111 = scmp.eq.s32.totalorder %s10, 0
    %p112 = por %p110, %p111
    %p113 = scmp.ne.s32.totalorder %s105, %s107
    %p114 = scmp.eq.s32.totalorder %s15, 1
    %p115 = por %p113, %p114
    %p116 = scmp.ne.s32.totalorder %s107, %s108
    %p117 = scmp.eq.s32.totalorder %s15, 0
    %p118 = por %p116, %p117
    %p119 = scmp.ne.s32.totalorder %s107, %s108
    %p120 = scmp.eq.s32.totalorder %s16, 1
    %p121 = por %p119, %p120
    %p123 = scmp.ne.s32.totalorder %s108, %s122
    %p124 = scmp.eq.s32.totalorder %s16, 0
    %p125 = por %p123, %p124
    %s126 = ssub.s32 %s17, %s29
    %p127 = scmp.eq.s32.totalorder %s126, 0
    %s129 = sadd.s32 %s128, 1
    %s130 = scalar_select %p127, %s128, %s129
    %p133 = pneg %p127
    %p134 = scmp.eq.s32.totalorder %s10, 1
    %p135 = por %p133, %p134
    %p136 = scmp.ne.s32.totalorder %s128, %s131
    %p137 = scmp.eq.s32.totalorder %s10, 0
    %p138 = por %p136, %p137
    %p139 = scmp.ne.s32.totalorder %s128, %s131
    %p140 = scmp.eq.s32.totalorder %s15, 1
    %p141 = por %p139, %p140
    %p142 = scmp.ne.s32.totalorder %s131, %s132
    %p143 = scmp.eq.s32.totalorder %s15, 0
    %p144 = por %p142, %p143
    %p145 = scmp.ne.s32.totalorder %s131, %s132
    %p146 = scmp.eq.s32.totalorder %s16, 1
    %p147 = por %p145, %p146
    %p149 = scmp.ne.s32.totalorder %s132, %s148
    %p150 = scmp.eq.s32.totalorder %s16, 0
    %p151 = por %p149, %p150
    %p152 = scmp.le.s32.totalorder 1, %s10
    %p153 = scmp.lt.s32.totalorder %s10, 3
    %p154 = pnand %p152, %p153
    %p155 = pneg %p154
    // Predicated region
    $region9: #{hin_conv_block.4} parent=5 // pred_check
      _
    $region10: #{hin_conv_block.4} parent=5 // pred_check_branch
      %157 = sbr.rel (%p154) target = $region12
    $region11: #{hin_conv_block.4} parent=5 // pred_region
      %s158 = ssub.s32 %s10, 1
      // Predicated region
      $region13: #{hin_conv_block.4} parent=11 // pred_check
        %p159 = pneg %p97
      $region14: #{hin_conv_block.4} parent=11 // pred_check_branch
        %161 = sbr.rel (%p159) target = $region16
      $region15: #{hin_conv_block.4} parent=11 // pred_region
        _
      $region16: #{hin_conv_block.4} parent=11 // pred_fallthru
        _
      // Predicated region
      $region17: #{hin_conv_block.4} parent=11 // pred_check
        %p162 = pneg %p118
      $region18: #{hin_conv_block.4} parent=11 // pred_check_branch
        %164 = sbr.rel (%p162) target = $region20
      $region19: #{hin_conv_block.4} parent=11 // pred_region
        _
      $region20: #{hin_conv_block.4} parent=11 // pred_fallthru
        _
    $region12: #{hin_conv_block.4} parent=5 // pred_fallthru
      _
    %p165 = scmp.lt.s32.totalorder %s10, 2
    // Predicated region
    $region21: #{hin_conv_block.4} parent=5 // pred_check
      %p166 = pneg %p165
    $region22: #{hin_conv_block.4} parent=5 // pred_check_branch
      %168 = sbr.rel (%p166) target = $region24
    $region23: #{hin_conv_block.4} parent=5 // pred_region
      // Predicated region
      $region25: #{hin_conv_block.4} parent=23 // pred_check
        %p169 = pneg %p44
      $region26: #{hin_conv_block.4} parent=23 // pred_check_branch
        %171 = sbr.rel (%p169) target = $region28
      $region27: #{hin_conv_block.4} parent=23 // pred_region
        %s172 = smul.u32 32, %s18
        %p173 = scmp.lt.s32.totalorder %s17, 1
        %s174 = scalar_select %p173, %s17, 1
        %p175 = scmp.lt.s32.totalorder %s172, 31
        %s176 = scalar_select %p175, %s172, 31
        %s177 = smul.addr %s174, 32
        %s178 = sadd.s32 %s176, %s177
        %s179 = smul.addr %s178, 4
        %s180 = scalar_lea.vmem %s0, %s179
        %s181 = smul.u32 32, %s18
      $region28: #{hin_conv_block.4} parent=23 // pred_fallthru
        _
      // Predicated region
      $region29: #{hin_conv_block.4} parent=23 // pred_check
        %p182 = pneg %p70
      $region30: #{hin_conv_block.4} parent=23 // pred_check_branch
        %184 = sbr.rel (%p182) target = $region32
      $region31: #{hin_conv_block.4} parent=23 // pred_region
        %p185 = scmp.lt.s32.totalorder %s17, 1
        %s186 = scalar_select %p185, %s17, 1
        %s187 = smul.addr %s186, 2
        %s188 = scalar_lea.vmem %s1, %s187
      $region32: #{hin_conv_block.4} parent=23 // pred_fallthru
        _
    $region24: #{hin_conv_block.4} parent=5 // pred_fallthru
      _
    %p189 = scmp.le.s32.totalorder 1, %s10
    %p190 = scmp.lt.s32.totalorder %s10, 3
    %p191 = pnand %p189, %p190
    %p192 = pneg %p191
    // Predicated region
    $region33: #{hin_conv_block.4} parent=5 // pred_check
      _
    $region34: #{hin_conv_block.4} parent=5 // pred_check_branch
      %194 = sbr.rel (%p191) target = $region36
    $region35: #{hin_conv_block.4} parent=5 // pred_region
      %s195 = ssub.s32 %s10, 1
      %s196 = smul.u32 32, %s20
      %p197 = scmp.lt.s32.totalorder %s19, 1
      %s198 = scalar_select %p197, %s19, 1
      %p199 = scmp.lt.s32.totalorder %s196, 31
      %s200 = scalar_select %p199, %s196, 31
      %s201 = smul.addr %s198, 32
      %s202 = sadd.s32 %s200, %s201
      %s203 = smul.addr %s202, 4
      %s204 = scalar_lea.vmem %s0, %s203
      %p205 = pneg %p50
      %p206 = pneg %p47
      %p207 = scmp.lt.s32.totalorder %s19, 1
      %s208 = scalar_select %p207, %s19, 1
      %s209 = smul.addr %s208, 2
      %s210 = scalar_lea.vmem %s1, %s209
      %p211 = pneg %p76
      %p212 = pneg %p73
      %p213 = pneg %p97
      %p214 = pneg %p94
      %p215 = pneg %p118
      %p216 = pneg %p115
      %p217 = pneg %p144
      %p218 = pneg %p141
      %p219 = scmp.lt.s32.totalorder %s19, 1
      %s220 = scalar_select %p219, %s19, 1
      %s221 = smul.addr %s220, 54
      %s222 = smul.addr %s221, 4
      %s223 = scalar_lea.vmem %s4, %s222
      %s224 = smul.u32 32, %s20
      %p225 = scmp.lt.s32.totalorder %s19, 1
      %s226 = scalar_select %p225, %s19, 1
      %p227 = scmp.lt.s32.totalorder %s224, 31
      %s228 = scalar_select %p227, %s224, 31
      %s229 = smul.addr %s226, 32
      %s230 = sadd.s32 %s228, %s229
      %s231 = smul.addr %s230, 4
      %s232 = scalar_lea.vmem %s0, %s231
      %s233 = smul.u32 32, %s20
      %p234 = scmp.lt.s32.totalorder %s19, 1
      %s235 = scalar_select %p234, %s19, 1
      %s236 = smul.addr %s235, 2
      %s237 = scalar_lea.vmem %s1, %s236
      %p238 = scmp.lt.s32.totalorder %s19, 1
      %s239 = scalar_select %p238, %s19, 1
      %s240 = smul.addr %s239, 54
      %s241 = smul.addr %s240, 4
      %s242 = scalar_lea.vmem %s4, %s241
      %p244 = scmp.eq.s32.totalorder %s20, 0
      // Predicated region
      $region37: #{hin_conv_block.4} parent=35 // pred_check
        %p245 = pneg %p244
      $region38: #{hin_conv_block.4} parent=35 // pred_check_branch
        %247 = sbr.rel (%p245) target = $region40
      $region39: #{hin_conv_block.4} parent=35 // pred_region
        %248 = vst [vmem:[%s242] sm:$0xf] 0
        %249 = vst [vmem:[%s242 + $0x4] sm:$0xf] 0
        %250 = vst [vmem:[%s242 + $0x8] sm:$0x1] 0
        %251 = vst [vmem:[%s242 + $0xc] sm:$0xf] 0
        %252 = vst [vmem:[%s242 + $0x10] sm:$0xf] 0
        %253 = vst [vmem:[%s242 + $0x14] sm:$0x1] 0
        %254 = vst [vmem:[%s242 + $0x18] sm:$0xf] 0
        %255 = vst [vmem:[%s242 + $0x1c] sm:$0xf] 0
        %256 = vst [vmem:[%s242 + $0x20] sm:$0x1] 0
        %257 = vst [vmem:[%s242 + $0x24] sm:$0xf] 0
        %258 = vst [vmem:[%s242 + $0x28] sm:$0xf] 0
        %259 = vst [vmem:[%s242 + $0x2c] sm:$0x1] 0
        %260 = vst [vmem:[%s242 + $0x30] sm:$0xf] 0
        %261 = vst [vmem:[%s242 + $0x34] sm:$0xf] 0
        %262 = vst [vmem:[%s242 + $0x38] sm:$0x1] 0
        %263 = vst [vmem:[%s242 + $0x3c] sm:$0xf] 0
        %264 = vst [vmem:[%s242 + $0x40] sm:$0xf] 0
        %265 = vst [vmem:[%s242 + $0x44] sm:$0x1] 0
        %266 = vst [vmem:[%s242 + $0x48] sm:$0xf] 0
        %267 = vst [vmem:[%s242 + $0x4c] sm:$0xf] 0
        %268 = vst [vmem:[%s242 + $0x50] sm:$0x1] 0
        %269 = vst [vmem:[%s242 + $0x54] sm:$0xf] 0
        %270 = vst [vmem:[%s242 + $0x58] sm:$0xf] 0
        %271 = vst [vmem:[%s242 + $0x5c] sm:$0x1] 0
        %272 = vst [vmem:[%s242 + $0x60] sm:$0xf] 0
        %273 = vst [vmem:[%s242 + $0x64] sm:$0xf] 0
        %274 = vst [vmem:[%s242 + $0x68] sm:$0x1] 0
        %275 = vst [vmem:[%s242 + $0x6c] sm:$0xf] 0
        %276 = vst [vmem:[%s242 + $0x70] sm:$0xf] 0
        %277 = vst [vmem:[%s242 + $0x74] sm:$0x1] 0
        %278 = vst [vmem:[%s242 + $0x78] sm:$0xf] 0
        %279 = vst [vmem:[%s242 + $0x7c] sm:$0xf] 0
        %280 = vst [vmem:[%s242 + $0x80] sm:$0x1] 0
        %281 = vst [vmem:[%s242 + $0x84] sm:$0xf] 0
        %282 = vst [vmem:[%s242 + $0x88] sm:$0xf] 0
        %283 = vst [vmem:[%s242 + $0x8c] sm:$0x1] 0
        %284 = vst [vmem:[%s242 + $0x90] sm:$0xf] 0
        %285 = vst [vmem:[%s242 + $0x94] sm:$0xf] 0
        %286 = vst [vmem:[%s242 + $0x98] sm:$0x1] 0
        %287 = vst [vmem:[%s242 + $0x9c] sm:$0xf] 0
        %288 = vst [vmem:[%s242 + $0xa0] sm:$0xf] 0
        %289 = vst [vmem:[%s242 + $0xa4] sm:$0x1] 0
        %290 = vst [vmem:[%s242 + $0xa8] sm:$0xf] 0
        %291 = vst [vmem:[%s242 + $0xac] sm:$0xf] 0
        %292 = vst [vmem:[%s242 + $0xb0] sm:$0x1] 0
        %293 = vst [vmem:[%s242 + $0xb4] sm:$0xf] 0
        %294 = vst [vmem:[%s242 + $0xb8] sm:$0xf] 0
        %295 = vst [vmem:[%s242 + $0xbc] sm:$0x1] 0
        %296 = vst [vmem:[%s242 + $0xc0] sm:$0xf] 0
        %297 = vst [vmem:[%s242 + $0xc4] sm:$0xf] 0
        %298 = vst [vmem:[%s242 + $0xc8] sm:$0x1] 0
        %299 = vst [vmem:[%s242 + $0xcc] sm:$0xf] 0
        %300 = vst [vmem:[%s242 + $0xd0] sm:$0xf] 0
        %301 = vst [vmem:[%s242 + $0xd4] sm:$0x1] 0
      $region40: #{hin_conv_block.4} parent=35 // pred_fallthru
        _
      %v302 = vld [vmem:[%s237] sm:$0x1]
      %v303 = vmul.f32 %v302, 0.00390625
      %v304 = vld [vmem:[%s237 + $0x1] sm:$0x1]
      %v305 = vmul.f32 %v304, 0.00390625
      %v306 = vmul.f32 %v303, %v303
      %v307 = vsub.f32 %v305, %v306
      %v308 = vmax.f32 %v307, 0.0
      %v309 = vadd.f32 %v308, 1e-05
      %v310 = vrsqrt.pop %v309
      %v311 = vlaneseq
      %v312 = vand.u32 %v311, 127
      %vm313 = vcmp.lt.s32.totalorder %v312, 64
      %v314 = vld [vmem:[%s2] sm:$0x1]
      %v315 = vmul.f32 %v310, %v314
      %v316 = vsel %vm313, %v315, 1.0
      %v317 = vld [vmem:[%s3] sm:$0x1]
      %v318 = vmul.f32 %v303, %v310
      %v319 = vmul.f32 %v318, %v314
      %v320 = vsub.f32 %v317, %v319
      %v321 = vsel %vm313, %v320, 0.0
      %v322 = vld [vmem:[%s232] sm:$0xf]
      %v323 = vld [vmem:[%s232 + $0x4] sm:$0xf]
      %v324 = vld [vmem:[%s232 + $0x8] sm:$0xf]
      %v325 = vld [vmem:[%s232 + $0xc] sm:$0xf]
      %v326 = vld [vmem:[%s232 + $0x10] sm:$0xf]
      %v327 = vld [vmem:[%s232 + $0x14] sm:$0xf]
      %v328 = vld [vmem:[%s232 + $0x18] sm:$0xf]
      %v329 = vld [vmem:[%s232 + $0x1c] sm:$0xf]
      %v330 = vld [vmem:[%s232 + $0x20] sm:$0xf]
      %v331 = vld [vmem:[%s232 + $0x24] sm:$0xf]
      %v332 = vld [vmem:[%s232 + $0x28] sm:$0xf]
      %v333 = vld [vmem:[%s232 + $0x2c] sm:$0xf]
      %v334 = vld [vmem:[%s232 + $0x30] sm:$0xf]
      %v335 = vld [vmem:[%s232 + $0x34] sm:$0xf]
      %v336 = vld [vmem:[%s232 + $0x38] sm:$0xf]
      %v337 = vld [vmem:[%s232 + $0x3c] sm:$0xf]
      %v338 = vld [vmem:[%s232 + $0x40] sm:$0xf]
      %v339 = vld [vmem:[%s232 + $0x44] sm:$0xf]
      %v340 = vld [vmem:[%s232 + $0x48] sm:$0xf]
      %v341 = vld [vmem:[%s232 + $0x4c] sm:$0xf]
      %v342 = vld [vmem:[%s232 + $0x50] sm:$0xf]
      %v343 = vld [vmem:[%s232 + $0x54] sm:$0xf]
      %v344 = vld [vmem:[%s232 + $0x58] sm:$0xf]
      %v345 = vld [vmem:[%s232 + $0x5c] sm:$0xf]
      %v346 = vld [vmem:[%s232 + $0x60] sm:$0xf]
      %v347 = vld [vmem:[%s232 + $0x64] sm:$0xf]
      %v348 = vld [vmem:[%s232 + $0x68] sm:$0xf]
      %v349 = vld [vmem:[%s232 + $0x6c] sm:$0xf]
      %v350 = vld [vmem:[%s232 + $0x70] sm:$0xf]
      %v351 = vld [vmem:[%s232 + $0x74] sm:$0xf]
      %v352 = vld [vmem:[%s232 + $0x78] sm:$0xf]
      %v353 = vld [vmem:[%s232 + $0x7c] sm:$0xf]
      %v354 = vunpack.c.l.bf16 %v322
      %v355 = vunpack.c.l.bf16 %v323
      %v356 = vunpack.c.l.bf16 %v324
      %v357 = vunpack.c.l.bf16 %v325
      %v358 = vunpack.c.l.bf16 %v326
      %v359 = vunpack.c.l.bf16 %v327
      %v360 = vunpack.c.l.bf16 %v328
      %v361 = vunpack.c.l.bf16 %v329
      %v362 = vunpack.c.l.bf16 %v330
      %v363 = vunpack.c.l.bf16 %v331
      %v364 = vunpack.c.l.bf16 %v332
      %v365 = vunpack.c.l.bf16 %v333
      %v366 = vunpack.c.l.bf16 %v334
      %v367 = vunpack.c.l.bf16 %v335
      %v368 = vunpack.c.l.bf16 %v336
      %v369 = vunpack.c.l.bf16 %v337
      %v370 = vunpack.c.l.bf16 %v338
      %v371 = vunpack.c.l.bf16 %v339
      %v372 = vunpack.c.l.bf16 %v340
      %v373 = vunpack.c.l.bf16 %v341
      %v374 = vunpack.c.l.bf16 %v342
      %v375 = vunpack.c.l.bf16 %v343
      %v376 = vunpack.c.l.bf16 %v344
      %v377 = vunpack.c.l.bf16 %v345
      %v378 = vunpack.c.l.bf16 %v346
      %v379 = vunpack.c.l.bf16 %v347
      %v380 = vunpack.c.l.bf16 %v348
      %v381 = vunpack.c.l.bf16 %v349
      %v382 = vunpack.c.l.bf16 %v350
      %v383 = vunpack.c.l.bf16 %v351
      %v384 = vunpack.c.l.bf16 %v352
      %v385 = vunpack.c.l.bf16 %v353
      %v386 = vlaneseq
      %v387 = vshrl.u32 %v386, 7
      %v388 = vsub.s32 0, %v387
      %v389 = vrot.slane %v316, %v388
      %v390 = vmul.f32 %v354, %v389
      %v391 = vmul.f32 %v355, %v389
      %v392 = vmul.f32 %v356, %v389
      %v393 = vmul.f32 %v357, %v389
      %v394 = vmul.f32 %v358, %v389
      %v395 = vmul.f32 %v359, %v389
      %v396 = vmul.f32 %v360, %v389
      %v397 = vmul.f32 %v361, %v389
      %v398 = vmul.f32 %v362, %v389
      %v399 = vmul.f32 %v363, %v389
      %v400 = vmul.f32 %v364, %v389
      %v401 = vmul.f32 %v365, %v389
      %v402 = vmul.f32 %v366, %v389
      %v403 = vmul.f32 %v367, %v389
      %v404 = vmul.f32 %v368, %v389
      %v405 = vmul.f32 %v369, %v389
      %v406 = vmul.f32 %v370, %v389
      %v407 = vmul.f32 %v371, %v389
      %v408 = vmul.f32 %v372, %v389
      %v409 = vmul.f32 %v373, %v389
      %v410 = vmul.f32 %v374, %v389
      %v411 = vmul.f32 %v375, %v389
      %v412 = vmul.f32 %v376, %v389
      %v413 = vmul.f32 %v377, %v389
      %v414 = vmul.f32 %v378, %v389
      %v415 = vmul.f32 %v379, %v389
      %v416 = vmul.f32 %v380, %v389
      %v417 = vmul.f32 %v381, %v389
      %v418 = vmul.f32 %v382, %v389
      %v419 = vmul.f32 %v383, %v389
      %v420 = vmul.f32 %v384, %v389
      %v421 = vmul.f32 %v385, %v389
      %v422 = vlaneseq
      %v423 = vshrl.u32 %v422, 7
      %v424 = vsub.s32 0, %v423
      %v425 = vrot.slane %v321, %v424
      %v426 = vadd.f32 %v390, %v425
      %v427 = vadd.f32 %v391, %v425
      %v428 = vadd.f32 %v392, %v425
      %v429 = vadd.f32 %v393, %v425
      %v430 = vadd.f32 %v394, %v425
      %v431 = vadd.f32 %v395, %v425
      %v432 = vadd.f32 %v396, %v425
      %v433 = vadd.f32 %v397, %v425
      %v434 = vadd.f32 %v398, %v425
      %v435 = vadd.f32 %v399, %v425
      %v436 = vadd.f32 %v400, %v425
      %v437 = vadd.f32 %v401, %v425
      %v438 = vadd.f32 %v402, %v425
      %v439 = vadd.f32 %v403, %v425
      %v440 = vadd.f32 %v404, %v425
      %v441 = vadd.f32 %v405, %v425
      %v442 = vadd.f32 %v406, %v425
      %v443 = vadd.f32 %v407, %v425
      %v444 = vadd.f32 %v408, %v425
      %v445 = vadd.f32 %v409, %v425
      %v446 = vadd.f32 %v410, %v425
      %v447 = vadd.f32 %v411, %v425
      %v448 = vadd.f32 %v412, %v425
      %v449 = vadd.f32 %v413, %v425
      %v450 = vadd.f32 %v414, %v425
      %v451 = vadd.f32 %v415, %v425
      %v452 = vadd.f32 %v416, %v425
      %v453 = vadd.f32 %v417, %v425
      %v454 = vadd.f32 %v418, %v425
      %v455 = vadd.f32 %v419, %v425
      %v456 = vadd.f32 %v420, %v425
      %v457 = vadd.f32 %v421, %v425
      %vm458 = vcmp.ge.f32.partialorder %v426, 0.0
      %vm459 = vcmp.ge.f32.partialorder %v427, 0.0
      %vm460 = vcmp.ge.f32.partialorder %v428, 0.0
      %vm461 = vcmp.ge.f32.partialorder %v429, 0.0
      %vm462 = vcmp.ge.f32.partialorder %v430, 0.0
      %vm463 = vcmp.ge.f32.partialorder %v431, 0.0
      %vm464 = vcmp.ge.f32.partialorder %v432, 0.0
      %vm465 = vcmp.ge.f32.partialorder %v433, 0.0
      %vm466 = vcmp.ge.f32.partialorder %v434, 0.0
      %vm467 = vcmp.ge.f32.partialorder %v435, 0.0
      %vm468 = vcmp.ge.f32.partialorder %v436, 0.0
      %vm469 = vcmp.ge.f32.partialorder %v437, 0.0
      %vm470 = vcmp.ge.f32.partialorder %v438, 0.0
      %vm471 = vcmp.ge.f32.partialorder %v439, 0.0
      %vm472 = vcmp.ge.f32.partialorder %v440, 0.0
      %vm473 = vcmp.ge.f32.partialorder %v441, 0.0
      %vm474 = vcmp.ge.f32.partialorder %v442, 0.0
      %vm475 = vcmp.ge.f32.partialorder %v443, 0.0
      %vm476 = vcmp.ge.f32.partialorder %v444, 0.0
      %vm477 = vcmp.ge.f32.partialorder %v445, 0.0
      %vm478 = vcmp.ge.f32.partialorder %v446, 0.0
      %vm479 = vcmp.ge.f32.partialorder %v447, 0.0
      %vm480 = vcmp.ge.f32.partialorder %v448, 0.0
      %vm481 = vcmp.ge.f32.partialorder %v449, 0.0
      %vm482 = vcmp.ge.f32.partialorder %v450, 0.0
      %vm483 = vcmp.ge.f32.partialorder %v451, 0.0
      %vm484 = vcmp.ge.f32.partialorder %v452, 0.0
      %vm485 = vcmp.ge.f32.partialorder %v453, 0.0
      %vm486 = vcmp.ge.f32.partialorder %v454, 0.0
      %vm487 = vcmp.ge.f32.partialorder %v455, 0.0
      %vm488 = vcmp.ge.f32.partialorder %v456, 0.0
      %vm489 = vcmp.ge.f32.partialorder %v457, 0.0
      %v490 = vmul.f32 %v426, 0.2
      %v491 = vmul.f32 %v427, 0.2
      %v492 = vmul.f32 %v428, 0.2
      %v493 = vmul.f32 %v429, 0.2
      %v494 = vmul.f32 %v430, 0.2
      %v495 = vmul.f32 %v431, 0.2
      %v496 = vmul.f32 %v432, 0.2
      %v497 = vmul.f32 %v433, 0.2
      %v498 = vmul.f32 %v434, 0.2
      %v499 = vmul.f32 %v435, 0.2
      %v500 = vmul.f32 %v436, 0.2
      %v501 = vmul.f32 %v437, 0.2
      %v502 = vmul.f32 %v438, 0.2
      %v503 = vmul.f32 %v439, 0.2
      %v504 = vmul.f32 %v440, 0.2
      %v505 = vmul.f32 %v441, 0.2
      %v506 = vmul.f32 %v442, 0.2
      %v507 = vmul.f32 %v443, 0.2
      %v508 = vmul.f32 %v444, 0.2
      %v509 = vmul.f32 %v445, 0.2
      %v510 = vmul.f32 %v446, 0.2
      %v511 = vmul.f32 %v447, 0.2
      %v512 = vmul.f32 %v448, 0.2
      %v513 = vmul.f32 %v449, 0.2
      %v514 = vmul.f32 %v450, 0.2
      %v515 = vmul.f32 %v451, 0.2
      %v516 = vmul.f32 %v452, 0.2
      %v517 = vmul.f32 %v453, 0.2
      %v518 = vmul.f32 %v454, 0.2
      %v519 = vmul.f32 %v455, 0.2
      %v520 = vmul.f32 %v456, 0.2
      %v521 = vmul.f32 %v457, 0.2
      %v522 = vsel %vm458, %v426, %v490
      %v523 = vsel %vm459, %v427, %v491
      %v524 = vsel %vm460, %v428, %v492
      %v525 = vsel %vm461, %v429, %v493
      %v526 = vsel %vm462, %v430, %v494
      %v527 = vsel %vm463, %v431, %v495
      %v528 = vsel %vm464, %v432, %v496
      %v529 = vsel %vm465, %v433, %v497
      %v530 = vsel %vm466, %v434, %v498
      %v531 = vsel %vm467, %v435, %v499
      %v532 = vsel %vm468, %v436, %v500
      %v533 = vsel %vm469, %v437, %v501
      %v534 = vsel %vm470, %v438, %v502
      %v535 = vsel %vm471, %v439, %v503
      %v536 = vsel %vm472, %v440, %v504
      %v537 = vsel %vm473, %v441, %v505
      %v538 = vsel %vm474, %v442, %v506
      %v539 = vsel %vm475, %v443, %v507
      %v540 = vsel %vm476, %v444, %v508
      %v541 = vsel %vm477, %v445, %v509
      %v542 = vsel %vm478, %v446, %v510
      %v543 = vsel %vm479, %v447, %v511
      %v544 = vsel %vm480, %v448, %v512
      %v545 = vsel %vm481, %v449, %v513
      %v546 = vsel %vm482, %v450, %v514
      %v547 = vsel %vm483, %v451, %v515
      %v548 = vsel %vm484, %v452, %v516
      %v549 = vsel %vm485, %v453, %v517
      %v550 = vsel %vm486, %v454, %v518
      %v551 = vsel %vm487, %v455, %v519
      %v552 = vsel %vm488, %v456, %v520
      %v553 = vsel %vm489, %v457, %v521
      %v554 = vpack.c.bf16 %v523, %v522
      %v555 = vpack.c.bf16 %v525, %v524
      %v556 = vpack.c.bf16 %v527, %v526
      %v557 = vpack.c.bf16 %v529, %v528
      %v558 = vpack.c.bf16 %v531, %v530
      %v559 = vpack.c.bf16 %v533, %v532
      %v560 = vpack.c.bf16 %v535, %v534
      %v561 = vpack.c.bf16 %v537, %v536
      %v562 = vpack.c.bf16 %v539, %v538
      %v563 = vpack.c.bf16 %v541, %v540
      %v564 = vpack.c.bf16 %v543, %v542
      %v565 = vpack.c.bf16 %v545, %v544
      %v566 = vpack.c.bf16 %v547, %v546
      %v567 = vpack.c.bf16 %v549, %v548
      %v568 = vpack.c.bf16 %v551, %v550
      %v569 = vpack.c.bf16 %v553, %v552
      %s570 = smul.u32 %s20, 16
      %v572 = vshrl.u32 %v554, 16
      %v574 = vrot.slane %v572, 7
      %v575 = vshll.u32 %v554, 16
      %v577 = vor.u32 %v574, %v575
      %v579 = vshrl.u32 %v555, 16
      %v581 = vrot.slane %v579, 7
      %v582 = vshll.u32 %v555, 16
      %v584 = vor.u32 %v581, %v582
      %v586 = vshrl.u32 %v556, 16
      %v588 = vrot.slane %v586, 7
      %v589 = vshll.u32 %v556, 16
      %v591 = vor.u32 %v588, %v589
      %v593 = vshrl.u32 %v557, 16
      %v595 = vrot.slane %v593, 7
      %v596 = vshll.u32 %v557, 16
      %v598 = vor.u32 %v595, %v596
      %v600 = vshrl.u32 %v558, 16
      %v602 = vrot.slane %v600, 7
      %v603 = vshll.u32 %v558, 16
      %v605 = vor.u32 %v602, %v603
      %v607 = vshrl.u32 %v559, 16
      %v609 = vrot.slane %v607, 7
      %v610 = vshll.u32 %v559, 16
      %v612 = vor.u32 %v609, %v610
      %v614 = vshrl.u32 %v560, 16
      %v616 = vrot.slane %v614, 7
      %v617 = vshll.u32 %v560, 16
      %v619 = vor.u32 %v616, %v617
      %v621 = vshrl.u32 %v561, 16
      %v623 = vrot.slane %v621, 7
      %v624 = vshll.u32 %v561, 16
      %v626 = vor.u32 %v623, %v624
      %v628 = vshrl.u32 %v562, 16
      %v630 = vrot.slane %v628, 7
      %v631 = vshll.u32 %v562, 16
      %v633 = vor.u32 %v630, %v631
      %v635 = vshrl.u32 %v563, 16
      %v637 = vrot.slane %v635, 7
      %v638 = vshll.u32 %v563, 16
      %v640 = vor.u32 %v637, %v638
      %v642 = vshrl.u32 %v564, 16
      %v644 = vrot.slane %v642, 7
      %v645 = vshll.u32 %v564, 16
      %v647 = vor.u32 %v644, %v645
      %v649 = vshrl.u32 %v565, 16
      %v651 = vrot.slane %v649, 7
      %v652 = vshll.u32 %v565, 16
      %v654 = vor.u32 %v651, %v652
      %v656 = vshrl.u32 %v566, 16
      %v658 = vrot.slane %v656, 7
      %v659 = vshll.u32 %v566, 16
      %v661 = vor.u32 %v658, %v659
      %v663 = vshrl.u32 %v567, 16
      %v665 = vrot.slane %v663, 7
      %v666 = vshll.u32 %v567, 16
      %v668 = vor.u32 %v665, %v666
      %v670 = vshrl.u32 %v568, 16
      %v672 = vrot.slane %v670, 7
      %v673 = vshll.u32 %v568, 16
      %v675 = vor.u32 %v672, %v673
      %v677 = vshrl.u32 %v569, 16
      %v679 = vrot.slane %v677, 7
      %v680 = vshll.u32 %v569, 16
      %v682 = vor.u32 %v679, %v680
      %vm715 = vcmask 1040384
      %vm716 = vsmask.f32 256
      %vm717 = vmand %vm715, %vm716
      %v718 = vsel %vm717, 0, %v577
      %v719 = vsel %vm717, 0, %v584
      %v720 = vsel %vm717, 0, %v591
      %v721 = vsel %vm717, 0, %v598
      %v722 = vsel %vm717, 0, %v605
      %v723 = vsel %vm717, 0, %v612
      %v724 = vsel %vm717, 0, %v619
      %v725 = vsel %vm717, 0, %v626
      %v726 = vsel %vm717, 0, %v633
      %v727 = vsel %vm717, 0, %v640
      %v728 = vsel %vm717, 0, %v647
      %v729 = vsel %vm717, 0, %v654
      %v730 = vsel %vm717, 0, %v661
      %v731 = vsel %vm717, 0, %v668
      %v732 = vsel %vm717, 0, %v675
      %v733 = vsel %vm717, 0, %v682
      %v734 = vsel %vm717, %v574, 0
      %v735 = vsel %vm717, %v581, 0
      %v736 = vsel %vm717, %v588, 0
      %v737 = vsel %vm717, %v595, 0
      %v738 = vsel %vm717, %v602, 0
      %v739 = vsel %vm717, %v609, 0
      %v740 = vsel %vm717, %v616, 0
      %v741 = vsel %vm717, %v623, 0
      %v742 = vsel %vm717, %v630, 0
      %v743 = vsel %vm717, %v637, 0
      %v744 = vsel %vm717, %v644, 0
      %v745 = vsel %vm717, %v651, 0
      %v746 = vsel %vm717, %v658, 0
      %v747 = vsel %vm717, %v665, 0
      %v748 = vsel %vm717, %v672, 0
      %v749 = vsel %vm717, %v679, 0
      %s750 = sadd.s32 %s570, 1
      %v783 = vunpack.c.l.b16 %v718
      %v784 = vunpack.c.h.b16 %v718
      %v785 = vunpack.c.l.b16 %v734
      %v786 = vunpack.c.l.b16 %v719
      %v787 = vunpack.c.h.b16 %v719
      %v788 = vunpack.c.l.b16 %v735
      %v789 = vunpack.c.l.b16 %v720
      %v790 = vunpack.c.h.b16 %v720
      %v791 = vunpack.c.l.b16 %v736
      %v792 = vunpack.c.l.b16 %v721
      %v793 = vunpack.c.h.b16 %v721
      %v794 = vunpack.c.l.b16 %v737
      %v795 = vunpack.c.l.b16 %v722
      %v796 = vunpack.c.h.b16 %v722
      %v797 = vunpack.c.l.b16 %v738
      %v798 = vunpack.c.l.b16 %v723
      %v799 = vunpack.c.h.b16 %v723
      %v800 = vunpack.c.l.b16 %v739
      %v801 = vunpack.c.l.b16 %v724
      %v802 = vunpack.c.h.b16 %v724
      %v803 = vunpack.c.l.b16 %v740
      %v804 = vunpack.c.l.b16 %v725
      %v805 = vunpack.c.h.b16 %v725
      %v806 = vunpack.c.l.b16 %v741
      %v807 = vunpack.c.l.b16 %v726
      %v808 = vunpack.c.h.b16 %v726
      %v809 = vunpack.c.l.b16 %v742
      %v810 = vunpack.c.l.b16 %v727
      %v811 = vunpack.c.h.b16 %v727
      %v812 = vunpack.c.l.b16 %v743
      %v813 = vunpack.c.l.b16 %v728
      %v814 = vunpack.c.h.b16 %v728
      %v815 = vunpack.c.l.b16 %v744
      %v816 = vunpack.c.l.b16 %v729
      %v817 = vunpack.c.h.b16 %v729
      %v818 = vunpack.c.l.b16 %v745
      %v819 = vunpack.c.l.b16 %v730
      %v820 = vunpack.c.h.b16 %v730
      %v821 = vunpack.c.l.b16 %v746
      %v822 = vunpack.c.l.b16 %v731
      %v823 = vunpack.c.h.b16 %v731
      %v824 = vunpack.c.l.b16 %v747
      %v825 = vunpack.c.l.b16 %v732
      %v826 = vunpack.c.h.b16 %v732
      %v827 = vunpack.c.l.b16 %v748
      %v828 = vunpack.c.l.b16 %v733
      %v829 = vunpack.c.h.b16 %v733
      %v830 = vunpack.c.l.b16 %v749
      %v831 = vpack.c.b16 %v783, %v783
      %v832 = vpack.c.b16 %v784, %v784
      %v833 = vpack.c.b16 %v785, %v785
      %v834 = vpack.c.b16 %v786, %v786
      %v835 = vpack.c.b16 %v787, %v787
      %v836 = vpack.c.b16 %v788, %v788
      %v837 = vpack.c.b16 %v789, %v789
      %v838 = vpack.c.b16 %v790, %v790
      %v839 = vpack.c.b16 %v791, %v791
      %v840 = vpack.c.b16 %v792, %v792
      %v841 = vpack.c.b16 %v793, %v793
      %v842 = vpack.c.b16 %v794, %v794
      %v843 = vpack.c.b16 %v795, %v795
      %v844 = vpack.c.b16 %v796, %v796
      %v845 = vpack.c.b16 %v797, %v797
      %v846 = vpack.c.b16 %v798, %v798
      %v847 = vpack.c.b16 %v799, %v799
      %v848 = vpack.c.b16 %v800, %v800
      %v849 = vpack.c.b16 %v801, %v801
      %v850 = vpack.c.b16 %v802, %v802
      %v851 = vpack.c.b16 %v803, %v803
      %v852 = vpack.c.b16 %v804, %v804
      %v853 = vpack.c.b16 %v805, %v805
      %v854 = vpack.c.b16 %v806, %v806
      %v855 = vpack.c.b16 %v807, %v807
      %v856 = vpack.c.b16 %v808, %v808
      %v857 = vpack.c.b16 %v809, %v809
      %v858 = vpack.c.b16 %v810, %v810
      %v859 = vpack.c.b16 %v811, %v811
      %v860 = vpack.c.b16 %v812, %v812
      %v861 = vpack.c.b16 %v813, %v813
      %v862 = vpack.c.b16 %v814, %v814
      %v863 = vpack.c.b16 %v815, %v815
      %v864 = vpack.c.b16 %v816, %v816
      %v865 = vpack.c.b16 %v817, %v817
      %v866 = vpack.c.b16 %v818, %v818
      %v867 = vpack.c.b16 %v819, %v819
      %v868 = vpack.c.b16 %v820, %v820
      %v869 = vpack.c.b16 %v821, %v821
      %v870 = vpack.c.b16 %v822, %v822
      %v871 = vpack.c.b16 %v823, %v823
      %v872 = vpack.c.b16 %v824, %v824
      %v873 = vpack.c.b16 %v825, %v825
      %v874 = vpack.c.b16 %v826, %v826
      %v875 = vpack.c.b16 %v827, %v827
      %v876 = vpack.c.b16 %v828, %v828
      %v877 = vpack.c.b16 %v829, %v829
      %v878 = vpack.c.b16 %v830, %v830
      %s927 = smul.u32 %s750, 3
      %s928 = smul.addr %s927, 4
      %s929 = scalar_lea.vmem %s242, %s928
      %930 = vst [vmem:[%s929] sm:$0xf] %v831
      %931 = vst [vmem:[%s929 + $0x4] sm:$0xf] %v832
      %932 = vst [vmem:[%s929 + $0x8] sm:$0x1] %v833
      %933 = vst [vmem:[%s929 + $0xc] sm:$0xf] %v834
      %934 = vst [vmem:[%s929 + $0x10] sm:$0xf] %v835
      %935 = vst [vmem:[%s929 + $0x14] sm:$0x1] %v836
      %936 = vst [vmem:[%s929 + $0x18] sm:$0xf] %v837
      %937 = vst [vmem:[%s929 + $0x1c] sm:$0xf] %v838
      %938 = vst [vmem:[%s929 + $0x20] sm:$0x1] %v839
      %939 = vst [vmem:[%s929 + $0x24] sm:$0xf] %v840
      %940 = vst [vmem:[%s929 + $0x28] sm:$0xf] %v841
      %941 = vst [vmem:[%s929 + $0x2c] sm:$0x1] %v842
      %942 = vst [vmem:[%s929 + $0x30] sm:$0xf] %v843
      %943 = vst [vmem:[%s929 + $0x34] sm:$0xf] %v844
      %944 = vst [vmem:[%s929 + $0x38] sm:$0x1] %v845
      %945 = vst [vmem:[%s929 + $0x3c] sm:$0xf] %v846
      %946 = vst [vmem:[%s929 + $0x40] sm:$0xf] %v847
      %947 = vst [vmem:[%s929 + $0x44] sm:$0x1] %v848
      %948 = vst [vmem:[%s929 + $0x48] sm:$0xf] %v849
      %949 = vst [vmem:[%s929 + $0x4c] sm:$0xf] %v850
      %950 = vst [vmem:[%s929 + $0x50] sm:$0x1] %v851
      %951 = vst [vmem:[%s929 + $0x54] sm:$0xf] %v852
      %952 = vst [vmem:[%s929 + $0x58] sm:$0xf] %v853
      %953 = vst [vmem:[%s929 + $0x5c] sm:$0x1] %v854
      %954 = vst [vmem:[%s929 + $0x60] sm:$0xf] %v855
      %955 = vst [vmem:[%s929 + $0x64] sm:$0xf] %v856
      %956 = vst [vmem:[%s929 + $0x68] sm:$0x1] %v857
      %957 = vst [vmem:[%s929 + $0x6c] sm:$0xf] %v858
      %958 = vst [vmem:[%s929 + $0x70] sm:$0xf] %v859
      %959 = vst [vmem:[%s929 + $0x74] sm:$0x1] %v860
      %960 = vst [vmem:[%s929 + $0x78] sm:$0xf] %v861
      %961 = vst [vmem:[%s929 + $0x7c] sm:$0xf] %v862
      %962 = vst [vmem:[%s929 + $0x80] sm:$0x1] %v863
      %963 = vst [vmem:[%s929 + $0x84] sm:$0xf] %v864
      %964 = vst [vmem:[%s929 + $0x88] sm:$0xf] %v865
      %965 = vst [vmem:[%s929 + $0x8c] sm:$0x1] %v866
      %966 = vst [vmem:[%s929 + $0x90] sm:$0xf] %v867
      %967 = vst [vmem:[%s929 + $0x94] sm:$0xf] %v868
      %968 = vst [vmem:[%s929 + $0x98] sm:$0x1] %v869
      %969 = vst [vmem:[%s929 + $0x9c] sm:$0xf] %v870
      %970 = vst [vmem:[%s929 + $0xa0] sm:$0xf] %v871
      %971 = vst [vmem:[%s929 + $0xa4] sm:$0x1] %v872
      %972 = vst [vmem:[%s929 + $0xa8] sm:$0xf] %v873
      %973 = vst [vmem:[%s929 + $0xac] sm:$0xf] %v874
      %974 = vst [vmem:[%s929 + $0xb0] sm:$0x1] %v875
      %975 = vst [vmem:[%s929 + $0xb4] sm:$0xf] %v876
      %976 = vst [vmem:[%s929 + $0xb8] sm:$0xf] %v877
      %977 = vst [vmem:[%s929 + $0xbc] sm:$0x1] %v878
      %p978 = scmp.lt.s32.totalorder %s19, 1
      %s979 = scalar_select %p978, %s19, 1
      %s980 = smul.addr %s979, 54
      %s981 = smul.addr %s980, 4
      %s982 = scalar_lea.vmem %s4, %s981
      // Predicated region
      $region41: #{hin_conv_block.4} parent=35 // pred_check
        %p983 = pneg %p141
      $region42: #{hin_conv_block.4} parent=35 // pred_check_branch
        %985 = sbr.rel (%p983) target = $region44
      $region43: #{hin_conv_block.4} parent=35 // pred_region
        _
      $region44: #{hin_conv_block.4} parent=35 // pred_fallthru
        _
    $region36: #{hin_conv_block.4} parent=5 // pred_fallthru
      _
    %p986 = scmp.le.s32.totalorder 2, %s10
    // Predicated region
    $region45: #{hin_conv_block.4} parent=5 // pred_check
      %p987 = pneg %p986
    $region46: #{hin_conv_block.4} parent=5 // pred_check_branch
      %989 = sbr.rel (%p987) target = $region48
    $region47: #{hin_conv_block.4} parent=5 // pred_region
      %s990 = ssub.s32 %s10, 2
      // Predicated region
      $region49: #{hin_conv_block.4} parent=47 // pred_check
        %p991 = pneg %p147
      $region50: #{hin_conv_block.4} parent=47 // pred_check_branch
        %993 = sbr.rel (%p991) target = $region52
      $region51: #{hin_conv_block.4} parent=47 // pred_region
        %p994 = scmp.lt.s32.totalorder %s21, 1
        %s995 = scalar_select %p994, %s21, 1
        %s996 = smul.addr %s995, 54
        %s997 = smul.addr %s996, 4
        %s998 = scalar_lea.vmem %s4, %s997
      $region52: #{hin_conv_block.4} parent=47 // pred_fallthru
        _
    $region48: #{hin_conv_block.4} parent=5 // pred_fallthru
      _
  $region6: #{hin_conv_block.4} parent=0 // loop_footer
    %s14 = sadd.s32 1, %s10
  $region7: #{hin_conv_block.4} parent=0 // loop_footer_branch
    %9 = sbr.rel target = $region3
  $region8: #{hin_conv_block.4} parent=0 // loop_exit
    _

// kernel: hin_conv_block.3
$region0: #{hin_conv_block.3}
  #allocation0 [shape = 'u32[]', space=smem, size = 0x4, offset = 0x4, fixed_abs, tag = 'smem constant byte address 0x4 - core index']
  #allocation1 [shape = 'u32[144,128]{1,0:T(1,128)}', space=vmem, size = 0x12000, scoped, tag = 'internal scratch']
  %s0 = inlined_call_operand.vmem [shape: bf16[2,18,18,4], index: 0, kind: input, shape index: {}]
  %s1 = inlined_call_operand.vmem [shape: bf16[36,128], index: 1, kind: input, shape index: {}]
  %s2 = inlined_call_operand.vmem [shape: f32[1,128], index: 2, kind: input, shape index: {}]
  %s3 = inlined_call_operand.vmem [shape: bf16[2,256,128], index: 3, kind: output, shape index: {0}]
  %s4 = inlined_call_operand.vmem [shape: f32[2,2,128], index: 4, kind: output, shape index: {1}]
  %5 = xla_tuple %s3, %s4
  %s6 = sld [smem:[#allocation0]]
  $region57: #{hin_conv_block.3} parent=0
    _
  %s8 = ssub.s32 1, %s6
  %s9 = scalar_select 0, %s8, %s6
  loop: start=0, step=1, limit=4
  $region2: #{hin_conv_block.3} parent=0 // loop_pre_header
    _
  $region3: #{hin_conv_block.3} parent=0 // loop_header
    %s11 = sphi 0, %s15
    %p12 = scmp.ge.s32.totalorder %s11, 4
    %s18 = sphi 0, %s30
    %s19 = sphi 0, %s26
    %s20 = sphi 0, %s18
    %s21 = sphi 0, %s19
    %s22 = sphi 0, %s20
    %s23 = sphi 0, %s21
    %s33 = sphi 0, %s35
    %s36 = sphi 0, %s33
    %s37 = sphi 0, %s36
    %s53 = sphi 0, %s37
    %s57 = sphi 0, %s57
    %s59 = sphi 0, %s57
    %s60 = sphi 0, %s59
    %s74 = sphi 0, %s60
    %s78 = sphi 0, %s78
    %s80 = sphi 0, %s78
    %s81 = sphi 0, %s80
    %s95 = sphi 0, %s81
    %s103 = sphi 0, %s105
    %s106 = sphi 0, %s103
    %s107 = sphi 0, %s106
    %s123 = sphi 0, %s107
    %s129 = sphi 0, %s131
    %s132 = sphi 0, %s129
    %s133 = sphi 0, %s132
    %s149 = sphi 0, %s133
  $region4: #{hin_conv_block.3} parent=0 // loop_header_branch
    %14 = sbr.rel (%p12) target = $region8
  $region5: #{hin_conv_block.3} parent=0 // loop_body
    %s16 = ssub.s32 %s11, 1
    %s17 = ssub.s32 %s11, 2
    %s24 = sadd.s32 1, %s19
    %p25 = scmp.ge.s32.totalorder %s24, 1
    %s26 = scalar_select %p25, 0, %s24
    %s27 = sadd.s32 1, %s18
    %s28 = scalar_select %p25, %s27, %s18
    %p29 = scmp.ge.s32.totalorder %s28, 2
    %s30 = scalar_select %p29, 0, %s28
    %s31 = ssub.s32 %s18, %s30
    %p32 = scmp.eq.s32.totalorder %s31, 0
    %s34 = sadd.s32 %s33, 1
    %s35 = scalar_select %p32, %s33, %s34
    %p38 = pneg %p32
    %p39 = scmp.eq.s32.totalorder %s11, 1
    %p40 = por %p38, %p39
    %p41 = scmp.ne.s32.totalorder %s33, %s36
    %p42 = scmp.eq.s32.totalorder %s11, 0
    %p43 = por %p41, %p42
    %p44 = scmp.ne.s32.totalorder %s33, %s36
    %p45 = scmp.eq.s32.totalorder %s16, 1
    %p46 = por %p44, %p45
    %p47 = scmp.ne.s32.totalorder %s36, %s37
    %p48 = scmp.eq.s32.totalorder %s16, 0
    %p49 = por %p47, %p48
    %p50 = scmp.ne.s32.totalorder %s36, %s37
    %p51 = scmp.eq.s32.totalorder %s17, 1
    %p52 = por %p50, %p51
    %p54 = scmp.ne.s32.totalorder %s37, %s53
    %p55 = scmp.eq.s32.totalorder %s17, 0
    %p56 = por %p54, %p55
    %s58 = sadd.s32 %s57, 1
    %p61 = scmp.eq.s32.totalorder %s11, 1
    %p62 = scmp.ne.s32.totalorder %s57, %s59
    %p63 = scmp.eq.s32.totalorder %s11, 0
    %p64 = por %p62, %p63
    %p65 = scmp.ne.s32.totalorder %s57, %s59
    %p66 = scmp.eq.s32.totalorder %s16, 1
    %p67 = por %p65, %p66
    %p68 = scmp.ne.s32.totalorder %s59, %s60
    %p69 = scmp.eq.s32.totalorder %s16, 0
    %p70 = por %p68, %p69
    %p71 = scmp.ne.s32.totalorder %s59, %s60
    %p72 = scmp.eq.s32.totalorder %s17, 1
    %p73 = por %p71, %p72
    %p75 = scmp.ne.s32.totalorder %s60, %s74
    %p76 = scmp.eq.s32.totalorder %s17, 0
    %p77 = por %p75, %p76
    %s79 = sadd.s32 %s78, 1
    %p82 = scmp.eq.s32.totalorder %s11, 1
    %p83 = scmp.ne.s32.totalorder %s78, %s80
    %p84 = scmp.eq.s32.totalorder %s11, 0
    %p85 = por %p83, %p84
    %p86 = scmp.ne.s32.totalorder %s78, %s80
    %p87 = scmp.eq.s32.totalorder %s16, 1
    %p88 = por %p86, %p87
    %p89 = scmp.ne.s32.totalorder %s80, %s81
    %p90 = scmp.eq.s32.totalorder %s16, 0
    %p91 = por %p89, %p90
    %p92 = scmp.ne.s32.totalorder %s80, %s81
    %p93 = scmp.eq.s32.totalorder %s17, 1
    %p94 = por %p92, %p93
    %p96 = scmp.ne.s32.totalorder %s81, %s95
    %p97 = scmp.eq.s32.totalorder %s17, 0
    %p98 = por %p96, %p97
    %s99 = ssub.s32 %s18, %s30
    %s100 = ssub.s32 %s19, %s26
    %s101 = sor.u32 %s99, %s100
    %p102 = scmp.eq.s32.totalorder %s101, 0
    %s104 = sadd.s32 %s103, 1
    %s105 = scalar_select %p102, %s103, %s104
    %p108 = pneg %p102
    %p109 = scmp.eq.s32.totalorder %s11, 1
    %p110 = por %p108, %p109
    %p111 = scmp.ne.s32.totalorder %s103, %s106
    %p112 = scmp.eq.s32.totalorder %s11, 0
    %p113 = por %p111, %p112
    %p114 = scmp.ne.s32.totalorder %s103, %s106
    %p115 = scmp.eq.s32.totalorder %s16, 1
    %p116 = por %p114, %p115
    %p117 = scmp.ne.s32.totalorder %s106, %s107
    %p118 = scmp.eq.s32.totalorder %s16, 0
    %p119 = por %p117, %p118
    %p120 = scmp.ne.s32.totalorder %s106, %s107
    %p121 = scmp.eq.s32.totalorder %s17, 1
    %p122 = por %p120, %p121
    %p124 = scmp.ne.s32.totalorder %s107, %s123
    %p125 = scmp.eq.s32.totalorder %s17, 0
    %p126 = por %p124, %p125
    %s127 = ssub.s32 %s18, %s30
    %p128 = scmp.eq.s32.totalorder %s127, 0
    %s130 = sadd.s32 %s129, 1
    %s131 = scalar_select %p128, %s129, %s130
    %p134 = pneg %p128
    %p135 = scmp.eq.s32.totalorder %s11, 1
    %p136 = por %p134, %p135
    %p137 = scmp.ne.s32.totalorder %s129, %s132
    %p138 = scmp.eq.s32.totalorder %s11, 0
    %p139 = por %p137, %p138
    %p140 = scmp.ne.s32.totalorder %s129, %s132
    %p141 = scmp.eq.s32.totalorder %s16, 1
    %p142 = por %p140, %p141
    %p143 = scmp.ne.s32.totalorder %s132, %s133
    %p144 = scmp.eq.s32.totalorder %s16, 0
    %p145 = por %p143, %p144
    %p146 = scmp.ne.s32.totalorder %s132, %s133
    %p147 = scmp.eq.s32.totalorder %s17, 1
    %p148 = por %p146, %p147
    %p150 = scmp.ne.s32.totalorder %s133, %s149
    %p151 = scmp.eq.s32.totalorder %s17, 0
    %p152 = por %p150, %p151
    %p153 = scmp.le.s32.totalorder 1, %s11
    %p154 = scmp.lt.s32.totalorder %s11, 3
    %p155 = pnand %p153, %p154
    %p156 = pneg %p155
    // Predicated region
    $region9: #{hin_conv_block.3} parent=5 // pred_check
      _
    $region10: #{hin_conv_block.3} parent=5 // pred_check_branch
      %158 = sbr.rel (%p155) target = $region12
    $region11: #{hin_conv_block.3} parent=5 // pred_region
      %s159 = ssub.s32 %s11, 1
      // Predicated region
      $region13: #{hin_conv_block.3} parent=11 // pred_check
        %p160 = pneg %p70
      $region14: #{hin_conv_block.3} parent=11 // pred_check_branch
        %162 = sbr.rel (%p160) target = $region16
      $region15: #{hin_conv_block.3} parent=11 // pred_region
        _
      $region16: #{hin_conv_block.3} parent=11 // pred_fallthru
        _
      // Predicated region
      $region17: #{hin_conv_block.3} parent=11 // pred_check
        %p163 = pneg %p91
      $region18: #{hin_conv_block.3} parent=11 // pred_check_branch
        %165 = sbr.rel (%p163) target = $region20
      $region19: #{hin_conv_block.3} parent=11 // pred_region
        _
      $region20: #{hin_conv_block.3} parent=11 // pred_fallthru
        _
    $region12: #{hin_conv_block.3} parent=5 // pred_fallthru
      _
    %p166 = scmp.lt.s32.totalorder %s11, 2
    // Predicated region
    $region21: #{hin_conv_block.3} parent=5 // pred_check
      %p167 = pneg %p166
    $region22: #{hin_conv_block.3} parent=5 // pred_check_branch
      %169 = sbr.rel (%p167) target = $region24
    $region23: #{hin_conv_block.3} parent=5 // pred_region
      // Predicated region
      $region25: #{hin_conv_block.3} parent=23 // pred_check
        %p170 = pneg %p43
      $region26: #{hin_conv_block.3} parent=23 // pred_check_branch
        %172 = sbr.rel (%p170) target = $region28
      $region27: #{hin_conv_block.3} parent=23 // pred_region
        %p173 = scmp.lt.s32.totalorder %s18, 1
        %s174 = scalar_select %p173, %s18, 1
        %s175 = smul.addr %s174, 54
        %s176 = smul.addr %s175, 4
        %s177 = scalar_lea.vmem %s0, %s176
      $region28: #{hin_conv_block.3} parent=23 // pred_fallthru
        _
    $region24: #{hin_conv_block.3} parent=5 // pred_fallthru
      _
    %p178 = scmp.le.s32.totalorder 1, %s11
    %p179 = scmp.lt.s32.totalorder %s11, 3
    %p180 = pnand %p178, %p179
    %p181 = pneg %p180
    // Predicated region
    $region29: #{hin_conv_block.3} parent=5 // pred_check
      _
    $region30: #{hin_conv_block.3} parent=5 // pred_check_branch
      %183 = sbr.rel (%p180) target = $region32
    $region31: #{hin_conv_block.3} parent=5 // pred_region
      %s184 = ssub.s32 %s11, 1
      %p185 = scmp.lt.s32.totalorder %s20, 1
      %s186 = scalar_select %p185, %s20, 1
      %s187 = smul.addr %s186, 54
      %s188 = smul.addr %s187, 4
      %s189 = scalar_lea.vmem %s0, %s188
      %p190 = pneg %p49
      %p191 = pneg %p46
      %p192 = pneg %p70
      %p193 = pneg %p67
      %p194 = pneg %p91
      %p195 = pneg %p88
      %p196 = pneg %p119
      %p197 = pneg %p116
      %s198 = smul.u32 32, %s21
      %p199 = scmp.lt.s32.totalorder %s20, 1
      %s200 = scalar_select %p199, %s20, 1
      %p201 = scmp.lt.s32.totalorder %s198, 31
      %s202 = scalar_select %p201, %s198, 31
      %s203 = smul.addr %s200, 32
      %s204 = sadd.s32 %s202, %s203
      %s205 = smul.addr %s204, 4
      %s206 = scalar_lea.vmem %s3, %s205
      %p207 = pneg %p145
      %p208 = pneg %p142
      %p209 = scmp.lt.s32.totalorder %s20, 1
      %s210 = scalar_select %p209, %s20, 1
      %s211 = smul.addr %s210, 2
      %s212 = scalar_lea.vmem %s4, %s211
      %p213 = scmp.lt.s32.totalorder %s20, 1
      %s214 = scalar_select %p213, %s20, 1
      %s215 = smul.addr %s214, 54
      %s216 = smul.addr %s215, 4
      %s217 = scalar_lea.vmem %s0, %s216
      %s218 = smul.u32 32, %s21
      %p219 = scmp.lt.s32.totalorder %s20, 1
      %s220 = scalar_select %p219, %s20, 1
      %p221 = scmp.lt.s32.totalorder %s218, 31
      %s222 = scalar_select %p221, %s218, 31
      %s223 = smul.addr %s220, 32
      %s224 = sadd.s32 %s222, %s223
      %s225 = smul.addr %s224, 4
      %s226 = scalar_lea.vmem %s3, %s225
      %s227 = smul.u32 32, %s21
      %p228 = scmp.lt.s32.totalorder %s20, 1
      %s229 = scalar_select %p228, %s20, 1
      %s230 = smul.addr %s229, 2
      %s231 = scalar_lea.vmem %s4, %s230
      %s233 = smul.u32 %s21, 16
      %s234 = smul.u32 %s233, 3
      %s235 = smul.addr %s234, 4
      %s236 = scalar_lea.vmem %s217, %s235
      %v237 = vld [vmem:[%s236] sm:$0xf]
      %v238 = vld [vmem:[%s236 + $0x4] sm:$0xf]
      %v239 = vld [vmem:[%s236 + $0xc] sm:$0xf]
      %v240 = vld [vmem:[%s236 + $0x10] sm:$0xf]
      %v241 = vld [vmem:[%s236 + $0x18] sm:$0xf]
      %v242 = vld [vmem:[%s236 + $0x1c] sm:$0xf]
      %v243 = vld [vmem:[%s236 + $0x24] sm:$0xf]
      %v244 = vld [vmem:[%s236 + $0x28] sm:$0xf]
      %v245 = vld [vmem:[%s236 + $0x30] sm:$0xf]
      %v246 = vld [vmem:[%s236 + $0x34] sm:$0xf]
      %v247 = vld [vmem:[%s236 + $0x3c] sm:$0xf]
      %v248 = vld [vmem:[%s236 + $0x40] sm:$0xf]
      %v249 = vld [vmem:[%s236 + $0x48] sm:$0xf]
      %v250 = vld [vmem:[%s236 + $0x4c] sm:$0xf]
      %v251 = vld [vmem:[%s236 + $0x54] sm:$0xf]
      %v252 = vld [vmem:[%s236 + $0x58] sm:$0xf]
      %v253 = vld [vmem:[%s236 + $0x60] sm:$0xf]
      %v254 = vld [vmem:[%s236 + $0x64] sm:$0xf]
      %v255 = vld [vmem:[%s236 + $0x6c] sm:$0xf]
      %v256 = vld [vmem:[%s236 + $0x70] sm:$0xf]
      %v257 = vld [vmem:[%s236 + $0x78] sm:$0xf]
      %v258 = vld [vmem:[%s236 + $0x7c] sm:$0xf]
      %v259 = vld [vmem:[%s236 + $0x84] sm:$0xf]
      %v260 = vld [vmem:[%s236 + $0x88] sm:$0xf]
      %v261 = vld [vmem:[%s236 + $0x90] sm:$0xf]
      %v262 = vld [vmem:[%s236 + $0x94] sm:$0xf]
      %v263 = vld [vmem:[%s236 + $0x9c] sm:$0xf]
      %v264 = vld [vmem:[%s236 + $0xa0] sm:$0xf]
      %v265 = vld [vmem:[%s236 + $0xa8] sm:$0xf]
      %v266 = vld [vmem:[%s236 + $0xac] sm:$0xf]
      %v267 = vld [vmem:[%s236 + $0xb4] sm:$0xf]
      %v268 = vld [vmem:[%s236 + $0xb8] sm:$0xf]
      %v269 = vld [vmem:[%s236 + $0x8] sm:$0x1]
      %v270 = vld [vmem:[%s236 + $0x14] sm:$0x1]
      %v271 = vld [vmem:[%s236 + $0x20] sm:$0x1]
      %v272 = vld [vmem:[%s236 + $0x2c] sm:$0x1]
      %v273 = vld [vmem:[%s236 + $0x38] sm:$0x1]
      %v274 = vld [vmem:[%s236 + $0x44] sm:$0x1]
      %v275 = vld [vmem:[%s236 + $0x50] sm:$0x1]
      %v276 = vld [vmem:[%s236 + $0x5c] sm:$0x1]
      %v277 = vld [vmem:[%s236 + $0x68] sm:$0x1]
      %v278 = vld [vmem:[%s236 + $0x74] sm:$0x1]
      %v279 = vld [vmem:[%s236 + $0x80] sm:$0x1]
      %v280 = vld [vmem:[%s236 + $0x8c] sm:$0x1]
      %v281 = vld [vmem:[%s236 + $0x98] sm:$0x1]
      %v282 = vld [vmem:[%s236 + $0xa4] sm:$0x1]
      %v283 = vld [vmem:[%s236 + $0xb0] sm:$0x1]
      %v284 = vld [vmem:[%s236 + $0xbc] sm:$0x1]
      %v285 = vld [vmem:[%s236] sm:$0xe]
      %v286 = vld [vmem:[%s236 + $0xc] sm:$0xe]
      %v287 = vld [vmem:[%s236 + $0x18] sm:$0xe]
      %v288 = vld [vmem:[%s236 + $0x24] sm:$0xe]
      %v289 = vld [vmem:[%s236 + $0x30] sm:$0xe]
      %v290 = vld [vmem:[%s236 + $0x3c] sm:$0xe]
      %v291 = vld [vmem:[%s236 + $0x48] sm:$0xe]
      %v292 = vld [vmem:[%s236 + $0x54] sm:$0xe]
      %v293 = vld [vmem:[%s236 + $0x60] sm:$0xe]
      %v294 = vld [vmem:[%s236 + $0x6c] sm:$0xe]
      %v295 = vld [vmem:[%s236 + $0x78] sm:$0xe]
      %v296 = vld [vmem:[%s236 + $0x84] sm:$0xe]
      %v297 = vld [vmem:[%s236 + $0x90] sm:$0xe]
      %v298 = vld [vmem:[%s236 + $0x9c] sm:$0xe]
      %v299 = vld [vmem:[%s236 + $0xa8] sm:$0xe]
      %v300 = vld [vmem:[%s236 + $0xb4] sm:$0xe]
      %s301 = sadd.s32 %s233, 1
      %s302 = smul.u32 %s301, 3
      %s303 = smul.addr %s302, 4
      %s304 = scalar_lea.vmem %s217, %s303
      %v305 = vld [vmem:[%s304] sm:$0xf]
      %v306 = vld [vmem:[%s304 + $0x4] sm:$0xf]
      %v307 = vld [vmem:[%s304 + $0xc] sm:$0xf]
      %v308 = vld [vmem:[%s304 + $0x10] sm:$0xf]
      %v309 = vld [vmem:[%s304 + $0x18] sm:$0xf]
      %v310 = vld [vmem:[%s304 + $0x1c] sm:$0xf]
      %v311 = vld [vmem:[%s304 + $0x24] sm:$0xf]
      %v312 = vld [vmem:[%s304 + $0x28] sm:$0xf]
      %v313 = vld [vmem:[%s304 + $0x30] sm:$0xf]
      %v314 = vld [vmem:[%s304 + $0x34] sm:$0xf]
      %v315 = vld [vmem:[%s304 + $0x3c] sm:$0xf]
      %v316 = vld [vmem:[%s304 + $0x40] sm:$0xf]
      %v317 = vld [vmem:[%s304 + $0x48] sm:$0xf]
      %v318 = vld [vmem:[%s304 + $0x4c] sm:$0xf]
      %v319 = vld [vmem:[%s304 + $0x54] sm:$0xf]
      %v320 = vld [vmem:[%s304 + $0x58] sm:$0xf]
      %v321 = vld [vmem:[%s304 + $0x60] sm:$0xf]
      %v322 = vld [vmem:[%s304 + $0x64] sm:$0xf]
      %v323 = vld [vmem:[%s304 + $0x6c] sm:$0xf]
      %v324 = vld [vmem:[%s304 + $0x70] sm:$0xf]
      %v325 = vld [vmem:[%s304 + $0x78] sm:$0xf]
      %v326 = vld [vmem:[%s304 + $0x7c] sm:$0xf]
      %v327 = vld [vmem:[%s304 + $0x84] sm:$0xf]
      %v328 = vld [vmem:[%s304 + $0x88] sm:$0xf]
      %v329 = vld [vmem:[%s304 + $0x90] sm:$0xf]
      %v330 = vld [vmem:[%s304 + $0x94] sm:$0xf]
      %v331 = vld [vmem:[%s304 + $0x9c] sm:$0xf]
      %v332 = vld [vmem:[%s304 + $0xa0] sm:$0xf]
      %v333 = vld [vmem:[%s304 + $0xa8] sm:$0xf]
      %v334 = vld [vmem:[%s304 + $0xac] sm:$0xf]
      %v335 = vld [vmem:[%s304 + $0xb4] sm:$0xf]
      %v336 = vld [vmem:[%s304 + $0xb8] sm:$0xf]
      %v337 = vld [vmem:[%s304 + $0x8] sm:$0x1]
      %v338 = vld [vmem:[%s304 + $0x14] sm:$0x1]
      %v339 = vld [vmem:[%s304 + $0x20] sm:$0x1]
      %v340 = vld [vmem:[%s304 + $0x2c] sm:$0x1]
      %v341 = vld [vmem:[%s304 + $0x38] sm:$0x1]
      %v342 = vld [vmem:[%s304 + $0x44] sm:$0x1]
      %v343 = vld [vmem:[%s304 + $0x50] sm:$0x1]
      %v344 = vld [vmem:[%s304 + $0x5c] sm:$0x1]
      %v345 = vld [vmem:[%s304 + $0x68] sm:$0x1]
      %v346 = vld [vmem:[%s304 + $0x74] sm:$0x1]
      %v347 = vld [vmem:[%s304 + $0x80] sm:$0x1]
      %v348 = vld [vmem:[%s304 + $0x8c] sm:$0x1]
      %v349 = vld [vmem:[%s304 + $0x98] sm:$0x1]
      %v350 = vld [vmem:[%s304 + $0xa4] sm:$0x1]
      %v351 = vld [vmem:[%s304 + $0xb0] sm:$0x1]
      %v352 = vld [vmem:[%s304 + $0xbc] sm:$0x1]
      %v353 = vld [vmem:[%s304] sm:$0xe]
      %v354 = vld [vmem:[%s304 + $0xc] sm:$0xe]
      %v355 = vld [vmem:[%s304 + $0x18] sm:$0xe]
      %v356 = vld [vmem:[%s304 + $0x24] sm:$0xe]
      %v357 = vld [vmem:[%s304 + $0x30] sm:$0xe]
      %v358 = vld [vmem:[%s304 + $0x3c] sm:$0xe]
      %v359 = vld [vmem:[%s304 + $0x48] sm:$0xe]
      %v360 = vld [vmem:[%s304 + $0x54] sm:$0xe]
      %v361 = vld [vmem:[%s304 + $0x60] sm:$0xe]
      %v362 = vld [vmem:[%s304 + $0x6c] sm:$0xe]
      %v363 = vld [vmem:[%s304 + $0x78] sm:$0xe]
      %v364 = vld [vmem:[%s304 + $0x84] sm:$0xe]
      %v365 = vld [vmem:[%s304 + $0x90] sm:$0xe]
      %v366 = vld [vmem:[%s304 + $0x9c] sm:$0xe]
      %v367 = vld [vmem:[%s304 + $0xa8] sm:$0xe]
      %v368 = vld [vmem:[%s304 + $0xb4] sm:$0xe]
      %s369 = sadd.s32 %s233, 2
      %s370 = smul.u32 %s369, 3
      %s371 = smul.addr %s370, 4
      %s372 = scalar_lea.vmem %s217, %s371
      %v373 = vld [vmem:[%s372] sm:$0xf]
      %v374 = vld [vmem:[%s372 + $0x4] sm:$0xf]
      %v375 = vld [vmem:[%s372 + $0xc] sm:$0xf]
      %v376 = vld [vmem:[%s372 + $0x10] sm:$0xf]
      %v377 = vld [vmem:[%s372 + $0x18] sm:$0xf]
      %v378 = vld [vmem:[%s372 + $0x1c] sm:$0xf]
      %v379 = vld [vmem:[%s372 + $0x24] sm:$0xf]
      %v380 = vld [vmem:[%s372 + $0x28] sm:$0xf]
      %v381 = vld [vmem:[%s372 + $0x30] sm:$0xf]
      %v382 = vld [vmem:[%s372 + $0x34] sm:$0xf]
      %v383 = vld [vmem:[%s372 + $0x3c] sm:$0xf]
      %v384 = vld [vmem:[%s372 + $0x40] sm:$0xf]
      %v385 = vld [vmem:[%s372 + $0x48] sm:$0xf]
      %v386 = vld [vmem:[%s372 + $0x4c] sm:$0xf]
      %v387 = vld [vmem:[%s372 + $0x54] sm:$0xf]
      %v388 = vld [vmem:[%s372 + $0x58] sm:$0xf]
      %v389 = vld [vmem:[%s372 + $0x60] sm:$0xf]
      %v390 = vld [vmem:[%s372 + $0x64] sm:$0xf]
      %v391 = vld [vmem:[%s372 + $0x6c] sm:$0xf]
      %v392 = vld [vmem:[%s372 + $0x70] sm:$0xf]
      %v393 = vld [vmem:[%s372 + $0x78] sm:$0xf]
      %v394 = vld [vmem:[%s372 + $0x7c] sm:$0xf]
      %v395 = vld [vmem:[%s372 + $0x84] sm:$0xf]
      %v396 = vld [vmem:[%s372 + $0x88] sm:$0xf]
      %v397 = vld [vmem:[%s372 + $0x90] sm:$0xf]
      %v398 = vld [vmem:[%s372 + $0x94] sm:$0xf]
      %v399 = vld [vmem:[%s372 + $0x9c] sm:$0xf]
      %v400 = vld [vmem:[%s372 + $0xa0] sm:$0xf]
      %v401 = vld [vmem:[%s372 + $0xa8] sm:$0xf]
      %v402 = vld [vmem:[%s372 + $0xac] sm:$0xf]
      %v403 = vld [vmem:[%s372 + $0xb4] sm:$0xf]
      %v404 = vld [vmem:[%s372 + $0xb8] sm:$0xf]
      %v405 = vld [vmem:[%s372 + $0x8] sm:$0x1]
      %v406 = vld [vmem:[%s372 + $0x14] sm:$0x1]
      %v407 = vld [vmem:[%s372 + $0x20] sm:$0x1]
      %v408 = vld [vmem:[%s372 + $0x2c] sm:$0x1]
      %v409 = vld [vmem:[%s372 + $0x38] sm:$0x1]
      %v410 = vld [vmem:[%s372 + $0x44] sm:$0x1]
      %v411 = vld [vmem:[%s372 + $0x50] sm:$0x1]
      %v412 = vld [vmem:[%s372 + $0x5c] sm:$0x1]
      %v413 = vld [vmem:[%s372 + $0x68] sm:$0x1]
      %v414 = vld [vmem:[%s372 + $0x74] sm:$0x1]
      %v415 = vld [vmem:[%s372 + $0x80] sm:$0x1]
      %v416 = vld [vmem:[%s372 + $0x8c] sm:$0x1]
      %v417 = vld [vmem:[%s372 + $0x98] sm:$0x1]
      %v418 = vld [vmem:[%s372 + $0xa4] sm:$0x1]
      %v419 = vld [vmem:[%s372 + $0xb0] sm:$0x1]
      %v420 = vld [vmem:[%s372 + $0xbc] sm:$0x1]
      %v421 = vld [vmem:[%s372] sm:$0xe]
      %v422 = vld [vmem:[%s372 + $0xc] sm:$0xe]
      %v423 = vld [vmem:[%s372 + $0x18] sm:$0xe]
      %v424 = vld [vmem:[%s372 + $0x24] sm:$0xe]
      %v425 = vld [vmem:[%s372 + $0x30] sm:$0xe]
      %v426 = vld [vmem:[%s372 + $0x3c] sm:$0xe]
      %v427 = vld [vmem:[%s372 + $0x48] sm:$0xe]
      %v428 = vld [vmem:[%s372 + $0x54] sm:$0xe]
      %v429 = vld [vmem:[%s372 + $0x60] sm:$0xe]
      %v430 = vld [vmem:[%s372 + $0x6c] sm:$0xe]
      %v431 = vld [vmem:[%s372 + $0x78] sm:$0xe]
      %v432 = vld [vmem:[%s372 + $0x84] sm:$0xe]
      %v433 = vld [vmem:[%s372 + $0x90] sm:$0xe]
      %v434 = vld [vmem:[%s372 + $0x9c] sm:$0xe]
      %v435 = vld [vmem:[%s372 + $0xa8] sm:$0xe]
      %v436 = vld [vmem:[%s372 + $0xb4] sm:$0xe]
      %v469 = vunpack.c.l.b16 %v237
      %v470 = vunpack.c.l.b16 %v238
      %v471 = vunpack.c.l.b16 %v239
      %v472 = vunpack.c.l.b16 %v240
      %v473 = vunpack.c.l.b16 %v241
      %v474 = vunpack.c.l.b16 %v242
      %v475 = vunpack.c.l.b16 %v243
      %v476 = vunpack.c.l.b16 %v244
      %v477 = vunpack.c.l.b16 %v245
      %v478 = vunpack.c.l.b16 %v246
      %v479 = vunpack.c.l.b16 %v247
      %v480 = vunpack.c.l.b16 %v248
      %v481 = vunpack.c.l.b16 %v249
      %v482 = vunpack.c.l.b16 %v250
      %v483 = vunpack.c.l.b16 %v251
      %v484 = vunpack.c.l.b16 %v252
      %v485 = vunpack.c.l.b16 %v253
      %v486 = vunpack.c.l.b16 %v254
      %v487 = vunpack.c.l.b16 %v255
      %v488 = vunpack.c.l.b16 %v256
      %v489 = vunpack.c.l.b16 %v257
      %v490 = vunpack.c.l.b16 %v258
      %v491 = vunpack.c.l.b16 %v259
      %v492 = vunpack.c.l.b16 %v260
      %v493 = vunpack.c.l.b16 %v261
      %v494 = vunpack.c.l.b16 %v262
      %v495 = vunpack.c.l.b16 %v263
      %v496 = vunpack.c.l.b16 %v264
      %v497 = vunpack.c.l.b16 %v265
      %v498 = vunpack.c.l.b16 %v266
      %v499 = vunpack.c.l.b16 %v267
      %v500 = vunpack.c.l.b16 %v268
      %v501 = vpack.c.b16 %v470, %v469
      %v502 = vpack.c.b16 %v472, %v471
      %v503 = vpack.c.b16 %v474, %v473
      %v504 = vpack.c.b16 %v476, %v475
      %v505 = vpack.c.b16 %v478, %v477
      %v506 = vpack.c.b16 %v480, %v479
      %v507 = vpack.c.b16 %v482, %v481
      %v508 = vpack.c.b16 %v484, %v483
      %v509 = vpack.c.b16 %v486, %v485
      %v510 = vpack.c.b16 %v488, %v487
      %v511 = vpack.c.b16 %v490, %v489
      %v512 = vpack.c.b16 %v492, %v491
      %v513 = vpack.c.b16 %v494, %v493
      %v514 = vpack.c.b16 %v496, %v495
      %v515 = vpack.c.b16 %v498, %v497
      %v516 = vpack.c.b16 %v500, %v499
      %v533 = vunpack.c.l.b16 %v269
      %v534 = vunpack.c.l.b16 %v270
      %v535 = vunpack.c.l.b16 %v271
      %v536 = vunpack.c.l.b16 %v272
      %v537 = vunpack.c.l.b16 %v273
      %v538 = vunpack.c.l.b16 %v274
      %v539 = vunpack.c.l.b16 %v275
      %v540 = vunpack.c.l.b16 %v276
      %v541 = vunpack.c.l.b16 %v277
      %v542 = vunpack.c.l.b16 %v278
      %v543 = vunpack.c.l.b16 %v279
      %v544 = vunpack.c.l.b16 %v280
      %v545 = vunpack.c.l.b16 %v281
      %v546 = vunpack.c.l.b16 %v282
      %v547 = vunpack.c.l.b16 %v283
      %v548 = vunpack.c.l.b16 %v284
      %v549 = vpack.c.b16 %v533, %v533
      %v550 = vpack.c.b16 %v534, %v534
      %v551 = vpack.c.b16 %v535, %v535
      %v552 = vpack.c.b16 %v536, %v536
      %v553 = vpack.c.b16 %v537, %v537
      %v554 = vpack.c.b16 %v538, %v538
      %v555 = vpack.c.b16 %v539, %v539
      %v556 = vpack.c.b16 %v540, %v540
      %v557 = vpack.c.b16 %v541, %v541
      %v558 = vpack.c.b16 %v542, %v542
      %v559 = vpack.c.b16 %v543, %v543
      %v560 = vpack.c.b16 %v544, %v544
      %v561 = vpack.c.b16 %v545, %v545
      %v562 = vpack.c.b16 %v546, %v546
      %v563 = vpack.c.b16 %v547, %v547
      %v564 = vpack.c.b16 %v548, %v548
      %vm565 = vsmask.f32 7424
      %v567 = vshrl.u32 %v501, 16
      %v569 = vshll.u32 %v501, 16
      %v571 = vrot.slane %v569, 1
      %v572 = vor.u32 %v567, %v571
      %v574 = vshll.u32 %v549, 16
      %v576 = vrot.slane %v574, 1
      %v577 = vsel %vm565, %v572, %v576
      %v579 = vshrl.u32 %v502, 16
      %v581 = vshll.u32 %v502, 16
      %v583 = vrot.slane %v581, 1
      %v584 = vor.u32 %v579, %v583
      %v586 = vshll.u32 %v550, 16
      %v588 = vrot.slane %v586, 1
      %v589 = vsel %vm565, %v584, %v588
      %v591 = vshrl.u32 %v503, 16
      %v593 = vshll.u32 %v503, 16
      %v595 = vrot.slane %v593, 1
      %v596 = vor.u32 %v591, %v595
      %v598 = vshll.u32 %v551, 16
      %v600 = vrot.slane %v598, 1
      %v601 = vsel %vm565, %v596, %v600
      %v603 = vshrl.u32 %v504, 16
      %v605 = vshll.u32 %v504, 16
      %v607 = vrot.slane %v605, 1
      %v608 = vor.u32 %v603, %v607
      %v610 = vshll.u32 %v552, 16
      %v612 = vrot.slane %v610, 1
      %v613 = vsel %vm565, %v608, %v612
      %v615 = vshrl.u32 %v505, 16
      %v617 = vshll.u32 %v505, 16
      %v619 = vrot.slane %v617, 1
      %v620 = vor.u32 %v615, %v619
      %v622 = vshll.u32 %v553, 16
      %v624 = vrot.slane %v622, 1
      %v625 = vsel %vm565, %v620, %v624
      %v627 = vshrl.u32 %v506, 16
      %v629 = vshll.u32 %v506, 16
      %v631 = vrot.slane %v629, 1
      %v632 = vor.u32 %v627, %v631
      %v634 = vshll.u32 %v554, 16
      %v636 = vrot.slane %v634, 1
      %v637 = vsel %vm565, %v632, %v636
      %v639 = vshrl.u32 %v507, 16
      %v641 = vshll.u32 %v507, 16
      %v643 = vrot.slane %v641, 1
      %v644 = vor.u32 %v639, %v643
      %v646 = vshll.u32 %v555, 16
      %v648 = vrot.slane %v646, 1
      %v649 = vsel %vm565, %v644, %v648
      %v651 = vshrl.u32 %v508, 16
      %v653 = vshll.u32 %v508, 16
      %v655 = vrot.slane %v653, 1
      %v656 = vor.u32 %v651, %v655
      %v658 = vshll.u32 %v556, 16
      %v660 = vrot.slane %v658, 1
      %v661 = vsel %vm565, %v656, %v660
      %v663 = vshrl.u32 %v509, 16
      %v665 = vshll.u32 %v509, 16
      %v667 = vrot.slane %v665, 1
      %v668 = vor.u32 %v663, %v667
      %v670 = vshll.u32 %v557, 16
      %v672 = vrot.slane %v670, 1
      %v673 = vsel %vm565, %v668, %v672
      %v675 = vshrl.u32 %v510, 16
      %v677 = vshll.u32 %v510, 16
      %v679 = vrot.slane %v677, 1
      %v680 = vor.u32 %v675, %v679
      %v682 = vshll.u32 %v558, 16
      %v684 = vrot.slane %v682, 1
      %v685 = vsel %vm565, %v680, %v684
      %v687 = vshrl.u32 %v511, 16
      %v689 = vshll.u32 %v511, 16
      %v691 = vrot.slane %v689, 1
      %v692 = vor.u32 %v687, %v691
      %v694 = vshll.u32 %v559, 16
      %v696 = vrot.slane %v694, 1
      %v697 = vsel %vm565, %v692, %v696
      %v699 = vshrl.u32 %v512, 16
      %v701 = vshll.u32 %v512, 16
      %v703 = vrot.slane %v701, 1
      %v704 = vor.u32 %v699, %v703
      %v706 = vshll.u32 %v560, 16
      %v708 = vrot.slane %v706, 1
      %v709 = vsel %vm565, %v704, %v708
      %v711 = vshrl.u32 %v513, 16
      %v713 = vshll.u32 %v513, 16
      %v715 = vrot.slane %v713, 1
      %v716 = vor.u32 %v711, %v715
      %v718 = vshll.u32 %v561, 16
      %v720 = vrot.slane %v718, 1
      %v721 = vsel %vm565, %v716, %v720
      %v723 = vshrl.u32 %v514, 16
      %v725 = vshll.u32 %v514, 16
      %v727 = vrot.slane %v725, 1
      %v728 = vor.u32 %v723, %v727
      %v730 = vshll.u32 %v562, 16
      %v732 = vrot.slane %v730, 1
      %v733 = vsel %vm565, %v728, %v732
      %v735 = vshrl.u32 %v515, 16
      %v737 = vshll.u32 %v515, 16
      %v739 = vrot.slane %v737, 1
      %v740 = vor.u32 %v735, %v739
      %v742 = vshll.u32 %v563, 16
      %v744 = vrot.slane %v742, 1
      %v745 = vsel %vm565, %v740, %v744
      %v747 = vshrl.u32 %v516, 16
      %v749 = vshll.u32 %v516, 16
      %v751 = vrot.slane %v749, 1
      %v752 = vor.u32 %v747, %v751
      %v754 = vshll.u32 %v564, 16
      %v756 = vrot.slane %v754, 1
      %v757 = vsel %vm565, %v752, %v756
      %758 = vrot.lane.b32.xlu0 %v577, 4
      %v759 = vpop.permute.xlu0 %758
      %760 = vrot.lane.b32.xlu0 %v589, 4
      %v761 = vpop.permute.xlu0 %760
      %762 = vrot.lane.b32.xlu0 %v601, 4
      %v763 = vpop.permute.xlu0 %762
      %764 = vrot.lane.b32.xlu0 %v613, 4
      %v765 = vpop.permute.xlu0 %764
      %766 = vrot.lane.b32.xlu0 %v625, 4
      %v767 = vpop.permute.xlu0 %766
      %768 = vrot.lane.b32.xlu0 %v637, 4
      %v769 = vpop.permute.xlu0 %768
      %770 = vrot.lane.b32.xlu0 %v649, 4
      %v771 = vpop.permute.xlu0 %770
      %772 = vrot.lane.b32.xlu0 %v661, 4
      %v773 = vpop.permute.xlu0 %772
      %774 = vrot.lane.b32.xlu0 %v673, 4
      %v775 = vpop.permute.xlu0 %774
      %776 = vrot.lane.b32.xlu0 %v685, 4
      %v777 = vpop.permute.xlu0 %776
      %778 = vrot.lane.b32.xlu0 %v697, 4
      %v779 = vpop.permute.xlu0 %778
      %780 = vrot.lane.b32.xlu0 %v709, 4
      %v781 = vpop.permute.xlu0 %780
      %782 = vrot.lane.b32.xlu0 %v721, 4
      %v783 = vpop.permute.xlu0 %782
      %784 = vrot.lane.b32.xlu0 %v733, 4
      %v785 = vpop.permute.xlu0 %784
      %786 = vrot.lane.b32.xlu0 %v745, 4
      %v787 = vpop.permute.xlu0 %786
      %788 = vrot.lane.b32.xlu0 %v757, 4
      %v789 = vpop.permute.xlu0 %788
      %v806 = vunpack.c.l.b16 %v285
      %v807 = vunpack.c.l.b16 %v286
      %v808 = vunpack.c.l.b16 %v287
      %v809 = vunpack.c.l.b16 %v288
      %v810 = vunpack.c.l.b16 %v289
      %v811 = vunpack.c.l.b16 %v290
      %v812 = vunpack.c.l.b16 %v291
      %v813 = vunpack.c.l.b16 %v292
      %v814 = vunpack.c.l.b16 %v293
      %v815 = vunpack.c.l.b16 %v294
      %v816 = vunpack.c.l.b16 %v295
      %v817 = vunpack.c.l.b16 %v296
      %v818 = vunpack.c.l.b16 %v297
      %v819 = vunpack.c.l.b16 %v298
      %v820 = vunpack.c.l.b16 %v299
      %v821 = vunpack.c.l.b16 %v300
      %v822 = vpack.c.b16 %v470, %v806
      %v823 = vpack.c.b16 %v472, %v807
      %v824 = vpack.c.b16 %v474, %v808
      %v825 = vpack.c.b16 %v476, %v809
      %v826 = vpack.c.b16 %v478, %v810
      %v827 = vpack.c.b16 %v480, %v811
      %v828 = vpack.c.b16 %v482, %v812
      %v829 = vpack.c.b16 %v484, %v813
      %v830 = vpack.c.b16 %v486, %v814
      %v831 = vpack.c.b16 %v488, %v815
      %v832 = vpack.c.b16 %v490, %v816
      %v833 = vpack.c.b16 %v492, %v817
      %v834 = vpack.c.b16 %v494, %v818
      %v835 = vpack.c.b16 %v496, %v819
      %v836 = vpack.c.b16 %v498, %v820
      %v837 = vpack.c.b16 %v500, %v821
      %vm838 = vcmask 1046528
      %v839 = vrot.slane %v822, 1
      %v840 = vrot.slane %v549, 1
      %v841 = vsel %vm838, %v839, %v840
      %v842 = vrot.slane %v823, 1
      %v843 = vrot.slane %v550, 1
      %v844 = vsel %vm838, %v842, %v843
      %v845 = vrot.slane %v824, 1
      %v846 = vrot.slane %v551, 1
      %v847 = vsel %vm838, %v845, %v846
      %v848 = vrot.slane %v825, 1
      %v849 = vrot.slane %v552, 1
      %v850 = vsel %vm838, %v848, %v849
      %v851 = vrot.slane %v826, 1
      %v852 = vrot.slane %v553, 1
      %v853 = vsel %vm838, %v851, %v852
      %v854 = vrot.slane %v827, 1
      %v855 = vrot.slane %v554, 1
      %v856 = vsel %vm838, %v854, %v855
      %v857 = vrot.slane %v828, 1
      %v858 = vrot.slane %v555, 1
      %v859 = vsel %vm838, %v857, %v858
      %v860 = vrot.slane %v829, 1
      %v861 = vrot.slane %v556, 1
      %v862 = vsel %vm838, %v860, %v861
      %v863 = vrot.slane %v830, 1
      %v864 = vrot.slane %v557, 1
      %v865 = vsel %vm838, %v863, %v864
      %v866 = vrot.slane %v831, 1
      %v867 = vrot.slane %v558, 1
      %v868 = vsel %vm838, %v866, %v867
      %v869 = vrot.slane %v832, 1
      %v870 = vrot.slane %v559, 1
      %v871 = vsel %vm838, %v869, %v870
      %v872 = vrot.slane %v833, 1
      %v873 = vrot.slane %v560, 1
      %v874 = vsel %vm838, %v872, %v873
      %v875 = vrot.slane %v834, 1
      %v876 = vrot.slane %v561, 1
      %v877 = vsel %vm838, %v875, %v876
      %v878 = vrot.slane %v835, 1
      %v879 = vrot.slane %v562, 1
      %v880 = vsel %vm838, %v878, %v879
      %v881 = vrot.slane %v836, 1
      %v882 = vrot.slane %v563, 1
      %v883 = vsel %vm838, %v881, %v882
      %v884 = vrot.slane %v837, 1
      %v885 = vrot.slane %v564, 1
      %v886 = vsel %vm838, %v884, %v885
      %887 = vrot.lane.b32.xlu0 %v841, 8
      %v888 = vpop.permute.xlu0 %887
      %889 = vrot.lane.b32.xlu0 %v844, 8
      %v890 = vpop.permute.xlu0 %889
      %891 = vrot.lane.b32.xlu0 %v847, 8
      %v892 = vpop.permute.xlu0 %891
      %893 = vrot.lane.b32.xlu0 %v850, 8
      %v894 = vpop.permute.xlu0 %893
      %895 = vrot.lane.b32.xlu0 %v853, 8
      %v896 = vpop.permute.xlu0 %895
      %897 = vrot.lane.b32.xlu0 %v856, 8
      %v898 = vpop.permute.xlu0 %897
      %899 = vrot.lane.b32.xlu0 %v859, 8
      %v900 = vpop.permute.xlu0 %899
      %901 = vrot.lane.b32.xlu0 %v862, 8
      %v902 = vpop.permute.xlu0 %901
      %903 = vrot.lane.b32.xlu0 %v865, 8
      %v904 = vpop.permute.xlu0 %903
      %905 = vrot.lane.b32.xlu0 %v868, 8
      %v906 = vpop.permute.xlu0 %905
      %907 = vrot.lane.b32.xlu0 %v871, 8
      %v908 = vpop.permute.xlu0 %907
      %909 = vrot.lane.b32.xlu0 %v874, 8
      %v910 = vpop.permute.xlu0 %909
      %911 = vrot.lane.b32.xlu0 %v877, 8
      %v912 = vpop.permute.xlu0 %911
      %913 = vrot.lane.b32.xlu0 %v880, 8
      %v914 = vpop.permute.xlu0 %913
      %915 = vrot.lane.b32.xlu0 %v883, 8
      %v916 = vpop.permute.xlu0 %915
      %917 = vrot.lane.b32.xlu0 %v886, 8
      %v918 = vpop.permute.xlu0 %917
      %v951 = vunpack.c.l.b16 %v305
      %v952 = vunpack.c.l.b16 %v306
      %v953 = vunpack.c.l.b16 %v307
      %v954 = vunpack.c.l.b16 %v308
      %v955 = vunpack.c.l.b16 %v309
      %v956 = vunpack.c.l.b16 %v310
      %v957 = vunpack.c.l.b16 %v311
      %v958 = vunpack.c.l.b16 %v312
      %v959 = vunpack.c.l.b16 %v313
      %v960 = vunpack.c.l.b16 %v314
      %v961 = vunpack.c.l.b16 %v315
      %v962 = vunpack.c.l.b16 %v316
      %v963 = vunpack.c.l.b16 %v317
      %v964 = vunpack.c.l.b16 %v318
      %v965 = vunpack.c.l.b16 %v319
      %v966 = vunpack.c.l.b16 %v320
      %v967 = vunpack.c.l.b16 %v321
      %v968 = vunpack.c.l.b16 %v322
      %v969 = vunpack.c.l.b16 %v323
      %v970 = vunpack.c.l.b16 %v324
      %v971 = vunpack.c.l.b16 %v325
      %v972 = vunpack.c.l.b16 %v326
      %v973 = vunpack.c.l.b16 %v327
      %v974 = vunpack.c.l.b16 %v328
      %v975 = vunpack.c.l.b16 %v329
      %v976 = vunpack.c.l.b16 %v330
      %v977 = vunpack.c.l.b16 %v331
      %v978 = vunpack.c.l.b16 %v332
      %v979 = vunpack.c.l.b16 %v333
      %v980 = vunpack.c.l.b16 %v334
      %v981 = vunpack.c.l.b16 %v335
      %v982 = vunpack.c.l.b16 %v336
      %v983 = vpack.c.b16 %v952, %v951
      %v984 = vpack.c.b16 %v954, %v953
      %v985 = vpack.c.b16 %v956, %v955
      %v986 = vpack.c.b16 %v958, %v957
      %v987 = vpack.c.b16 %v960, %v959
      %v988 = vpack.c.b16 %v962, %v961
      %v989 = vpack.c.b16 %v964, %v963
      %v990 = vpack.c.b16 %v966, %v965
      %v991 = vpack.c.b16 %v968, %v967
      %v992 = vpack.c.b16 %v970, %v969
      %v993 = vpack.c.b16 %v972, %v971
      %v994 = vpack.c.b16 %v974, %v973
      %v995 = vpack.c.b16 %v976, %v975
      %v996 = vpack.c.b16 %v978, %v977
      %v997 = vpack.c.b16 %v980, %v979
      %v998 = vpack.c.b16 %v982, %v981
      %999 = vrot.lane.b32.xlu0 %v983, 12
      %v1000 = vpop.permute.xlu0 %999
      %1001 = vrot.lane.b32.xlu0 %v984, 12
      %v1002 = vpop.permute.xlu0 %1001
      %1003 = vrot.lane.b32.xlu0 %v985, 12
      %v1004 = vpop.permute.xlu0 %1003
      %1005 = vrot.lane.b32.xlu0 %v986, 12
      %v1006 = vpop.permute.xlu0 %1005
      %1007 = vrot.lane.b32.xlu0 %v987, 12
      %v1008 = vpop.permute.xlu0 %1007
      %1009 = vrot.lane.b32.xlu0 %v988, 12
      %v1010 = vpop.permute.xlu0 %1009
      %1011 = vrot.lane.b32.xlu0 %v989, 12
      %v1012 = vpop.permute.xlu0 %1011
      %1013 = vrot.lane.b32.xlu0 %v990, 12
      %v1014 = vpop.permute.xlu0 %1013
      %1015 = vrot.lane.b32.xlu0 %v991, 12
      %v1016 = vpop.permute.xlu0 %1015
      %1017 = vrot.lane.b32.xlu0 %v992, 12
      %v1018 = vpop.permute.xlu0 %1017
      %1019 = vrot.lane.b32.xlu0 %v993, 12
      %v1020 = vpop.permute.xlu0 %1019
      %1021 = vrot.lane.b32.xlu0 %v994, 12
      %v1022 = vpop.permute.xlu0 %1021
      %1023 = vrot.lane.b32.xlu0 %v995, 12
      %v1024 = vpop.permute.xlu0 %1023
      %1025 = vrot.lane.b32.xlu0 %v996, 12
      %v1026 = vpop.permute.xlu0 %1025
      %1027 = vrot.lane.b32.xlu0 %v997, 12
      %v1028 = vpop.permute.xlu0 %1027
      %1029 = vrot.lane.b32.xlu0 %v998, 12
      %v1030 = vpop.permute.xlu0 %1029
      %v1047 = vunpack.c.l.b16 %v337
      %v1048 = vunpack.c.l.b16 %v338
      %v1049 = vunpack.c.l.b16 %v339
      %v1050 = vunpack.c.l.b16 %v340
      %v1051 = vunpack.c.l.b16 %v341
      %v1052 = vunpack.c.l.b16 %v342
      %v1053 = vunpack.c.l.b16 %v343
      %v1054 = vunpack.c.l.b16 %v344
      %v1055 = vunpack.c.l.b16 %v345
      %v1056 = vunpack.c.l.b16 %v346
      %v1057 = vunpack.c.l.b16 %v347
      %v1058 = vunpack.c.l.b16 %v348
      %v1059 = vunpack.c.l.b16 %v349
      %v1060 = vunpack.c.l.b16 %v350
      %v1061 = vunpack.c.l.b16 %v351
      %v1062 = vunpack.c.l.b16 %v352
      %v1063 = vpack.c.b16 %v1047, %v1047
      %v1064 = vpack.c.b16 %v1048, %v1048
      %v1065 = vpack.c.b16 %v1049, %v1049
      %v1066 = vpack.c.b16 %v1050, %v1050
      %v1067 = vpack.c.b16 %v1051, %v1051
      %v1068 = vpack.c.b16 %v1052, %v1052
      %v1069 = vpack.c.b16 %v1053, %v1053
      %v1070 = vpack.c.b16 %v1054, %v1054
      %v1071 = vpack.c.b16 %v1055, %v1055
      %v1072 = vpack.c.b16 %v1056, %v1056
      %v1073 = vpack.c.b16 %v1057, %v1057
      %v1074 = vpack.c.b16 %v1058, %v1058
      %v1075 = vpack.c.b16 %v1059, %v1059
      %v1076 = vpack.c.b16 %v1060, %v1060
      %v1077 = vpack.c.b16 %v1061, %v1061
      %v1078 = vpack.c.b16 %v1062, %v1062
      %v1080 = vshrl.u32 %v983, 16
      %v1082 = vshll.u32 %v983, 16
      %v1084 = vrot.slane %v1082, 1
      %v1085 = vor.u32 %v1080, %v1084
      %v1087 = vshll.u32 %v1063, 16
      %v1089 = vrot.slane %v1087, 1
      %v1090 = vsel %vm565, %v1085, %v1089
      %v1092 = vshrl.u32 %v984, 16
      %v1094 = vshll.u32 %v984, 16
      %v1096 = vrot.slane %v1094, 1
      %v1097 = vor.u32 %v1092, %v1096
      %v1099 = vshll.u32 %v1064, 16
      %v1101 = vrot.slane %v1099, 1
      %v1102 = vsel %vm565, %v1097, %v1101
      %v1104 = vshrl.u32 %v985, 16
      %v1106 = vshll.u32 %v985, 16
      %v1108 = vrot.slane %v1106, 1
      %v1109 = vor.u32 %v1104, %v1108
      %v1111 = vshll.u32 %v1065, 16
      %v1113 = vrot.slane %v1111, 1
      %v1114 = vsel %vm565, %v1109, %v1113
      %v1116 = vshrl.u32 %v986, 16
      %v1118 = vshll.u32 %v986, 16
      %v1120 = vrot.slane %v1118, 1
      %v1121 = vor.u32 %v1116, %v1120
      %v1123 = vshll.u32 %v1066, 16
      %v1125 = vrot.slane %v1123, 1
      %v1126 = vsel %vm565, %v1121, %v1125
      %v1128 = vshrl.u32 %v987, 16
      %v1130 = vshll.u32 %v987, 16
      %v1132 = vrot.slane %v1130, 1
      %v1133 = vor.u32 %v1128, %v1132
      %v1135 = vshll.u32 %v1067, 16
      %v1137 = vrot.slane %v1135, 1
      %v1138 = vsel %vm565, %v1133, %v1137
      %v1140 = vshrl.u32 %v988, 16
      %v1142 = vshll.u32 %v988, 16
      %v1144 = vrot.slane %v1142, 1
      %v1145 = vor.u32 %v1140, %v1144
      %v1147 = vshll.u32 %v1068, 16
      %v1149 = vrot.slane %v1147, 1
      %v1150 = vsel %vm565, %v1145, %v1149
      %v1152 = vshrl.u32 %v989, 16
      %v1154 = vshll.u32 %v989, 16
      %v1156 = vrot.slane %v1154, 1
      %v1157 = vor.u32 %v1152, %v1156
      %v1159 = vshll.u32 %v1069, 16
      %v1161 = vrot.slane %v1159, 1
      %v1162 = vsel %vm565, %v1157, %v1161
      %v1164 = vshrl.u32 %v990, 16
      %v1166 = vshll.u32 %v990, 16
      %v1168 = vrot.slane %v1166, 1
      %v1169 = vor.u32 %v1164, %v1168
      %v1171 = vshll.u32 %v1070, 16
      %v1173 = vrot.slane %v1171, 1
      %v1174 = vsel %vm565, %v1169, %v1173
      %v1176 = vshrl.u32 %v991, 16
      %v1178 = vshll.u32 %v991, 16
      %v1180 = vrot.slane %v1178, 1
      %v1181 = vor.u32 %v1176, %v1180
      %v1183 = vshll.u32 %v1071, 16
      %v1185 = vrot.slane %v1183, 1
      %v1186 = vsel %vm565, %v1181, %v1185
      %v1188 = vshrl.u32 %v992, 16
      %v1190 = vshll.u32 %v992, 16
      %v1192 = vrot.slane %v1190, 1
      %v1193 = vor.u32 %v1188, %v1192
      %v1195 = vshll.u32 %v1072, 16
      %v1197 = vrot.slane %v1195, 1
      %v1198 = vsel %vm565, %v1193, %v1197
      %v1200 = vshrl.u32 %v993, 16
      %v1202 = vshll.u32 %v993, 16
      %v1204 = vrot.slane %v1202, 1
      %v1205 = vor.u32 %v1200, %v1204
      %v1207 = vshll.u32 %v1073, 16
      %v1209 = vrot.slane %v1207, 1
      %v1210 = vsel %vm565, %v1205, %v1209
      %v1212 = vshrl.u32 %v994, 16
      %v1214 = vshll.u32 %v994, 16
      %v1216 = vrot.slane %v1214, 1
      %v1217 = vor.u32 %v1212, %v1216
      %v1219 = vshll.u32 %v1074, 16
      %v1221 = vrot.slane %v1219, 1
      %v1222 = vsel %vm565, %v1217, %v1221
      %v1224 = vshrl.u32 %v995, 16
      %v1226 = vshll.u32 %v995, 16
      %v1228 = vrot.slane %v1226, 1
      %v1229 = vor.u32 %v1224, %v1228
      %v1231 = vshll.u32 %v1075, 16
      %v1233 = vrot.slane %v1231, 1
      %v1234 = vsel %vm565, %v1229, %v1233
      %v1236 = vshrl.u32 %v996, 16
      %v1238 = vshll.u32 %v996, 16
      %v1240 = vrot.slane %v1238, 1
      %v1241 = vor.u32 %v1236, %v1240
      %v1243 = vshll.u32 %v1076, 16
      %v1245 = vrot.slane %v1243, 1
      %v1246 = vsel %vm565, %v1241, %v1245
      %v1248 = vshrl.u32 %v997, 16
      %v1250 = vshll.u32 %v997, 16
      %v1252 = vrot.slane %v1250, 1
      %v1253 = vor.u32 %v1248, %v1252
      %v1255 = vshll.u32 %v1077, 16
      %v1257 = vrot.slane %v1255, 1
      %v1258 = vsel %vm565, %v1253, %v1257
      %v1260 = vshrl.u32 %v998, 16
      %v1262 = vshll.u32 %v998, 16
      %v1264 = vrot.slane %v1262, 1
      %v1265 = vor.u32 %v1260, %v1264
      %v1267 = vshll.u32 %v1078, 16
      %v1269 = vrot.slane %v1267, 1
      %v1270 = vsel %vm565, %v1265, %v1269
      %1271 = vrot.lane.b32.xlu0 %v1090, 16
      %v1272 = vpop.permute.xlu0 %1271
      %1273 = vrot.lane.b32.xlu0 %v1102, 16
      %v1274 = vpop.permute.xlu0 %1273
      %1275 = vrot.lane.b32.xlu0 %v1114, 16
      %v1276 = vpop.permute.xlu0 %1275
      %1277 = vrot.lane.b32.xlu0 %v1126, 16
      %v1278 = vpop.permute.xlu0 %1277
      %1279 = vrot.lane.b32.xlu0 %v1138, 16
      %v1280 = vpop.permute.xlu0 %1279
      %1281 = vrot.lane.b32.xlu0 %v1150, 16
      %v1282 = vpop.permute.xlu0 %1281
      %1283 = vrot.lane.b32.xlu0 %v1162, 16
      %v1284 = vpop.permute.xlu0 %1283
      %1285 = vrot.lane.b32.xlu0 %v1174, 16
      %v1286 = vpop.permute.xlu0 %1285
      %1287 = vrot.lane.b32.xlu0 %v1186, 16
      %v1288 = vpop.permute.xlu0 %1287
      %1289 = vrot.lane.b32.xlu0 %v1198, 16
      %v1290 = vpop.permute.xlu0 %1289
      %1291 = vrot.lane.b32.xlu0 %v1210, 16
      %v1292 = vpop.permute.xlu0 %1291
      %1293 = vrot.lane.b32.xlu0 %v1222, 16
      %v1294 = vpop.permute.xlu0 %1293
      %1295 = vrot.lane.b32.xlu0 %v1234, 16
      %v1296 = vpop.permute.xlu0 %1295
      %1297 = vrot.lane.b32.xlu0 %v1246, 16
      %v1298 = vpop.permute.xlu0 %1297
      %1299 = vrot.lane.b32.xlu0 %v1258, 16
      %v1300 = vpop.permute.xlu0 %1299
      %1301 = vrot.lane.b32.xlu0 %v1270, 16
      %v1302 = vpop.permute.xlu0 %1301
      %v1319 = vunpack.c.l.b16 %v353
      %v1320 = vunpack.c.l.b16 %v354
      %v1321 = vunpack.c.l.b16 %v355
      %v1322 = vunpack.c.l.b16 %v356
      %v1323 = vunpack.c.l.b16 %v357
      %v1324 = vunpack.c.l.b16 %v358
      %v1325 = vunpack.c.l.b16 %v359
      %v1326 = vunpack.c.l.b16 %v360
      %v1327 = vunpack.c.l.b16 %v361
      %v1328 = vunpack.c.l.b16 %v362
      %v1329 = vunpack.c.l.b16 %v363
      %v1330 = vunpack.c.l.b16 %v364
      %v1331 = vunpack.c.l.b16 %v365
      %v1332 = vunpack.c.l.b16 %v366
      %v1333 = vunpack.c.l.b16 %v367
      %v1334 = vunpack.c.l.b16 %v368
      %v1335 = vpack.c.b16 %v952, %v1319
      %v1336 = vpack.c.b16 %v954, %v1320
      %v1337 = vpack.c.b16 %v956, %v1321
      %v1338 = vpack.c.b16 %v958, %v1322
      %v1339 = vpack.c.b16 %v960, %v1323
      %v1340 = vpack.c.b16 %v962, %v1324
      %v1341 = vpack.c.b16 %v964, %v1325
      %v1342 = vpack.c.b16 %v966, %v1326
      %v1343 = vpack.c.b16 %v968, %v1327
      %v1344 = vpack.c.b16 %v970, %v1328
      %v1345 = vpack.c.b16 %v972, %v1329
      %v1346 = vpack.c.b16 %v974, %v1330
      %v1347 = vpack.c.b16 %v976, %v1331
      %v1348 = vpack.c.b16 %v978, %v1332
      %v1349 = vpack.c.b16 %v980, %v1333
      %v1350 = vpack.c.b16 %v982, %v1334
      %v1351 = vrot.slane %v1335, 1
      %v1352 = vrot.slane %v1063, 1
      %v1353 = vsel %vm838, %v1351, %v1352
      %v1354 = vrot.slane %v1336, 1
      %v1355 = vrot.slane %v1064, 1
      %v1356 = vsel %vm838, %v1354, %v1355
      %v1357 = vrot.slane %v1337, 1
      %v1358 = vrot.slane %v1065, 1
      %v1359 = vsel %vm838, %v1357, %v1358
      %v1360 = vrot.slane %v1338, 1
      %v1361 = vrot.slane %v1066, 1
      %v1362 = vsel %vm838, %v1360, %v1361
      %v1363 = vrot.slane %v1339, 1
      %v1364 = vrot.slane %v1067, 1
      %v1365 = vsel %vm838, %v1363, %v1364
      %v1366 = vrot.slane %v1340, 1
      %v1367 = vrot.slane %v1068, 1
      %v1368 = vsel %vm838, %v1366, %v1367
      %v1369 = vrot.slane %v1341, 1
      %v1370 = vrot.slane %v1069, 1
      %v1371 = vsel %vm838, %v1369, %v1370
      %v1372 = vrot.slane %v1342, 1
      %v1373 = vrot.slane %v1070, 1
      %v1374 = vsel %vm838, %v1372, %v1373
      %v1375 = vrot.slane %v1343, 1
      %v1376 = vrot.slane %v1071, 1
      %v1377 = vsel %vm838, %v1375, %v1376
      %v1378 = vrot.slane %v1344, 1
      %v1379 = vrot.slane %v1072, 1
      %v1380 = vsel %vm838, %v1378, %v1379
      %v1381 = vrot.slane %v1345, 1
      %v1382 = vrot.slane %v1073, 1
      %v1383 = vsel %vm838, %v1381, %v1382
      %v1384 = vrot.slane %v1346, 1
      %v1385 = vrot.slane %v1074, 1
      %v1386 = vsel %vm838, %v1384, %v1385
      %v1387 = vrot.slane %v1347, 1
      %v1388 = vrot.slane %v1075, 1
      %v1389 = vsel %vm838, %v1387, %v1388
      %v1390 = vrot.slane %v1348, 1
      %v1391 = vrot.slane %v1076, 1
      %v1392 = vsel %vm838, %v1390, %v1391
      %v1393 = vrot.slane %v1349, 1
      %v1394 = vrot.slane %v1077, 1
      %v1395 = vsel %vm838, %v1393, %v1394
      %v1396 = vrot.slane %v1350, 1
      %v1397 = vrot.slane %v1078, 1
      %v1398 = vsel %vm838, %v1396, %v1397
      %1399 = vrot.lane.b32.xlu0 %v1353, 20
      %v1400 = vpop.permute.xlu0 %1399
      %1401 = vrot.lane.b32.xlu0 %v1356, 20
      %v1402 = vpop.permute.xlu0 %1401
      %1403 = vrot.lane.b32.xlu0 %v1359, 20
      %v1404 = vpop.permute.xlu0 %1403
      %1405 = vrot.lane.b32.xlu0 %v1362, 20
      %v1406 = vpop.permute.xlu0 %1405
      %1407 = vrot.lane.b32.xlu0 %v1365, 20
      %v1408 = vpop.permute.xlu0 %1407
      %1409 = vrot.lane.b32.xlu0 %v1368, 20
      %v1410 = vpop.permute.xlu0 %1409
      %1411 = vrot.lane.b32.xlu0 %v1371, 20
      %v1412 = vpop.permute.xlu0 %1411
      %1413 = vrot.lane.b32.xlu0 %v1374, 20
      %v1414 = vpop.permute.xlu0 %1413
      %1415 = vrot.lane.b32.xlu0 %v1377, 20
      %v1416 = vpop.permute.xlu0 %1415
      %1417 = vrot.lane.b32.xlu0 %v1380, 20
      %v1418 = vpop.permute.xlu0 %1417
      %1419 = vrot.lane.b32.xlu0 %v1383, 20
      %v1420 = vpop.permute.xlu0 %1419
      %1421 = vrot.lane.b32.xlu0 %v1386, 20
      %v1422 = vpop.permute.xlu0 %1421
      %1423 = vrot.lane.b32.xlu0 %v1389, 20
      %v1424 = vpop.permute.xlu0 %1423
      %1425 = vrot.lane.b32.xlu0 %v1392, 20
      %v1426 = vpop.permute.xlu0 %1425
      %1427 = vrot.lane.b32.xlu0 %v1395, 20
      %v1428 = vpop.permute.xlu0 %1427
      %1429 = vrot.lane.b32.xlu0 %v1398, 20
      %v1430 = vpop.permute.xlu0 %1429
      %v1463 = vunpack.c.l.b16 %v373
      %v1464 = vunpack.c.l.b16 %v374
      %v1465 = vunpack.c.l.b16 %v375
      %v1466 = vunpack.c.l.b16 %v376
      %v1467 = vunpack.c.l.b16 %v377
      %v1468 = vunpack.c.l.b16 %v378
      %v1469 = vunpack.c.l.b16 %v379
      %v1470 = vunpack.c.l.b16 %v380
      %v1471 = vunpack.c.l.b16 %v381
      %v1472 = vunpack.c.l.b16 %v382
      %v1473 = vunpack.c.l.b16 %v383
      %v1474 = vunpack.c.l.b16 %v384
      %v1475 = vunpack.c.l.b16 %v385
      %v1476 = vunpack.c.l.b16 %v386
      %v1477 = vunpack.c.l.b16 %v387
      %v1478 = vunpack.c.l.b16 %v388
      %v1479 = vunpack.c.l.b16 %v389
      %v1480 = vunpack.c.l.b16 %v390
      %v1481 = vunpack.c.l.b16 %v391
      %v1482 = vunpack.c.l.b16 %v392
      %v1483 = vunpack.c.l.b16 %v393
      %v1484 = vunpack.c.l.b16 %v394
      %v1485 = vunpack.c.l.b16 %v395
      %v1486 = vunpack.c.l.b16 %v396
      %v1487 = vunpack.c.l.b16 %v397
      %v1488 = vunpack.c.l.b16 %v398
      %v1489 = vunpack.c.l.b16 %v399
      %v1490 = vunpack.c.l.b16 %v400
      %v1491 = vunpack.c.l.b16 %v401
      %v1492 = vunpack.c.l.b16 %v402
      %v1493 = vunpack.c.l.b16 %v403
      %v1494 = vunpack.c.l.b16 %v404
      %v1495 = vpack.c.b16 %v1464, %v1463
      %v1496 = vpack.c.b16 %v1466, %v1465
      %v1497 = vpack.c.b16 %v1468, %v1467
      %v1498 = vpack.c.b16 %v1470, %v1469
      %v1499 = vpack.c.b16 %v1472, %v1471
      %v1500 = vpack.c.b16 %v1474, %v1473
      %v1501 = vpack.c.b16 %v1476, %v1475
      %v1502 = vpack.c.b16 %v1478, %v1477
      %v1503 = vpack.c.b16 %v1480, %v1479
      %v1504 = vpack.c.b16 %v1482, %v1481
      %v1505 = vpack.c.b16 %v1484, %v1483
      %v1506 = vpack.c.b16 %v1486, %v1485
      %v1507 = vpack.c.b16 %v1488, %v1487
      %v1508 = vpack.c.b16 %v1490, %v1489
      %v1509 = vpack.c.b16 %v1492, %v1491
      %v1510 = vpack.c.b16 %v1494, %v1493
      %1511 = vrot.lane.b32.xlu0 %v1495, 24
      %v1512 = vpop.permute.xlu0 %1511
      %1513 = vrot.lane.b32.xlu0 %v1496, 24
      %v1514 = vpop.permute.xlu0 %1513
      %1515 = vrot.lane.b32.xlu0 %v1497, 24
      %v1516 = vpop.permute.xlu0 %1515
      %1517 = vrot.lane.b32.xlu0 %v1498, 24
      %v1518 = vpop.permute.xlu0 %1517
      %1519 = vrot.lane.b32.xlu0 %v1499, 24
      %v1520 = vpop.permute.xlu0 %1519
      %1521 = vrot.lane.b32.xlu0 %v1500, 24
      %v1522 = vpop.permute.xlu0 %1521
      %1523 = vrot.lane.b32.xlu0 %v1501, 24
      %v1524 = vpop.permute.xlu0 %1523
      %1525 = vrot.lane.b32.xlu0 %v1502, 24
      %v1526 = vpop.permute.xlu0 %1525
      %1527 = vrot.lane.b32.xlu0 %v1503, 24
      %v1528 = vpop.permute.xlu0 %1527
      %1529 = vrot.lane.b32.xlu0 %v1504, 24
      %v1530 = vpop.permute.xlu0 %1529
      %1531 = vrot.lane.b32.xlu0 %v1505, 24
      %v1532 = vpop.permute.xlu0 %1531
      %1533 = vrot.lane.b32.xlu0 %v1506, 24
      %v1534 = vpop.permute.xlu0 %1533
      %1535 = vrot.lane.b32.xlu0 %v1507, 24
      %v1536 = vpop.permute.xlu0 %1535
      %1537 = vrot.lane.b32.xlu0 %v1508, 24
      %v1538 = vpop.permute.xlu0 %1537
      %1539 = vrot.lane.b32.xlu0 %v1509, 24
      %v1540 = vpop.permute.xlu0 %1539
      %1541 = vrot.lane.b32.xlu0 %v1510, 24
      %v1542 = vpop.permute.xlu0 %1541
      %v1559 = vunpack.c.l.b16 %v405
      %v1560 = vunpack.c.l.b16 %v406
      %v1561 = vunpack.c.l.b16 %v407
      %v1562 = vunpack.c.l.b16 %v408
      %v1563 = vunpack.c.l.b16 %v409
      %v1564 = vunpack.c.l.b16 %v410
      %v1565 = vunpack.c.l.b16 %v411
      %v1566 = vunpack.c.l.b16 %v412
      %v1567 = vunpack.c.l.b16 %v413
      %v1568 = vunpack.c.l.b16 %v414
      %v1569 = vunpack.c.l.b16 %v415
      %v1570 = vunpack.c.l.b16 %v416
      %v1571 = vunpack.c.l.b16 %v417
      %v1572 = vunpack.c.l.b16 %v418
      %v1573 = vunpack.c.l.b16 %v419
      %v1574 = vunpack.c.l.b16 %v420
      %v1575 = vpack.c.b16 %v1559, %v1559
      %v1576 = vpack.c.b16 %v1560, %v1560
      %v1577 = vpack.c.b16 %v1561, %v1561
      %v1578 = vpack.c.b16 %v1562, %v1562
      %v1579 = vpack.c.b16 %v1563, %v1563
      %v1580 = vpack.c.b16 %v1564, %v1564
      %v1581 = vpack.c.b16 %v1565, %v1565
      %v1582 = vpack.c.b16 %v1566, %v1566
      %v1583 = vpack.c.b16 %v1567, %v1567
      %v1584 = vpack.c.b16 %v1568, %v1568
      %v1585 = vpack.c.b16 %v1569, %v1569
      %v1586 = vpack.c.b16 %v1570, %v1570
      %v1587 = vpack.c.b16 %v1571, %v1571
      %v1588 = vpack.c.b16 %v1572, %v1572
      %v1589 = vpack.c.b16 %v1573, %v1573
      %v1590 = vpack.c.b16 %v1574, %v1574
      %v1592 = vshrl.u32 %v1495, 16
      %v1594 = vshll.u32 %v1495, 16
      %v1596 = vrot.slane %v1594, 1
      %v1597 = vor.u32 %v1592, %v1596
      %v1599 = vshll.u32 %v1575, 16
      %v1601 = vrot.slane %v1599, 1
      %v1602 = vsel %vm565, %v1597, %v1601
      %v1604 = vshrl.u32 %v1496, 16
      %v1606 = vshll.u32 %v1496, 16
      %v1608 = vrot.slane %v1606, 1
      %v1609 = vor.u32 %v1604, %v1608
      %v1611 = vshll.u32 %v1576, 16
      %v1613 = vrot.slane %v1611, 1
      %v1614 = vsel %vm565, %v1609, %v1613
      %v1616 = vshrl.u32 %v1497, 16
      %v1618 = vshll.u32 %v1497, 16
      %v1620 = vrot.slane %v1618, 1
      %v1621 = vor.u32 %v1616, %v1620
      %v1623 = vshll.u32 %v1577, 16
      %v1625 = vrot.slane %v1623, 1
      %v1626 = vsel %vm565, %v1621, %v1625
      %v1628 = vshrl.u32 %v1498, 16
      %v1630 = vshll.u32 %v1498, 16
      %v1632 = vrot.slane %v1630, 1
      %v1633 = vor.u32 %v1628, %v1632
      %v1635 = vshll.u32 %v1578, 16
      %v1637 = vrot.slane %v1635, 1
      %v1638 = vsel %vm565, %v1633, %v1637
      %v1640 = vshrl.u32 %v1499, 16
      %v1642 = vshll.u32 %v1499, 16
      %v1644 = vrot.slane %v1642, 1
      %v1645 = vor.u32 %v1640, %v1644
      %v1647 = vshll.u32 %v1579, 16
      %v1649 = vrot.slane %v1647, 1
      %v1650 = vsel %vm565, %v1645, %v1649
      %v1652 = vshrl.u32 %v1500, 16
      %v1654 = vshll.u32 %v1500, 16
      %v1656 = vrot.slane %v1654, 1
      %v1657 = vor.u32 %v1652, %v1656
      %v1659 = vshll.u32 %v1580, 16
      %v1661 = vrot.slane %v1659, 1
      %v1662 = vsel %vm565, %v1657, %v1661
      %v1664 = vshrl.u32 %v1501, 16
      %v1666 = vshll.u32 %v1501, 16
      %v1668 = vrot.slane %v1666, 1
      %v1669 = vor.u32 %v1664, %v1668
      %v1671 = vshll.u32 %v1581, 16
      %v1673 = vrot.slane %v1671, 1
      %v1674 = vsel %vm565, %v1669, %v1673
      %v1676 = vshrl.u32 %v1502, 16
      %v1678 = vshll.u32 %v1502, 16
      %v1680 = vrot.slane %v1678, 1
      %v1681 = vor.u32 %v1676, %v1680
      %v1683 = vshll.u32 %v1582, 16
      %v1685 = vrot.slane %v1683, 1
      %v1686 = vsel %vm565, %v1681, %v1685
      %v1688 = vshrl.u32 %v1503, 16
      %v1690 = vshll.u32 %v1503, 16
      %v1692 = vrot.slane %v1690, 1
      %v1693 = vor.u32 %v1688, %v1692
      %v1695 = vshll.u32 %v1583, 16
      %v1697 = vrot.slane %v1695, 1
      %v1698 = vsel %vm565, %v1693, %v1697
      %v1700 = vshrl.u32 %v1504, 16
      %v1702 = vshll.u32 %v1504, 16
      %v1704 = vrot.slane %v1702, 1
      %v1705 = vor.u32 %v1700, %v1704
      %v1707 = vshll.u32 %v1584, 16
      %v1709 = vrot.slane %v1707, 1
      %v1710 = vsel %vm565, %v1705, %v1709
      %v1712 = vshrl.u32 %v1505, 16
      %v1714 = vshll.u32 %v1505, 16
      %v1716 = vrot.slane %v1714, 1
      %v1717 = vor.u32 %v1712, %v1716
      %v1719 = vshll.u32 %v1585, 16
      %v1721 = vrot.slane %v1719, 1
      %v1722 = vsel %vm565, %v1717, %v1721
      %v1724 = vshrl.u32 %v1506, 16
      %v1726 = vshll.u32 %v1506, 16
      %v1728 = vrot.slane %v1726, 1
      %v1729 = vor.u32 %v1724, %v1728
      %v1731 = vshll.u32 %v1586, 16
      %v1733 = vrot.slane %v1731, 1
      %v1734 = vsel %vm565, %v1729, %v1733
      %v1736 = vshrl.u32 %v1507, 16
      %v1738 = vshll.u32 %v1507, 16
      %v1740 = vrot.slane %v1738, 1
      %v1741 = vor.u32 %v1736, %v1740
      %v1743 = vshll.u32 %v1587, 16
      %v1745 = vrot.slane %v1743, 1
      %v1746 = vsel %vm565, %v1741, %v1745
      %v1748 = vshrl.u32 %v1508, 16
      %v1750 = vshll.u32 %v1508, 16
      %v1752 = vrot.slane %v1750, 1
      %v1753 = vor.u32 %v1748, %v1752
      %v1755 = vshll.u32 %v1588, 16
      %v1757 = vrot.slane %v1755, 1
      %v1758 = vsel %vm565, %v1753, %v1757
      %v1760 = vshrl.u32 %v1509, 16
      %v1762 = vshll.u32 %v1509, 16
      %v1764 = vrot.slane %v1762, 1
      %v1765 = vor.u32 %v1760, %v1764
      %v1767 = vshll.u32 %v1589, 16
      %v1769 = vrot.slane %v1767, 1
      %v1770 = vsel %vm565, %v1765, %v1769
      %v1772 = vshrl.u32 %v1510, 16
      %v1774 = vshll.u32 %v1510, 16
      %v1776 = vrot.slane %v1774, 1
      %v1777 = vor.u32 %v1772, %v1776
      %v1779 = vshll.u32 %v1590, 16
      %v1781 = vrot.slane %v1779, 1
      %v1782 = vsel %vm565, %v1777, %v1781
      %1783 = vrot.lane.b32.xlu0 %v1602, 28
      %v1784 = vpop.permute.xlu0 %1783
      %1785 = vrot.lane.b32.xlu0 %v1614, 28
      %v1786 = vpop.permute.xlu0 %1785
      %1787 = vrot.lane.b32.xlu0 %v1626, 28
      %v1788 = vpop.permute.xlu0 %1787
      %1789 = vrot.lane.b32.xlu0 %v1638, 28
      %v1790 = vpop.permute.xlu0 %1789
      %1791 = vrot.lane.b32.xlu0 %v1650, 28
      %v1792 = vpop.permute.xlu0 %1791
      %1793 = vrot.lane.b32.xlu0 %v1662, 28
      %v1794 = vpop.permute.xlu0 %1793
      %1795 = vrot.lane.b32.xlu0 %v1674, 28
      %v1796 = vpop.permute.xlu0 %1795
      %1797 = vrot.lane.b32.xlu0 %v1686, 28
      %v1798 = vpop.permute.xlu0 %1797
      %1799 = vrot.lane.b32.xlu0 %v1698, 28
      %v1800 = vpop.permute.xlu0 %1799
      %1801 = vrot.lane.b32.xlu0 %v1710, 28
      %v1802 = vpop.permute.xlu0 %1801
      %1803 = vrot.lane.b32.xlu0 %v1722, 28
      %v1804 = vpop.permute.xlu0 %1803
      %1805 = vrot.lane.b32.xlu0 %v1734, 28
      %v1806 = vpop.permute.xlu0 %1805
      %1807 = vrot.lane.b32.xlu0 %v1746, 28
      %v1808 = vpop.permute.xlu0 %1807
      %1809 = vrot.lane.b32.xlu0 %v1758, 28
      %v1810 = vpop.permute.xlu0 %1809
      %1811 = vrot.lane.b32.xlu0 %v1770, 28
      %v1812 = vpop.permute.xlu0 %1811
      %1813 = vrot.lane.b32.xlu0 %v1782, 28
      %v1814 = vpop.permute.xlu0 %1813
      %v1831 = vunpack.c.l.b16 %v421
      %v1832 = vunpack.c.l.b16 %v422
      %v1833 = vunpack.c.l.b16 %v423
      %v1834 = vunpack.c.l.b16 %v424
      %v1835 = vunpack.c.l.b16 %v425
      %v1836 = vunpack.c.l.b16 %v426
      %v1837 = vunpack.c.l.b16 %v427
      %v1838 = vunpack.c.l.b16 %v428
      %v1839 = vunpack.c.l.b16 %v429
      %v1840 = vunpack.c.l.b16 %v430
      %v1841 = vunpack.c.l.b16 %v431
      %v1842 = vunpack.c.l.b16 %v432
      %v1843 = vunpack.c.l.b16 %v433
      %v1844 = vunpack.c.l.b16 %v434
      %v1845 = vunpack.c.l.b16 %v435
      %v1846 = vunpack.c.l.b16 %v436
      %v1847 = vpack.c.b16 %v1464, %v1831
      %v1848 = vpack.c.b16 %v1466, %v1832
      %v1849 = vpack.c.b16 %v1468, %v1833
      %v1850 = vpack.c.b16 %v1470, %v1834
      %v1851 = vpack.c.b16 %v1472, %v1835
      %v1852 = vpack.c.b16 %v1474, %v1836
      %v1853 = vpack.c.b16 %v1476, %v1837
      %v1854 = vpack.c.b16 %v1478, %v1838
      %v1855 = vpack.c.b16 %v1480, %v1839
      %v1856 = vpack.c.b16 %v1482, %v1840
      %v1857 = vpack.c.b16 %v1484, %v1841
      %v1858 = vpack.c.b16 %v1486, %v1842
      %v1859 = vpack.c.b16 %v1488, %v1843
      %v1860 = vpack.c.b16 %v1490, %v1844
      %v1861 = vpack.c.b16 %v1492, %v1845
      %v1862 = vpack.c.b16 %v1494, %v1846
      %v1863 = vrot.slane %v1847, 1
      %v1864 = vrot.slane %v1575, 1
      %v1865 = vsel %vm838, %v1863, %v1864
      %v1866 = vrot.slane %v1848, 1
      %v1867 = vrot.slane %v1576, 1
      %v1868 = vsel %vm838, %v1866, %v1867
      %v1869 = vrot.slane %v1849, 1
      %v1870 = vrot.slane %v1577, 1
      %v1871 = vsel %vm838, %v1869, %v1870
      %v1872 = vrot.slane %v1850, 1
      %v1873 = vrot.slane %v1578, 1
      %v1874 = vsel %vm838, %v1872, %v1873
      %v1875 = vrot.slane %v1851, 1
      %v1876 = vrot.slane %v1579, 1
      %v1877 = vsel %vm838, %v1875, %v1876
      %v1878 = vrot.slane %v1852, 1
      %v1879 = vrot.slane %v1580, 1
      %v1880 = vsel %vm838, %v1878, %v1879
      %v1881 = vrot.slane %v1853, 1
      %v1882 = vrot.slane %v1581, 1
      %v1883 = vsel %vm838, %v1881, %v1882
      %v1884 = vrot.slane %v1854, 1
      %v1885 = vrot.slane %v1582, 1
      %v1886 = vsel %vm838, %v1884, %v1885
      %v1887 = vrot.slane %v1855, 1
      %v1888 = vrot.slane %v1583, 1
      %v1889 = vsel %vm838, %v1887, %v1888
      %v1890 = vrot.slane %v1856, 1
      %v1891 = vrot.slane %v1584, 1
      %v1892 = vsel %vm838, %v1890, %v1891
      %v1893 = vrot.slane %v1857, 1
      %v1894 = vrot.slane %v1585, 1
      %v1895 = vsel %vm838, %v1893, %v1894
      %v1896 = vrot.slane %v1858, 1
      %v1897 = vrot.slane %v1586, 1
      %v1898 = vsel %vm838, %v1896, %v1897
      %v1899 = vrot.slane %v1859, 1
      %v1900 = vrot.slane %v1587, 1
      %v1901 = vsel %vm838, %v1899, %v1900
      %v1902 = vrot.slane %v1860, 1
      %v1903 = vrot.slane %v1588, 1
      %v1904 = vsel %vm838, %v1902, %v1903
      %v1905 = vrot.slane %v1861, 1
      %v1906 = vrot.slane %v1589, 1
      %v1907 = vsel %vm838, %v1905, %v1906
      %v1908 = vrot.slane %v1862, 1
      %v1909 = vrot.slane %v1590, 1
      %v1910 = vsel %vm838, %v1908, %v1909
      %1911 = vrot.lane.b32.xlu0 %v1865, 32
      %v1912 = vpop.permute.xlu0 %1911
      %1913 = vrot.lane.b32.xlu0 %v1868, 32
      %v1914 = vpop.permute.xlu0 %1913
      %1915 = vrot.lane.b32.xlu0 %v1871, 32
      %v1916 = vpop.permute.xlu0 %1915
      %1917 = vrot.lane.b32.xlu0 %v1874, 32
      %v1918 = vpop.permute.xlu0 %1917
      %1919 = vrot.lane.b32.xlu0 %v1877, 32
      %v1920 = vpop.permute.xlu0 %1919
      %1921 = vrot.lane.b32.xlu0 %v1880, 32
      %v1922 = vpop.permute.xlu0 %1921
      %1923 = vrot.lane.b32.xlu0 %v1883, 32
      %v1924 = vpop.permute.xlu0 %1923
      %1925 = vrot.lane.b32.xlu0 %v1886, 32
      %v1926 = vpop.permute.xlu0 %1925
      %1927 = vrot.lane.b32.xlu0 %v1889, 32
      %v1928 = vpop.permute.xlu0 %1927
      %1929 = vrot.lane.b32.xlu0 %v1892, 32
      %v1930 = vpop.permute.xlu0 %1929
      %1931 = vrot.lane.b32.xlu0 %v1895, 32
      %v1932 = vpop.permute.xlu0 %1931
      %1933 = vrot.lane.b32.xlu0 %v1898, 32
      %v1934 = vpop.permute.xlu0 %1933
      %1935 = vrot.lane.b32.xlu0 %v1901, 32
      %v1936 = vpop.permute.xlu0 %1935
      %1937 = vrot.lane.b32.xlu0 %v1904, 32
      %v1938 = vpop.permute.xlu0 %1937
      %1939 = vrot.lane.b32.xlu0 %v1907, 32
      %v1940 = vpop.permute.xlu0 %1939
      %1941 = vrot.lane.b32.xlu0 %v1910, 32
      %v1942 = vpop.permute.xlu0 %1941
      %vm1943 = vcmask 31744
      %v1945 = vsel %vm1943, %v501, %v759
      %v1947 = vsel %vm1943, %v502, %v761
      %v1949 = vsel %vm1943, %v503, %v763
      %v1951 = vsel %vm1943, %v504, %v765
      %v1953 = vsel %vm1943, %v505, %v767
      %v1955 = vsel %vm1943, %v506, %v769
      %v1957 = vsel %vm1943, %v507, %v771
      %v1959 = vsel %vm1943, %v508, %v773
      %v1961 = vsel %vm1943, %v509, %v775
      %v1963 = vsel %vm1943, %v510, %v777
      %v1965 = vsel %vm1943, %v511, %v779
      %v1967 = vsel %vm1943, %v512, %v781
      %v1969 = vsel %vm1943, %v513, %v783
      %v1971 = vsel %vm1943, %v514, %v785
      %v1973 = vsel %vm1943, %v515, %v787
      %v1975 = vsel %vm1943, %v516, %v789
      %vm1976 = vcmask 64512
      %v1978 = vsel %vm1976, %v1945, %v888
      %v1980 = vsel %vm1976, %v1947, %v890
      %v1982 = vsel %vm1976, %v1949, %v892
      %v1984 = vsel %vm1976, %v1951, %v894
      %v1986 = vsel %vm1976, %v1953, %v896
      %v1988 = vsel %vm1976, %v1955, %v898
      %v1990 = vsel %vm1976, %v1957, %v900
      %v1992 = vsel %vm1976, %v1959, %v902
      %v1994 = vsel %vm1976, %v1961, %v904
      %v1996 = vsel %vm1976, %v1963, %v906
      %v1998 = vsel %vm1976, %v1965, %v908
      %v2000 = vsel %vm1976, %v1967, %v910
      %v2002 = vsel %vm1976, %v1969, %v912
      %v2004 = vsel %vm1976, %v1971, %v914
      %v2006 = vsel %vm1976, %v1973, %v916
      %v2008 = vsel %vm1976, %v1975, %v918
      %vm2009 = vcmask 97280
      %v2011 = vsel %vm2009, %v1978, %v1000
      %v2013 = vsel %vm2009, %v1980, %v1002
      %v2015 = vsel %vm2009, %v1982, %v1004
      %v2017 = vsel %vm2009, %v1984, %v1006
      %v2019 = vsel %vm2009, %v1986, %v1008
      %v2021 = vsel %vm2009, %v1988, %v1010
      %v2023 = vsel %vm2009, %v1990, %v1012
      %v2025 = vsel %vm2009, %v1992, %v1014
      %v2027 = vsel %vm2009, %v1994, %v1016
      %v2029 = vsel %vm2009, %v1996, %v1018
      %v2031 = vsel %vm2009, %v1998, %v1020
      %v2033 = vsel %vm2009, %v2000, %v1022
      %v2035 = vsel %vm2009, %v2002, %v1024
      %v2037 = vsel %vm2009, %v2004, %v1026
      %v2039 = vsel %vm2009, %v2006, %v1028
      %v2041 = vsel %vm2009, %v2008, %v1030
      %vm2042 = vcmask 130048
      %v2044 = vsel %vm2042, %v2011, %v1272
      %v2046 = vsel %vm2042, %v2013, %v1274
      %v2048 = vsel %vm2042, %v2015, %v1276
      %v2050 = vsel %vm2042, %v2017, %v1278
      %v2052 = vsel %vm2042, %v2019, %v1280
      %v2054 = vsel %vm2042, %v2021, %v1282
      %v2056 = vsel %vm2042, %v2023, %v1284
      %v2058 = vsel %vm2042, %v2025, %v1286
      %v2060 = vsel %vm2042, %v2027, %v1288
      %v2062 = vsel %vm2042, %v2029, %v1290
      %v2064 = vsel %vm2042, %v2031, %v1292
      %v2066 = vsel %vm2042, %v2033, %v1294
      %v2068 = vsel %vm2042, %v2035, %v1296
      %v2070 = vsel %vm2042, %v2037, %v1298
      %v2072 = vsel %vm2042, %v2039, %v1300
      %v2074 = vsel %vm2042, %v2041, %v1302
      %vm2075 = vcmask 162816
      %v2077 = vsel %vm2075, %v2044, %v1400
      %v2079 = vsel %vm2075, %v2046, %v1402
      %v2081 = vsel %vm2075, %v2048, %v1404
      %v2083 = vsel %vm2075, %v2050, %v1406
      %v2085 = vsel %vm2075, %v2052, %v1408
      %v2087 = vsel %vm2075, %v2054, %v1410
      %v2089 = vsel %vm2075, %v2056, %v1412
      %v2091 = vsel %vm2075, %v2058, %v1414
      %v2093 = vsel %vm2075, %v2060, %v1416
      %v2095 = vsel %vm2075, %v2062, %v1418
      %v2097 = vsel %vm2075, %v2064, %v1420
      %v2099 = vsel %vm2075, %v2066, %v1422
      %v2101 = vsel %vm2075, %v2068, %v1424
      %v2103 = vsel %vm2075, %v2070, %v1426
      %v2105 = vsel %vm2075, %v2072, %v1428
      %v2107 = vsel %vm2075, %v2074, %v1430
      %vm2108 = vcmask 195584
      %v2110 = vsel %vm2108, %v2077, %v1512
      %v2112 = vsel %vm2108, %v2079, %v1514
      %v2114 = vsel %vm2108, %v2081, %v1516
      %v2116 = vsel %vm2108, %v2083, %v1518
      %v2118 = vsel %vm2108, %v2085, %v1520
      %v2120 = vsel %vm2108, %v2087, %v1522
      %v2122 = vsel %vm2108, %v2089, %v1524
      %v2124 = vsel %vm2108, %v2091, %v1526
      %v2126 = vsel %vm2108, %v2093, %v1528
      %v2128 = vsel %vm2108, %v2095, %v1530
      %v2130 = vsel %vm2108, %v2097, %v1532
      %v2132 = vsel %vm2108, %v2099, %v1534
      %v2134 = vsel %vm2108, %v2101, %v1536
      %v2136 = vsel %vm2108, %v2103, %v1538
      %v2138 = vsel %vm2108, %v2105, %v1540
      %v2140 = vsel %vm2108, %v2107, %v1542
      %vm2141 = vcmask 228352
      %v2143 = vsel %vm2141, %v2110, %v1784
      %v2145 = vsel %vm2141, %v2112, %v1786
      %v2147 = vsel %vm2141, %v2114, %v1788
      %v2149 = vsel %vm2141, %v2116, %v1790
      %v2151 = vsel %vm2141, %v2118, %v1792
      %v2153 = vsel %vm2141, %v2120, %v1794
      %v2155 = vsel %vm2141, %v2122, %v1796
      %v2157 = vsel %vm2141, %v2124, %v1798
      %v2159 = vsel %vm2141, %v2126, %v1800
      %v2161 = vsel %vm2141, %v2128, %v1802
      %v2163 = vsel %vm2141, %v2130, %v1804
      %v2165 = vsel %vm2141, %v2132, %v1806
      %v2167 = vsel %vm2141, %v2134, %v1808
      %v2169 = vsel %vm2141, %v2136, %v1810
      %v2171 = vsel %vm2141, %v2138, %v1812
      %v2173 = vsel %vm2141, %v2140, %v1814
      %vm2174 = vcmask 261120
      %v2176 = vsel %vm2174, %v2143, %v1912
      %v2178 = vsel %vm2174, %v2145, %v1914
      %v2180 = vsel %vm2174, %v2147, %v1916
      %v2182 = vsel %vm2174, %v2149, %v1918
      %v2184 = vsel %vm2174, %v2151, %v1920
      %v2186 = vsel %vm2174, %v2153, %v1922
      %v2188 = vsel %vm2174, %v2155, %v1924
      %v2190 = vsel %vm2174, %v2157, %v1926
      %v2192 = vsel %vm2174, %v2159, %v1928
      %v2194 = vsel %vm2174, %v2161, %v1930
      %v2196 = vsel %vm2174, %v2163, %v1932
      %v2198 = vsel %vm2174, %v2165, %v1934
      %v2200 = vsel %vm2174, %v2167, %v1936
      %v2202 = vsel %vm2174, %v2169, %v1938
      %v2204 = vsel %vm2174, %v2171, %v1940
      %v2206 = vsel %vm2174, %v2173, %v1942
      %v2207 = vld [vmem:[%s1] sm:$0xf]
      %v2208 = vld [vmem:[%s1 + $0x4] sm:$0xf]
      %v2209 = vld [vmem:[%s1 + $0x8] sm:$0xf]
      %v2210 = vld [vmem:[%s1 + $0xc] sm:$0xf]
      %v2211 = vld [vmem:[%s1 + $0x10] sm:$0x3]
      %v2212 = vld [vmem:[%s2] sm:$0x1]
      %v2214 = vlaneseq
      %v2215 = vshrl.u32 %v2214, 7
      %v2216 = vsub.s32 0, %v2215
      %v2217 = vrot.slane %v2212, %v2216
      %v2224 = vunpack.c.l.b16 %v2207
      %v2225 = vunpack.c.l.b16 %v2208
      %v2226 = vunpack.c.l.b16 %v2209
      %v2227 = vunpack.c.l.b16 %v2210
      %v2228 = vunpack.c.l.b16 %v2211
      %v2229 = vpack.c.b16 %v2225, %v2224
      %v2230 = vpack.c.b16 %v2227, %v2226
      %v2231 = vpack.c.b16 %v2228, %v2228
      %vm2234 = vcmask 293888
      %v2235 = vsel %vm2234, %v2176, 0
      %v2237 = vsel %vm2234, %v2178, 0
      %v2239 = vsel %vm2234, %v2180, 0
      %v2241 = vsel %vm2234, %v2182, 0
      %v2243 = vsel %vm2234, %v2184, 0
      %v2245 = vsel %vm2234, %v2186, 0
      %v2247 = vsel %vm2234, %v2188, 0
      %v2249 = vsel %vm2234, %v2190, 0
      %v2251 = vsel %vm2234, %v2192, 0
      %v2253 = vsel %vm2234, %v2194, 0
      %v2255 = vsel %vm2234, %v2196, 0
      %v2257 = vsel %vm2234, %v2198, 0
      %v2259 = vsel %vm2234, %v2200, 0
      %v2261 = vsel %vm2234, %v2202, 0
      %v2263 = vsel %vm2234, %v2204, 0
      %v2265 = vsel %vm2234, %v2206, 0
      %vm2267 = vcmask 1041408
      %v2269 = vsel %vm2267, %v2231, 0
      %2271 = vmatprep.subr.bf16.mxu0 0
      %2272 = vmatpush1.bf16.msra.mxu0 %v2229
      %2273 = vmatprep.subr.bf16.mxu0 0
      %2274 = vmatpush1.bf16.msra.mxu0 %v2230
      %2275 = vmatprep.subr.bf16.mxu0 0
      %2276 = vmatpush1.bf16.msra.mxu0 %v2269
      %2277 = vmatprep.subr.bf16.mxu0 0
      %2278 = vmatpush1.bf16.msra.mxu0 0
      %2279 = vmatprep.subr.bf16.mxu0 0
      %2280 = vmatpush1.bf16.msra.mxu0 0
      %2281 = vmatprep.subr.bf16.mxu0 0
      %2282 = vmatpush1.bf16.msra.mxu0 0
      %2283 = vmatprep.subr.bf16.mxu0 0
      %2284 = vmatpush1.bf16.msra.mxu0 0
      %2285 = vmatprep.subr.bf16.mxu0 0
      %2286 = vmatpush1.bf16.msra.mxu0 0
      %2287 = vmatprep.subr.bf16.mxu0 0
      %2288 = vmatpush1.bf16.msra.mxu0 0
      %2289 = vmatprep.subr.bf16.mxu0 0
      %2290 = vmatpush1.bf16.msra.mxu0 0
      %2291 = vmatprep.subr.bf16.mxu0 0
      %2292 = vmatpush1.bf16.msra.mxu0 0
      %2293 = vmatprep.subr.bf16.mxu0 0
      %2294 = vmatpush1.bf16.msra.mxu0 0
      %2295 = vmatprep.subr.bf16.mxu0 0
      %2296 = vmatpush1.bf16.msra.mxu0 0
      %2297 = vmatprep.subr.bf16.mxu0 0
      %2298 = vmatpush1.bf16.msra.mxu0 0
      %2299 = vmatprep.subr.bf16.mxu0 0
      %2300 = vmatpush1.bf16.msra.mxu0 0
      %2301 = vmatprep.subr.bf16.mxu0 0
      %2302 = vmatpush1.bf16.msra.mxu0 0
      %2303 = vmatprep.mubr.bf16.mxu0 0
      %2304 = vmatmul.mubr.bf16.gmra.mrb[0].mxu0 %v2235
      %v2305 = vpop.f32.mrb[0].mxu0
      %v2306 = vadd.f32 %v2217, %v2305
      %v2307 = vpop.f32.mrb[0].mxu0
      %v2308 = vpop.f32.mrb[0].mxu0
      %v2309 = vadd.f32 %v2217, %v2308
      %v2310 = vpop.f32.mrb[0].mxu0
      %2311 = vmatprep.mubr.bf16.mxu0 0
      %2312 = vmatmul.mubr.bf16.gmra.mrb[0].mxu0 %v2237
      %v2313 = vpop.f32.mrb[0].mxu0
      %v2314 = vadd.f32 %v2217, %v2313
      %v2315 = vpop.f32.mrb[0].mxu0
      %v2316 = vpop.f32.mrb[0].mxu0
      %v2317 = vadd.f32 %v2217, %v2316
      %v2318 = vpop.f32.mrb[0].mxu0
      %2319 = vmatprep.mubr.bf16.mxu0 0
      %2320 = vmatmul.mubr.bf16.gmra.mrb[0].mxu0 %v2239
      %v2321 = vpop.f32.mrb[0].mxu0
      %v2322 = vadd.f32 %v2217, %v2321
      %v2323 = vpop.f32.mrb[0].mxu0
      %v2324 = vpop.f32.mrb[0].mxu0
      %v2325 = vadd.f32 %v2217, %v2324
      %v2326 = vpop.f32.mrb[0].mxu0
      %2327 = vmatprep.mubr.bf16.mxu0 0
      %2328 = vmatmul.mubr.bf16.gmra.mrb[0].mxu0 %v2241
      %v2329 = vpop.f32.mrb[0].mxu0
      %v2330 = vadd.f32 %v2217, %v2329
      %v2331 = vpop.f32.mrb[0].mxu0
      %v2332 = vpop.f32.mrb[0].mxu0
      %v2333 = vadd.f32 %v2217, %v2332
      %v2334 = vpop.f32.mrb[0].mxu0
      %2335 = vmatprep.mubr.bf16.mxu0 0
      %2336 = vmatmul.mubr.bf16.gmra.mrb[0].mxu0 %v2243
      %v2337 = vpop.f32.mrb[0].mxu0
      %v2338 = vadd.f32 %v2217, %v2337
      %v2339 = vpop.f32.mrb[0].mxu0
      %v2340 = vpop.f32.mrb[0].mxu0
      %v2341 = vadd.f32 %v2217, %v2340
      %v2342 = vpop.f32.mrb[0].mxu0
      %2343 = vmatprep.mubr.bf16.mxu0 0
      %2344 = vmatmul.mubr.bf16.gmra.mrb[0].mxu0 %v2245
      %v2345 = vpop.f32.mrb[0].mxu0
      %v2346 = vadd.f32 %v2217, %v2345
      %v2347 = vpop.f32.mrb[0].mxu0
      %v2348 = vpop.f32.mrb[0].mxu0
      %v2349 = vadd.f32 %v2217, %v2348
      %v2350 = vpop.f32.mrb[0].mxu0
      %2351 = vmatprep.mubr.bf16.mxu0 0
      %2352 = vmatmul.mubr.bf16.gmra.mrb[0].mxu0 %v2247
      %v2353 = vpop.f32.mrb[0].mxu0
      %v2354 = vadd.f32 %v2217, %v2353
      %v2355 = vpop.f32.mrb[0].mxu0
      %v2356 = vpop.f32.mrb[0].mxu0
      %v2357 = vadd.f32 %v2217, %v2356
      %v2358 = vpop.f32.mrb[0].mxu0
      %2359 = vmatprep.mubr.bf16.mxu0 0
      %2360 = vmatmul.mubr.bf16.gmra.mrb[0].mxu0 %v2249
      %v2361 = vpop.f32.mrb[0].mxu0
      %v2362 = vadd.f32 %v2217, %v2361
      %v2363 = vpop.f32.mrb[0].mxu0
      %v2364 = vpop.f32.mrb[0].mxu0
      %v2365 = vadd.f32 %v2217, %v2364
      %v2366 = vpop.f32.mrb[0].mxu0
      %2367 = vmatprep.mubr.bf16.mxu0 0
      %2368 = vmatmul.mubr.bf16.gmra.mrb[0].mxu0 %v2251
      %v2369 = vpop.f32.mrb[0].mxu0
      %v2370 = vadd.f32 %v2217, %v2369
      %v2371 = vpop.f32.mrb[0].mxu0
      %v2372 = vpop.f32.mrb[0].mxu0
      %v2373 = vadd.f32 %v2217, %v2372
      %v2374 = vpop.f32.mrb[0].mxu0
      %2375 = vmatprep.mubr.bf16.mxu0 0
      %2376 = vmatmul.mubr.bf16.gmra.mrb[0].mxu0 %v2253
      %v2377 = vpop.f32.mrb[0].mxu0
      %v2378 = vadd.f32 %v2217, %v2377
      %v2379 = vpop.f32.mrb[0].mxu0
      %v2380 = vpop.f32.mrb[0].mxu0
      %v2381 = vadd.f32 %v2217, %v2380
      %v2382 = vpop.f32.mrb[0].mxu0
      %2383 = vmatprep.mubr.bf16.mxu0 0
      %2384 = vmatmul.mubr.bf16.gmra.mrb[0].mxu0 %v2255
      %v2385 = vpop.f32.mrb[0].mxu0
      %v2386 = vadd.f32 %v2217, %v2385
      %v2387 = vpop.f32.mrb[0].mxu0
      %v2388 = vpop.f32.mrb[0].mxu0
      %v2389 = vadd.f32 %v2217, %v2388
      %v2390 = vpop.f32.mrb[0].mxu0
      %2391 = vmatprep.mubr.bf16.mxu0 0
      %2392 = vmatmul.mubr.bf16.gmra.mrb[0].mxu0 %v2257
      %v2393 = vpop.f32.mrb[0].mxu0
      %v2394 = vadd.f32 %v2217, %v2393
      %v2395 = vpop.f32.mrb[0].mxu0
      %v2396 = vpop.f32.mrb[0].mxu0
      %v2397 = vadd.f32 %v2217, %v2396
      %v2398 = vpop.f32.mrb[0].mxu0
      %2399 = vmatprep.mubr.bf16.mxu0 0
      %2400 = vmatmul.mubr.bf16.gmra.mrb[0].mxu0 %v2259
      %v2401 = vpop.f32.mrb[0].mxu0
      %v2402 = vadd.f32 %v2217, %v2401
      %v2403 = vpop.f32.mrb[0].mxu0
      %v2404 = vpop.f32.mrb[0].mxu0
      %v2405 = vadd.f32 %v2217, %v2404
      %v2406 = vpop.f32.mrb[0].mxu0
      %2407 = vmatprep.mubr.bf16.mxu0 0
      %2408 = vmatmul.mubr.bf16.gmra.mrb[0].mxu0 %v2261
      %v2409 = vpop.f32.mrb[0].mxu0
      %v2410 = vadd.f32 %v2217, %v2409
      %v2411 = vpop.f32.mrb[0].mxu0
      %v2412 = vpop.f32.mrb[0].mxu0
      %v2413 = vadd.f32 %v2217, %v2412
      %v2414 = vpop.f32.mrb[0].mxu0
      %2415 = vmatprep.mubr.bf16.mxu0 0
      %2416 = vmatmul.mubr.bf16.gmra.mrb[0].mxu0 %v2263
      %v2417 = vpop.f32.mrb[0].mxu0
      %v2418 = vadd.f32 %v2217, %v2417
      %v2419 = vpop.f32.mrb[0].mxu0
      %v2420 = vpop.f32.mrb[0].mxu0
      %v2421 = vadd.f32 %v2217, %v2420
      %v2422 = vpop.f32.mrb[0].mxu0
      %2423 = vmatprep.mubr.bf16.mxu0 0
      %2424 = vmatmul.mubr.bf16.gmra.mrb[0].mxu0 %v2265
      %v2425 = vpop.f32.mrb[0].mxu0
      %v2426 = vadd.f32 %v2217, %v2425
      %v2427 = vpop.f32.mrb[0].mxu0
      %v2428 = vpop.f32.mrb[0].mxu0
      %v2429 = vadd.f32 %v2217, %v2428
      %v2430 = vpop.f32.mrb[0].mxu0
      %2431 = vdwg.mxu0
      %v2432 = vpack.c.bf16 %v2309, %v2306
      %v2433 = vpack.c.bf16 %v2317, %v2314
      %v2434 = vpack.c.bf16 %v2325, %v2322
      %v2435 = vpack.c.bf16 %v2333, %v2330
      %v2436 = vpack.c.bf16 %v2341, %v2338
      %v2437 = vpack.c.bf16 %v2349, %v2346
      %v2438 = vpack.c.bf16 %v2357, %v2354
      %v2439 = vpack.c.bf16 %v2365, %v2362
      %v2440 = vpack.c.bf16 %v2373, %v2370
      %v2441 = vpack.c.bf16 %v2381, %v2378
      %v2442 = vpack.c.bf16 %v2389, %v2386
      %v2443 = vpack.c.bf16 %v2397, %v2394
      %v2444 = vpack.c.bf16 %v2405, %v2402
      %v2445 = vpack.c.bf16 %v2413, %v2410
      %v2446 = vpack.c.bf16 %v2421, %v2418
      %v2447 = vpack.c.bf16 %v2429, %v2426
      %v2464 = vunpack.c.l.b16 %v2432
      %v2465 = vunpack.c.h.b16 %v2432
      %v2466 = vunpack.c.l.b16 %v2433
      %v2467 = vunpack.c.h.b16 %v2433
      %v2468 = vunpack.c.l.b16 %v2434
      %v2469 = vunpack.c.h.b16 %v2434
      %v2470 = vunpack.c.l.b16 %v2435
      %v2471 = vunpack.c.h.b16 %v2435
      %v2472 = vunpack.c.l.b16 %v2436
      %v2473 = vunpack.c.h.b16 %v2436
      %v2474 = vunpack.c.l.b16 %v2437
      %v2475 = vunpack.c.h.b16 %v2437
      %v2476 = vunpack.c.l.b16 %v2438
      %v2477 = vunpack.c.h.b16 %v2438
      %v2478 = vunpack.c.l.b16 %v2439
      %v2479 = vunpack.c.h.b16 %v2439
      %v2480 = vunpack.c.l.b16 %v2440
      %v2481 = vunpack.c.h.b16 %v2440
      %v2482 = vunpack.c.l.b16 %v2441
      %v2483 = vunpack.c.h.b16 %v2441
      %v2484 = vunpack.c.l.b16 %v2442
      %v2485 = vunpack.c.h.b16 %v2442
      %v2486 = vunpack.c.l.b16 %v2443
      %v2487 = vunpack.c.h.b16 %v2443
      %v2488 = vunpack.c.l.b16 %v2444
      %v2489 = vunpack.c.h.b16 %v2444
      %v2490 = vunpack.c.l.b16 %v2445
      %v2491 = vunpack.c.h.b16 %v2445
      %v2492 = vunpack.c.l.b16 %v2446
      %v2493 = vunpack.c.h.b16 %v2446
      %v2494 = vunpack.c.l.b16 %v2447
      %v2495 = vunpack.c.h.b16 %v2447
      %v2496 = vpack.c.b16 %v2464, %v2464
      %v2497 = vpack.c.b16 %v2465, %v2465
      %v2498 = vpack.c.b16 %v2466, %v2466
      %v2499 = vpack.c.b16 %v2467, %v2467
      %v2500 = vpack.c.b16 %v2468, %v2468
      %v2501 = vpack.c.b16 %v2469, %v2469
      %v2502 = vpack.c.b16 %v2470, %v2470
      %v2503 = vpack.c.b16 %v2471, %v2471
      %v2504 = vpack.c.b16 %v2472, %v2472
      %v2505 = vpack.c.b16 %v2473, %v2473
      %v2506 = vpack.c.b16 %v2474, %v2474
      %v2507 = vpack.c.b16 %v2475, %v2475
      %v2508 = vpack.c.b16 %v2476, %v2476
      %v2509 = vpack.c.b16 %v2477, %v2477
      %v2510 = vpack.c.b16 %v2478, %v2478
      %v2511 = vpack.c.b16 %v2479, %v2479
      %v2512 = vpack.c.b16 %v2480, %v2480
      %v2513 = vpack.c.b16 %v2481, %v2481
      %v2514 = vpack.c.b16 %v2482, %v2482
      %v2515 = vpack.c.b16 %v2483, %v2483
      %v2516 = vpack.c.b16 %v2484, %v2484
      %v2517 = vpack.c.b16 %v2485, %v2485
      %v2518 = vpack.c.b16 %v2486, %v2486
      %v2519 = vpack.c.b16 %v2487, %v2487
      %v2520 = vpack.c.b16 %v2488, %v2488
      %v2521 = vpack.c.b16 %v2489, %v2489
      %v2522 = vpack.c.b16 %v2490, %v2490
      %v2523 = vpack.c.b16 %v2491, %v2491
      %v2524 = vpack.c.b16 %v2492, %v2492
      %v2525 = vpack.c.b16 %v2493, %v2493
      %v2526 = vpack.c.b16 %v2494, %v2494
      %v2527 = vpack.c.b16 %v2495, %v2495
      %2560 = vst [vmem:[%s226] sm:$0xf] %v2496
      %2561 = vst [vmem:[%s226 + $0x4] sm:$0xf] %v2497
      %2562 = vst [vmem:[%s226 + $0x8] sm:$0xf] %v2498
      %2563 = vst [vmem:[%s226 + $0xc] sm:$0xf] %v2499
      %2564 = vst [vmem:[%s226 + $0x10] sm:$0xf] %v2500
      %2565 = vst [vmem:[%s226 + $0x14] sm:$0xf] %v2501
      %2566 = vst [vmem:[%s226 + $0x18] sm:$0xf] %v2502
      %2567 = vst [vmem:[%s226 + $0x1c] sm:$0xf] %v2503
      %2568 = vst [vmem:[%s226 + $0x20] sm:$0xf] %v2504
      %2569 = vst [vmem:[%s226 + $0x24] sm:$0xf] %v2505
      %2570 = vst [vmem:[%s226 + $0x28] sm:$0xf] %v2506
      %2571 = vst [vmem:[%s226 + $0x2c] sm:$0xf] %v2507
      %2572 = vst [vmem:[%s226 + $0x30] sm:$0xf] %v2508
      %2573 = vst [vmem:[%s226 + $0x34] sm:$0xf] %v2509
      %2574 = vst [vmem:[%s226 + $0x38] sm:$0xf] %v2510
      %2575 = vst [vmem:[%s226 + $0x3c] sm:$0xf] %v2511
      %2576 = vst [vmem:[%s226 + $0x40] sm:$0xf] %v2512
      %2577 = vst [vmem:[%s226 + $0x44] sm:$0xf] %v2513
      %2578 = vst [vmem:[%s226 + $0x48] sm:$0xf] %v2514
      %2579 = vst [vmem:[%s226 + $0x4c] sm:$0xf] %v2515
      %2580 = vst [vmem:[%s226 + $0x50] sm:$0xf] %v2516
      %2581 = vst [vmem:[%s226 + $0x54] sm:$0xf] %v2517
      %2582 = vst [vmem:[%s226 + $0x58] sm:$0xf] %v2518
      %2583 = vst [vmem:[%s226 + $0x5c] sm:$0xf] %v2519
      %2584 = vst [vmem:[%s226 + $0x60] sm:$0xf] %v2520
      %2585 = vst [vmem:[%s226 + $0x64] sm:$0xf] %v2521
      %2586 = vst [vmem:[%s226 + $0x68] sm:$0xf] %v2522
      %2587 = vst [vmem:[%s226 + $0x6c] sm:$0xf] %v2523
      %2588 = vst [vmem:[%s226 + $0x70] sm:$0xf] %v2524
      %2589 = vst [vmem:[%s226 + $0x74] sm:$0xf] %v2525
      %2590 = vst [vmem:[%s226 + $0x78] sm:$0xf] %v2526
      %2591 = vst [vmem:[%s226 + $0x7c] sm:$0xf] %v2527
      %p2592 = scmp.eq.s32.totalorder %s21, 0
      // Predicated region
      $region33: #{hin_conv_block.3} parent=31 // pred_check
        %p2593 = pneg %p2592
      $region34: #{hin_conv_block.3} parent=31 // pred_check_branch
        %2595 = sbr.rel (%p2593) target = $region36
      $region35: #{hin_conv_block.3} parent=31 // pred_region
        %2596 = vst [vmem:[%s231] sm:$0x3] 0.0
      $region36: #{hin_conv_block.3} parent=31 // pred_fallthru
        _
      %v2597 = vunpack.c.l.bf16 %v2432
      %v2598 = vunpack.c.h.bf16 %v2432
      %v2599 = vunpack.c.l.bf16 %v2433
      %v2600 = vunpack.c.h.bf16 %v2433
      %v2601 = vunpack.c.l.bf16 %v2434
      %v2602 = vunpack.c.h.bf16 %v2434
      %v2603 = vunpack.c.l.bf16 %v2435
      %v2604 = vunpack.c.h.bf16 %v2435
      %v2605 = vunpack.c.l.bf16 %v2436
      %v2606 = vunpack.c.h.bf16 %v2436
      %v2607 = vunpack.c.l.bf16 %v2437
      %v2608 = vunpack.c.h.bf16 %v2437
      %v2609 = vunpack.c.l.bf16 %v2438
      %v2610 = vunpack.c.h.bf16 %v2438
      %v2611 = vunpack.c.l.bf16 %v2439
      %v2612 = vunpack.c.h.bf16 %v2439
      %v2613 = vunpack.c.l.bf16 %v2440
      %v2614 = vunpack.c.h.bf16 %v2440
      %v2615 = vunpack.c.l.bf16 %v2441
      %v2616 = vunpack.c.h.bf16 %v2441
      %v2617 = vunpack.c.l.bf16 %v2442
      %v2618 = vunpack.c.h.bf16 %v2442
      %v2619 = vunpack.c.l.bf16 %v2443
      %v2620 = vunpack.c.h.bf16 %v2443
      %v2621 = vunpack.c.l.bf16 %v2444
      %v2622 = vunpack.c.h.bf16 %v2444
      %v2623 = vunpack.c.l.bf16 %v2445
      %v2624 = vunpack.c.h.bf16 %v2445
      %v2625 = vunpack.c.l.bf16 %v2446
      %v2626 = vunpack.c.h.bf16 %v2446
      %v2627 = vunpack.c.l.bf16 %v2447
      %v2628 = vunpack.c.h.bf16 %v2447
      %v2629 = vadd.f32 %v2597, %v2598
      %v2630 = vadd.f32 %v2629, %v2599
      %v2631 = vadd.f32 %v2630, %v2600
      %v2632 = vadd.f32 %v2631, %v2601
      %v2633 = vadd.f32 %v2632, %v2602
      %v2634 = vadd.f32 %v2633, %v2603
      %v2635 = vadd.f32 %v2634, %v2604
      %v2636 = vadd.f32 %v2635, %v2605
      %v2637 = vadd.f32 %v2636, %v2606
      %v2638 = vadd.f32 %v2637, %v2607
      %v2639 = vadd.f32 %v2638, %v2608
      %v2640 = vadd.f32 %v2639, %v2609
      %v2641 = vadd.f32 %v2640, %v2610
      %v2642 = vadd.f32 %v2641, %v2611
      %v2643 = vadd.f32 %v2642, %v2612
      %v2644 = vadd.f32 %v2643, %v2613
      %v2645 = vadd.f32 %v2644, %v2614
      %v2646 = vadd.f32 %v2645, %v2615
      %v2647 = vadd.f32 %v2646, %v2616
      %v2648 = vadd.f32 %v2647, %v2617
      %v2649 = vadd.f32 %v2648, %v2618
      %v2650 = vadd.f32 %v2649, %v2619
      %v2651 = vadd.f32 %v2650, %v2620
      %v2652 = vadd.f32 %v2651, %v2621
      %v2653 = vadd.f32 %v2652, %v2622
      %v2654 = vadd.f32 %v2653, %v2623
      %v2655 = vadd.f32 %v2654, %v2624
      %v2656 = vadd.f32 %v2655, %v2625
      %v2657 = vadd.f32 %v2656, %v2626
      %v2658 = vadd.f32 %v2657, %v2627
      %v2659 = vadd.f32 %v2658, %v2628
      %v2660 = vrot.slane %v2659, 4
      %v2661 = vadd.f32 %v2659, %v2660
      %v2662 = vrot.slane %v2661, 2
      %v2663 = vadd.f32 %v2661, %v2662
      %v2664 = vrot.slane %v2663, 1
      %v2665 = vadd.f32 %v2663, %v2664
      %v2666 = vmul.f32 %v2597, %v2597
      %v2667 = vmul.f32 %v2598, %v2598
      %v2668 = vmul.f32 %v2599, %v2599
      %v2669 = vmul.f32 %v2600, %v2600
      %v2670 = vmul.f32 %v2601, %v2601
      %v2671 = vmul.f32 %v2602, %v2602
      %v2672 = vmul.f32 %v2603, %v2603
      %v2673 = vmul.f32 %v2604, %v2604
      %v2674 = vmul.f32 %v2605, %v2605
      %v2675 = vmul.f32 %v2606, %v2606
      %v2676 = vmul.f32 %v2607, %v2607
      %v2677 = vmul.f32 %v2608, %v2608
      %v2678 = vmul.f32 %v2609, %v2609
      %v2679 = vmul.f32 %v2610, %v2610
      %v2680 = vmul.f32 %v2611, %v2611
      %v2681 = vmul.f32 %v2612, %v2612
      %v2682 = vmul.f32 %v2613, %v2613
      %v2683 = vmul.f32 %v2614, %v2614
      %v2684 = vmul.f32 %v2615, %v2615
      %v2685 = vmul.f32 %v2616, %v2616
      %v2686 = vmul.f32 %v2617, %v2617
      %v2687 = vmul.f32 %v2618, %v2618
      %v2688 = vmul.f32 %v2619, %v2619
      %v2689 = vmul.f32 %v2620, %v2620
      %v2690 = vmul.f32 %v2621, %v2621
      %v2691 = vmul.f32 %v2622, %v2622
      %v2692 = vmul.f32 %v2623, %v2623
      %v2693 = vmul.f32 %v2624, %v2624
      %v2694 = vmul.f32 %v2625, %v2625
      %v2695 = vmul.f32 %v2626, %v2626
      %v2696 = vmul.f32 %v2627, %v2627
      %v2697 = vmul.f32 %v2628, %v2628
      %v2698 = vadd.f32 %v2666, %v2667
      %v2699 = vadd.f32 %v2698, %v2668
      %v2700 = vadd.f32 %v2699, %v2669
      %v2701 = vadd.f32 %v2700, %v2670
      %v2702 = vadd.f32 %v2701, %v2671
      %v2703 = vadd.f32 %v2702, %v2672
      %v2704 = vadd.f32 %v2703, %v2673
      %v2705 = vadd.f32 %v2704, %v2674
      %v2706 = vadd.f32 %v2705, %v2675
      %v2707 = vadd.f32 %v2706, %v2676
      %v2708 = vadd.f32 %v2707, %v2677
      %v2709 = vadd.f32 %v2708, %v2678
      %v2710 = vadd.f32 %v2709, %v2679
      %v2711 = vadd.f32 %v2710, %v2680
      %v2712 = vadd.f32 %v2711, %v2681
      %v2713 = vadd.f32 %v2712, %v2682
      %v2714 = vadd.f32 %v2713, %v2683
      %v2715 = vadd.f32 %v2714, %v2684
      %v2716 = vadd.f32 %v2715, %v2685
      %v2717 = vadd.f32 %v2716, %v2686
      %v2718 = vadd.f32 %v2717, %v2687
      %v2719 = vadd.f32 %v2718, %v2688
      %v2720 = vadd.f32 %v2719, %v2689
      %v2721 = vadd.f32 %v2720, %v2690
      %v2722 = vadd.f32 %v2721, %v2691
      %v2723 = vadd.f32 %v2722, %v2692
      %v2724 = vadd.f32 %v2723, %v2693
      %v2725 = vadd.f32 %v2724, %v2694
      %v2726 = vadd.f32 %v2725, %v2695
      %v2727 = vadd.f32 %v2726, %v2696
      %v2728 = vadd.f32 %v2727, %v2697
      %v2729 = vrot.slane %v2728, 4
      %v2730 = vadd.f32 %v2728, %v2729
      %v2731 = vrot.slane %v2730, 2
      %v2732 = vadd.f32 %v2730, %v2731
      %v2733 = vrot.slane %v2732, 1
      %v2734 = vadd.f32 %v2732, %v2733
      %v2735 = vld [vmem:[%s231] sm:$0x3]
      %vm2736 = vcmask 1040384
      %v2737 = vsel %vm2736, %v2665, %v2734
      %v2738 = vadd.f32 %v2735, %v2737
      %2739 = vst [vmem:[%s231] sm:$0x3] %v2738
      %s2740 = smul.u32 32, %s21
      %p2741 = scmp.lt.s32.totalorder %s20, 1
      %s2742 = scalar_select %p2741, %s20, 1
      %p2743 = scmp.lt.s32.totalorder %s2740, 31
      %s2744 = scalar_select %p2743, %s2740, 31
      %s2745 = smul.addr %s2742, 32
      %s2746 = sadd.s32 %s2744, %s2745
      %s2747 = smul.addr %s2746, 4
      %s2748 = scalar_lea.vmem %s3, %s2747
      %p2749 = scmp.lt.s32.totalorder %s20, 1
      %s2750 = scalar_select %p2749, %s20, 1
      %s2751 = smul.addr %s2750, 2
      %s2752 = scalar_lea.vmem %s4, %s2751
      // Predicated region
      $region37: #{hin_conv_block.3} parent=31 // pred_check
        %p2753 = pneg %p116
      $region38: #{hin_conv_block.3} parent=31 // pred_check_branch
        %2755 = sbr.rel (%p2753) target = $region40
      $region39: #{hin_conv_block.3} parent=31 // pred_region
        %s2756 = smul.u32 32, %s21
      $region40: #{hin_conv_block.3} parent=31 // pred_fallthru
        _
      // Predicated region
      $region41: #{hin_conv_block.3} parent=31 // pred_check
        %p2757 = pneg %p142
      $region42: #{hin_conv_block.3} parent=31 // pred_check_branch
        %2759 = sbr.rel (%p2757) target = $region44
      $region43: #{hin_conv_block.3} parent=31 // pred_region
        _
      $region44: #{hin_conv_block.3} parent=31 // pred_fallthru
        _
    $region32: #{hin_conv_block.3} parent=5 // pred_fallthru
      _
    %p2760 = scmp.le.s32.totalorder 2, %s11
    // Predicated region
    $region45: #{hin_conv_block.3} parent=5 // pred_check
      %p2761 = pneg %p2760
    $region46: #{hin_conv_block.3} parent=5 // pred_check_branch
      %2763 = sbr.rel (%p2761) target = $region48
    $region47: #{hin_conv_block.3} parent=5 // pred_region
      %s2764 = ssub.s32 %s11, 2
      // Predicated region
      $region49: #{hin_conv_block.3} parent=47 // pred_check
        %p2765 = pneg %p122
      $region50: #{hin_conv_block.3} parent=47 // pred_check_branch
        %2767 = sbr.rel (%p2765) target = $region52
      $region51: #{hin_conv_block.3} parent=47 // pred_region
        %s2768 = smul.u32 32, %s23
        %p2769 = scmp.lt.s32.totalorder %s22, 1
        %s2770 = scalar_select %p2769, %s22, 1
        %p2771 = scmp.lt.s32.totalorder %s2768, 31
        %s2772 = scalar_select %p2771, %s2768, 31
        %s2773 = smul.addr %s2770, 32
        %s2774 = sadd.s32 %s2772, %s2773
        %s2775 = smul.addr %s2774, 4
        %s2776 = scalar_lea.vmem %s3, %s2775
      $region52: #{hin_conv_block.3} parent=47 // pred_fallthru
        _
      // Predicated region
      $region53: #{hin_conv_block.3} parent=47 // pred_check
        %p2777 = pneg %p148
      $region54: #{hin_conv_block.3} parent=47 // pred_check_branch
        %2779 = sbr.rel (%p2777) target = $region56
      $region55: #{hin_conv_block.3} parent=47 // pred_region
        %p2780 = scmp.lt.s32.totalorder %s22, 1
        %s2781 = scalar_select %p2780, %s22, 1
        %s2782 = smul.addr %s2781, 2
        %s2783 = scalar_lea.vmem %s4, %s2782
      $region56: #{hin_conv_block.3} parent=47 // pred_fallthru
        _
    $region48: #{hin_conv_block.3} parent=5 // pred_fallthru
      _
  $region6: #{hin_conv_block.3} parent=0 // loop_footer
    %s15 = sadd.s32 1, %s11
  $region7: #{hin_conv_block.3} parent=0 // loop_footer_branch
    %10 = sbr.rel target = $region3
  $region8: #{hin_conv_block.3} parent=0 // loop_exit
    _

// kernel: hin_conv_block.5
$region0: #{hin_conv_block.5}
  #allocation0 [shape = 'u32[]', space=smem, size = 0x4, offset = 0x4, fixed_abs, tag = 'smem constant byte address 0x4 - core index']
  #allocation1 [shape = 'u32[144,128]{1,0:T(1,128)}', space=vmem, size = 0x12000, scoped, tag = 'internal scratch']
  %s0 = inlined_call_operand.vmem [shape: bf16[2,18,18,128], index: 0, kind: input, shape index: {}]
  %s1 = inlined_call_operand.vmem [shape: bf16[2,256,128], index: 1, kind: input, shape index: {}]
  %s2 = inlined_call_operand.vmem [shape: bf16[1152,128], index: 2, kind: input, shape index: {}]
  %s3 = inlined_call_operand.vmem [shape: f32[1,128], index: 3, kind: input, shape index: {}]
  %s4 = inlined_call_operand.hbm [shape: f32[2,256,128], index: 4, kind: output, shape index: {}]
  %s5 = sld [smem:[#allocation0]]
  $region49: #{hin_conv_block.5} parent=0
    _
  %s7 = ssub.s32 1, %s5
  %s8 = scalar_select 0, %s7, %s5
  $region1: #{hin_conv_block.5} parent=0
    #allocation2 [shape = 'u8[262144]{0}', space=vmem, size = 0x40000, scoped, tag = 'output window, operand 0']
    #allocation3 [shape = 's32[2]{0}', space=sflag, size = 0x8, scoped, tag = 'scoped memory for hin_conv_block.5']
    %9 = vsyncpa [#allocation3], 0
    %s10 = scalar_lea.sflag [#allocation3], 1
    %11 = vsyncpa %s10, 0
    loop: start=0, step=1, limit=4
    $region2: #{hin_conv_block.5} parent=1 // loop_pre_header
      _
    $region3: #{hin_conv_block.5} parent=1 // loop_header
      %s13 = sphi 0, %s17
      %p14 = scmp.ge.s32.totalorder %s13, 4
      %s20 = sphi 0, %s32
      %s21 = sphi 0, %s28
      %s22 = sphi 0, %s20
      %s23 = sphi 0, %s21
      %s24 = sphi 0, %s22
      %s25 = sphi 0, %s23
      %s35 = sphi 0, %s37
      %s38 = sphi 0, %s35
      %s39 = sphi 0, %s38
      %s55 = sphi 0, %s39
      %s63 = sphi 0, %s65
      %s66 = sphi 0, %s63
      %s67 = sphi 0, %s66
      %s83 = sphi 0, %s67
      %s87 = sphi 0, %s87
      %s89 = sphi 0, %s87
      %s90 = sphi 0, %s89
      %s104 = sphi 0, %s90
      %s108 = sphi 0, %s108
      %s110 = sphi 0, %s108
      %s111 = sphi 0, %s110
      %s125 = sphi 0, %s111
      %s133 = sphi 0, %s135
      %s136 = sphi 0, %s133
      %s137 = sphi 0, %s136
      %s153 = sphi 0, %s137
    $region4: #{hin_conv_block.5} parent=1 // loop_header_branch
      %16 = sbr.rel (%p14) target = $region8
    $region5: #{hin_conv_block.5} parent=1 // loop_body
      %s18 = ssub.s32 %s13, 1
      %s19 = ssub.s32 %s13, 2
      %s26 = sadd.s32 1, %s21
      %p27 = scmp.ge.s32.totalorder %s26, 1
      %s28 = scalar_select %p27, 0, %s26
      %s29 = sadd.s32 1, %s20
      %s30 = scalar_select %p27, %s29, %s20
      %p31 = scmp.ge.s32.totalorder %s30, 2
      %s32 = scalar_select %p31, 0, %s30
      %s33 = ssub.s32 %s20, %s32
      %p34 = scmp.eq.s32.totalorder %s33, 0
      %s36 = sadd.s32 %s35, 1
      %s37 = scalar_select %p34, %s35, %s36
      %p40 = pneg %p34
      %p41 = scmp.eq.s32.totalorder %s13, 1
      %p42 = por %p40, %p41
      %p43 = scmp.ne.s32.totalorder %s35, %s38
      %p44 = scmp.eq.s32.totalorder %s13, 0
      %p45 = por %p43, %p44
      %p46 = scmp.ne.s32.totalorder %s35, %s38
      %p47 = scmp.eq.s32.totalorder %s18, 1
      %p48 = por %p46, %p47
      %p49 = scmp.ne.s32.totalorder %s38, %s39
      %p50 = scmp.eq.s32.totalorder %s18, 0
      %p51 = por %p49, %p50
      %p52 = scmp.ne.s32.totalorder %s38, %s39
      %p53 = scmp.eq.s32.totalorder %s19, 1
      %p54 = por %p52, %p53
      %p56 = scmp.ne.s32.totalorder %s39, %s55
      %p57 = scmp.eq.s32.totalorder %s19, 0
      %p58 = por %p56, %p57
      %s59 = ssub.s32 %s20, %s32
      %s60 = ssub.s32 %s21, %s28
      %s61 = sor.u32 %s59, %s60
      %p62 = scmp.eq.s32.totalorder %s61, 0
      %s64 = sadd.s32 %s63, 1
      %s65 = scalar_select %p62, %s63, %s64
      %p68 = pneg %p62
      %p69 = scmp.eq.s32.totalorder %s13, 1
      %p70 = por %p68, %p69
      %p71 = scmp.ne.s32.totalorder %s63, %s66
      %p72 = scmp.eq.s32.totalorder %s13, 0
      %p73 = por %p71, %p72
      %p74 = scmp.ne.s32.totalorder %s63, %s66
      %p75 = scmp.eq.s32.totalorder %s18, 1
      %p76 = por %p74, %p75
      %p77 = scmp.ne.s32.totalorder %s66, %s67
      %p78 = scmp.eq.s32.totalorder %s18, 0
      %p79 = por %p77, %p78
      %p80 = scmp.ne.s32.totalorder %s66, %s67
      %p81 = scmp.eq.s32.totalorder %s19, 1
      %p82 = por %p80, %p81
      %p84 = scmp.ne.s32.totalorder %s67, %s83
      %p85 = scmp.eq.s32.totalorder %s19, 0
      %p86 = por %p84, %p85
      %s88 = sadd.s32 %s87, 1
      %p91 = scmp.eq.s32.totalorder %s13, 1
      %p92 = scmp.ne.s32.totalorder %s87, %s89
      %p93 = scmp.eq.s32.totalorder %s13, 0
      %p94 = por %p92, %p93
      %p95 = scmp.ne.s32.totalorder %s87, %s89
      %p96 = scmp.eq.s32.totalorder %s18, 1
      %p97 = por %p95, %p96
      %p98 = scmp.ne.s32.totalorder %s89, %s90
      %p99 = scmp.eq.s32.totalorder %s18, 0
      %p100 = por %p98, %p99
      %p101 = scmp.ne.s32.totalorder %s89, %s90
      %p102 = scmp.eq.s32.totalorder %s19, 1
      %p103 = por %p101, %p102
      %p105 = scmp.ne.s32.totalorder %s90, %s104
      %p106 = scmp.eq.s32.totalorder %s19, 0
      %p107 = por %p105, %p106
      %s109 = sadd.s32 %s108, 1
      %p112 = scmp.eq.s32.totalorder %s13, 1
      %p113 = scmp.ne.s32.totalorder %s108, %s110
      %p114 = scmp.eq.s32.totalorder %s13, 0
      %p115 = por %p113, %p114
      %p116 = scmp.ne.s32.totalorder %s108, %s110
      %p117 = scmp.eq.s32.totalorder %s18, 1
      %p118 = por %p116, %p117
      %p119 = scmp.ne.s32.totalorder %s110, %s111
      %p120 = scmp.eq.s32.totalorder %s18, 0
      %p121 = por %p119, %p120
      %p122 = scmp.ne.s32.totalorder %s110, %s111
      %p123 = scmp.eq.s32.totalorder %s19, 1
      %p124 = por %p122, %p123
      %p126 = scmp.ne.s32.totalorder %s111, %s125
      %p127 = scmp.eq.s32.totalorder %s19, 0
      %p128 = por %p126, %p127
      %s129 = ssub.s32 %s20, %s32
      %s130 = ssub.s32 %s21, %s28
      %s131 = sor.u32 %s129, %s130
      %p132 = scmp.eq.s32.totalorder %s131, 0
      %s134 = sadd.s32 %s133, 1
      %s135 = scalar_select %p132, %s133, %s134
      %p138 = pneg %p132
      %p139 = scmp.eq.s32.totalorder %s13, 1
      %p140 = por %p138, %p139
      %p141 = scmp.ne.s32.totalorder %s133, %s136
      %p142 = scmp.eq.s32.totalorder %s13, 0
      %p143 = por %p141, %p142
      %p144 = scmp.ne.s32.totalorder %s133, %s136
      %p145 = scmp.eq.s32.totalorder %s18, 1
      %p146 = por %p144, %p145
      %p147 = scmp.ne.s32.totalorder %s136, %s137
      %p148 = scmp.eq.s32.totalorder %s18, 0
      %p149 = por %p147, %p148
      %p150 = scmp.ne.s32.totalorder %s136, %s137
      %p151 = scmp.eq.s32.totalorder %s19, 1
      %p152 = por %p150, %p151
      %p154 = scmp.ne.s32.totalorder %s137, %s153
      %p155 = scmp.eq.s32.totalorder %s19, 0
      %p156 = por %p154, %p155
      %p157 = scmp.le.s32.totalorder 1, %s13
      %p158 = scmp.lt.s32.totalorder %s13, 3
      %p159 = pnand %p157, %p158
      %p160 = pneg %p159
      // Predicated region
      $region9: #{hin_conv_block.5} parent=5 // pred_check
        _
      $region10: #{hin_conv_block.5} parent=5 // pred_check_branch
        %162 = sbr.rel (%p159) target = $region12
      $region11: #{hin_conv_block.5} parent=5 // pred_region
        %s163 = ssub.s32 %s13, 1
        // Predicated region
        $region13: #{hin_conv_block.5} parent=11 // pred_check
          %p164 = pneg %p100
        $region14: #{hin_conv_block.5} parent=11 // pred_check_branch
          %166 = sbr.rel (%p164) target = $region16
        $region15: #{hin_conv_block.5} parent=11 // pred_region
          _
        $region16: #{hin_conv_block.5} parent=11 // pred_fallthru
          _
        // Predicated region
        $region17: #{hin_conv_block.5} parent=11 // pred_check
          %p167 = pneg %p121
        $region18: #{hin_conv_block.5} parent=11 // pred_check_branch
          %169 = sbr.rel (%p167) target = $region20
        $region19: #{hin_conv_block.5} parent=11 // pred_region
          _
        $region20: #{hin_conv_block.5} parent=11 // pred_fallthru
          _
      $region12: #{hin_conv_block.5} parent=5 // pred_fallthru
        _
      %p170 = scmp.lt.s32.totalorder %s13, 2
      // Predicated region
      $region21: #{hin_conv_block.5} parent=5 // pred_check
        %p171 = pneg %p170
      $region22: #{hin_conv_block.5} parent=5 // pred_check_branch
        %173 = sbr.rel (%p171) target = $region24
      $region23: #{hin_conv_block.5} parent=5 // pred_region
        // Predicated region
        $region25: #{hin_conv_block.5} parent=23 // pred_check
          %p174 = pneg %p45
        $region26: #{hin_conv_block.5} parent=23 // pred_check_branch
          %176 = sbr.rel (%p174) target = $region28
        $region27: #{hin_conv_block.5} parent=23 // pred_region
          %p177 = scmp.lt.s32.totalorder %s20, 1
          %s178 = scalar_select %p177, %s20, 1
          %s179 = smul.addr %s178, 54
          %s180 = smul.addr %s179, 4
          %s181 = scalar_lea.vmem %s0, %s180
        $region28: #{hin_conv_block.5} parent=23 // pred_fallthru
          _
        // Predicated region
        $region29: #{hin_conv_block.5} parent=23 // pred_check
          %p182 = pneg %p73
        $region30: #{hin_conv_block.5} parent=23 // pred_check_branch
          %184 = sbr.rel (%p182) target = $region32
        $region31: #{hin_conv_block.5} parent=23 // pred_region
          %s185 = smul.u32 32, %s21
          %p186 = scmp.lt.s32.totalorder %s20, 1
          %s187 = scalar_select %p186, %s20, 1
          %p188 = scmp.lt.s32.totalorder %s185, 31
          %s189 = scalar_select %p188, %s185, 31
          %s190 = smul.addr %s187, 32
          %s191 = sadd.s32 %s189, %s190
          %s192 = smul.addr %s191, 4
          %s193 = scalar_lea.vmem %s1, %s192
          %s194 = smul.u32 32, %s21
        $region32: #{hin_conv_block.5} parent=23 // pred_fallthru
          _
      $region24: #{hin_conv_block.5} parent=5 // pred_fallthru
        _
      %p195 = scmp.le.s32.totalorder 1, %s13
      %p196 = scmp.lt.s32.totalorder %s13, 3
      %p197 = pnand %p195, %p196
      %p198 = pneg %p197
      // Predicated region
      $region33: #{hin_conv_block.5} parent=5 // pred_check
        _
      $region34: #{hin_conv_block.5} parent=5 // pred_check_branch
        %200 = sbr.rel (%p197) target = $region36
      $region35: #{hin_conv_block.5} parent=5 // pred_region
        %s201 = ssub.s32 %s13, 1
        %p202 = scmp.lt.s32.totalorder %s22, 1
        %s203 = scalar_select %p202, %s22, 1
        %s204 = smul.addr %s203, 54
        %s205 = smul.addr %s204, 4
        %s206 = scalar_lea.vmem %s0, %s205
        %p207 = pneg %p51
        %p208 = pneg %p48
        %s209 = smul.u32 32, %s23
        %p210 = scmp.lt.s32.totalorder %s22, 1
        %s211 = scalar_select %p210, %s22, 1
        %p212 = scmp.lt.s32.totalorder %s209, 31
        %s213 = scalar_select %p212, %s209, 31
        %s214 = smul.addr %s211, 32
        %s215 = sadd.s32 %s213, %s214
        %s216 = smul.addr %s215, 4
        %s217 = scalar_lea.vmem %s1, %s216
        %p218 = pneg %p79
        %p219 = pneg %p76
        %p220 = pneg %p100
        %p221 = pneg %p97
        %p222 = pneg %p121
        %p223 = pneg %p118
        %p224 = pneg %p149
        %p225 = pneg %p146
        %s226 = sand.u32 %s136, 1
        %s227 = scalar_lea.sflag [#allocation3], %s226
        %s228 = sand.u32 %s136, 1
        %s229 = smul.addr %s228, 256
        %s230 = scalar_lea.vmem [#allocation2], %s229
        %p231 = scmp.lt.s32.totalorder %s22, 1
        %s232 = scalar_select %p231, %s22, 1
        %s233 = smul.addr %s232, 54
        %s234 = smul.addr %s233, 4
        %s235 = scalar_lea.vmem %s0, %s234
        %s236 = smul.u32 32, %s23
        %p237 = scmp.lt.s32.totalorder %s22, 1
        %s238 = scalar_select %p237, %s22, 1
        %p239 = scmp.lt.s32.totalorder %s236, 31
        %s240 = scalar_select %p239, %s236, 31
        %s241 = smul.addr %s238, 32
        %s242 = sadd.s32 %s240, %s241
        %s243 = smul.addr %s242, 4
        %s244 = scalar_lea.vmem %s1, %s243
        %s245 = smul.u32 32, %s23
        %s246 = smul.u32 32, %s23
        %s248 = smul.u32 %s23, 16
        %s249 = smul.u32 %s248, 3
        %s250 = smul.addr %s249, 4
        %s251 = scalar_lea.vmem %s235, %s250
        %v252 = vld [vmem:[%s251] sm:$0xf]
        %v253 = vld [vmem:[%s251 + $0x4] sm:$0xf]
        %v254 = vld [vmem:[%s251 + $0xc] sm:$0xf]
        %v255 = vld [vmem:[%s251 + $0x10] sm:$0xf]
        %v256 = vld [vmem:[%s251 + $0x18] sm:$0xf]
        %v257 = vld [vmem:[%s251 + $0x1c] sm:$0xf]
        %v258 = vld [vmem:[%s251 + $0x24] sm:$0xf]
        %v259 = vld [vmem:[%s251 + $0x28] sm:$0xf]
        %v260 = vld [vmem:[%s251 + $0x30] sm:$0xf]
        %v261 = vld [vmem:[%s251 + $0x34] sm:$0xf]
        %v262 = vld [vmem:[%s251 + $0x3c] sm:$0xf]
        %v263 = vld [vmem:[%s251 + $0x40] sm:$0xf]
        %v264 = vld [vmem:[%s251 + $0x48] sm:$0xf]
        %v265 = vld [vmem:[%s251 + $0x4c] sm:$0xf]
        %v266 = vld [vmem:[%s251 + $0x54] sm:$0xf]
        %v267 = vld [vmem:[%s251 + $0x58] sm:$0xf]
        %v268 = vld [vmem:[%s251 + $0x60] sm:$0xf]
        %v269 = vld [vmem:[%s251 + $0x64] sm:$0xf]
        %v270 = vld [vmem:[%s251 + $0x6c] sm:$0xf]
        %v271 = vld [vmem:[%s251 + $0x70] sm:$0xf]
        %v272 = vld [vmem:[%s251 + $0x78] sm:$0xf]
        %v273 = vld [vmem:[%s251 + $0x7c] sm:$0xf]
        %v274 = vld [vmem:[%s251 + $0x84] sm:$0xf]
        %v275 = vld [vmem:[%s251 + $0x88] sm:$0xf]
        %v276 = vld [vmem:[%s251 + $0x90] sm:$0xf]
        %v277 = vld [vmem:[%s251 + $0x94] sm:$0xf]
        %v278 = vld [vmem:[%s251 + $0x9c] sm:$0xf]
        %v279 = vld [vmem:[%s251 + $0xa0] sm:$0xf]
        %v280 = vld [vmem:[%s251 + $0xa8] sm:$0xf]
        %v281 = vld [vmem:[%s251 + $0xac] sm:$0xf]
        %v282 = vld [vmem:[%s251 + $0xb4] sm:$0xf]
        %v283 = vld [vmem:[%s251 + $0xb8] sm:$0xf]
        %v284 = vld [vmem:[%s251 + $0x8] sm:$0x1]
        %v285 = vld [vmem:[%s251 + $0x14] sm:$0x1]
        %v286 = vld [vmem:[%s251 + $0x20] sm:$0x1]
        %v287 = vld [vmem:[%s251 + $0x2c] sm:$0x1]
        %v288 = vld [vmem:[%s251 + $0x38] sm:$0x1]
        %v289 = vld [vmem:[%s251 + $0x44] sm:$0x1]
        %v290 = vld [vmem:[%s251 + $0x50] sm:$0x1]
        %v291 = vld [vmem:[%s251 + $0x5c] sm:$0x1]
        %v292 = vld [vmem:[%s251 + $0x68] sm:$0x1]
        %v293 = vld [vmem:[%s251 + $0x74] sm:$0x1]
        %v294 = vld [vmem:[%s251 + $0x80] sm:$0x1]
        %v295 = vld [vmem:[%s251 + $0x8c] sm:$0x1]
        %v296 = vld [vmem:[%s251 + $0x98] sm:$0x1]
        %v297 = vld [vmem:[%s251 + $0xa4] sm:$0x1]
        %v298 = vld [vmem:[%s251 + $0xb0] sm:$0x1]
        %v299 = vld [vmem:[%s251 + $0xbc] sm:$0x1]
        %v300 = vld [vmem:[%s251] sm:$0xe]
        %v301 = vld [vmem:[%s251 + $0xc] sm:$0xe]
        %v302 = vld [vmem:[%s251 + $0x18] sm:$0xe]
        %v303 = vld [vmem:[%s251 + $0x24] sm:$0xe]
        %v304 = vld [vmem:[%s251 + $0x30] sm:$0xe]
        %v305 = vld [vmem:[%s251 + $0x3c] sm:$0xe]
        %v306 = vld [vmem:[%s251 + $0x48] sm:$0xe]
        %v307 = vld [vmem:[%s251 + $0x54] sm:$0xe]
        %v308 = vld [vmem:[%s251 + $0x60] sm:$0xe]
        %v309 = vld [vmem:[%s251 + $0x6c] sm:$0xe]
        %v310 = vld [vmem:[%s251 + $0x78] sm:$0xe]
        %v311 = vld [vmem:[%s251 + $0x84] sm:$0xe]
        %v312 = vld [vmem:[%s251 + $0x90] sm:$0xe]
        %v313 = vld [vmem:[%s251 + $0x9c] sm:$0xe]
        %v314 = vld [vmem:[%s251 + $0xa8] sm:$0xe]
        %v315 = vld [vmem:[%s251 + $0xb4] sm:$0xe]
        %s316 = sadd.s32 %s248, 1
        %s317 = smul.u32 %s316, 3
        %s318 = smul.addr %s317, 4
        %s319 = scalar_lea.vmem %s235, %s318
        %v320 = vld [vmem:[%s319] sm:$0xf]
        %v321 = vld [vmem:[%s319 + $0x4] sm:$0xf]
        %v322 = vld [vmem:[%s319 + $0xc] sm:$0xf]
        %v323 = vld [vmem:[%s319 + $0x10] sm:$0xf]
        %v324 = vld [vmem:[%s319 + $0x18] sm:$0xf]
        %v325 = vld [vmem:[%s319 + $0x1c] sm:$0xf]
        %v326 = vld [vmem:[%s319 + $0x24] sm:$0xf]
        %v327 = vld [vmem:[%s319 + $0x28] sm:$0xf]
        %v328 = vld [vmem:[%s319 + $0x30] sm:$0xf]
        %v329 = vld [vmem:[%s319 + $0x34] sm:$0xf]
        %v330 = vld [vmem:[%s319 + $0x3c] sm:$0xf]
        %v331 = vld [vmem:[%s319 + $0x40] sm:$0xf]
        %v332 = vld [vmem:[%s319 + $0x48] sm:$0xf]
        %v333 = vld [vmem:[%s319 + $0x4c] sm:$0xf]
        %v334 = vld [vmem:[%s319 + $0x54] sm:$0xf]
        %v335 = vld [vmem:[%s319 + $0x58] sm:$0xf]
        %v336 = vld [vmem:[%s319 + $0x60] sm:$0xf]
        %v337 = vld [vmem:[%s319 + $0x64] sm:$0xf]
        %v338 = vld [vmem:[%s319 + $0x6c] sm:$0xf]
        %v339 = vld [vmem:[%s319 + $0x70] sm:$0xf]
        %v340 = vld [vmem:[%s319 + $0x78] sm:$0xf]
        %v341 = vld [vmem:[%s319 + $0x7c] sm:$0xf]
        %v342 = vld [vmem:[%s319 + $0x84] sm:$0xf]
        %v343 = vld [vmem:[%s319 + $0x88] sm:$0xf]
        %v344 = vld [vmem:[%s319 + $0x90] sm:$0xf]
        %v345 = vld [vmem:[%s319 + $0x94] sm:$0xf]
        %v346 = vld [vmem:[%s319 + $0x9c] sm:$0xf]
        %v347 = vld [vmem:[%s319 + $0xa0] sm:$0xf]
        %v348 = vld [vmem:[%s319 + $0xa8] sm:$0xf]
        %v349 = vld [vmem:[%s319 + $0xac] sm:$0xf]
        %v350 = vld [vmem:[%s319 + $0xb4] sm:$0xf]
        %v351 = vld [vmem:[%s319 + $0xb8] sm:$0xf]
        %v352 = vld [vmem:[%s319 + $0x8] sm:$0x1]
        %v353 = vld [vmem:[%s319 + $0x14] sm:$0x1]
        %v354 = vld [vmem:[%s319 + $0x20] sm:$0x1]
        %v355 = vld [vmem:[%s319 + $0x2c] sm:$0x1]
        %v356 = vld [vmem:[%s319 + $0x38] sm:$0x1]
        %v357 = vld [vmem:[%s319 + $0x44] sm:$0x1]
        %v358 = vld [vmem:[%s319 + $0x50] sm:$0x1]
        %v359 = vld [vmem:[%s319 + $0x5c] sm:$0x1]
        %v360 = vld [vmem:[%s319 + $0x68] sm:$0x1]
        %v361 = vld [vmem:[%s319 + $0x74] sm:$0x1]
        %v362 = vld [vmem:[%s319 + $0x80] sm:$0x1]
        %v363 = vld [vmem:[%s319 + $0x8c] sm:$0x1]
        %v364 = vld [vmem:[%s319 + $0x98] sm:$0x1]
        %v365 = vld [vmem:[%s319 + $0xa4] sm:$0x1]
        %v366 = vld [vmem:[%s319 + $0xb0] sm:$0x1]
        %v367 = vld [vmem:[%s319 + $0xbc] sm:$0x1]
        %v368 = vld [vmem:[%s319] sm:$0xe]
        %v369 = vld [vmem:[%s319 + $0xc] sm:$0xe]
        %v370 = vld [vmem:[%s319 + $0x18] sm:$0xe]
        %v371 = vld [vmem:[%s319 + $0x24] sm:$0xe]
        %v372 = vld [vmem:[%s319 + $0x30] sm:$0xe]
        %v373 = vld [vmem:[%s319 + $0x3c] sm:$0xe]
        %v374 = vld [vmem:[%s319 + $0x48] sm:$0xe]
        %v375 = vld [vmem:[%s319 + $0x54] sm:$0xe]
        %v376 = vld [vmem:[%s319 + $0x60] sm:$0xe]
        %v377 = vld [vmem:[%s319 + $0x6c] sm:$0xe]
        %v378 = vld [vmem:[%s319 + $0x78] sm:$0xe]
        %v379 = vld [vmem:[%s319 + $0x84] sm:$0xe]
        %v380 = vld [vmem:[%s319 + $0x90] sm:$0xe]
        %v381 = vld [vmem:[%s319 + $0x9c] sm:$0xe]
        %v382 = vld [vmem:[%s319 + $0xa8] sm:$0xe]
        %v383 = vld [vmem:[%s319 + $0xb4] sm:$0xe]
        %s384 = sadd.s32 %s248, 2
        %s385 = smul.u32 %s384, 3
        %s386 = smul.addr %s385, 4
        %s387 = scalar_lea.vmem %s235, %s386
        %v388 = vld [vmem:[%s387] sm:$0xf]
        %v389 = vld [vmem:[%s387 + $0x4] sm:$0xf]
        %v390 = vld [vmem:[%s387 + $0xc] sm:$0xf]
        %v391 = vld [vmem:[%s387 + $0x10] sm:$0xf]
        %v392 = vld [vmem:[%s387 + $0x18] sm:$0xf]
        %v393 = vld [vmem:[%s387 + $0x1c] sm:$0xf]
        %v394 = vld [vmem:[%s387 + $0x24] sm:$0xf]
        %v395 = vld [vmem:[%s387 + $0x28] sm:$0xf]
        %v396 = vld [vmem:[%s387 + $0x30] sm:$0xf]
        %v397 = vld [vmem:[%s387 + $0x34] sm:$0xf]
        %v398 = vld [vmem:[%s387 + $0x3c] sm:$0xf]
        %v399 = vld [vmem:[%s387 + $0x40] sm:$0xf]
        %v400 = vld [vmem:[%s387 + $0x48] sm:$0xf]
        %v401 = vld [vmem:[%s387 + $0x4c] sm:$0xf]
        %v402 = vld [vmem:[%s387 + $0x54] sm:$0xf]
        %v403 = vld [vmem:[%s387 + $0x58] sm:$0xf]
        %v404 = vld [vmem:[%s387 + $0x60] sm:$0xf]
        %v405 = vld [vmem:[%s387 + $0x64] sm:$0xf]
        %v406 = vld [vmem:[%s387 + $0x6c] sm:$0xf]
        %v407 = vld [vmem:[%s387 + $0x70] sm:$0xf]
        %v408 = vld [vmem:[%s387 + $0x78] sm:$0xf]
        %v409 = vld [vmem:[%s387 + $0x7c] sm:$0xf]
        %v410 = vld [vmem:[%s387 + $0x84] sm:$0xf]
        %v411 = vld [vmem:[%s387 + $0x88] sm:$0xf]
        %v412 = vld [vmem:[%s387 + $0x90] sm:$0xf]
        %v413 = vld [vmem:[%s387 + $0x94] sm:$0xf]
        %v414 = vld [vmem:[%s387 + $0x9c] sm:$0xf]
        %v415 = vld [vmem:[%s387 + $0xa0] sm:$0xf]
        %v416 = vld [vmem:[%s387 + $0xa8] sm:$0xf]
        %v417 = vld [vmem:[%s387 + $0xac] sm:$0xf]
        %v418 = vld [vmem:[%s387 + $0xb4] sm:$0xf]
        %v419 = vld [vmem:[%s387 + $0xb8] sm:$0xf]
        %v420 = vld [vmem:[%s387 + $0x8] sm:$0x1]
        %v421 = vld [vmem:[%s387 + $0x14] sm:$0x1]
        %v422 = vld [vmem:[%s387 + $0x20] sm:$0x1]
        %v423 = vld [vmem:[%s387 + $0x2c] sm:$0x1]
        %v424 = vld [vmem:[%s387 + $0x38] sm:$0x1]
        %v425 = vld [vmem:[%s387 + $0x44] sm:$0x1]
        %v426 = vld [vmem:[%s387 + $0x50] sm:$0x1]
        %v427 = vld [vmem:[%s387 + $0x5c] sm:$0x1]
        %v428 = vld [vmem:[%s387 + $0x68] sm:$0x1]
        %v429 = vld [vmem:[%s387 + $0x74] sm:$0x1]
        %v430 = vld [vmem:[%s387 + $0x80] sm:$0x1]
        %v431 = vld [vmem:[%s387 + $0x8c] sm:$0x1]
        %v432 = vld [vmem:[%s387 + $0x98] sm:$0x1]
        %v433 = vld [vmem:[%s387 + $0xa4] sm:$0x1]
        %v434 = vld [vmem:[%s387 + $0xb0] sm:$0x1]
        %v435 = vld [vmem:[%s387 + $0xbc] sm:$0x1]
        %v436 = vld [vmem:[%s387] sm:$0xe]
        %v437 = vld [vmem:[%s387 + $0xc] sm:$0xe]
        %v438 = vld [vmem:[%s387 + $0x18] sm:$0xe]
        %v439 = vld [vmem:[%s387 + $0x24] sm:$0xe]
        %v440 = vld [vmem:[%s387 + $0x30] sm:$0xe]
        %v441 = vld [vmem:[%s387 + $0x3c] sm:$0xe]
        %v442 = vld [vmem:[%s387 + $0x48] sm:$0xe]
        %v443 = vld [vmem:[%s387 + $0x54] sm:$0xe]
        %v444 = vld [vmem:[%s387 + $0x60] sm:$0xe]
        %v445 = vld [vmem:[%s387 + $0x6c] sm:$0xe]
        %v446 = vld [vmem:[%s387 + $0x78] sm:$0xe]
        %v447 = vld [vmem:[%s387 + $0x84] sm:$0xe]
        %v448 = vld [vmem:[%s387 + $0x90] sm:$0xe]
        %v449 = vld [vmem:[%s387 + $0x9c] sm:$0xe]
        %v450 = vld [vmem:[%s387 + $0xa8] sm:$0xe]
        %v451 = vld [vmem:[%s387 + $0xb4] sm:$0xe]
        %v484 = vunpack.c.l.b16 %v252
        %v485 = vunpack.c.l.b16 %v253
        %v486 = vunpack.c.l.b16 %v254
        %v487 = vunpack.c.l.b16 %v255
        %v488 = vunpack.c.l.b16 %v256
        %v489 = vunpack.c.l.b16 %v257
        %v490 = vunpack.c.l.b16 %v258
        %v491 = vunpack.c.l.b16 %v259
        %v492 = vunpack.c.l.b16 %v260
        %v493 = vunpack.c.l.b16 %v261
        %v494 = vunpack.c.l.b16 %v262
        %v495 = vunpack.c.l.b16 %v263
        %v496 = vunpack.c.l.b16 %v264
        %v497 = vunpack.c.l.b16 %v265
        %v498 = vunpack.c.l.b16 %v266
        %v499 = vunpack.c.l.b16 %v267
        %v500 = vunpack.c.l.b16 %v268
        %v501 = vunpack.c.l.b16 %v269
        %v502 = vunpack.c.l.b16 %v270
        %v503 = vunpack.c.l.b16 %v271
        %v504 = vunpack.c.l.b16 %v272
        %v505 = vunpack.c.l.b16 %v273
        %v506 = vunpack.c.l.b16 %v274
        %v507 = vunpack.c.l.b16 %v275
        %v508 = vunpack.c.l.b16 %v276
        %v509 = vunpack.c.l.b16 %v277
        %v510 = vunpack.c.l.b16 %v278
        %v511 = vunpack.c.l.b16 %v279
        %v512 = vunpack.c.l.b16 %v280
        %v513 = vunpack.c.l.b16 %v281
        %v514 = vunpack.c.l.b16 %v282
        %v515 = vunpack.c.l.b16 %v283
        %v516 = vpack.c.b16 %v485, %v484
        %v517 = vpack.c.b16 %v487, %v486
        %v518 = vpack.c.b16 %v489, %v488
        %v519 = vpack.c.b16 %v491, %v490
        %v520 = vpack.c.b16 %v493, %v492
        %v521 = vpack.c.b16 %v495, %v494
        %v522 = vpack.c.b16 %v497, %v496
        %v523 = vpack.c.b16 %v499, %v498
        %v524 = vpack.c.b16 %v501, %v500
        %v525 = vpack.c.b16 %v503, %v502
        %v526 = vpack.c.b16 %v505, %v504
        %v527 = vpack.c.b16 %v507, %v506
        %v528 = vpack.c.b16 %v509, %v508
        %v529 = vpack.c.b16 %v511, %v510
        %v530 = vpack.c.b16 %v513, %v512
        %v531 = vpack.c.b16 %v515, %v514
        %v564 = vunpack.c.l.b16 %v284
        %v565 = vunpack.c.l.b16 %v285
        %v566 = vunpack.c.l.b16 %v286
        %v567 = vunpack.c.l.b16 %v287
        %v568 = vunpack.c.l.b16 %v288
        %v569 = vunpack.c.l.b16 %v289
        %v570 = vunpack.c.l.b16 %v290
        %v571 = vunpack.c.l.b16 %v291
        %v572 = vunpack.c.l.b16 %v292
        %v573 = vunpack.c.l.b16 %v293
        %v574 = vunpack.c.l.b16 %v294
        %v575 = vunpack.c.l.b16 %v295
        %v576 = vunpack.c.l.b16 %v296
        %v577 = vunpack.c.l.b16 %v297
        %v578 = vunpack.c.l.b16 %v298
        %v579 = vunpack.c.l.b16 %v299
        %v580 = vpack.c.b16 %v564, %v564
        %v581 = vpack.c.b16 %v565, %v565
        %v582 = vpack.c.b16 %v566, %v566
        %v583 = vpack.c.b16 %v567, %v567
        %v584 = vpack.c.b16 %v568, %v568
        %v585 = vpack.c.b16 %v569, %v569
        %v586 = vpack.c.b16 %v570, %v570
        %v587 = vpack.c.b16 %v571, %v571
        %v588 = vpack.c.b16 %v572, %v572
        %v589 = vpack.c.b16 %v573, %v573
        %v590 = vpack.c.b16 %v574, %v574
        %v591 = vpack.c.b16 %v575, %v575
        %v592 = vpack.c.b16 %v576, %v576
        %v593 = vpack.c.b16 %v577, %v577
        %v594 = vpack.c.b16 %v578, %v578
        %v595 = vpack.c.b16 %v579, %v579
        %vm596 = vsmask.f32 7424
        %v598 = vshrl.u32 %v516, 16
        %v600 = vshll.u32 %v516, 16
        %v602 = vrot.slane %v600, 1
        %v603 = vor.u32 %v598, %v602
        %v605 = vshll.u32 %v580, 16
        %v607 = vrot.slane %v605, 1
        %v608 = vsel %vm596, %v603, %v607
        %v610 = vshrl.u32 %v517, 16
        %v612 = vshll.u32 %v517, 16
        %v614 = vrot.slane %v612, 1
        %v615 = vor.u32 %v610, %v614
        %v617 = vshll.u32 %v581, 16
        %v619 = vrot.slane %v617, 1
        %v620 = vsel %vm596, %v615, %v619
        %v622 = vshrl.u32 %v518, 16
        %v624 = vshll.u32 %v518, 16
        %v626 = vrot.slane %v624, 1
        %v627 = vor.u32 %v622, %v626
        %v629 = vshll.u32 %v582, 16
        %v631 = vrot.slane %v629, 1
        %v632 = vsel %vm596, %v627, %v631
        %v634 = vshrl.u32 %v519, 16
        %v636 = vshll.u32 %v519, 16
        %v638 = vrot.slane %v636, 1
        %v639 = vor.u32 %v634, %v638
        %v641 = vshll.u32 %v583, 16
        %v643 = vrot.slane %v641, 1
        %v644 = vsel %vm596, %v639, %v643
        %v646 = vshrl.u32 %v520, 16
        %v648 = vshll.u32 %v520, 16
        %v650 = vrot.slane %v648, 1
        %v651 = vor.u32 %v646, %v650
        %v653 = vshll.u32 %v584, 16
        %v655 = vrot.slane %v653, 1
        %v656 = vsel %vm596, %v651, %v655
        %v658 = vshrl.u32 %v521, 16
        %v660 = vshll.u32 %v521, 16
        %v662 = vrot.slane %v660, 1
        %v663 = vor.u32 %v658, %v662
        %v665 = vshll.u32 %v585, 16
        %v667 = vrot.slane %v665, 1
        %v668 = vsel %vm596, %v663, %v667
        %v670 = vshrl.u32 %v522, 16
        %v672 = vshll.u32 %v522, 16
        %v674 = vrot.slane %v672, 1
        %v675 = vor.u32 %v670, %v674
        %v677 = vshll.u32 %v586, 16
        %v679 = vrot.slane %v677, 1
        %v680 = vsel %vm596, %v675, %v679
        %v682 = vshrl.u32 %v523, 16
        %v684 = vshll.u32 %v523, 16
        %v686 = vrot.slane %v684, 1
        %v687 = vor.u32 %v682, %v686
        %v689 = vshll.u32 %v587, 16
        %v691 = vrot.slane %v689, 1
        %v692 = vsel %vm596, %v687, %v691
        %v694 = vshrl.u32 %v524, 16
        %v696 = vshll.u32 %v524, 16
        %v698 = vrot.slane %v696, 1
        %v699 = vor.u32 %v694, %v698
        %v701 = vshll.u32 %v588, 16
        %v703 = vrot.slane %v701, 1
        %v704 = vsel %vm596, %v699, %v703
        %v706 = vshrl.u32 %v525, 16
        %v708 = vshll.u32 %v525, 16
        %v710 = vrot.slane %v708, 1
        %v711 = vor.u32 %v706, %v710
        %v713 = vshll.u32 %v589, 16
        %v715 = vrot.slane %v713, 1
        %v716 = vsel %vm596, %v711, %v715
        %v718 = vshrl.u32 %v526, 16
        %v720 = vshll.u32 %v526, 16
        %v722 = vrot.slane %v720, 1
        %v723 = vor.u32 %v718, %v722
        %v725 = vshll.u32 %v590, 16
        %v727 = vrot.slane %v725, 1
        %v728 = vsel %vm596, %v723, %v727
        %v730 = vshrl.u32 %v527, 16
        %v732 = vshll.u32 %v527, 16
        %v734 = vrot.slane %v732, 1
        %v735 = vor.u32 %v730, %v734
        %v737 = vshll.u32 %v591, 16
        %v739 = vrot.slane %v737, 1
        %v740 = vsel %vm596, %v735, %v739
        %v742 = vshrl.u32 %v528, 16
        %v744 = vshll.u32 %v528, 16
        %v746 = vrot.slane %v744, 1
        %v747 = vor.u32 %v742, %v746
        %v749 = vshll.u32 %v592, 16
        %v751 = vrot.slane %v749, 1
        %v752 = vsel %vm596, %v747, %v751
        %v754 = vshrl.u32 %v529, 16
        %v756 = vshll.u32 %v529, 16
        %v758 = vrot.slane %v756, 1
        %v759 = vor.u32 %v754, %v758
        %v761 = vshll.u32 %v593, 16
        %v763 = vrot.slane %v761, 1
        %v764 = vsel %vm596, %v759, %v763
        %v766 = vshrl.u32 %v530, 16
        %v768 = vshll.u32 %v530, 16
        %v770 = vrot.slane %v768, 1
        %v771 = vor.u32 %v766, %v770
        %v773 = vshll.u32 %v594, 16
        %v775 = vrot.slane %v773, 1
        %v776 = vsel %vm596, %v771, %v775
        %v778 = vshrl.u32 %v531, 16
        %v780 = vshll.u32 %v531, 16
        %v782 = vrot.slane %v780, 1
        %v783 = vor.u32 %v778, %v782
        %v785 = vshll.u32 %v595, 16
        %v787 = vrot.slane %v785, 1
        %v788 = vsel %vm596, %v783, %v787
        %v821 = vunpack.c.l.b16 %v300
        %v822 = vunpack.c.l.b16 %v301
        %v823 = vunpack.c.l.b16 %v302
        %v824 = vunpack.c.l.b16 %v303
        %v825 = vunpack.c.l.b16 %v304
        %v826 = vunpack.c.l.b16 %v305
        %v827 = vunpack.c.l.b16 %v306
        %v828 = vunpack.c.l.b16 %v307
        %v829 = vunpack.c.l.b16 %v308
        %v830 = vunpack.c.l.b16 %v309
        %v831 = vunpack.c.l.b16 %v310
        %v832 = vunpack.c.l.b16 %v311
        %v833 = vunpack.c.l.b16 %v312
        %v834 = vunpack.c.l.b16 %v313
        %v835 = vunpack.c.l.b16 %v314
        %v836 = vunpack.c.l.b16 %v315
        %v837 = vpack.c.b16 %v485, %v821
        %v838 = vpack.c.b16 %v487, %v822
        %v839 = vpack.c.b16 %v489, %v823
        %v840 = vpack.c.b16 %v491, %v824
        %v841 = vpack.c.b16 %v493, %v825
        %v842 = vpack.c.b16 %v495, %v826
        %v843 = vpack.c.b16 %v497, %v827
        %v844 = vpack.c.b16 %v499, %v828
        %v845 = vpack.c.b16 %v501, %v829
        %v846 = vpack.c.b16 %v503, %v830
        %v847 = vpack.c.b16 %v505, %v831
        %v848 = vpack.c.b16 %v507, %v832
        %v849 = vpack.c.b16 %v509, %v833
        %v850 = vpack.c.b16 %v511, %v834
        %v851 = vpack.c.b16 %v513, %v835
        %v852 = vpack.c.b16 %v515, %v836
        %vm853 = vcmask 1046528
        %v854 = vrot.slane %v837, 1
        %v855 = vrot.slane %v580, 1
        %v856 = vsel %vm853, %v854, %v855
        %v857 = vrot.slane %v838, 1
        %v858 = vrot.slane %v581, 1
        %v859 = vsel %vm853, %v857, %v858
        %v860 = vrot.slane %v839, 1
        %v861 = vrot.slane %v582, 1
        %v862 = vsel %vm853, %v860, %v861
        %v863 = vrot.slane %v840, 1
        %v864 = vrot.slane %v583, 1
        %v865 = vsel %vm853, %v863, %v864
        %v866 = vrot.slane %v841, 1
        %v867 = vrot.slane %v584, 1
        %v868 = vsel %vm853, %v866, %v867
        %v869 = vrot.slane %v842, 1
        %v870 = vrot.slane %v585, 1
        %v871 = vsel %vm853, %v869, %v870
        %v872 = vrot.slane %v843, 1
        %v873 = vrot.slane %v586, 1
        %v874 = vsel %vm853, %v872, %v873
        %v875 = vrot.slane %v844, 1
        %v876 = vrot.slane %v587, 1
        %v877 = vsel %vm853, %v875, %v876
        %v878 = vrot.slane %v845, 1
        %v879 = vrot.slane %v588, 1
        %v880 = vsel %vm853, %v878, %v879
        %v881 = vrot.slane %v846, 1
        %v882 = vrot.slane %v589, 1
        %v883 = vsel %vm853, %v881, %v882
        %v884 = vrot.slane %v847, 1
        %v885 = vrot.slane %v590, 1
        %v886 = vsel %vm853, %v884, %v885
        %v887 = vrot.slane %v848, 1
        %v888 = vrot.slane %v591, 1
        %v889 = vsel %vm853, %v887, %v888
        %v890 = vrot.slane %v849, 1
        %v891 = vrot.slane %v592, 1
        %v892 = vsel %vm853, %v890, %v891
        %v893 = vrot.slane %v850, 1
        %v894 = vrot.slane %v593, 1
        %v895 = vsel %vm853, %v893, %v894
        %v896 = vrot.slane %v851, 1
        %v897 = vrot.slane %v594, 1
        %v898 = vsel %vm853, %v896, %v897
        %v899 = vrot.slane %v852, 1
        %v900 = vrot.slane %v595, 1
        %v901 = vsel %vm853, %v899, %v900
        %v950 = vunpack.c.l.b16 %v320
        %v951 = vunpack.c.l.b16 %v321
        %v952 = vunpack.c.l.b16 %v322
        %v953 = vunpack.c.l.b16 %v323
        %v954 = vunpack.c.l.b16 %v324
        %v955 = vunpack.c.l.b16 %v325
        %v956 = vunpack.c.l.b16 %v326
        %v957 = vunpack.c.l.b16 %v327
        %v958 = vunpack.c.l.b16 %v328
        %v959 = vunpack.c.l.b16 %v329
        %v960 = vunpack.c.l.b16 %v330
        %v961 = vunpack.c.l.b16 %v331
        %v962 = vunpack.c.l.b16 %v332
        %v963 = vunpack.c.l.b16 %v333
        %v964 = vunpack.c.l.b16 %v334
        %v965 = vunpack.c.l.b16 %v335
        %v966 = vunpack.c.l.b16 %v336
        %v967 = vunpack.c.l.b16 %v337
        %v968 = vunpack.c.l.b16 %v338
        %v969 = vunpack.c.l.b16 %v339
        %v970 = vunpack.c.l.b16 %v340
        %v971 = vunpack.c.l.b16 %v341
        %v972 = vunpack.c.l.b16 %v342
        %v973 = vunpack.c.l.b16 %v343
        %v974 = vunpack.c.l.b16 %v344
        %v975 = vunpack.c.l.b16 %v345
        %v976 = vunpack.c.l.b16 %v346
        %v977 = vunpack.c.l.b16 %v347
        %v978 = vunpack.c.l.b16 %v348
        %v979 = vunpack.c.l.b16 %v349
        %v980 = vunpack.c.l.b16 %v350
        %v981 = vunpack.c.l.b16 %v351
        %v982 = vpack.c.b16 %v951, %v950
        %v983 = vpack.c.b16 %v953, %v952
        %v984 = vpack.c.b16 %v955, %v954
        %v985 = vpack.c.b16 %v957, %v956
        %v986 = vpack.c.b16 %v959, %v958
        %v987 = vpack.c.b16 %v961, %v960
        %v988 = vpack.c.b16 %v963, %v962
        %v989 = vpack.c.b16 %v965, %v964
        %v990 = vpack.c.b16 %v967, %v966
        %v991 = vpack.c.b16 %v969, %v968
        %v992 = vpack.c.b16 %v971, %v970
        %v993 = vpack.c.b16 %v973, %v972
        %v994 = vpack.c.b16 %v975, %v974
        %v995 = vpack.c.b16 %v977, %v976
        %v996 = vpack.c.b16 %v979, %v978
        %v997 = vpack.c.b16 %v981, %v980
        %v1030 = vunpack.c.l.b16 %v352
        %v1031 = vunpack.c.l.b16 %v353
        %v1032 = vunpack.c.l.b16 %v354
        %v1033 = vunpack.c.l.b16 %v355
        %v1034 = vunpack.c.l.b16 %v356
        %v1035 = vunpack.c.l.b16 %v357
        %v1036 = vunpack.c.l.b16 %v358
        %v1037 = vunpack.c.l.b16 %v359
        %v1038 = vunpack.c.l.b16 %v360
        %v1039 = vunpack.c.l.b16 %v361
        %v1040 = vunpack.c.l.b16 %v362
        %v1041 = vunpack.c.l.b16 %v363
        %v1042 = vunpack.c.l.b16 %v364
        %v1043 = vunpack.c.l.b16 %v365
        %v1044 = vunpack.c.l.b16 %v366
        %v1045 = vunpack.c.l.b16 %v367
        %v1046 = vpack.c.b16 %v1030, %v1030
        %v1047 = vpack.c.b16 %v1031, %v1031
        %v1048 = vpack.c.b16 %v1032, %v1032
        %v1049 = vpack.c.b16 %v1033, %v1033
        %v1050 = vpack.c.b16 %v1034, %v1034
        %v1051 = vpack.c.b16 %v1035, %v1035
        %v1052 = vpack.c.b16 %v1036, %v1036
        %v1053 = vpack.c.b16 %v1037, %v1037
        %v1054 = vpack.c.b16 %v1038, %v1038
        %v1055 = vpack.c.b16 %v1039, %v1039
        %v1056 = vpack.c.b16 %v1040, %v1040
        %v1057 = vpack.c.b16 %v1041, %v1041
        %v1058 = vpack.c.b16 %v1042, %v1042
        %v1059 = vpack.c.b16 %v1043, %v1043
        %v1060 = vpack.c.b16 %v1044, %v1044
        %v1061 = vpack.c.b16 %v1045, %v1045
        %v1063 = vshrl.u32 %v982, 16
        %v1065 = vshll.u32 %v982, 16
        %v1067 = vrot.slane %v1065, 1
        %v1068 = vor.u32 %v1063, %v1067
        %v1070 = vshll.u32 %v1046, 16
        %v1072 = vrot.slane %v1070, 1
        %v1073 = vsel %vm596, %v1068, %v1072
        %v1075 = vshrl.u32 %v983, 16
        %v1077 = vshll.u32 %v983, 16
        %v1079 = vrot.slane %v1077, 1
        %v1080 = vor.u32 %v1075, %v1079
        %v1082 = vshll.u32 %v1047, 16
        %v1084 = vrot.slane %v1082, 1
        %v1085 = vsel %vm596, %v1080, %v1084
        %v1087 = vshrl.u32 %v984, 16
        %v1089 = vshll.u32 %v984, 16
        %v1091 = vrot.slane %v1089, 1
        %v1092 = vor.u32 %v1087, %v1091
        %v1094 = vshll.u32 %v1048, 16
        %v1096 = vrot.slane %v1094, 1
        %v1097 = vsel %vm596, %v1092, %v1096
        %v1099 = vshrl.u32 %v985, 16
        %v1101 = vshll.u32 %v985, 16
        %v1103 = vrot.slane %v1101, 1
        %v1104 = vor.u32 %v1099, %v1103
        %v1106 = vshll.u32 %v1049, 16
        %v1108 = vrot.slane %v1106, 1
        %v1109 = vsel %vm596, %v1104, %v1108
        %v1111 = vshrl.u32 %v986, 16
        %v1113 = vshll.u32 %v986, 16
        %v1115 = vrot.slane %v1113, 1
        %v1116 = vor.u32 %v1111, %v1115
        %v1118 = vshll.u32 %v1050, 16
        %v1120 = vrot.slane %v1118, 1
        %v1121 = vsel %vm596, %v1116, %v1120
        %v1123 = vshrl.u32 %v987, 16
        %v1125 = vshll.u32 %v987, 16
        %v1127 = vrot.slane %v1125, 1
        %v1128 = vor.u32 %v1123, %v1127
        %v1130 = vshll.u32 %v1051, 16
        %v1132 = vrot.slane %v1130, 1
        %v1133 = vsel %vm596, %v1128, %v1132
        %v1135 = vshrl.u32 %v988, 16
        %v1137 = vshll.u32 %v988, 16
        %v1139 = vrot.slane %v1137, 1
        %v1140 = vor.u32 %v1135, %v1139
        %v1142 = vshll.u32 %v1052, 16
        %v1144 = vrot.slane %v1142, 1
        %v1145 = vsel %vm596, %v1140, %v1144
        %v1147 = vshrl.u32 %v989, 16
        %v1149 = vshll.u32 %v989, 16
        %v1151 = vrot.slane %v1149, 1
        %v1152 = vor.u32 %v1147, %v1151
        %v1154 = vshll.u32 %v1053, 16
        %v1156 = vrot.slane %v1154, 1
        %v1157 = vsel %vm596, %v1152, %v1156
        %v1159 = vshrl.u32 %v990, 16
        %v1161 = vshll.u32 %v990, 16
        %v1163 = vrot.slane %v1161, 1
        %v1164 = vor.u32 %v1159, %v1163
        %v1166 = vshll.u32 %v1054, 16
        %v1168 = vrot.slane %v1166, 1
        %v1169 = vsel %vm596, %v1164, %v1168
        %v1171 = vshrl.u32 %v991, 16
        %v1173 = vshll.u32 %v991, 16
        %v1175 = vrot.slane %v1173, 1
        %v1176 = vor.u32 %v1171, %v1175
        %v1178 = vshll.u32 %v1055, 16
        %v1180 = vrot.slane %v1178, 1
        %v1181 = vsel %vm596, %v1176, %v1180
        %v1183 = vshrl.u32 %v992, 16
        %v1185 = vshll.u32 %v992, 16
        %v1187 = vrot.slane %v1185, 1
        %v1188 = vor.u32 %v1183, %v1187
        %v1190 = vshll.u32 %v1056, 16
        %v1192 = vrot.slane %v1190, 1
        %v1193 = vsel %vm596, %v1188, %v1192
        %v1195 = vshrl.u32 %v993, 16
        %v1197 = vshll.u32 %v993, 16
        %v1199 = vrot.slane %v1197, 1
        %v1200 = vor.u32 %v1195, %v1199
        %v1202 = vshll.u32 %v1057, 16
        %v1204 = vrot.slane %v1202, 1
        %v1205 = vsel %vm596, %v1200, %v1204
        %v1207 = vshrl.u32 %v994, 16
        %v1209 = vshll.u32 %v994, 16
        %v1211 = vrot.slane %v1209, 1
        %v1212 = vor.u32 %v1207, %v1211
        %v1214 = vshll.u32 %v1058, 16
        %v1216 = vrot.slane %v1214, 1
        %v1217 = vsel %vm596, %v1212, %v1216
        %v1219 = vshrl.u32 %v995, 16
        %v1221 = vshll.u32 %v995, 16
        %v1223 = vrot.slane %v1221, 1
        %v1224 = vor.u32 %v1219, %v1223
        %v1226 = vshll.u32 %v1059, 16
        %v1228 = vrot.slane %v1226, 1
        %v1229 = vsel %vm596, %v1224, %v1228
        %v1231 = vshrl.u32 %v996, 16
        %v1233 = vshll.u32 %v996, 16
        %v1235 = vrot.slane %v1233, 1
        %v1236 = vor.u32 %v1231, %v1235
        %v1238 = vshll.u32 %v1060, 16
        %v1240 = vrot.slane %v1238, 1
        %v1241 = vsel %vm596, %v1236, %v1240
        %v1243 = vshrl.u32 %v997, 16
        %v1245 = vshll.u32 %v997, 16
        %v1247 = vrot.slane %v1245, 1
        %v1248 = vor.u32 %v1243, %v1247
        %v1250 = vshll.u32 %v1061, 16
        %v1252 = vrot.slane %v1250, 1
        %v1253 = vsel %vm596, %v1248, %v1252
        %v1286 = vunpack.c.l.b16 %v368
        %v1287 = vunpack.c.l.b16 %v369
        %v1288 = vunpack.c.l.b16 %v370
        %v1289 = vunpack.c.l.b16 %v371
        %v1290 = vunpack.c.l.b16 %v372
        %v1291 = vunpack.c.l.b16 %v373
        %v1292 = vunpack.c.l.b16 %v374
        %v1293 = vunpack.c.l.b16 %v375
        %v1294 = vunpack.c.l.b16 %v376
        %v1295 = vunpack.c.l.b16 %v377
        %v1296 = vunpack.c.l.b16 %v378
        %v1297 = vunpack.c.l.b16 %v379
        %v1298 = vunpack.c.l.b16 %v380
        %v1299 = vunpack.c.l.b16 %v381
        %v1300 = vunpack.c.l.b16 %v382
        %v1301 = vunpack.c.l.b16 %v383
        %v1302 = vpack.c.b16 %v951, %v1286
        %v1303 = vpack.c.b16 %v953, %v1287
        %v1304 = vpack.c.b16 %v955, %v1288
        %v1305 = vpack.c.b16 %v957, %v1289
        %v1306 = vpack.c.b16 %v959, %v1290
        %v1307 = vpack.c.b16 %v961, %v1291
        %v1308 = vpack.c.b16 %v963, %v1292
        %v1309 = vpack.c.b16 %v965, %v1293
        %v1310 = vpack.c.b16 %v967, %v1294
        %v1311 = vpack.c.b16 %v969, %v1295
        %v1312 = vpack.c.b16 %v971, %v1296
        %v1313 = vpack.c.b16 %v973, %v1297
        %v1314 = vpack.c.b16 %v975, %v1298
        %v1315 = vpack.c.b16 %v977, %v1299
        %v1316 = vpack.c.b16 %v979, %v1300
        %v1317 = vpack.c.b16 %v981, %v1301
        %v1318 = vrot.slane %v1302, 1
        %v1319 = vrot.slane %v1046, 1
        %v1320 = vsel %vm853, %v1318, %v1319
        %v1321 = vrot.slane %v1303, 1
        %v1322 = vrot.slane %v1047, 1
        %v1323 = vsel %vm853, %v1321, %v1322
        %v1324 = vrot.slane %v1304, 1
        %v1325 = vrot.slane %v1048, 1
        %v1326 = vsel %vm853, %v1324, %v1325
        %v1327 = vrot.slane %v1305, 1
        %v1328 = vrot.slane %v1049, 1
        %v1329 = vsel %vm853, %v1327, %v1328
        %v1330 = vrot.slane %v1306, 1
        %v1331 = vrot.slane %v1050, 1
        %v1332 = vsel %vm853, %v1330, %v1331
        %v1333 = vrot.slane %v1307, 1
        %v1334 = vrot.slane %v1051, 1
        %v1335 = vsel %vm853, %v1333, %v1334
        %v1336 = vrot.slane %v1308, 1
        %v1337 = vrot.slane %v1052, 1
        %v1338 = vsel %vm853, %v1336, %v1337
        %v1339 = vrot.slane %v1309, 1
        %v1340 = vrot.slane %v1053, 1
        %v1341 = vsel %vm853, %v1339, %v1340
        %v1342 = vrot.slane %v1310, 1
        %v1343 = vrot.slane %v1054, 1
        %v1344 = vsel %vm853, %v1342, %v1343
        %v1345 = vrot.slane %v1311, 1
        %v1346 = vrot.slane %v1055, 1
        %v1347 = vsel %vm853, %v1345, %v1346
        %v1348 = vrot.slane %v1312, 1
        %v1349 = vrot.slane %v1056, 1
        %v1350 = vsel %vm853, %v1348, %v1349
        %v1351 = vrot.slane %v1313, 1
        %v1352 = vrot.slane %v1057, 1
        %v1353 = vsel %vm853, %v1351, %v1352
        %v1354 = vrot.slane %v1314, 1
        %v1355 = vrot.slane %v1058, 1
        %v1356 = vsel %vm853, %v1354, %v1355
        %v1357 = vrot.slane %v1315, 1
        %v1358 = vrot.slane %v1059, 1
        %v1359 = vsel %vm853, %v1357, %v1358
        %v1360 = vrot.slane %v1316, 1
        %v1361 = vrot.slane %v1060, 1
        %v1362 = vsel %vm853, %v1360, %v1361
        %v1363 = vrot.slane %v1317, 1
        %v1364 = vrot.slane %v1061, 1
        %v1365 = vsel %vm853, %v1363, %v1364
        %v1414 = vunpack.c.l.b16 %v388
        %v1415 = vunpack.c.l.b16 %v389
        %v1416 = vunpack.c.l.b16 %v390
        %v1417 = vunpack.c.l.b16 %v391
        %v1418 = vunpack.c.l.b16 %v392
        %v1419 = vunpack.c.l.b16 %v393
        %v1420 = vunpack.c.l.b16 %v394
        %v1421 = vunpack.c.l.b16 %v395
        %v1422 = vunpack.c.l.b16 %v396
        %v1423 = vunpack.c.l.b16 %v397
        %v1424 = vunpack.c.l.b16 %v398
        %v1425 = vunpack.c.l.b16 %v399
        %v1426 = vunpack.c.l.b16 %v400
        %v1427 = vunpack.c.l.b16 %v401
        %v1428 = vunpack.c.l.b16 %v402
        %v1429 = vunpack.c.l.b16 %v403
        %v1430 = vunpack.c.l.b16 %v404
        %v1431 = vunpack.c.l.b16 %v405
        %v1432 = vunpack.c.l.b16 %v406
        %v1433 = vunpack.c.l.b16 %v407
        %v1434 = vunpack.c.l.b16 %v408
        %v1435 = vunpack.c.l.b16 %v409
        %v1436 = vunpack.c.l.b16 %v410
        %v1437 = vunpack.c.l.b16 %v411
        %v1438 = vunpack.c.l.b16 %v412
        %v1439 = vunpack.c.l.b16 %v413
        %v1440 = vunpack.c.l.b16 %v414
        %v1441 = vunpack.c.l.b16 %v415
        %v1442 = vunpack.c.l.b16 %v416
        %v1443 = vunpack.c.l.b16 %v417
        %v1444 = vunpack.c.l.b16 %v418
        %v1445 = vunpack.c.l.b16 %v419
        %v1446 = vpack.c.b16 %v1415, %v1414
        %v1447 = vpack.c.b16 %v1417, %v1416
        %v1448 = vpack.c.b16 %v1419, %v1418
        %v1449 = vpack.c.b16 %v1421, %v1420
        %v1450 = vpack.c.b16 %v1423, %v1422
        %v1451 = vpack.c.b16 %v1425, %v1424
        %v1452 = vpack.c.b16 %v1427, %v1426
        %v1453 = vpack.c.b16 %v1429, %v1428
        %v1454 = vpack.c.b16 %v1431, %v1430
        %v1455 = vpack.c.b16 %v1433, %v1432
        %v1456 = vpack.c.b16 %v1435, %v1434
        %v1457 = vpack.c.b16 %v1437, %v1436
        %v1458 = vpack.c.b16 %v1439, %v1438
        %v1459 = vpack.c.b16 %v1441, %v1440
        %v1460 = vpack.c.b16 %v1443, %v1442
        %v1461 = vpack.c.b16 %v1445, %v1444
        %v1494 = vunpack.c.l.b16 %v420
        %v1495 = vunpack.c.l.b16 %v421
        %v1496 = vunpack.c.l.b16 %v422
        %v1497 = vunpack.c.l.b16 %v423
        %v1498 = vunpack.c.l.b16 %v424
        %v1499 = vunpack.c.l.b16 %v425
        %v1500 = vunpack.c.l.b16 %v426
        %v1501 = vunpack.c.l.b16 %v427
        %v1502 = vunpack.c.l.b16 %v428
        %v1503 = vunpack.c.l.b16 %v429
        %v1504 = vunpack.c.l.b16 %v430
        %v1505 = vunpack.c.l.b16 %v431
        %v1506 = vunpack.c.l.b16 %v432
        %v1507 = vunpack.c.l.b16 %v433
        %v1508 = vunpack.c.l.b16 %v434
        %v1509 = vunpack.c.l.b16 %v435
        %v1510 = vpack.c.b16 %v1494, %v1494
        %v1511 = vpack.c.b16 %v1495, %v1495
        %v1512 = vpack.c.b16 %v1496, %v1496
        %v1513 = vpack.c.b16 %v1497, %v1497
        %v1514 = vpack.c.b16 %v1498, %v1498
        %v1515 = vpack.c.b16 %v1499, %v1499
        %v1516 = vpack.c.b16 %v1500, %v1500
        %v1517 = vpack.c.b16 %v1501, %v1501
        %v1518 = vpack.c.b16 %v1502, %v1502
        %v1519 = vpack.c.b16 %v1503, %v1503
        %v1520 = vpack.c.b16 %v1504, %v1504
        %v1521 = vpack.c.b16 %v1505, %v1505
        %v1522 = vpack.c.b16 %v1506, %v1506
        %v1523 = vpack.c.b16 %v1507, %v1507
        %v1524 = vpack.c.b16 %v1508, %v1508
        %v1525 = vpack.c.b16 %v1509, %v1509
        %v1527 = vshrl.u32 %v1446, 16
        %v1529 = vshll.u32 %v1446, 16
        %v1531 = vrot.slane %v1529, 1
        %v1532 = vor.u32 %v1527, %v1531
        %v1534 = vshll.u32 %v1510, 16
        %v1536 = vrot.slane %v1534, 1
        %v1537 = vsel %vm596, %v1532, %v1536
        %v1539 = vshrl.u32 %v1447, 16
        %v1541 = vshll.u32 %v1447, 16
        %v1543 = vrot.slane %v1541, 1
        %v1544 = vor.u32 %v1539, %v1543
        %v1546 = vshll.u32 %v1511, 16
        %v1548 = vrot.slane %v1546, 1
        %v1549 = vsel %vm596, %v1544, %v1548
        %v1551 = vshrl.u32 %v1448, 16
        %v1553 = vshll.u32 %v1448, 16
        %v1555 = vrot.slane %v1553, 1
        %v1556 = vor.u32 %v1551, %v1555
        %v1558 = vshll.u32 %v1512, 16
        %v1560 = vrot.slane %v1558, 1
        %v1561 = vsel %vm596, %v1556, %v1560
        %v1563 = vshrl.u32 %v1449, 16
        %v1565 = vshll.u32 %v1449, 16
        %v1567 = vrot.slane %v1565, 1
        %v1568 = vor.u32 %v1563, %v1567
        %v1570 = vshll.u32 %v1513, 16
        %v1572 = vrot.slane %v1570, 1
        %v1573 = vsel %vm596, %v1568, %v1572
        %v1575 = vshrl.u32 %v1450, 16
        %v1577 = vshll.u32 %v1450, 16
        %v1579 = vrot.slane %v1577, 1
        %v1580 = vor.u32 %v1575, %v1579
        %v1582 = vshll.u32 %v1514, 16
        %v1584 = vrot.slane %v1582, 1
        %v1585 = vsel %vm596, %v1580, %v1584
        %v1587 = vshrl.u32 %v1451, 16
        %v1589 = vshll.u32 %v1451, 16
        %v1591 = vrot.slane %v1589, 1
        %v1592 = vor.u32 %v1587, %v1591
        %v1594 = vshll.u32 %v1515, 16
        %v1596 = vrot.slane %v1594, 1
        %v1597 = vsel %vm596, %v1592, %v1596
        %v1599 = vshrl.u32 %v1452, 16
        %v1601 = vshll.u32 %v1452, 16
        %v1603 = vrot.slane %v1601, 1
        %v1604 = vor.u32 %v1599, %v1603
        %v1606 = vshll.u32 %v1516, 16
        %v1608 = vrot.slane %v1606, 1
        %v1609 = vsel %vm596, %v1604, %v1608
        %v1611 = vshrl.u32 %v1453, 16
        %v1613 = vshll.u32 %v1453, 16
        %v1615 = vrot.slane %v1613, 1
        %v1616 = vor.u32 %v1611, %v1615
        %v1618 = vshll.u32 %v1517, 16
        %v1620 = vrot.slane %v1618, 1
        %v1621 = vsel %vm596, %v1616, %v1620
        %v1623 = vshrl.u32 %v1454, 16
        %v1625 = vshll.u32 %v1454, 16
        %v1627 = vrot.slane %v1625, 1
        %v1628 = vor.u32 %v1623, %v1627
        %v1630 = vshll.u32 %v1518, 16
        %v1632 = vrot.slane %v1630, 1
        %v1633 = vsel %vm596, %v1628, %v1632
        %v1635 = vshrl.u32 %v1455, 16
        %v1637 = vshll.u32 %v1455, 16
        %v1639 = vrot.slane %v1637, 1
        %v1640 = vor.u32 %v1635, %v1639
        %v1642 = vshll.u32 %v1519, 16
        %v1644 = vrot.slane %v1642, 1
        %v1645 = vsel %vm596, %v1640, %v1644
        %v1647 = vshrl.u32 %v1456, 16
        %v1649 = vshll.u32 %v1456, 16
        %v1651 = vrot.slane %v1649, 1
        %v1652 = vor.u32 %v1647, %v1651
        %v1654 = vshll.u32 %v1520, 16
        %v1656 = vrot.slane %v1654, 1
        %v1657 = vsel %vm596, %v1652, %v1656
        %v1659 = vshrl.u32 %v1457, 16
        %v1661 = vshll.u32 %v1457, 16
        %v1663 = vrot.slane %v1661, 1
        %v1664 = vor.u32 %v1659, %v1663
        %v1666 = vshll.u32 %v1521, 16
        %v1668 = vrot.slane %v1666, 1
        %v1669 = vsel %vm596, %v1664, %v1668
        %v1671 = vshrl.u32 %v1458, 16
        %v1673 = vshll.u32 %v1458, 16
        %v1675 = vrot.slane %v1673, 1
        %v1676 = vor.u32 %v1671, %v1675
        %v1678 = vshll.u32 %v1522, 16
        %v1680 = vrot.slane %v1678, 1
        %v1681 = vsel %vm596, %v1676, %v1680
        %v1683 = vshrl.u32 %v1459, 16
        %v1685 = vshll.u32 %v1459, 16
        %v1687 = vrot.slane %v1685, 1
        %v1688 = vor.u32 %v1683, %v1687
        %v1690 = vshll.u32 %v1523, 16
        %v1692 = vrot.slane %v1690, 1
        %v1693 = vsel %vm596, %v1688, %v1692
        %v1695 = vshrl.u32 %v1460, 16
        %v1697 = vshll.u32 %v1460, 16
        %v1699 = vrot.slane %v1697, 1
        %v1700 = vor.u32 %v1695, %v1699
        %v1702 = vshll.u32 %v1524, 16
        %v1704 = vrot.slane %v1702, 1
        %v1705 = vsel %vm596, %v1700, %v1704
        %v1707 = vshrl.u32 %v1461, 16
        %v1709 = vshll.u32 %v1461, 16
        %v1711 = vrot.slane %v1709, 1
        %v1712 = vor.u32 %v1707, %v1711
        %v1714 = vshll.u32 %v1525, 16
        %v1716 = vrot.slane %v1714, 1
        %v1717 = vsel %vm596, %v1712, %v1716
        %v1750 = vunpack.c.l.b16 %v436
        %v1751 = vunpack.c.l.b16 %v437
        %v1752 = vunpack.c.l.b16 %v438
        %v1753 = vunpack.c.l.b16 %v439
        %v1754 = vunpack.c.l.b16 %v440
        %v1755 = vunpack.c.l.b16 %v441
        %v1756 = vunpack.c.l.b16 %v442
        %v1757 = vunpack.c.l.b16 %v443
        %v1758 = vunpack.c.l.b16 %v444
        %v1759 = vunpack.c.l.b16 %v445
        %v1760 = vunpack.c.l.b16 %v446
        %v1761 = vunpack.c.l.b16 %v447
        %v1762 = vunpack.c.l.b16 %v448
        %v1763 = vunpack.c.l.b16 %v449
        %v1764 = vunpack.c.l.b16 %v450
        %v1765 = vunpack.c.l.b16 %v451
        %v1766 = vpack.c.b16 %v1415, %v1750
        %v1767 = vpack.c.b16 %v1417, %v1751
        %v1768 = vpack.c.b16 %v1419, %v1752
        %v1769 = vpack.c.b16 %v1421, %v1753
        %v1770 = vpack.c.b16 %v1423, %v1754
        %v1771 = vpack.c.b16 %v1425, %v1755
        %v1772 = vpack.c.b16 %v1427, %v1756
        %v1773 = vpack.c.b16 %v1429, %v1757
        %v1774 = vpack.c.b16 %v1431, %v1758
        %v1775 = vpack.c.b16 %v1433, %v1759
        %v1776 = vpack.c.b16 %v1435, %v1760
        %v1777 = vpack.c.b16 %v1437, %v1761
        %v1778 = vpack.c.b16 %v1439, %v1762
        %v1779 = vpack.c.b16 %v1441, %v1763
        %v1780 = vpack.c.b16 %v1443, %v1764
        %v1781 = vpack.c.b16 %v1445, %v1765
        %v1782 = vrot.slane %v1766, 1
        %v1783 = vrot.slane %v1510, 1
        %v1784 = vsel %vm853, %v1782, %v1783
        %v1785 = vrot.slane %v1767, 1
        %v1786 = vrot.slane %v1511, 1
        %v1787 = vsel %vm853, %v1785, %v1786
        %v1788 = vrot.slane %v1768, 1
        %v1789 = vrot.slane %v1512, 1
        %v1790 = vsel %vm853, %v1788, %v1789
        %v1791 = vrot.slane %v1769, 1
        %v1792 = vrot.slane %v1513, 1
        %v1793 = vsel %vm853, %v1791, %v1792
        %v1794 = vrot.slane %v1770, 1
        %v1795 = vrot.slane %v1514, 1
        %v1796 = vsel %vm853, %v1794, %v1795
        %v1797 = vrot.slane %v1771, 1
        %v1798 = vrot.slane %v1515, 1
        %v1799 = vsel %vm853, %v1797, %v1798
        %v1800 = vrot.slane %v1772, 1
        %v1801 = vrot.slane %v1516, 1
        %v1802 = vsel %vm853, %v1800, %v1801
        %v1803 = vrot.slane %v1773, 1
        %v1804 = vrot.slane %v1517, 1
        %v1805 = vsel %vm853, %v1803, %v1804
        %v1806 = vrot.slane %v1774, 1
        %v1807 = vrot.slane %v1518, 1
        %v1808 = vsel %vm853, %v1806, %v1807
        %v1809 = vrot.slane %v1775, 1
        %v1810 = vrot.slane %v1519, 1
        %v1811 = vsel %vm853, %v1809, %v1810
        %v1812 = vrot.slane %v1776, 1
        %v1813 = vrot.slane %v1520, 1
        %v1814 = vsel %vm853, %v1812, %v1813
        %v1815 = vrot.slane %v1777, 1
        %v1816 = vrot.slane %v1521, 1
        %v1817 = vsel %vm853, %v1815, %v1816
        %v1818 = vrot.slane %v1778, 1
        %v1819 = vrot.slane %v1522, 1
        %v1820 = vsel %vm853, %v1818, %v1819
        %v1821 = vrot.slane %v1779, 1
        %v1822 = vrot.slane %v1523, 1
        %v1823 = vsel %vm853, %v1821, %v1822
        %v1824 = vrot.slane %v1780, 1
        %v1825 = vrot.slane %v1524, 1
        %v1826 = vsel %vm853, %v1824, %v1825
        %v1827 = vrot.slane %v1781, 1
        %v1828 = vrot.slane %v1525, 1
        %v1829 = vsel %vm853, %v1827, %v1828
        %v1846 = vld [vmem:[%s2] sm:$0xf]
        %v1847 = vld [vmem:[%s2 + $0x4] sm:$0xf]
        %v1848 = vld [vmem:[%s2 + $0x8] sm:$0xf]
        %v1849 = vld [vmem:[%s2 + $0xc] sm:$0xf]
        %v1850 = vld [vmem:[%s2 + $0x10] sm:$0xf]
        %v1851 = vld [vmem:[%s2 + $0x14] sm:$0xf]
        %v1852 = vld [vmem:[%s2 + $0x18] sm:$0xf]
        %v1853 = vld [vmem:[%s2 + $0x1c] sm:$0xf]
        %v1854 = vld [vmem:[%s2 + $0x20] sm:$0xf]
        %v1855 = vld [vmem:[%s2 + $0x24] sm:$0xf]
        %v1856 = vld [vmem:[%s2 + $0x28] sm:$0xf]
        %v1857 = vld [vmem:[%s2 + $0x2c] sm:$0xf]
        %v1858 = vld [vmem:[%s2 + $0x30] sm:$0xf]
        %v1859 = vld [vmem:[%s2 + $0x34] sm:$0xf]
        %v1860 = vld [vmem:[%s2 + $0x38] sm:$0xf]
        %v1861 = vld [vmem:[%s2 + $0x3c] sm:$0xf]
        %v1862 = vld [vmem:[%s2 + $0x40] sm:$0xf]
        %v1863 = vld [vmem:[%s2 + $0x44] sm:$0xf]
        %v1864 = vld [vmem:[%s2 + $0x48] sm:$0xf]
        %v1865 = vld [vmem:[%s2 + $0x4c] sm:$0xf]
        %v1866 = vld [vmem:[%s2 + $0x50] sm:$0xf]
        %v1867 = vld [vmem:[%s2 + $0x54] sm:$0xf]
        %v1868 = vld [vmem:[%s2 + $0x58] sm:$0xf]
        %v1869 = vld [vmem:[%s2 + $0x5c] sm:$0xf]
        %v1870 = vld [vmem:[%s2 + $0x60] sm:$0xf]
        %v1871 = vld [vmem:[%s2 + $0x64] sm:$0xf]
        %v1872 = vld [vmem:[%s2 + $0x68] sm:$0xf]
        %v1873 = vld [vmem:[%s2 + $0x6c] sm:$0xf]
        %v1874 = vld [vmem:[%s2 + $0x70] sm:$0xf]
        %v1875 = vld [vmem:[%s2 + $0x74] sm:$0xf]
        %v1876 = vld [vmem:[%s2 + $0x78] sm:$0xf]
        %v1877 = vld [vmem:[%s2 + $0x7c] sm:$0xf]
        %v1878 = vld [vmem:[%s2 + $0x80] sm:$0xf]
        %v1879 = vld [vmem:[%s2 + $0x84] sm:$0xf]
        %v1880 = vld [vmem:[%s2 + $0x88] sm:$0xf]
        %v1881 = vld [vmem:[%s2 + $0x8c] sm:$0xf]
        %v1882 = vld [vmem:[%s2 + $0x90] sm:$0xf]
        %v1883 = vld [vmem:[%s2 + $0x94] sm:$0xf]
        %v1884 = vld [vmem:[%s2 + $0x98] sm:$0xf]
        %v1885 = vld [vmem:[%s2 + $0x9c] sm:$0xf]
        %v1886 = vld [vmem:[%s2 + $0xa0] sm:$0xf]
        %v1887 = vld [vmem:[%s2 + $0xa4] sm:$0xf]
        %v1888 = vld [vmem:[%s2 + $0xa8] sm:$0xf]
        %v1889 = vld [vmem:[%s2 + $0xac] sm:$0xf]
        %v1890 = vld [vmem:[%s2 + $0xb0] sm:$0xf]
        %v1891 = vld [vmem:[%s2 + $0xb4] sm:$0xf]
        %v1892 = vld [vmem:[%s2 + $0xb8] sm:$0xf]
        %v1893 = vld [vmem:[%s2 + $0xbc] sm:$0xf]
        %v1894 = vld [vmem:[%s2 + $0xc0] sm:$0xf]
        %v1895 = vld [vmem:[%s2 + $0xc4] sm:$0xf]
        %v1896 = vld [vmem:[%s2 + $0xc8] sm:$0xf]
        %v1897 = vld [vmem:[%s2 + $0xcc] sm:$0xf]
        %v1898 = vld [vmem:[%s2 + $0xd0] sm:$0xf]
        %v1899 = vld [vmem:[%s2 + $0xd4] sm:$0xf]
        %v1900 = vld [vmem:[%s2 + $0xd8] sm:$0xf]
        %v1901 = vld [vmem:[%s2 + $0xdc] sm:$0xf]
        %v1902 = vld [vmem:[%s2 + $0xe0] sm:$0xf]
        %v1903 = vld [vmem:[%s2 + $0xe4] sm:$0xf]
        %v1904 = vld [vmem:[%s2 + $0xe8] sm:$0xf]
        %v1905 = vld [vmem:[%s2 + $0xec] sm:$0xf]
        %v1906 = vld [vmem:[%s2 + $0xf0] sm:$0xf]
        %v1907 = vld [vmem:[%s2 + $0xf4] sm:$0xf]
        %v1908 = vld [vmem:[%s2 + $0xf8] sm:$0xf]
        %v1909 = vld [vmem:[%s2 + $0xfc] sm:$0xf]
        %v1910 = vld [vmem:[%s2 + $0x100] sm:$0xf]
        %v1911 = vld [vmem:[%s2 + $0x104] sm:$0xf]
        %v1912 = vld [vmem:[%s2 + $0x108] sm:$0xf]
        %v1913 = vld [vmem:[%s2 + $0x10c] sm:$0xf]
        %v1914 = vld [vmem:[%s2 + $0x110] sm:$0xf]
        %v1915 = vld [vmem:[%s2 + $0x114] sm:$0xf]
        %v1916 = vld [vmem:[%s2 + $0x118] sm:$0xf]
        %v1917 = vld [vmem:[%s2 + $0x11c] sm:$0xf]
        %v1918 = vld [vmem:[%s2 + $0x120] sm:$0xf]
        %v1919 = vld [vmem:[%s2 + $0x124] sm:$0xf]
        %v1920 = vld [vmem:[%s2 + $0x128] sm:$0xf]
        %v1921 = vld [vmem:[%s2 + $0x12c] sm:$0xf]
        %v1922 = vld [vmem:[%s2 + $0x130] sm:$0xf]
        %v1923 = vld [vmem:[%s2 + $0x134] sm:$0xf]
        %v1924 = vld [vmem:[%s2 + $0x138] sm:$0xf]
        %v1925 = vld [vmem:[%s2 + $0x13c] sm:$0xf]
        %v1926 = vld [vmem:[%s2 + $0x140] sm:$0xf]
        %v1927 = vld [vmem:[%s2 + $0x144] sm:$0xf]
        %v1928 = vld [vmem:[%s2 + $0x148] sm:$0xf]
        %v1929 = vld [vmem:[%s2 + $0x14c] sm:$0xf]
        %v1930 = vld [vmem:[%s2 + $0x150] sm:$0xf]
        %v1931 = vld [vmem:[%s2 + $0x154] sm:$0xf]
        %v1932 = vld [vmem:[%s2 + $0x158] sm:$0xf]
        %v1933 = vld [vmem:[%s2 + $0x15c] sm:$0xf]
        %v1934 = vld [vmem:[%s2 + $0x160] sm:$0xf]
        %v1935 = vld [vmem:[%s2 + $0x164] sm:$0xf]
        %v1936 = vld [vmem:[%s2 + $0x168] sm:$0xf]
        %v1937 = vld [vmem:[%s2 + $0x16c] sm:$0xf]
        %v1938 = vld [vmem:[%s2 + $0x170] sm:$0xf]
        %v1939 = vld [vmem:[%s2 + $0x174] sm:$0xf]
        %v1940 = vld [vmem:[%s2 + $0x178] sm:$0xf]
        %v1941 = vld [vmem:[%s2 + $0x17c] sm:$0xf]
        %v1942 = vld [vmem:[%s2 + $0x180] sm:$0xf]
        %v1943 = vld [vmem:[%s2 + $0x184] sm:$0xf]
        %v1944 = vld [vmem:[%s2 + $0x188] sm:$0xf]
        %v1945 = vld [vmem:[%s2 + $0x18c] sm:$0xf]
        %v1946 = vld [vmem:[%s2 + $0x190] sm:$0xf]
        %v1947 = vld [vmem:[%s2 + $0x194] sm:$0xf]
        %v1948 = vld [vmem:[%s2 + $0x198] sm:$0xf]
        %v1949 = vld [vmem:[%s2 + $0x19c] sm:$0xf]
        %v1950 = vld [vmem:[%s2 + $0x1a0] sm:$0xf]
        %v1951 = vld [vmem:[%s2 + $0x1a4] sm:$0xf]
        %v1952 = vld [vmem:[%s2 + $0x1a8] sm:$0xf]
        %v1953 = vld [vmem:[%s2 + $0x1ac] sm:$0xf]
        %v1954 = vld [vmem:[%s2 + $0x1b0] sm:$0xf]
        %v1955 = vld [vmem:[%s2 + $0x1b4] sm:$0xf]
        %v1956 = vld [vmem:[%s2 + $0x1b8] sm:$0xf]
        %v1957 = vld [vmem:[%s2 + $0x1bc] sm:$0xf]
        %v1958 = vld [vmem:[%s2 + $0x1c0] sm:$0xf]
        %v1959 = vld [vmem:[%s2 + $0x1c4] sm:$0xf]
        %v1960 = vld [vmem:[%s2 + $0x1c8] sm:$0xf]
        %v1961 = vld [vmem:[%s2 + $0x1cc] sm:$0xf]
        %v1962 = vld [vmem:[%s2 + $0x1d0] sm:$0xf]
        %v1963 = vld [vmem:[%s2 + $0x1d4] sm:$0xf]
        %v1964 = vld [vmem:[%s2 + $0x1d8] sm:$0xf]
        %v1965 = vld [vmem:[%s2 + $0x1dc] sm:$0xf]
        %v1966 = vld [vmem:[%s2 + $0x1e0] sm:$0xf]
        %v1967 = vld [vmem:[%s2 + $0x1e4] sm:$0xf]
        %v1968 = vld [vmem:[%s2 + $0x1e8] sm:$0xf]
        %v1969 = vld [vmem:[%s2 + $0x1ec] sm:$0xf]
        %v1970 = vld [vmem:[%s2 + $0x1f0] sm:$0xf]
        %v1971 = vld [vmem:[%s2 + $0x1f4] sm:$0xf]
        %v1972 = vld [vmem:[%s2 + $0x1f8] sm:$0xf]
        %v1973 = vld [vmem:[%s2 + $0x1fc] sm:$0xf]
        %v1974 = vld [vmem:[%s2 + $0x200] sm:$0xf]
        %v1975 = vld [vmem:[%s2 + $0x204] sm:$0xf]
        %v1976 = vld [vmem:[%s2 + $0x208] sm:$0xf]
        %v1977 = vld [vmem:[%s2 + $0x20c] sm:$0xf]
        %v1978 = vld [vmem:[%s2 + $0x210] sm:$0xf]
        %v1979 = vld [vmem:[%s2 + $0x214] sm:$0xf]
        %v1980 = vld [vmem:[%s2 + $0x218] sm:$0xf]
        %v1981 = vld [vmem:[%s2 + $0x21c] sm:$0xf]
        %v1982 = vld [vmem:[%s2 + $0x220] sm:$0xf]
        %v1983 = vld [vmem:[%s2 + $0x224] sm:$0xf]
        %v1984 = vld [vmem:[%s2 + $0x228] sm:$0xf]
        %v1985 = vld [vmem:[%s2 + $0x22c] sm:$0xf]
        %v1986 = vld [vmem:[%s2 + $0x230] sm:$0xf]
        %v1987 = vld [vmem:[%s2 + $0x234] sm:$0xf]
        %v1988 = vld [vmem:[%s2 + $0x238] sm:$0xf]
        %v1989 = vld [vmem:[%s2 + $0x23c] sm:$0xf]
        %v1990 = vld [vmem:[%s3] sm:$0x1]
        %v1992 = vlaneseq
        %v1993 = vshrl.u32 %v1992, 7
        %v1994 = vsub.s32 0, %v1993
        %v1995 = vrot.slane %v1990, %v1994
        %v2141 = vunpack.c.l.b16 %v1846
        %v2142 = vunpack.c.l.b16 %v1847
        %v2143 = vunpack.c.l.b16 %v1848
        %v2144 = vunpack.c.l.b16 %v1849
        %v2145 = vunpack.c.l.b16 %v1850
        %v2146 = vunpack.c.l.b16 %v1851
        %v2147 = vunpack.c.l.b16 %v1852
        %v2148 = vunpack.c.l.b16 %v1853
        %v2149 = vunpack.c.l.b16 %v1854
        %v2150 = vunpack.c.l.b16 %v1855
        %v2151 = vunpack.c.l.b16 %v1856
        %v2152 = vunpack.c.l.b16 %v1857
        %v2153 = vunpack.c.l.b16 %v1858
        %v2154 = vunpack.c.l.b16 %v1859
        %v2155 = vunpack.c.l.b16 %v1860
        %v2156 = vunpack.c.l.b16 %v1861
        %v2157 = vunpack.c.l.b16 %v1862
        %v2158 = vunpack.c.l.b16 %v1863
        %v2159 = vunpack.c.l.b16 %v1864
        %v2160 = vunpack.c.l.b16 %v1865
        %v2161 = vunpack.c.l.b16 %v1866
        %v2162 = vunpack.c.l.b16 %v1867
        %v2163 = vunpack.c.l.b16 %v1868
        %v2164 = vunpack.c.l.b16 %v1869
        %v2165 = vunpack.c.l.b16 %v1870
        %v2166 = vunpack.c.l.b16 %v1871
        %v2167 = vunpack.c.l.b16 %v1872
        %v2168 = vunpack.c.l.b16 %v1873
        %v2169 = vunpack.c.l.b16 %v1874
        %v2170 = vunpack.c.l.b16 %v1875
        %v2171 = vunpack.c.l.b16 %v1876
        %v2172 = vunpack.c.l.b16 %v1877
        %v2173 = vunpack.c.l.b16 %v1878
        %v2174 = vunpack.c.l.b16 %v1879
        %v2175 = vunpack.c.l.b16 %v1880
        %v2176 = vunpack.c.l.b16 %v1881
        %v2177 = vunpack.c.l.b16 %v1882
        %v2178 = vunpack.c.l.b16 %v1883
        %v2179 = vunpack.c.l.b16 %v1884
        %v2180 = vunpack.c.l.b16 %v1885
        %v2181 = vunpack.c.l.b16 %v1886
        %v2182 = vunpack.c.l.b16 %v1887
        %v2183 = vunpack.c.l.b16 %v1888
        %v2184 = vunpack.c.l.b16 %v1889
        %v2185 = vunpack.c.l.b16 %v1890
        %v2186 = vunpack.c.l.b16 %v1891
        %v2187 = vunpack.c.l.b16 %v1892
        %v2188 = vunpack.c.l.b16 %v1893
        %v2189 = vunpack.c.l.b16 %v1894
        %v2190 = vunpack.c.l.b16 %v1895
        %v2191 = vunpack.c.l.b16 %v1896
        %v2192 = vunpack.c.l.b16 %v1897
        %v2193 = vunpack.c.l.b16 %v1898
        %v2194 = vunpack.c.l.b16 %v1899
        %v2195 = vunpack.c.l.b16 %v1900
        %v2196 = vunpack.c.l.b16 %v1901
        %v2197 = vunpack.c.l.b16 %v1902
        %v2198 = vunpack.c.l.b16 %v1903
        %v2199 = vunpack.c.l.b16 %v1904
        %v2200 = vunpack.c.l.b16 %v1905
        %v2201 = vunpack.c.l.b16 %v1906
        %v2202 = vunpack.c.l.b16 %v1907
        %v2203 = vunpack.c.l.b16 %v1908
        %v2204 = vunpack.c.l.b16 %v1909
        %v2205 = vunpack.c.l.b16 %v1910
        %v2206 = vunpack.c.l.b16 %v1911
        %v2207 = vunpack.c.l.b16 %v1912
        %v2208 = vunpack.c.l.b16 %v1913
        %v2209 = vunpack.c.l.b16 %v1914
        %v2210 = vunpack.c.l.b16 %v1915
        %v2211 = vunpack.c.l.b16 %v1916
        %v2212 = vunpack.c.l.b16 %v1917
        %v2213 = vunpack.c.l.b16 %v1918
        %v2214 = vunpack.c.l.b16 %v1919
        %v2215 = vunpack.c.l.b16 %v1920
        %v2216 = vunpack.c.l.b16 %v1921
        %v2217 = vunpack.c.l.b16 %v1922
        %v2218 = vunpack.c.l.b16 %v1923
        %v2219 = vunpack.c.l.b16 %v1924
        %v2220 = vunpack.c.l.b16 %v1925
        %v2221 = vunpack.c.l.b16 %v1926
        %v2222 = vunpack.c.l.b16 %v1927
        %v2223 = vunpack.c.l.b16 %v1928
        %v2224 = vunpack.c.l.b16 %v1929
        %v2225 = vunpack.c.l.b16 %v1930
        %v2226 = vunpack.c.l.b16 %v1931
        %v2227 = vunpack.c.l.b16 %v1932
        %v2228 = vunpack.c.l.b16 %v1933
        %v2229 = vunpack.c.l.b16 %v1934
        %v2230 = vunpack.c.l.b16 %v1935
        %v2231 = vunpack.c.l.b16 %v1936
        %v2232 = vunpack.c.l.b16 %v1937
        %v2233 = vunpack.c.l.b16 %v1938
        %v2234 = vunpack.c.l.b16 %v1939
        %v2235 = vunpack.c.l.b16 %v1940
        %v2236 = vunpack.c.l.b16 %v1941
        %v2237 = vunpack.c.l.b16 %v1942
        %v2238 = vunpack.c.l.b16 %v1943
        %v2239 = vunpack.c.l.b16 %v1944
        %v2240 = vunpack.c.l.b16 %v1945
        %v2241 = vunpack.c.l.b16 %v1946
        %v2242 = vunpack.c.l.b16 %v1947
        %v2243 = vunpack.c.l.b16 %v1948
        %v2244 = vunpack.c.l.b16 %v1949
        %v2245 = vunpack.c.l.b16 %v1950
        %v2246 = vunpack.c.l.b16 %v1951
        %v2247 = vunpack.c.l.b16 %v1952
        %v2248 = vunpack.c.l.b16 %v1953
        %v2249 = vunpack.c.l.b16 %v1954
        %v2250 = vunpack.c.l.b16 %v1955
        %v2251 = vunpack.c.l.b16 %v1956
        %v2252 = vunpack.c.l.b16 %v1957
        %v2253 = vunpack.c.l.b16 %v1958
        %v2254 = vunpack.c.l.b16 %v1959
        %v2255 = vunpack.c.l.b16 %v1960
        %v2256 = vunpack.c.l.b16 %v1961
        %v2257 = vunpack.c.l.b16 %v1962
        %v2258 = vunpack.c.l.b16 %v1963
        %v2259 = vunpack.c.l.b16 %v1964
        %v2260 = vunpack.c.l.b16 %v1965
        %v2261 = vunpack.c.l.b16 %v1966
        %v2262 = vunpack.c.l.b16 %v1967
        %v2263 = vunpack.c.l.b16 %v1968
        %v2264 = vunpack.c.l.b16 %v1969
        %v2265 = vunpack.c.l.b16 %v1970
        %v2266 = vunpack.c.l.b16 %v1971
        %v2267 = vunpack.c.l.b16 %v1972
        %v2268 = vunpack.c.l.b16 %v1973
        %v2269 = vunpack.c.l.b16 %v1974
        %v2270 = vunpack.c.l.b16 %v1975
        %v2271 = vunpack.c.l.b16 %v1976
        %v2272 = vunpack.c.l.b16 %v1977
        %v2273 = vunpack.c.l.b16 %v1978
        %v2274 = vunpack.c.l.b16 %v1979
        %v2275 = vunpack.c.l.b16 %v1980
        %v2276 = vunpack.c.l.b16 %v1981
        %v2277 = vunpack.c.l.b16 %v1982
        %v2278 = vunpack.c.l.b16 %v1983
        %v2279 = vunpack.c.l.b16 %v1984
        %v2280 = vunpack.c.l.b16 %v1985
        %v2281 = vunpack.c.l.b16 %v1986
        %v2282 = vunpack.c.l.b16 %v1987
        %v2283 = vunpack.c.l.b16 %v1988
        %v2284 = vunpack.c.l.b16 %v1989
        %v2285 = vpack.c.b16 %v2142, %v2141
        %v2286 = vpack.c.b16 %v2144, %v2143
        %v2287 = vpack.c.b16 %v2146, %v2145
        %v2288 = vpack.c.b16 %v2148, %v2147
        %v2289 = vpack.c.b16 %v2150, %v2149
        %v2290 = vpack.c.b16 %v2152, %v2151
        %v2291 = vpack.c.b16 %v2154, %v2153
        %v2292 = vpack.c.b16 %v2156, %v2155
        %v2293 = vpack.c.b16 %v2158, %v2157
        %v2294 = vpack.c.b16 %v2160, %v2159
        %v2295 = vpack.c.b16 %v2162, %v2161
        %v2296 = vpack.c.b16 %v2164, %v2163
        %v2297 = vpack.c.b16 %v2166, %v2165
        %v2298 = vpack.c.b16 %v2168, %v2167
        %v2299 = vpack.c.b16 %v2170, %v2169
        %v2300 = vpack.c.b16 %v2172, %v2171
        %v2301 = vpack.c.b16 %v2174, %v2173
        %v2302 = vpack.c.b16 %v2176, %v2175
        %v2303 = vpack.c.b16 %v2178, %v2177
        %v2304 = vpack.c.b16 %v2180, %v2179
        %v2305 = vpack.c.b16 %v2182, %v2181
        %v2306 = vpack.c.b16 %v2184, %v2183
        %v2307 = vpack.c.b16 %v2186, %v2185
        %v2308 = vpack.c.b16 %v2188, %v2187
        %v2309 = vpack.c.b16 %v2190, %v2189
        %v2310 = vpack.c.b16 %v2192, %v2191
        %v2311 = vpack.c.b16 %v2194, %v2193
        %v2312 = vpack.c.b16 %v2196, %v2195
        %v2313 = vpack.c.b16 %v2198, %v2197
        %v2314 = vpack.c.b16 %v2200, %v2199
        %v2315 = vpack.c.b16 %v2202, %v2201
        %v2316 = vpack.c.b16 %v2204, %v2203
        %v2317 = vpack.c.b16 %v2206, %v2205
        %v2318 = vpack.c.b16 %v2208, %v2207
        %v2319 = vpack.c.b16 %v2210, %v2209
        %v2320 = vpack.c.b16 %v2212, %v2211
        %v2321 = vpack.c.b16 %v2214, %v2213
        %v2322 = vpack.c.b16 %v2216, %v2215
        %v2323 = vpack.c.b16 %v2218, %v2217
        %v2324 = vpack.c.b16 %v2220, %v2219
        %v2325 = vpack.c.b16 %v2222, %v2221
        %v2326 = vpack.c.b16 %v2224, %v2223
        %v2327 = vpack.c.b16 %v2226, %v2225
        %v2328 = vpack.c.b16 %v2228, %v2227
        %v2329 = vpack.c.b16 %v2230, %v2229
        %v2330 = vpack.c.b16 %v2232, %v2231
        %v2331 = vpack.c.b16 %v2234, %v2233
        %v2332 = vpack.c.b16 %v2236, %v2235
        %v2333 = vpack.c.b16 %v2238, %v2237
        %v2334 = vpack.c.b16 %v2240, %v2239
        %v2335 = vpack.c.b16 %v2242, %v2241
        %v2336 = vpack.c.b16 %v2244, %v2243
        %v2337 = vpack.c.b16 %v2246, %v2245
        %v2338 = vpack.c.b16 %v2248, %v2247
        %v2339 = vpack.c.b16 %v2250, %v2249
        %v2340 = vpack.c.b16 %v2252, %v2251
        %v2341 = vpack.c.b16 %v2254, %v2253
        %v2342 = vpack.c.b16 %v2256, %v2255
        %v2343 = vpack.c.b16 %v2258, %v2257
        %v2344 = vpack.c.b16 %v2260, %v2259
        %v2345 = vpack.c.b16 %v2262, %v2261
        %v2346 = vpack.c.b16 %v2264, %v2263
        %v2347 = vpack.c.b16 %v2266, %v2265
        %v2348 = vpack.c.b16 %v2268, %v2267
        %v2349 = vpack.c.b16 %v2270, %v2269
        %v2350 = vpack.c.b16 %v2272, %v2271
        %v2351 = vpack.c.b16 %v2274, %v2273
        %v2352 = vpack.c.b16 %v2276, %v2275
        %v2353 = vpack.c.b16 %v2278, %v2277
        %v2354 = vpack.c.b16 %v2280, %v2279
        %v2355 = vpack.c.b16 %v2282, %v2281
        %v2356 = vpack.c.b16 %v2284, %v2283
        %2429 = vmatprep.subr.bf16.mxu0 0
        %2430 = vmatpush1.bf16.msra.mxu0 %v2285
        %2431 = vmatprep.subr.bf16.mxu0 0
        %2432 = vmatpush1.bf16.msra.mxu0 %v2286
        %2433 = vmatprep.subr.bf16.mxu0 0
        %2434 = vmatpush1.bf16.msra.mxu0 %v2287
        %2435 = vmatprep.subr.bf16.mxu0 0
        %2436 = vmatpush1.bf16.msra.mxu0 %v2288
        %2437 = vmatprep.subr.bf16.mxu0 0
        %2438 = vmatpush1.bf16.msra.mxu0 %v2289
        %2439 = vmatprep.subr.bf16.mxu0 0
        %2440 = vmatpush1.bf16.msra.mxu0 %v2290
        %2441 = vmatprep.subr.bf16.mxu0 0
        %2442 = vmatpush1.bf16.msra.mxu0 %v2291
        %2443 = vmatprep.subr.bf16.mxu0 0
        %2444 = vmatpush1.bf16.msra.mxu0 %v2292
        %2445 = vmatprep.subr.bf16.mxu0 0
        %2446 = vmatpush1.bf16.msra.mxu0 %v2293
        %2447 = vmatprep.subr.bf16.mxu0 0
        %2448 = vmatpush1.bf16.msra.mxu0 %v2294
        %2449 = vmatprep.subr.bf16.mxu0 0
        %2450 = vmatpush1.bf16.msra.mxu0 %v2295
        %2451 = vmatprep.subr.bf16.mxu0 0
        %2452 = vmatpush1.bf16.msra.mxu0 %v2296
        %2453 = vmatprep.subr.bf16.mxu0 0
        %2454 = vmatpush1.bf16.msra.mxu0 %v2297
        %2455 = vmatprep.subr.bf16.mxu0 0
        %2456 = vmatpush1.bf16.msra.mxu0 %v2298
        %2457 = vmatprep.subr.bf16.mxu0 0
        %2458 = vmatpush1.bf16.msra.mxu0 %v2299
        %2459 = vmatprep.subr.bf16.mxu0 0
        %2460 = vmatpush1.bf16.msra.mxu0 %v2300
        %2461 = vmatprep.mubr.bf16.mxu0 %v608
        %2462 = vmatmul.mubr.bf16.gmra.mrb[0].mxu0 %v516
        %v2463 = vpop.f32.mrb[0].mxu0
        %v2464 = vadd.f32 %v1995, %v2463
        %v2465 = vpop.f32.mrb[0].mxu0
        %v2466 = vpop.f32.mrb[0].mxu0
        %v2467 = vadd.f32 %v1995, %v2466
        %v2468 = vpop.f32.mrb[0].mxu0
        %2469 = vmatprep.mubr.bf16.mxu0 %v620
        %2470 = vmatmul.mubr.bf16.gmra.mrb[0].mxu0 %v517
        %v2471 = vpop.f32.mrb[0].mxu0
        %v2472 = vadd.f32 %v1995, %v2471
        %v2473 = vpop.f32.mrb[0].mxu0
        %v2474 = vpop.f32.mrb[0].mxu0
        %v2475 = vadd.f32 %v1995, %v2474
        %v2476 = vpop.f32.mrb[0].mxu0
        %2477 = vmatprep.mubr.bf16.mxu0 %v632
        %2478 = vmatmul.mubr.bf16.gmra.mrb[0].mxu0 %v518
        %v2479 = vpop.f32.mrb[0].mxu0
        %v2480 = vadd.f32 %v1995, %v2479
        %v2481 = vpop.f32.mrb[0].mxu0
        %v2482 = vpop.f32.mrb[0].mxu0
        %v2483 = vadd.f32 %v1995, %v2482
        %v2484 = vpop.f32.mrb[0].mxu0
        %2485 = vmatprep.mubr.bf16.mxu0 %v644
        %2486 = vmatmul.mubr.bf16.gmra.mrb[0].mxu0 %v519
        %v2487 = vpop.f32.mrb[0].mxu0
        %v2488 = vadd.f32 %v1995, %v2487
        %v2489 = vpop.f32.mrb[0].mxu0
        %v2490 = vpop.f32.mrb[0].mxu0
        %v2491 = vadd.f32 %v1995, %v2490
        %v2492 = vpop.f32.mrb[0].mxu0
        %2493 = vmatprep.mubr.bf16.mxu0 %v656
        %2494 = vmatmul.mubr.bf16.gmra.mrb[0].mxu0 %v520
        %v2495 = vpop.f32.mrb[0].mxu0
        %v2496 = vadd.f32 %v1995, %v2495
        %v2497 = vpop.f32.mrb[0].mxu0
        %v2498 = vpop.f32.mrb[0].mxu0
        %v2499 = vadd.f32 %v1995, %v2498
        %v2500 = vpop.f32.mrb[0].mxu0
        %2501 = vmatprep.mubr.bf16.mxu0 %v668
        %2502 = vmatmul.mubr.bf16.gmra.mrb[0].mxu0 %v521
        %v2503 = vpop.f32.mrb[0].mxu0
        %v2504 = vadd.f32 %v1995, %v2503
        %v2505 = vpop.f32.mrb[0].mxu0
        %v2506 = vpop.f32.mrb[0].mxu0
        %v2507 = vadd.f32 %v1995, %v2506
        %v2508 = vpop.f32.mrb[0].mxu0
        %2509 = vmatprep.mubr.bf16.mxu0 %v680
        %2510 = vmatmul.mubr.bf16.gmra.mrb[0].mxu0 %v522
        %v2511 = vpop.f32.mrb[0].mxu0
        %v2512 = vadd.f32 %v1995, %v2511
        %v2513 = vpop.f32.mrb[0].mxu0
        %v2514 = vpop.f32.mrb[0].mxu0
        %v2515 = vadd.f32 %v1995, %v2514
        %v2516 = vpop.f32.mrb[0].mxu0
        %2517 = vmatprep.mubr.bf16.mxu0 %v692
        %2518 = vmatmul.mubr.bf16.gmra.mrb[0].mxu0 %v523
        %v2519 = vpop.f32.mrb[0].mxu0
        %v2520 = vadd.f32 %v1995, %v2519
        %v2521 = vpop.f32.mrb[0].mxu0
        %v2522 = vpop.f32.mrb[0].mxu0
        %v2523 = vadd.f32 %v1995, %v2522
        %v2524 = vpop.f32.mrb[0].mxu0
        %2525 = vmatprep.mubr.bf16.mxu0 %v704
        %2526 = vmatmul.mubr.bf16.gmra.mrb[0].mxu0 %v524
        %v2527 = vpop.f32.mrb[0].mxu0
        %v2528 = vadd.f32 %v1995, %v2527
        %v2529 = vpop.f32.mrb[0].mxu0
        %v2530 = vpop.f32.mrb[0].mxu0
        %v2531 = vadd.f32 %v1995, %v2530
        %v2532 = vpop.f32.mrb[0].mxu0
        %2533 = vmatprep.mubr.bf16.mxu0 %v716
        %2534 = vmatmul.mubr.bf16.gmra.mrb[0].mxu0 %v525
        %v2535 = vpop.f32.mrb[0].mxu0
        %v2536 = vadd.f32 %v1995, %v2535
        %v2537 = vpop.f32.mrb[0].mxu0
        %v2538 = vpop.f32.mrb[0].mxu0
        %v2539 = vadd.f32 %v1995, %v2538
        %v2540 = vpop.f32.mrb[0].mxu0
        %2541 = vmatprep.mubr.bf16.mxu0 %v728
        %2542 = vmatmul.mubr.bf16.gmra.mrb[0].mxu0 %v526
        %v2543 = vpop.f32.mrb[0].mxu0
        %v2544 = vadd.f32 %v1995, %v2543
        %v2545 = vpop.f32.mrb[0].mxu0
        %v2546 = vpop.f32.mrb[0].mxu0
        %v2547 = vadd.f32 %v1995, %v2546
        %v2548 = vpop.f32.mrb[0].mxu0
        %2549 = vmatprep.mubr.bf16.mxu0 %v740
        %2550 = vmatmul.mubr.bf16.gmra.mrb[0].mxu0 %v527
        %v2551 = vpop.f32.mrb[0].mxu0
        %v2552 = vadd.f32 %v1995, %v2551
        %v2553 = vpop.f32.mrb[0].mxu0
        %v2554 = vpop.f32.mrb[0].mxu0
        %v2555 = vadd.f32 %v1995, %v2554
        %v2556 = vpop.f32.mrb[0].mxu0
        %2557 = vmatprep.mubr.bf16.mxu0 %v752
        %2558 = vmatmul.mubr.bf16.gmra.mrb[0].mxu0 %v528
        %v2559 = vpop.f32.mrb[0].mxu0
        %v2560 = vadd.f32 %v1995, %v2559
        %v2561 = vpop.f32.mrb[0].mxu0
        %v2562 = vpop.f32.mrb[0].mxu0
        %v2563 = vadd.f32 %v1995, %v2562
        %v2564 = vpop.f32.mrb[0].mxu0
        %2565 = vmatprep.mubr.bf16.mxu0 %v764
        %2566 = vmatmul.mubr.bf16.gmra.mrb[0].mxu0 %v529
        %v2567 = vpop.f32.mrb[0].mxu0
        %v2568 = vadd.f32 %v1995, %v2567
        %v2569 = vpop.f32.mrb[0].mxu0
        %v2570 = vpop.f32.mrb[0].mxu0
        %v2571 = vadd.f32 %v1995, %v2570
        %v2572 = vpop.f32.mrb[0].mxu0
        %2573 = vmatprep.mubr.bf16.mxu0 %v776
        %2574 = vmatmul.mubr.bf16.gmra.mrb[0].mxu0 %v530
        %v2575 = vpop.f32.mrb[0].mxu0
        %v2576 = vadd.f32 %v1995, %v2575
        %v2577 = vpop.f32.mrb[0].mxu0
        %v2578 = vpop.f32.mrb[0].mxu0
        %v2579 = vadd.f32 %v1995, %v2578
        %v2580 = vpop.f32.mrb[0].mxu0
        %2581 = vmatprep.mubr.bf16.mxu0 %v788
        %2582 = vmatmul.mubr.bf16.gmra.mrb[0].mxu0 %v531
        %v2583 = vpop.f32.mrb[0].mxu0
        %v2584 = vadd.f32 %v1995, %v2583
        %v2585 = vpop.f32.mrb[0].mxu0
        %v2586 = vpop.f32.mrb[0].mxu0
        %v2587 = vadd.f32 %v1995, %v2586
        %v2588 = vpop.f32.mrb[0].mxu0
        %2589 = vdwg.mxu0
        %2590 = vmatprep.subr.bf16.mxu0 0
        %2591 = vmatpush1.bf16.msra.mxu0 %v2301
        %2592 = vmatprep.subr.bf16.mxu0 0
        %2593 = vmatpush1.bf16.msra.mxu0 %v2302
        %2594 = vmatprep.subr.bf16.mxu0 0
        %2595 = vmatpush1.bf16.msra.mxu0 %v2303
        %2596 = vmatprep.subr.bf16.mxu0 0
        %2597 = vmatpush1.bf16.msra.mxu0 %v2304
        %2598 = vmatprep.subr.bf16.mxu0 0
        %2599 = vmatpush1.bf16.msra.mxu0 %v2305
        %2600 = vmatprep.subr.bf16.mxu0 0
        %2601 = vmatpush1.bf16.msra.mxu0 %v2306
        %2602 = vmatprep.subr.bf16.mxu0 0
        %2603 = vmatpush1.bf16.msra.mxu0 %v2307
        %2604 = vmatprep.subr.bf16.mxu0 0
        %2605 = vmatpush1.bf16.msra.mxu0 %v2308
        %2606 = vmatprep.subr.bf16.mxu0 0
        %2607 = vmatpush1.bf16.msra.mxu0 %v2309
        %2608 = vmatprep.subr.bf16.mxu0 0
        %2609 = vmatpush1.bf16.msra.mxu0 %v2310
        %2610 = vmatprep.subr.bf16.mxu0 0
        %2611 = vmatpush1.bf16.msra.mxu0 %v2311
        %2612 = vmatprep.subr.bf16.mxu0 0
        %2613 = vmatpush1.bf16.msra.mxu0 %v2312
        %2614 = vmatprep.subr.bf16.mxu0 0
        %2615 = vmatpush1.bf16.msra.mxu0 %v2313
        %2616 = vmatprep.subr.bf16.mxu0 0
        %2617 = vmatpush1.bf16.msra.mxu0 %v2314
        %2618 = vmatprep.subr.bf16.mxu0 0
        %2619 = vmatpush1.bf16.msra.mxu0 %v2315
        %2620 = vmatprep.subr.bf16.mxu0 0
        %2621 = vmatpush1.bf16.msra.mxu0 %v2316
        %2622 = vmatprep.mubr.bf16.mxu0 %v982
        %2623 = vmatmul.mubr.bf16.gmra.mrb[0].mxu0 %v856
        %v2624 = vpop.f32.mrb[0].mxu0
        %v2625 = vadd.f32 %v2464, %v2624
        %v2626 = vpop.f32.mrb[0].mxu0
        %v2627 = vpop.f32.mrb[0].mxu0
        %v2628 = vadd.f32 %v2467, %v2627
        %v2629 = vpop.f32.mrb[0].mxu0
        %2630 = vmatprep.mubr.bf16.mxu0 %v983
        %2631 = vmatmul.mubr.bf16.gmra.mrb[0].mxu0 %v859
        %v2632 = vpop.f32.mrb[0].mxu0
        %v2633 = vadd.f32 %v2472, %v2632
        %v2634 = vpop.f32.mrb[0].mxu0
        %v2635 = vpop.f32.mrb[0].mxu0
        %v2636 = vadd.f32 %v2475, %v2635
        %v2637 = vpop.f32.mrb[0].mxu0
        %2638 = vmatprep.mubr.bf16.mxu0 %v984
        %2639 = vmatmul.mubr.bf16.gmra.mrb[0].mxu0 %v862
        %v2640 = vpop.f32.mrb[0].mxu0
        %v2641 = vadd.f32 %v2480, %v2640
        %v2642 = vpop.f32.mrb[0].mxu0
        %v2643 = vpop.f32.mrb[0].mxu0
        %v2644 = vadd.f32 %v2483, %v2643
        %v2645 = vpop.f32.mrb[0].mxu0
        %2646 = vmatprep.mubr.bf16.mxu0 %v985
        %2647 = vmatmul.mubr.bf16.gmra.mrb[0].mxu0 %v865
        %v2648 = vpop.f32.mrb[0].mxu0
        %v2649 = vadd.f32 %v2488, %v2648
        %v2650 = vpop.f32.mrb[0].mxu0
        %v2651 = vpop.f32.mrb[0].mxu0
        %v2652 = vadd.f32 %v2491, %v2651
        %v2653 = vpop.f32.mrb[0].mxu0
        %2654 = vmatprep.mubr.bf16.mxu0 %v986
        %2655 = vmatmul.mubr.bf16.gmra.mrb[0].mxu0 %v868
        %v2656 = vpop.f32.mrb[0].mxu0
        %v2657 = vadd.f32 %v2496, %v2656
        %v2658 = vpop.f32.mrb[0].mxu0
        %v2659 = vpop.f32.mrb[0].mxu0
        %v2660 = vadd.f32 %v2499, %v2659
        %v2661 = vpop.f32.mrb[0].mxu0
        %2662 = vmatprep.mubr.bf16.mxu0 %v987
        %2663 = vmatmul.mubr.bf16.gmra.mrb[0].mxu0 %v871
        %v2664 = vpop.f32.mrb[0].mxu0
        %v2665 = vadd.f32 %v2504, %v2664
        %v2666 = vpop.f32.mrb[0].mxu0
        %v2667 = vpop.f32.mrb[0].mxu0
        %v2668 = vadd.f32 %v2507, %v2667
        %v2669 = vpop.f32.mrb[0].mxu0
        %2670 = vmatprep.mubr.bf16.mxu0 %v988
        %2671 = vmatmul.mubr.bf16.gmra.mrb[0].mxu0 %v874
        %v2672 = vpop.f32.mrb[0].mxu0
        %v2673 = vadd.f32 %v2512, %v2672
        %v2674 = vpop.f32.mrb[0].mxu0
        %v2675 = vpop.f32.mrb[0].mxu0
        %v2676 = vadd.f32 %v2515, %v2675
        %v2677 = vpop.f32.mrb[0].mxu0
        %2678 = vmatprep.mubr.bf16.mxu0 %v989
        %2679 = vmatmul.mubr.bf16.gmra.mrb[0].mxu0 %v877
        %v2680 = vpop.f32.mrb[0].mxu0
        %v2681 = vadd.f32 %v2520, %v2680
        %v2682 = vpop.f32.mrb[0].mxu0
        %v2683 = vpop.f32.mrb[0].mxu0
        %v2684 = vadd.f32 %v2523, %v2683
        %v2685 = vpop.f32.mrb[0].mxu0
        %2686 = vmatprep.mubr.bf16.mxu0 %v990
        %2687 = vmatmul.mubr.bf16.gmra.mrb[0].mxu0 %v880
        %v2688 = vpop.f32.mrb[0].mxu0
        %v2689 = vadd.f32 %v2528, %v2688
        %v2690 = vpop.f32.mrb[0].mxu0
        %v2691 = vpop.f32.mrb[0].mxu0
        %v2692 = vadd.f32 %v2531, %v2691
        %v2693 = vpop.f32.mrb[0].mxu0
        %2694 = vmatprep.mubr.bf16.mxu0 %v991
        %2695 = vmatmul.mubr.bf16.gmra.mrb[0].mxu0 %v883
        %v2696 = vpop.f32.mrb[0].mxu0
        %v2697 = vadd.f32 %v2536, %v2696
        %v2698 = vpop.f32.mrb[0].mxu0
        %v2699 = vpop.f32.mrb[0].mxu0
        %v2700 = vadd.f32 %v2539, %v2699
        %v2701 = vpop.f32.mrb[0].mxu0
        %2702 = vmatprep.mubr.bf16.mxu0 %v992
        %2703 = vmatmul.mubr.bf16.gmra.mrb[0].mxu0 %v886
        %v2704 = vpop.f32.mrb[0].mxu0
        %v2705 = vadd.f32 %v2544, %v2704
        %v2706 = vpop.f32.mrb[0].mxu0
        %v2707 = vpop.f32.mrb[0].mxu0
        %v2708 = vadd.f32 %v2547, %v2707
        %v2709 = vpop.f32.mrb[0].mxu0
        %2710 = vmatprep.mubr.bf16.mxu0 %v993
        %2711 = vmatmul.mubr.bf16.gmra.mrb[0].mxu0 %v889
        %v2712 = vpop.f32.mrb[0].mxu0
        %v2713 = vadd.f32 %v2552, %v2712
        %v2714 = vpop.f32.mrb[0].mxu0
        %v2715 = vpop.f32.mrb[0].mxu0
        %v2716 = vadd.f32 %v2555, %v2715
        %v2717 = vpop.f32.mrb[0].mxu0
        %2718 = vmatprep.mubr.bf16.mxu0 %v994
        %2719 = vmatmul.mubr.bf16.gmra.mrb[0].mxu0 %v892
        %v2720 = vpop.f32.mrb[0].mxu0
        %v2721 = vadd.f32 %v2560, %v2720
        %v2722 = vpop.f32.mrb[0].mxu0
        %v2723 = vpop.f32.mrb[0].mxu0
        %v2724 = vadd.f32 %v2563, %v2723
        %v2725 = vpop.f32.mrb[0].mxu0
        %2726 = vmatprep.mubr.bf16.mxu0 %v995
        %2727 = vmatmul.mubr.bf16.gmra.mrb[0].mxu0 %v895
        %v2728 = vpop.f32.mrb[0].mxu0
        %v2729 = vadd.f32 %v2568, %v2728
        %v2730 = vpop.f32.mrb[0].mxu0
        %v2731 = vpop.f32.mrb[0].mxu0
        %v2732 = vadd.f32 %v2571, %v2731
        %v2733 = vpop.f32.mrb[0].mxu0
        %2734 = vmatprep.mubr.bf16.mxu0 %v996
        %2735 = vmatmul.mubr.bf16.gmra.mrb[0].mxu0 %v898
        %v2736 = vpop.f32.mrb[0].mxu0
        %v2737 = vadd.f32 %v2576, %v2736
        %v2738 = vpop.f32.mrb[0].mxu0
        %v2739 = vpop.f32.mrb[0].mxu0
        %v2740 = vadd.f32 %v2579, %v2739
        %v2741 = vpop.f32.mrb[0].mxu0
        %2742 = vmatprep.mubr.bf16.mxu0 %v997
        %2743 = vmatmul.mubr.bf16.gmra.mrb[0].mxu0 %v901
        %v2744 = vpop.f32.mrb[0].mxu0
        %v2745 = vadd.f32 %v2584, %v2744
        %v2746 = vpop.f32.mrb[0].mxu0
        %v2747 = vpop.f32.mrb[0].mxu0
        %v2748 = vadd.f32 %v2587, %v2747
        %v2749 = vpop.f32.mrb[0].mxu0
        %2750 = vdwg.mxu0
        %2751 = vmatprep.subr.bf16.mxu0 0
        %2752 = vmatpush1.bf16.msra.mxu0 %v2317
        %2753 = vmatprep.subr.bf16.mxu0 0
        %2754 = vmatpush1.bf16.msra.mxu0 %v2318
        %2755 = vmatprep.subr.bf16.mxu0 0
        %2756 = vmatpush1.bf16.msra.mxu0 %v2319
        %2757 = vmatprep.subr.bf16.mxu0 0
        %2758 = vmatpush1.bf16.msra.mxu0 %v2320
        %2759 = vmatprep.subr.bf16.mxu0 0
        %2760 = vmatpush1.bf16.msra.mxu0 %v2321
        %2761 = vmatprep.subr.bf16.mxu0 0
        %2762 = vmatpush1.bf16.msra.mxu0 %v2322
        %2763 = vmatprep.subr.bf16.mxu0 0
        %2764 = vmatpush1.bf16.msra.mxu0 %v2323
        %2765 = vmatprep.subr.bf16.mxu0 0
        %2766 = vmatpush1.bf16.msra.mxu0 %v2324
        %2767 = vmatprep.subr.bf16.mxu0 0
        %2768 = vmatpush1.bf16.msra.mxu0 %v2325
        %2769 = vmatprep.subr.bf16.mxu0 0
        %2770 = vmatpush1.bf16.msra.mxu0 %v2326
        %2771 = vmatprep.subr.bf16.mxu0 0
        %2772 = vmatpush1.bf16.msra.mxu0 %v2327
        %2773 = vmatprep.subr.bf16.mxu0 0
        %2774 = vmatpush1.bf16.msra.mxu0 %v2328
        %2775 = vmatprep.subr.bf16.mxu0 0
        %2776 = vmatpush1.bf16.msra.mxu0 %v2329
        %2777 = vmatprep.subr.bf16.mxu0 0
        %2778 = vmatpush1.bf16.msra.mxu0 %v2330
        %2779 = vmatprep.subr.bf16.mxu0 0
        %2780 = vmatpush1.bf16.msra.mxu0 %v2331
        %2781 = vmatprep.subr.bf16.mxu0 0
        %2782 = vmatpush1.bf16.msra.mxu0 %v2332
        %2783 = vmatprep.mubr.bf16.mxu0 %v1320
        %2784 = vmatmul.mubr.bf16.gmra.mrb[0].mxu0 %v1073
        %v2785 = vpop.f32.mrb[0].mxu0
        %v2786 = vadd.f32 %v2625, %v2785
        %v2787 = vpop.f32.mrb[0].mxu0
        %v2788 = vpop.f32.mrb[0].mxu0
        %v2789 = vadd.f32 %v2628, %v2788
        %v2790 = vpop.f32.mrb[0].mxu0
        %2791 = vmatprep.mubr.bf16.mxu0 %v1323
        %2792 = vmatmul.mubr.bf16.gmra.mrb[0].mxu0 %v1085
        %v2793 = vpop.f32.mrb[0].mxu0
        %v2794 = vadd.f32 %v2633, %v2793
        %v2795 = vpop.f32.mrb[0].mxu0
        %v2796 = vpop.f32.mrb[0].mxu0
        %v2797 = vadd.f32 %v2636, %v2796
        %v2798 = vpop.f32.mrb[0].mxu0
        %2799 = vmatprep.mubr.bf16.mxu0 %v1326
        %2800 = vmatmul.mubr.bf16.gmra.mrb[0].mxu0 %v1097
        %v2801 = vpop.f32.mrb[0].mxu0
        %v2802 = vadd.f32 %v2641, %v2801
        %v2803 = vpop.f32.mrb[0].mxu0
        %v2804 = vpop.f32.mrb[0].mxu0
        %v2805 = vadd.f32 %v2644, %v2804
        %v2806 = vpop.f32.mrb[0].mxu0
        %2807 = vmatprep.mubr.bf16.mxu0 %v1329
        %2808 = vmatmul.mubr.bf16.gmra.mrb[0].mxu0 %v1109
        %v2809 = vpop.f32.mrb[0].mxu0
        %v2810 = vadd.f32 %v2649, %v2809
        %v2811 = vpop.f32.mrb[0].mxu0
        %v2812 = vpop.f32.mrb[0].mxu0
        %v2813 = vadd.f32 %v2652, %v2812
        %v2814 = vpop.f32.mrb[0].mxu0
        %2815 = vmatprep.mubr.bf16.mxu0 %v1332
        %2816 = vmatmul.mubr.bf16.gmra.mrb[0].mxu0 %v1121
        %v2817 = vpop.f32.mrb[0].mxu0
        %v2818 = vadd.f32 %v2657, %v2817
        %v2819 = vpop.f32.mrb[0].mxu0
        %v2820 = vpop.f32.mrb[0].mxu0
        %v2821 = vadd.f32 %v2660, %v2820
        %v2822 = vpop.f32.mrb[0].mxu0
        %2823 = vmatprep.mubr.bf16.mxu0 %v1335
        %2824 = vmatmul.mubr.bf16.gmra.mrb[0].mxu0 %v1133
        %v2825 = vpop.f32.mrb[0].mxu0
        %v2826 = vadd.f32 %v2665, %v2825
        %v2827 = vpop.f32.mrb[0].mxu0
        %v2828 = vpop.f32.mrb[0].mxu0
        %v2829 = vadd.f32 %v2668, %v2828
        %v2830 = vpop.f32.mrb[0].mxu0
        %2831 = vmatprep.mubr.bf16.mxu0 %v1338
        %2832 = vmatmul.mubr.bf16.gmra.mrb[0].mxu0 %v1145
        %v2833 = vpop.f32.mrb[0].mxu0
        %v2834 = vadd.f32 %v2673, %v2833
        %v2835 = vpop.f32.mrb[0].mxu0
        %v2836 = vpop.f32.mrb[0].mxu0
        %v2837 = vadd.f32 %v2676, %v2836
        %v2838 = vpop.f32.mrb[0].mxu0
        %2839 = vmatprep.mubr.bf16.mxu0 %v1341
        %2840 = vmatmul.mubr.bf16.gmra.mrb[0].mxu0 %v1157
        %v2841 = vpop.f32.mrb[0].mxu0
        %v2842 = vadd.f32 %v2681, %v2841
        %v2843 = vpop.f32.mrb[0].mxu0
        %v2844 = vpop.f32.mrb[0].mxu0
        %v2845 = vadd.f32 %v2684, %v2844
        %v2846 = vpop.f32.mrb[0].mxu0
        %2847 = vmatprep.mubr.bf16.mxu0 %v1344
        %2848 = vmatmul.mubr.bf16.gmra.mrb[0].mxu0 %v1169
        %v2849 = vpop.f32.mrb[0].mxu0
        %v2850 = vadd.f32 %v2689, %v2849
        %v2851 = vpop.f32.mrb[0].mxu0
        %v2852 = vpop.f32.mrb[0].mxu0
        %v2853 = vadd.f32 %v2692, %v2852
        %v2854 = vpop.f32.mrb[0].mxu0
        %2855 = vmatprep.mubr.bf16.mxu0 %v1347
        %2856 = vmatmul.mubr.bf16.gmra.mrb[0].mxu0 %v1181
        %v2857 = vpop.f32.mrb[0].mxu0
        %v2858 = vadd.f32 %v2697, %v2857
        %v2859 = vpop.f32.mrb[0].mxu0
        %v2860 = vpop.f32.mrb[0].mxu0
        %v2861 = vadd.f32 %v2700, %v2860
        %v2862 = vpop.f32.mrb[0].mxu0
        %2863 = vmatprep.mubr.bf16.mxu0 %v1350
        %2864 = vmatmul.mubr.bf16.gmra.mrb[0].mxu0 %v1193
        %v2865 = vpop.f32.mrb[0].mxu0
        %v2866 = vadd.f32 %v2705, %v2865
        %v2867 = vpop.f32.mrb[0].mxu0
        %v2868 = vpop.f32.mrb[0].mxu0
        %v2869 = vadd.f32 %v2708, %v2868
        %v2870 = vpop.f32.mrb[0].mxu0
        %2871 = vmatprep.mubr.bf16.mxu0 %v1353
        %2872 = vmatmul.mubr.bf16.gmra.mrb[0].mxu0 %v1205
        %v2873 = vpop.f32.mrb[0].mxu0
        %v2874 = vadd.f32 %v2713, %v2873
        %v2875 = vpop.f32.mrb[0].mxu0
        %v2876 = vpop.f32.mrb[0].mxu0
        %v2877 = vadd.f32 %v2716, %v2876
        %v2878 = vpop.f32.mrb[0].mxu0
        %2879 = vmatprep.mubr.bf16.mxu0 %v1356
        %2880 = vmatmul.mubr.bf16.gmra.mrb[0].mxu0 %v1217
        %v2881 = vpop.f32.mrb[0].mxu0
        %v2882 = vadd.f32 %v2721, %v2881
        %v2883 = vpop.f32.mrb[0].mxu0
        %v2884 = vpop.f32.mrb[0].mxu0
        %v2885 = vadd.f32 %v2724, %v2884
        %v2886 = vpop.f32.mrb[0].mxu0
        %2887 = vmatprep.mubr.bf16.mxu0 %v1359
        %2888 = vmatmul.mubr.bf16.gmra.mrb[0].mxu0 %v1229
        %v2889 = vpop.f32.mrb[0].mxu0
        %v2890 = vadd.f32 %v2729, %v2889
        %v2891 = vpop.f32.mrb[0].mxu0
        %v2892 = vpop.f32.mrb[0].mxu0
        %v2893 = vadd.f32 %v2732, %v2892
        %v2894 = vpop.f32.mrb[0].mxu0
        %2895 = vmatprep.mubr.bf16.mxu0 %v1362
        %2896 = vmatmul.mubr.bf16.gmra.mrb[0].mxu0 %v1241
        %v2897 = vpop.f32.mrb[0].mxu0
        %v2898 = vadd.f32 %v2737, %v2897
        %v2899 = vpop.f32.mrb[0].mxu0
        %v2900 = vpop.f32.mrb[0].mxu0
        %v2901 = vadd.f32 %v2740, %v2900
        %v2902 = vpop.f32.mrb[0].mxu0
        %2903 = vmatprep.mubr.bf16.mxu0 %v1365
        %2904 = vmatmul.mubr.bf16.gmra.mrb[0].mxu0 %v1253
        %v2905 = vpop.f32.mrb[0].mxu0
        %v2906 = vadd.f32 %v2745, %v2905
        %v2907 = vpop.f32.mrb[0].mxu0
        %v2908 = vpop.f32.mrb[0].mxu0
        %v2909 = vadd.f32 %v2748, %v2908
        %v2910 = vpop.f32.mrb[0].mxu0
        %2911 = vdwg.mxu0
        %2912 = vmatprep.subr.bf16.mxu0 0
        %2913 = vmatpush1.bf16.msra.mxu0 %v2333
        %2914 = vmatprep.subr.bf16.mxu0 0
        %2915 = vmatpush1.bf16.msra.mxu0 %v2334
        %2916 = vmatprep.subr.bf16.mxu0 0
        %2917 = vmatpush1.bf16.msra.mxu0 %v2335
        %2918 = vmatprep.subr.bf16.mxu0 0
        %2919 = vmatpush1.bf16.msra.mxu0 %v2336
        %2920 = vmatprep.subr.bf16.mxu0 0
        %2921 = vmatpush1.bf16.msra.mxu0 %v2337
        %2922 = vmatprep.subr.bf16.mxu0 0
        %2923 = vmatpush1.bf16.msra.mxu0 %v2338
        %2924 = vmatprep.subr.bf16.mxu0 0
        %2925 = vmatpush1.bf16.msra.mxu0 %v2339
        %2926 = vmatprep.subr.bf16.mxu0 0
        %2927 = vmatpush1.bf16.msra.mxu0 %v2340
        %2928 = vmatprep.subr.bf16.mxu0 0
        %2929 = vmatpush1.bf16.msra.mxu0 %v2341
        %2930 = vmatprep.subr.bf16.mxu0 0
        %2931 = vmatpush1.bf16.msra.mxu0 %v2342
        %2932 = vmatprep.subr.bf16.mxu0 0
        %2933 = vmatpush1.bf16.msra.mxu0 %v2343
        %2934 = vmatprep.subr.bf16.mxu0 0
        %2935 = vmatpush1.bf16.msra.mxu0 %v2344
        %2936 = vmatprep.subr.bf16.mxu0 0
        %2937 = vmatpush1.bf16.msra.mxu0 %v2345
        %2938 = vmatprep.subr.bf16.mxu0 0
        %2939 = vmatpush1.bf16.msra.mxu0 %v2346
        %2940 = vmatprep.subr.bf16.mxu0 0
        %2941 = vmatpush1.bf16.msra.mxu0 %v2347
        %2942 = vmatprep.subr.bf16.mxu0 0
        %2943 = vmatpush1.bf16.msra.mxu0 %v2348
        %2944 = vmatprep.mubr.bf16.mxu0 %v1537
        %2945 = vmatmul.mubr.bf16.gmra.mrb[0].mxu0 %v1446
        %v2946 = vpop.f32.mrb[0].mxu0
        %v2947 = vadd.f32 %v2786, %v2946
        %v2948 = vpop.f32.mrb[0].mxu0
        %v2949 = vpop.f32.mrb[0].mxu0
        %v2950 = vadd.f32 %v2789, %v2949
        %v2951 = vpop.f32.mrb[0].mxu0
        %2952 = vmatprep.mubr.bf16.mxu0 %v1549
        %2953 = vmatmul.mubr.bf16.gmra.mrb[0].mxu0 %v1447
        %v2954 = vpop.f32.mrb[0].mxu0
        %v2955 = vadd.f32 %v2794, %v2954
        %v2956 = vpop.f32.mrb[0].mxu0
        %v2957 = vpop.f32.mrb[0].mxu0
        %v2958 = vadd.f32 %v2797, %v2957
        %v2959 = vpop.f32.mrb[0].mxu0
        %2960 = vmatprep.mubr.bf16.mxu0 %v1561
        %2961 = vmatmul.mubr.bf16.gmra.mrb[0].mxu0 %v1448
        %v2962 = vpop.f32.mrb[0].mxu0
        %v2963 = vadd.f32 %v2802, %v2962
        %v2964 = vpop.f32.mrb[0].mxu0
        %v2965 = vpop.f32.mrb[0].mxu0
        %v2966 = vadd.f32 %v2805, %v2965
        %v2967 = vpop.f32.mrb[0].mxu0
        %2968 = vmatprep.mubr.bf16.mxu0 %v1573
        %2969 = vmatmul.mubr.bf16.gmra.mrb[0].mxu0 %v1449
        %v2970 = vpop.f32.mrb[0].mxu0
        %v2971 = vadd.f32 %v2810, %v2970
        %v2972 = vpop.f32.mrb[0].mxu0
        %v2973 = vpop.f32.mrb[0].mxu0
        %v2974 = vadd.f32 %v2813, %v2973
        %v2975 = vpop.f32.mrb[0].mxu0
        %2976 = vmatprep.mubr.bf16.mxu0 %v1585
        %2977 = vmatmul.mubr.bf16.gmra.mrb[0].mxu0 %v1450
        %v2978 = vpop.f32.mrb[0].mxu0
        %v2979 = vadd.f32 %v2818, %v2978
        %v2980 = vpop.f32.mrb[0].mxu0
        %v2981 = vpop.f32.mrb[0].mxu0
        %v2982 = vadd.f32 %v2821, %v2981
        %v2983 = vpop.f32.mrb[0].mxu0
        %2984 = vmatprep.mubr.bf16.mxu0 %v1597
        %2985 = vmatmul.mubr.bf16.gmra.mrb[0].mxu0 %v1451
        %v2986 = vpop.f32.mrb[0].mxu0
        %v2987 = vadd.f32 %v2826, %v2986
        %v2988 = vpop.f32.mrb[0].mxu0
        %v2989 = vpop.f32.mrb[0].mxu0
        %v2990 = vadd.f32 %v2829, %v2989
        %v2991 = vpop.f32.mrb[0].mxu0
        %2992 = vmatprep.mubr.bf16.mxu0 %v1609
        %2993 = vmatmul.mubr.bf16.gmra.mrb[0].mxu0 %v1452
        %v2994 = vpop.f32.mrb[0].mxu0
        %v2995 = vadd.f32 %v2834, %v2994
        %v2996 = vpop.f32.mrb[0].mxu0
        %v2997 = vpop.f32.mrb[0].mxu0
        %v2998 = vadd.f32 %v2837, %v2997
        %v2999 = vpop.f32.mrb[0].mxu0
        %3000 = vmatprep.mubr.bf16.mxu0 %v1621
        %3001 = vmatmul.mubr.bf16.gmra.mrb[0].mxu0 %v1453
        %v3002 = vpop.f32.mrb[0].mxu0
        %v3003 = vadd.f32 %v2842, %v3002
        %v3004 = vpop.f32.mrb[0].mxu0
        %v3005 = vpop.f32.mrb[0].mxu0
        %v3006 = vadd.f32 %v2845, %v3005
        %v3007 = vpop.f32.mrb[0].mxu0
        %3008 = vmatprep.mubr.bf16.mxu0 %v1633
        %3009 = vmatmul.mubr.bf16.gmra.mrb[0].mxu0 %v1454
        %v3010 = vpop.f32.mrb[0].mxu0
        %v3011 = vadd.f32 %v2850, %v3010
        %v3012 = vpop.f32.mrb[0].mxu0
        %v3013 = vpop.f32.mrb[0].mxu0
        %v3014 = vadd.f32 %v2853, %v3013
        %v3015 = vpop.f32.mrb[0].mxu0
        %3016 = vmatprep.mubr.bf16.mxu0 %v1645
        %3017 = vmatmul.mubr.bf16.gmra.mrb[0].mxu0 %v1455
        %v3018 = vpop.f32.mrb[0].mxu0
        %v3019 = vadd.f32 %v2858, %v3018
        %v3020 = vpop.f32.mrb[0].mxu0
        %v3021 = vpop.f32.mrb[0].mxu0
        %v3022 = vadd.f32 %v2861, %v3021
        %v3023 = vpop.f32.mrb[0].mxu0
        %3024 = vmatprep.mubr.bf16.mxu0 %v1657
        %3025 = vmatmul.mubr.bf16.gmra.mrb[0].mxu0 %v1456
        %v3026 = vpop.f32.mrb[0].mxu0
        %v3027 = vadd.f32 %v2866, %v3026
        %v3028 = vpop.f32.mrb[0].mxu0
        %v3029 = vpop.f32.mrb[0].mxu0
        %v3030 = vadd.f32 %v2869, %v3029
        %v3031 = vpop.f32.mrb[0].mxu0
        %3032 = vmatprep.mubr.bf16.mxu0 %v1669
        %3033 = vmatmul.mubr.bf16.gmra.mrb[0].mxu0 %v1457
        %v3034 = vpop.f32.mrb[0].mxu0
        %v3035 = vadd.f32 %v2874, %v3034
        %v3036 = vpop.f32.mrb[0].mxu0
        %v3037 = vpop.f32.mrb[0].mxu0
        %v3038 = vadd.f32 %v2877, %v3037
        %v3039 = vpop.f32.mrb[0].mxu0
        %3040 = vmatprep.mubr.bf16.mxu0 %v1681
        %3041 = vmatmul.mubr.bf16.gmra.mrb[0].mxu0 %v1458
        %v3042 = vpop.f32.mrb[0].mxu0
        %v3043 = vadd.f32 %v2882, %v3042
        %v3044 = vpop.f32.mrb[0].mxu0
        %v3045 = vpop.f32.mrb[0].mxu0
        %v3046 = vadd.f32 %v2885, %v3045
        %v3047 = vpop.f32.mrb[0].mxu0
        %3048 = vmatprep.mubr.bf16.mxu0 %v1693
        %3049 = vmatmul.mubr.bf16.gmra.mrb[0].mxu0 %v1459
        %v3050 = vpop.f32.mrb[0].mxu0
        %v3051 = vadd.f32 %v2890, %v3050
        %v3052 = vpop.f32.mrb[0].mxu0
        %v3053 = vpop.f32.mrb[0].mxu0
        %v3054 = vadd.f32 %v2893, %v3053
        %v3055 = vpop.f32.mrb[0].mxu0
        %3056 = vmatprep.mubr.bf16.mxu0 %v1705
        %3057 = vmatmul.mubr.bf16.gmra.mrb[0].mxu0 %v1460
        %v3058 = vpop.f32.mrb[0].mxu0
        %v3059 = vadd.f32 %v2898, %v3058
        %v3060 = vpop.f32.mrb[0].mxu0
        %v3061 = vpop.f32.mrb[0].mxu0
        %v3062 = vadd.f32 %v2901, %v3061
        %v3063 = vpop.f32.mrb[0].mxu0
        %3064 = vmatprep.mubr.bf16.mxu0 %v1717
        %3065 = vmatmul.mubr.bf16.gmra.mrb[0].mxu0 %v1461
        %v3066 = vpop.f32.mrb[0].mxu0
        %v3067 = vadd.f32 %v2906, %v3066
        %v3068 = vpop.f32.mrb[0].mxu0
        %v3069 = vpop.f32.mrb[0].mxu0
        %v3070 = vadd.f32 %v2909, %v3069
        %v3071 = vpop.f32.mrb[0].mxu0
        %3072 = vdwg.mxu0
        %3073 = vmatprep.subr.bf16.mxu0 0
        %3074 = vmatpush1.bf16.msra.mxu0 %v2349
        %3075 = vmatprep.subr.bf16.mxu0 0
        %3076 = vmatpush1.bf16.msra.mxu0 %v2350
        %3077 = vmatprep.subr.bf16.mxu0 0
        %3078 = vmatpush1.bf16.msra.mxu0 %v2351
        %3079 = vmatprep.subr.bf16.mxu0 0
        %3080 = vmatpush1.bf16.msra.mxu0 %v2352
        %3081 = vmatprep.subr.bf16.mxu0 0
        %3082 = vmatpush1.bf16.msra.mxu0 %v2353
        %3083 = vmatprep.subr.bf16.mxu0 0
        %3084 = vmatpush1.bf16.msra.mxu0 %v2354
        %3085 = vmatprep.subr.bf16.mxu0 0
        %3086 = vmatpush1.bf16.msra.mxu0 %v2355
        %3087 = vmatprep.subr.bf16.mxu0 0
        %3088 = vmatpush1.bf16.msra.mxu0 %v2356
        %3089 = vmatprep.subr.bf16.mxu0 0
        %3090 = vmatpush1.bf16.msra.mxu0 0
        %3091 = vmatprep.subr.bf16.mxu0 0
        %3092 = vmatpush1.bf16.msra.mxu0 0
        %3093 = vmatprep.subr.bf16.mxu0 0
        %3094 = vmatpush1.bf16.msra.mxu0 0
        %3095 = vmatprep.subr.bf16.mxu0 0
        %3096 = vmatpush1.bf16.msra.mxu0 0
        %3097 = vmatprep.subr.bf16.mxu0 0
        %3098 = vmatpush1.bf16.msra.mxu0 0
        %3099 = vmatprep.subr.bf16.mxu0 0
        %3100 = vmatpush1.bf16.msra.mxu0 0
        %3101 = vmatprep.subr.bf16.mxu0 0
        %3102 = vmatpush1.bf16.msra.mxu0 0
        %3103 = vmatprep.subr.bf16.mxu0 0
        %3104 = vmatpush1.bf16.msra.mxu0 0
        %3105 = vmatprep.mubr.bf16.mxu0 0
        %3106 = vmatmul.mubr.bf16.gmra.mrb[0].mxu0 %v1784
        %v3107 = vpop.f32.mrb[0].mxu0
        %v3108 = vadd.f32 %v2947, %v3107
        %v3109 = vpop.f32.mrb[0].mxu0
        %v3110 = vpop.f32.mrb[0].mxu0
        %v3111 = vadd.f32 %v2950, %v3110
        %v3112 = vpop.f32.mrb[0].mxu0
        %3113 = vmatprep.mubr.bf16.mxu0 0
        %3114 = vmatmul.mubr.bf16.gmra.mrb[0].mxu0 %v1787
        %v3115 = vpop.f32.mrb[0].mxu0
        %v3116 = vadd.f32 %v2955, %v3115
        %v3117 = vpop.f32.mrb[0].mxu0
        %v3118 = vpop.f32.mrb[0].mxu0
        %v3119 = vadd.f32 %v2958, %v3118
        %v3120 = vpop.f32.mrb[0].mxu0
        %3121 = vmatprep.mubr.bf16.mxu0 0
        %3122 = vmatmul.mubr.bf16.gmra.mrb[0].mxu0 %v1790
        %v3123 = vpop.f32.mrb[0].mxu0
        %v3124 = vadd.f32 %v2963, %v3123
        %v3125 = vpop.f32.mrb[0].mxu0
        %v3126 = vpop.f32.mrb[0].mxu0
        %v3127 = vadd.f32 %v2966, %v3126
        %v3128 = vpop.f32.mrb[0].mxu0
        %3129 = vmatprep.mubr.bf16.mxu0 0
        %3130 = vmatmul.mubr.bf16.gmra.mrb[0].mxu0 %v1793
        %v3131 = vpop.f32.mrb[0].mxu0
        %v3132 = vadd.f32 %v2971, %v3131
        %v3133 = vpop.f32.mrb[0].mxu0
        %v3134 = vpop.f32.mrb[0].mxu0
        %v3135 = vadd.f32 %v2974, %v3134
        %v3136 = vpop.f32.mrb[0].mxu0
        %3137 = vmatprep.mubr.bf16.mxu0 0
        %3138 = vmatmul.mubr.bf16.gmra.mrb[0].mxu0 %v1796
        %v3139 = vpop.f32.mrb[0].mxu0
        %v3140 = vadd.f32 %v2979, %v3139
        %v3141 = vpop.f32.mrb[0].mxu0
        %v3142 = vpop.f32.mrb[0].mxu0
        %v3143 = vadd.f32 %v2982, %v3142
        %v3144 = vpop.f32.mrb[0].mxu0
        %3145 = vmatprep.mubr.bf16.mxu0 0
        %3146 = vmatmul.mubr.bf16.gmra.mrb[0].mxu0 %v1799
        %v3147 = vpop.f32.mrb[0].mxu0
        %v3148 = vadd.f32 %v2987, %v3147
        %v3149 = vpop.f32.mrb[0].mxu0
        %v3150 = vpop.f32.mrb[0].mxu0
        %v3151 = vadd.f32 %v2990, %v3150
        %v3152 = vpop.f32.mrb[0].mxu0
        %3153 = vmatprep.mubr.bf16.mxu0 0
        %3154 = vmatmul.mubr.bf16.gmra.mrb[0].mxu0 %v1802
        %v3155 = vpop.f32.mrb[0].mxu0
        %v3156 = vadd.f32 %v2995, %v3155
        %v3157 = vpop.f32.mrb[0].mxu0
        %v3158 = vpop.f32.mrb[0].mxu0
        %v3159 = vadd.f32 %v2998, %v3158
        %v3160 = vpop.f32.mrb[0].mxu0
        %3161 = vmatprep.mubr.bf16.mxu0 0
        %3162 = vmatmul.mubr.bf16.gmra.mrb[0].mxu0 %v1805
        %v3163 = vpop.f32.mrb[0].mxu0
        %v3164 = vadd.f32 %v3003, %v3163
        %v3165 = vpop.f32.mrb[0].mxu0
        %v3166 = vpop.f32.mrb[0].mxu0
        %v3167 = vadd.f32 %v3006, %v3166
        %v3168 = vpop.f32.mrb[0].mxu0
        %3169 = vmatprep.mubr.bf16.mxu0 0
        %3170 = vmatmul.mubr.bf16.gmra.mrb[0].mxu0 %v1808
        %v3171 = vpop.f32.mrb[0].mxu0
        %v3172 = vadd.f32 %v3011, %v3171
        %v3173 = vpop.f32.mrb[0].mxu0
        %v3174 = vpop.f32.mrb[0].mxu0
        %v3175 = vadd.f32 %v3014, %v3174
        %v3176 = vpop.f32.mrb[0].mxu0
        %3177 = vmatprep.mubr.bf16.mxu0 0
        %3178 = vmatmul.mubr.bf16.gmra.mrb[0].mxu0 %v1811
        %v3179 = vpop.f32.mrb[0].mxu0
        %v3180 = vadd.f32 %v3019, %v3179
        %v3181 = vpop.f32.mrb[0].mxu0
        %v3182 = vpop.f32.mrb[0].mxu0
        %v3183 = vadd.f32 %v3022, %v3182
        %v3184 = vpop.f32.mrb[0].mxu0
        %3185 = vmatprep.mubr.bf16.mxu0 0
        %3186 = vmatmul.mubr.bf16.gmra.mrb[0].mxu0 %v1814
        %v3187 = vpop.f32.mrb[0].mxu0
        %v3188 = vadd.f32 %v3027, %v3187
        %v3189 = vpop.f32.mrb[0].mxu0
        %v3190 = vpop.f32.mrb[0].mxu0
        %v3191 = vadd.f32 %v3030, %v3190
        %v3192 = vpop.f32.mrb[0].mxu0
        %3193 = vmatprep.mubr.bf16.mxu0 0
        %3194 = vmatmul.mubr.bf16.gmra.mrb[0].mxu0 %v1817
        %v3195 = vpop.f32.mrb[0].mxu0
        %v3196 = vadd.f32 %v3035, %v3195
        %v3197 = vpop.f32.mrb[0].mxu0
        %v3198 = vpop.f32.mrb[0].mxu0
        %v3199 = vadd.f32 %v3038, %v3198
        %v3200 = vpop.f32.mrb[0].mxu0
        %3201 = vmatprep.mubr.bf16.mxu0 0
        %3202 = vmatmul.mubr.bf16.gmra.mrb[0].mxu0 %v1820
        %v3203 = vpop.f32.mrb[0].mxu0
        %v3204 = vadd.f32 %v3043, %v3203
        %v3205 = vpop.f32.mrb[0].mxu0
        %v3206 = vpop.f32.mrb[0].mxu0
        %v3207 = vadd.f32 %v3046, %v3206
        %v3208 = vpop.f32.mrb[0].mxu0
        %3209 = vmatprep.mubr.bf16.mxu0 0
        %3210 = vmatmul.mubr.bf16.gmra.mrb[0].mxu0 %v1823
        %v3211 = vpop.f32.mrb[0].mxu0
        %v3212 = vadd.f32 %v3051, %v3211
        %v3213 = vpop.f32.mrb[0].mxu0
        %v3214 = vpop.f32.mrb[0].mxu0
        %v3215 = vadd.f32 %v3054, %v3214
        %v3216 = vpop.f32.mrb[0].mxu0
        %3217 = vmatprep.mubr.bf16.mxu0 0
        %3218 = vmatmul.mubr.bf16.gmra.mrb[0].mxu0 %v1826
        %v3219 = vpop.f32.mrb[0].mxu0
        %v3220 = vadd.f32 %v3059, %v3219
        %v3221 = vpop.f32.mrb[0].mxu0
        %v3222 = vpop.f32.mrb[0].mxu0
        %v3223 = vadd.f32 %v3062, %v3222
        %v3224 = vpop.f32.mrb[0].mxu0
        %3225 = vmatprep.mubr.bf16.mxu0 0
        %3226 = vmatmul.mubr.bf16.gmra.mrb[0].mxu0 %v1829
        %v3227 = vpop.f32.mrb[0].mxu0
        %v3228 = vadd.f32 %v3067, %v3227
        %v3229 = vpop.f32.mrb[0].mxu0
        %v3230 = vpop.f32.mrb[0].mxu0
        %v3231 = vadd.f32 %v3070, %v3230
        %v3232 = vpop.f32.mrb[0].mxu0
        %3233 = vdwg.mxu0
        %vm3234 = vcmp.ge.f32.partialorder %v3108, 0.0
        %vm3235 = vcmp.ge.f32.partialorder %v3111, 0.0
        %vm3236 = vcmp.ge.f32.partialorder %v3116, 0.0
        %vm3237 = vcmp.ge.f32.partialorder %v3119, 0.0
        %vm3238 = vcmp.ge.f32.partialorder %v3124, 0.0
        %vm3239 = vcmp.ge.f32.partialorder %v3127, 0.0
        %vm3240 = vcmp.ge.f32.partialorder %v3132, 0.0
        %vm3241 = vcmp.ge.f32.partialorder %v3135, 0.0
        %vm3242 = vcmp.ge.f32.partialorder %v3140, 0.0
        %vm3243 = vcmp.ge.f32.partialorder %v3143, 0.0
        %vm3244 = vcmp.ge.f32.partialorder %v3148, 0.0
        %vm3245 = vcmp.ge.f32.partialorder %v3151, 0.0
        %vm3246 = vcmp.ge.f32.partialorder %v3156, 0.0
        %vm3247 = vcmp.ge.f32.partialorder %v3159, 0.0
        %vm3248 = vcmp.ge.f32.partialorder %v3164, 0.0
        %vm3249 = vcmp.ge.f32.partialorder %v3167, 0.0
        %vm3250 = vcmp.ge.f32.partialorder %v3172, 0.0
        %vm3251 = vcmp.ge.f32.partialorder %v3175, 0.0
        %vm3252 = vcmp.ge.f32.partialorder %v3180, 0.0
        %vm3253 = vcmp.ge.f32.partialorder %v3183, 0.0
        %vm3254 = vcmp.ge.f32.partialorder %v3188, 0.0
        %vm3255 = vcmp.ge.f32.partialorder %v3191, 0.0
        %vm3256 = vcmp.ge.f32.partialorder %v3196, 0.0
        %vm3257 = vcmp.ge.f32.partialorder %v3199, 0.0
        %vm3258 = vcmp.ge.f32.partialorder %v3204, 0.0
        %vm3259 = vcmp.ge.f32.partialorder %v3207, 0.0
        %vm3260 = vcmp.ge.f32.partialorder %v3212, 0.0
        %vm3261 = vcmp.ge.f32.partialorder %v3215, 0.0
        %vm3262 = vcmp.ge.f32.partialorder %v3220, 0.0
        %vm3263 = vcmp.ge.f32.partialorder %v3223, 0.0
        %vm3264 = vcmp.ge.f32.partialorder %v3228, 0.0
        %vm3265 = vcmp.ge.f32.partialorder %v3231, 0.0
        %v3266 = vmul.f32 %v3108, 0.2
        %v3267 = vmul.f32 %v3111, 0.2
        %v3268 = vmul.f32 %v3116, 0.2
        %v3269 = vmul.f32 %v3119, 0.2
        %v3270 = vmul.f32 %v3124, 0.2
        %v3271 = vmul.f32 %v3127, 0.2
        %v3272 = vmul.f32 %v3132, 0.2
        %v3273 = vmul.f32 %v3135, 0.2
        %v3274 = vmul.f32 %v3140, 0.2
        %v3275 = vmul.f32 %v3143, 0.2
        %v3276 = vmul.f32 %v3148, 0.2
        %v3277 = vmul.f32 %v3151, 0.2
        %v3278 = vmul.f32 %v3156, 0.2
        %v3279 = vmul.f32 %v3159, 0.2
        %v3280 = vmul.f32 %v3164, 0.2
        %v3281 = vmul.f32 %v3167, 0.2
        %v3282 = vmul.f32 %v3172, 0.2
        %v3283 = vmul.f32 %v3175, 0.2
        %v3284 = vmul.f32 %v3180, 0.2
        %v3285 = vmul.f32 %v3183, 0.2
        %v3286 = vmul.f32 %v3188, 0.2
        %v3287 = vmul.f32 %v3191, 0.2
        %v3288 = vmul.f32 %v3196, 0.2
        %v3289 = vmul.f32 %v3199, 0.2
        %v3290 = vmul.f32 %v3204, 0.2
        %v3291 = vmul.f32 %v3207, 0.2
        %v3292 = vmul.f32 %v3212, 0.2
        %v3293 = vmul.f32 %v3215, 0.2
        %v3294 = vmul.f32 %v3220, 0.2
        %v3295 = vmul.f32 %v3223, 0.2
        %v3296 = vmul.f32 %v3228, 0.2
        %v3297 = vmul.f32 %v3231, 0.2
        %v3298 = vsel %vm3234, %v3108, %v3266
        %v3299 = vsel %vm3235, %v3111, %v3267
        %v3300 = vsel %vm3236, %v3116, %v3268
        %v3301 = vsel %vm3237, %v3119, %v3269
        %v3302 = vsel %vm3238, %v3124, %v3270
        %v3303 = vsel %vm3239, %v3127, %v3271
        %v3304 = vsel %vm3240, %v3132, %v3272
        %v3305 = vsel %vm3241, %v3135, %v3273
        %v3306 = vsel %vm3242, %v3140, %v3274
        %v3307 = vsel %vm3243, %v3143, %v3275
        %v3308 = vsel %vm3244, %v3148, %v3276
        %v3309 = vsel %vm3245, %v3151, %v3277
        %v3310 = vsel %vm3246, %v3156, %v3278
        %v3311 = vsel %vm3247, %v3159, %v3279
        %v3312 = vsel %vm3248, %v3164, %v3280
        %v3313 = vsel %vm3249, %v3167, %v3281
        %v3314 = vsel %vm3250, %v3172, %v3282
        %v3315 = vsel %vm3251, %v3175, %v3283
        %v3316 = vsel %vm3252, %v3180, %v3284
        %v3317 = vsel %vm3253, %v3183, %v3285
        %v3318 = vsel %vm3254, %v3188, %v3286
        %v3319 = vsel %vm3255, %v3191, %v3287
        %v3320 = vsel %vm3256, %v3196, %v3288
        %v3321 = vsel %vm3257, %v3199, %v3289
        %v3322 = vsel %vm3258, %v3204, %v3290
        %v3323 = vsel %vm3259, %v3207, %v3291
        %v3324 = vsel %vm3260, %v3212, %v3292
        %v3325 = vsel %vm3261, %v3215, %v3293
        %v3326 = vsel %vm3262, %v3220, %v3294
        %v3327 = vsel %vm3263, %v3223, %v3295
        %v3328 = vsel %vm3264, %v3228, %v3296
        %v3329 = vsel %vm3265, %v3231, %v3297
        %v3330 = vld [vmem:[%s244] sm:$0xf]
        %v3331 = vld [vmem:[%s244 + $0x4] sm:$0xf]
        %v3332 = vld [vmem:[%s244 + $0x8] sm:$0xf]
        %v3333 = vld [vmem:[%s244 + $0xc] sm:$0xf]
        %v3334 = vld [vmem:[%s244 + $0x10] sm:$0xf]
        %v3335 = vld [vmem:[%s244 + $0x14] sm:$0xf]
        %v3336 = vld [vmem:[%s244 + $0x18] sm:$0xf]
        %v3337 = vld [vmem:[%s244 + $0x1c] sm:$0xf]
        %v3338 = vld [vmem:[%s244 + $0x20] sm:$0xf]
        %v3339 = vld [vmem:[%s244 + $0x24] sm:$0xf]
        %v3340 = vld [vmem:[%s244 + $0x28] sm:$0xf]
        %v3341 = vld [vmem:[%s244 + $0x2c] sm:$0xf]
        %v3342 = vld [vmem:[%s244 + $0x30] sm:$0xf]
        %v3343 = vld [vmem:[%s244 + $0x34] sm:$0xf]
        %v3344 = vld [vmem:[%s244 + $0x38] sm:$0xf]
        %v3345 = vld [vmem:[%s244 + $0x3c] sm:$0xf]
        %v3346 = vld [vmem:[%s244 + $0x40] sm:$0xf]
        %v3347 = vld [vmem:[%s244 + $0x44] sm:$0xf]
        %v3348 = vld [vmem:[%s244 + $0x48] sm:$0xf]
        %v3349 = vld [vmem:[%s244 + $0x4c] sm:$0xf]
        %v3350 = vld [vmem:[%s244 + $0x50] sm:$0xf]
        %v3351 = vld [vmem:[%s244 + $0x54] sm:$0xf]
        %v3352 = vld [vmem:[%s244 + $0x58] sm:$0xf]
        %v3353 = vld [vmem:[%s244 + $0x5c] sm:$0xf]
        %v3354 = vld [vmem:[%s244 + $0x60] sm:$0xf]
        %v3355 = vld [vmem:[%s244 + $0x64] sm:$0xf]
        %v3356 = vld [vmem:[%s244 + $0x68] sm:$0xf]
        %v3357 = vld [vmem:[%s244 + $0x6c] sm:$0xf]
        %v3358 = vld [vmem:[%s244 + $0x70] sm:$0xf]
        %v3359 = vld [vmem:[%s244 + $0x74] sm:$0xf]
        %v3360 = vld [vmem:[%s244 + $0x78] sm:$0xf]
        %v3361 = vld [vmem:[%s244 + $0x7c] sm:$0xf]
        %v3362 = vunpack.c.l.bf16 %v3330
        %v3363 = vunpack.c.l.bf16 %v3331
        %v3364 = vunpack.c.l.bf16 %v3332
        %v3365 = vunpack.c.l.bf16 %v3333
        %v3366 = vunpack.c.l.bf16 %v3334
        %v3367 = vunpack.c.l.bf16 %v3335
        %v3368 = vunpack.c.l.bf16 %v3336
        %v3369 = vunpack.c.l.bf16 %v3337
        %v3370 = vunpack.c.l.bf16 %v3338
        %v3371 = vunpack.c.l.bf16 %v3339
        %v3372 = vunpack.c.l.bf16 %v3340
        %v3373 = vunpack.c.l.bf16 %v3341
        %v3374 = vunpack.c.l.bf16 %v3342
        %v3375 = vunpack.c.l.bf16 %v3343
        %v3376 = vunpack.c.l.bf16 %v3344
        %v3377 = vunpack.c.l.bf16 %v3345
        %v3378 = vunpack.c.l.bf16 %v3346
        %v3379 = vunpack.c.l.bf16 %v3347
        %v3380 = vunpack.c.l.bf16 %v3348
        %v3381 = vunpack.c.l.bf16 %v3349
        %v3382 = vunpack.c.l.bf16 %v3350
        %v3383 = vunpack.c.l.bf16 %v3351
        %v3384 = vunpack.c.l.bf16 %v3352
        %v3385 = vunpack.c.l.bf16 %v3353
        %v3386 = vunpack.c.l.bf16 %v3354
        %v3387 = vunpack.c.l.bf16 %v3355
        %v3388 = vunpack.c.l.bf16 %v3356
        %v3389 = vunpack.c.l.bf16 %v3357
        %v3390 = vunpack.c.l.bf16 %v3358
        %v3391 = vunpack.c.l.bf16 %v3359
        %v3392 = vunpack.c.l.bf16 %v3360
        %v3393 = vunpack.c.l.bf16 %v3361
        %v3394 = vadd.f32 %v3298, %v3362
        %v3395 = vadd.f32 %v3299, %v3363
        %v3396 = vadd.f32 %v3300, %v3364
        %v3397 = vadd.f32 %v3301, %v3365
        %v3398 = vadd.f32 %v3302, %v3366
        %v3399 = vadd.f32 %v3303, %v3367
        %v3400 = vadd.f32 %v3304, %v3368
        %v3401 = vadd.f32 %v3305, %v3369
        %v3402 = vadd.f32 %v3306, %v3370
        %v3403 = vadd.f32 %v3307, %v3371
        %v3404 = vadd.f32 %v3308, %v3372
        %v3405 = vadd.f32 %v3309, %v3373
        %v3406 = vadd.f32 %v3310, %v3374
        %v3407 = vadd.f32 %v3311, %v3375
        %v3408 = vadd.f32 %v3312, %v3376
        %v3409 = vadd.f32 %v3313, %v3377
        %v3410 = vadd.f32 %v3314, %v3378
        %v3411 = vadd.f32 %v3315, %v3379
        %v3412 = vadd.f32 %v3316, %v3380
        %v3413 = vadd.f32 %v3317, %v3381
        %v3414 = vadd.f32 %v3318, %v3382
        %v3415 = vadd.f32 %v3319, %v3383
        %v3416 = vadd.f32 %v3320, %v3384
        %v3417 = vadd.f32 %v3321, %v3385
        %v3418 = vadd.f32 %v3322, %v3386
        %v3419 = vadd.f32 %v3323, %v3387
        %v3420 = vadd.f32 %v3324, %v3388
        %v3421 = vadd.f32 %v3325, %v3389
        %v3422 = vadd.f32 %v3326, %v3390
        %v3423 = vadd.f32 %v3327, %v3391
        %v3424 = vadd.f32 %v3328, %v3392
        %v3425 = vadd.f32 %v3329, %v3393
        %3426 = vst [vmem:[%s230] sm:$0xff] %v3394
        %3427 = vst [vmem:[%s230 + $0x8] sm:$0xff] %v3395
        %3428 = vst [vmem:[%s230 + $0x10] sm:$0xff] %v3396
        %3429 = vst [vmem:[%s230 + $0x18] sm:$0xff] %v3397
        %3430 = vst [vmem:[%s230 + $0x20] sm:$0xff] %v3398
        %3431 = vst [vmem:[%s230 + $0x28] sm:$0xff] %v3399
        %3432 = vst [vmem:[%s230 + $0x30] sm:$0xff] %v3400
        %3433 = vst [vmem:[%s230 + $0x38] sm:$0xff] %v3401
        %3434 = vst [vmem:[%s230 + $0x40] sm:$0xff] %v3402
        %3435 = vst [vmem:[%s230 + $0x48] sm:$0xff] %v3403
        %3436 = vst [vmem:[%s230 + $0x50] sm:$0xff] %v3404
        %3437 = vst [vmem:[%s230 + $0x58] sm:$0xff] %v3405
        %3438 = vst [vmem:[%s230 + $0x60] sm:$0xff] %v3406
        %3439 = vst [vmem:[%s230 + $0x68] sm:$0xff] %v3407
        %3440 = vst [vmem:[%s230 + $0x70] sm:$0xff] %v3408
        %3441 = vst [vmem:[%s230 + $0x78] sm:$0xff] %v3409
        %3442 = vst [vmem:[%s230 + $0x80] sm:$0xff] %v3410
        %3443 = vst [vmem:[%s230 + $0x88] sm:$0xff] %v3411
        %3444 = vst [vmem:[%s230 + $0x90] sm:$0xff] %v3412
        %3445 = vst [vmem:[%s230 + $0x98] sm:$0xff] %v3413
        %3446 = vst [vmem:[%s230 + $0xa0] sm:$0xff] %v3414
        %3447 = vst [vmem:[%s230 + $0xa8] sm:$0xff] %v3415
        %3448 = vst [vmem:[%s230 + $0xb0] sm:$0xff] %v3416
        %3449 = vst [vmem:[%s230 + $0xb8] sm:$0xff] %v3417
        %3450 = vst [vmem:[%s230 + $0xc0] sm:$0xff] %v3418
        %3451 = vst [vmem:[%s230 + $0xc8] sm:$0xff] %v3419
        %3452 = vst [vmem:[%s230 + $0xd0] sm:$0xff] %v3420
        %3453 = vst [vmem:[%s230 + $0xd8] sm:$0xff] %v3421
        %3454 = vst [vmem:[%s230 + $0xe0] sm:$0xff] %v3422
        %3455 = vst [vmem:[%s230 + $0xe8] sm:$0xff] %v3423
        %3456 = vst [vmem:[%s230 + $0xf0] sm:$0xff] %v3424
        %3457 = vst [vmem:[%s230 + $0xf8] sm:$0xff] %v3425
        %s3458 = sand.u32 %s136, 1
        %s3459 = scalar_lea.sflag [#allocation3], %s3458
        %s3460 = sand.u32 %s136, 1
        %s3461 = smul.addr %s3460, 256
        %s3462 = scalar_lea.vmem [#allocation2], %s3461
        // Predicated region
        $region37: #{hin_conv_block.5} parent=35 // pred_check
          %p3463 = pneg %p146
        $region38: #{hin_conv_block.5} parent=35 // pred_check_branch
          %3465 = sbr.rel (%p3463) target = $region40
        $region39: #{hin_conv_block.5} parent=35 // pred_region
          %s3466 = smul.u32 32, %s23
          %s3468 = ssub.s32 4096, 4096
          %3469 = vsyncadd %s3459, %s3468
          %s3470 = smul.addr %s22, 32
          %s3471 = sadd.s32 %s3466, %s3470
          %s3472 = smul.addr %s3471, 128
          %s3473 = scalar_lea.hbm %s4, %s3472
          %s3474 = sshll.u32 %s3462, 4
          %s3475 = int_to_ptr.vmem [resolvable:$true] %s3474
          %3480 = dma.vmem_to_hbm [thread:$0]  %s3475, 4096, %s3473, %s3459, 128, 128, 8
        $region40: #{hin_conv_block.5} parent=35 // pred_fallthru
          _
      $region36: #{hin_conv_block.5} parent=5 // pred_fallthru
        _
      %p3481 = scmp.le.s32.totalorder 2, %s13
      // Predicated region
      $region41: #{hin_conv_block.5} parent=5 // pred_check
        %p3482 = pneg %p3481
      $region42: #{hin_conv_block.5} parent=5 // pred_check_branch
        %3484 = sbr.rel (%p3482) target = $region44
      $region43: #{hin_conv_block.5} parent=5 // pred_region
        %s3485 = ssub.s32 %s13, 2
        // Predicated region
        $region45: #{hin_conv_block.5} parent=43 // pred_check
          %p3486 = pneg %p152
        $region46: #{hin_conv_block.5} parent=43 // pred_check_branch
          %3488 = sbr.rel (%p3486) target = $region48
        $region47: #{hin_conv_block.5} parent=43 // pred_region
          %s3489 = sand.u32 %s137, 1
          %s3490 = scalar_lea.sflag [#allocation3], %s3489
          %s3491 = sand.u32 %s137, 1
          %s3492 = smul.addr %s3491, 256
          %s3493 = scalar_lea.vmem [#allocation2], %s3492
          %3494 = dma.done %s3490, 4096
        $region48: #{hin_conv_block.5} parent=43 // pred_fallthru
          _
      $region44: #{hin_conv_block.5} parent=5 // pred_fallthru
        _
    $region6: #{hin_conv_block.5} parent=1 // loop_footer
      %s17 = sadd.s32 1, %s13
    $region7: #{hin_conv_block.5} parent=1 // loop_footer_branch
      %12 = sbr.rel target = $region3
    $region8: #{hin_conv_block.5} parent=1 // loop_exit
      _
    %3495 = vsyncpa [#allocation3], 1
    %s3496 = scalar_lea.sflag [#allocation3], 1
    %3497 = vsyncpa %s3496, 1

</llo_original>
